<compile_context>
chip_gen: v5e
topology: v5e:2x2
jax: 0.10.0
libtpu: 0.0.40
codegen_flags: <defaults>
</compile_context>

<pallas_src>
import jax
import jax.numpy as jnp
from jax.experimental import pallas as pl
from jax.experimental.pallas import tpu as pltpu


LANE = 128
MXU_DTYPE = jnp.bfloat16          # MXU operand dtype (accumulation stays f32)
ACT_DTYPE = jnp.bfloat16          # dtype of HBM intermediates y1 / y2
_VMEM_LIMIT = 32 * 1024 * 1024    # explicit, safe on v5e / v6e / v7x


def _round_up(x, m):
    return (x + m - 1) // m * m


# ----------------------------------------------------------------------------
# shared helper: 3x3 conv as 9 shifted MXU matmuls over a zero-padded VMEM tile
# ----------------------------------------------------------------------------
def _conv3x3_taps(load_tap, w_ref, H, W):
    """load_tap(ky, kx) -> (H, W, Cin) tile (MXU_DTYPE).  Returns (H*W, Cout) f32."""
    c_out = w_ref.shape[-1]
    acc = jnp.zeros((H * W, c_out), jnp.float32)
    for t in range(9):                              # static 9-tap unroll (LLO-visible)
        ky, kx = divmod(t, 3)
        xt = load_tap(ky, kx)
        xt = xt.reshape(H * W, xt.shape[-1])
        acc = acc + jnp.dot(xt, w_ref[t], preferred_element_type=jnp.float32)
    return acc


def _store_stats(st_ref, acc):
    # per-image partial sums for BatchNorm (row 0 = sum, row 1 = sum of squares), f32
    st_ref[0, 0:1, :] = jnp.sum(acc, axis=0, keepdims=True)
    st_ref[0, 1:2, :] = jnp.sum(acc * acc, axis=0, keepdims=True)


# ----------------------------------------------------------------------------
# Kernel 1: conv1 (input pre-padded spatially in the wrapper) + BN partial sums
# ----------------------------------------------------------------------------
def _make_conv1_kernel(H, W):
    def kernel(xp_ref, w_ref, y_ref, st_ref):
        # xp_ref block: (1, H+2, W+2, Cin_p) bf16
        def load_tap(ky, kx):
            return xp_ref[0, ky:ky + H, kx:kx + W, :]
        acc = _conv3x3_taps(load_tap, w_ref, H, W)
        y_ref[0] = acc.reshape(H, W, acc.shape[-1]).astype(y_ref.dtype)
        _store_stats(st_ref, acc)
    return kernel


# ----------------------------------------------------------------------------
# Kernel 2: fused BN1 + ReLU (on the loaded y1 tile, f32 math) -> in-VMEM zero pad ->
#           conv2 + BN partial sums.  Padding is applied AFTER the activation, matching
#           PyTorch conv2's zero padding of relu(bn1(conv1(x))).
# ----------------------------------------------------------------------------
def _make_conv2_kernel(H, W):
    def kernel(y1_ref, sc_ref, sh_ref, w_ref, y2_ref, st_ref, pad_ref):
        a1 = jnp.maximum(
            y1_ref[0].astype(jnp.float32) * sc_ref[...] + sh_ref[...], 0.0)  # (H,W,C) f32
        # zero every step (scratch is per-core; batch axis may be core-sharded on v7x)
        pad_ref[...] = jnp.zeros(pad_ref.shape, pad_ref.dtype)
        pad_ref[1:H + 1, 1:W + 1, :] = a1.astype(pad_ref.dtype)

        def load_tap(ky, kx):
            return pad_ref[ky:ky + H, kx:kx + W, :]
        acc = _conv3x3_taps(load_tap, w_ref, H, W)
        y2_ref[0] = acc.reshape(H, W, acc.shape[-1]).astype(y2_ref.dtype)
        _store_stats(st_ref, acc)
    return kernel


# ----------------------------------------------------------------------------
# Kernel 3: fused BN2 + ReLU + 2x2/2 max-pool.  Pool-H via a leading-dim pair
# reduction; pool-W via static 2-wide sublane slices, stored as 128-lane chunks
# into a lane-merged pooled output (reshaped back outside for free).
# ----------------------------------------------------------------------------
def _make_bn_relu_pool_kernel(H, W, C):
    H2, W2 = H // 2, W // 2

    def kernel(y_ref, sc_ref, sh_ref, a_ref, p_ref):
        a = jnp.maximum(
            y_ref[0].astype(jnp.float32) * sc_ref[...] + sh_ref[...], 0.0)   # (H,W,C) f32
        a_ref[0] = a
        ar = a.reshape(H2, 2, W, C)                                      # split leading dim only
        rowmax = jnp.maximum(ar[:, 0], ar[:, 1])                         # (H2, W, C)
        for j in range(W2):
            pair = rowmax[:, 2 * j:2 * j + 2, :]                         # (H2, 2, C)
            p_ref[0, :, j * C:(j + 1) * C] = jnp.max(pair, axis=1)       # lane-dense store
    return kernel


# ----------------------------------------------------------------------------
# pallas_call wrappers
# ----------------------------------------------------------------------------
def _conv1_pass(xp, w, H, W):
    N, _, _, cin_p = xp.shape
    cout_p = w.shape[-1]
    return pl.pallas_call(
        _make_conv1_kernel(H, W),
        out_shape=(jax.ShapeDtypeStruct((N, H, W, cout_p), ACT_DTYPE),
                   jax.ShapeDtypeStruct((N, 2, cout_p), jnp.float32)),
        grid=(N,),
        in_specs=[pl.BlockSpec((1, H + 2, W + 2, cin_p), lambda n: (n, 0, 0, 0)),
                  pl.BlockSpec((9, cin_p, cout_p), lambda n: (0, 0, 0))],
        out_specs=(pl.BlockSpec((1, H, W, cout_p), lambda n: (n, 0, 0, 0)),
                   pl.BlockSpec((1, 2, cout_p), lambda n: (n, 0, 0))),
        compiler_params=pltpu.CompilerParams(
            dimension_semantics=("parallel",),
            vmem_limit_bytes=_VMEM_LIMIT),
    )(xp, w)


def _conv2_pass(y1, scale, shift, w, H, W):
    N = y1.shape[0]
    c_in = w.shape[1]
    cout_p = w.shape[-1]
    return pl.pallas_call(
        _make_conv2_kernel(H, W),
        out_shape=(jax.ShapeDtypeStruct((N, H, W, cout_p), ACT_DTYPE),
                   jax.ShapeDtypeStruct((N, 2, cout_p), jnp.float32)),
        grid=(N,),
        in_specs=[pl.BlockSpec((1, H, W, c_in), lambda n: (n, 0, 0, 0)),
                  pl.BlockSpec((1, c_in), lambda n: (0, 0)),
                  pl.BlockSpec((1, c_in), lambda n: (0, 0)),
                  pl.BlockSpec((9, c_in, cout_p), lambda n: (0, 0, 0))],
        out_specs=(pl.BlockSpec((1, H, W, cout_p), lambda n: (n, 0, 0, 0)),
                   pl.BlockSpec((1, 2, cout_p), lambda n: (n, 0, 0))),
        scratch_shapes=[pltpu.VMEM((H + 2, W + 2, c_in), MXU_DTYPE)],
        compiler_params=pltpu.CompilerParams(
            dimension_semantics=("parallel",),
            vmem_limit_bytes=_VMEM_LIMIT),
    )(y1, scale, shift, w)


def _bn_relu_pool_pass(y2, scale, shift):
    N, H, W, C = y2.shape
    H2, W2 = H // 2, W // 2
    a, p = pl.pallas_call(
        _make_bn_relu_pool_kernel(H, W, C),
        out_shape=(jax.ShapeDtypeStruct((N, H, W, C), jnp.float32),
                   jax.ShapeDtypeStruct((N, H2, W2 * C), jnp.float32)),
        grid=(N,),
        in_specs=[pl.BlockSpec((1, H, W, C), lambda n: (n, 0, 0, 0)),
                  pl.BlockSpec((1, C), lambda n: (0, 0)),
                  pl.BlockSpec((1, C), lambda n: (0, 0))],
        out_specs=(pl.BlockSpec((1, H, W, C), lambda n: (n, 0, 0, 0)),
                   pl.BlockSpec((1, H2, W2 * C), lambda n: (n, 0, 0))),
        compiler_params=pltpu.CompilerParams(
            dimension_semantics=("parallel",),
            vmem_limit_bytes=_VMEM_LIMIT),
    )(y2, scale, shift)
    return a, p.reshape(N, H2, W2, C)   # free row-major reshape in XLA


# ----------------------------------------------------------------------------
# Glue: channel padding, weight prep, BN finalize, layer composition.
# ----------------------------------------------------------------------------
def _pad_last(x, target):
    pad = target - x.shape[-1]
    if pad == 0:
        return x
    return jnp.pad(x, [(0, 0)] * (x.ndim - 1) + [(0, pad)])


def _prep_weight(w_oihw, cin_p, cout_p):
    co, ci, _, _ = w_oihw.shape
    w = jnp.transpose(w_oihw, (2, 3, 1, 0))                       # (3,3,Ci,Co), taps (ky,kx)
    w = jnp.pad(w, ((0, 0), (0, 0), (0, cin_p - ci), (0, cout_p - co)))
    return w.reshape(9, cin_p, cout_p).astype(MXU_DTYPE)


def _bn_fold(stats, gamma, beta, count, eps):
    s = jnp.sum(stats[:, 0, :], axis=0)
    ss = jnp.sum(stats[:, 1, :], axis=0)
    mean = s / count
    var = jnp.maximum(ss / count - mean * mean, 0.0)   # clamp: E[x^2]-E[x]^2 can go negative
    scale = gamma / jnp.sqrt(var + eps)
    shift = beta - mean * scale
    return scale.reshape(1, -1), shift.reshape(1, -1)


def encoder_block(x_nchw, params, eps=1e-5):
    # TODO(synk): BatchNorm running_mean/running_var buffer updates are not materialized
    # (the PyTorch forward does not return them).
    # TODO(synk): each grid step holds one full (H+2, W+2, C) image in VMEM; very large
    # spatial sizes would need an H-tiled (halo'd row-slab) variant with manual DMA.
    N, Cin, H, W = x_nchw.shape
    assert H % 2 == 0 and W % 2 == 0, "MaxPool2d(2,2) path assumes even H and W"
    Cout = params["w1"].shape[0]
    cin_p = _round_up(Cin, LANE)
    cout_p = _round_up(Cout, LANE)

    # NCHW -> NHWC, pad channels to a lane multiple, zero-pad spatially for conv1.
    x = jnp.transpose(x_nchw, (0, 2, 3, 1)).astype(jnp.float32)
    x = _pad_last(x, cin_p)
    xp = jnp.pad(x, ((0, 0), (1, 1), (1, 1), (0, 0))).astype(MXU_DTYPE)

    w1 = _prep_weight(params["w1"], cin_p, cout_p)
    w2 = _prep_weight(params["w2"], cout_p, cout_p)
    g1 = _pad_last(params["g1"].astype(jnp.float32), cout_p)
    be1 = _pad_last(params["be1"].astype(jnp.float32), cout_p)
    g2 = _pad_last(params["g2"].astype(jnp.float32), cout_p)
    be2 = _pad_last(params["be2"].astype(jnp.float32), cout_p)
    # NOTE: conv biases b1/b2 cancel exactly under training-mode BatchNorm
    # (BN subtracts the batch mean), so the kernels do not add them.

    cnt = jnp.float32(N * H * W)

    y1, st1 = _conv1_pass(xp, w1, H, W)
    sc1, sh1 = _bn_fold(st1, g1, be1, cnt, eps)

    y2, st2 = _conv2_pass(y1, sc1, sh1, w2, H, W)
    sc2, sh2 = _bn_fold(st2, g2, be2, cnt, eps)

    a2, p = _bn_relu_pool_pass(y2, sc2, sh2)

    a2 = jnp.transpose(a2[..., :Cout], (0, 3, 1, 2))   # back to NCHW
    p = jnp.transpose(p[..., :Cout], (0, 3, 1, 2))
    return a2, p


# ----------------------------------------------------------------------------
# Pure-JAX reference (matches the PyTorch module in training mode, f32).
# ----------------------------------------------------------------------------
def reference(x_nchw, params, eps=1e-5):
    def conv(x, w, b):
        y = jax.lax.conv_general_dilated(
            x, w, (1, 1), ((1, 1), (1, 1)),
            dimension_numbers=("NCHW", "OIHW", "NCHW"))
        return y + b.reshape(1, -1, 1, 1)

    def bn(x, g, be):
        mean = x.mean(axis=(0, 2, 3), keepdims=True)
        var = x.var(axis=(0, 2, 3), keepdims=True)
        return (x - mean) / jnp.sqrt(var + eps) * g.reshape(1, -1, 1, 1) + be.reshape(1, -1, 1, 1)

    y = jax.nn.relu(bn(conv(x_nchw, params["w1"], params["b1"]), params["g1"], params["be1"]))
    y = jax.nn.relu(bn(conv(y, params["w2"], params["b2"]), params["g2"], params["be2"]))
    p = jax.lax.reduce_window(y, -jnp.inf, jax.lax.max, (1, 1, 2, 2), (1, 1, 2, 2), "VALID")
    return y, p


if __name__ == "__main__":
    N, Cin, Cout, H, W = 2, 4, 8, 16, 16
    key = jax.random.PRNGKey(0)
    ks = jax.random.split(key, 9)
    x = jax.random.normal(ks[0], (N, Cin, H, W), dtype=jnp.float32)
    params = {
        "w1": 0.1 * jax.random.normal(ks[1], (Cout, Cin, 3, 3), dtype=jnp.float32),
        "b1": 0.1 * jax.random.normal(ks[2], (Cout,), dtype=jnp.float32),
        "g1": 1.0 + 0.1 * jax.random.normal(ks[3], (Cout,), dtype=jnp.float32),
        "be1": 0.1 * jax.random.normal(ks[4], (Cout,), dtype=jnp.float32),
        "w2": 0.1 * jax.random.normal(ks[5], (Cout, Cout, 3, 3), dtype=jnp.float32),
        "b2": 0.1 * jax.random.normal(ks[6], (Cout,), dtype=jnp.float32),
        "g2": 1.0 + 0.1 * jax.random.normal(ks[7], (Cout,), dtype=jnp.float32),
        "be2": 0.1 * jax.random.normal(ks[8], (Cout,), dtype=jnp.float32),
    }

    x_out, p_out = jax.jit(encoder_block)(x, params)
    jax.block_until_ready((x_out, p_out))

    x_ref, p_ref = reference(x, params)
    assert x_out.shape == (N, Cout, H, W) and p_out.shape == (N, Cout, H // 2, W // 2)
    # bf16 MXU operands / bf16 intermediates (f32 accumulation and BN math) vs. a
    # pure-f32 reference -> loosened tolerance.
    assert jnp.allclose(x_out, x_ref, atol=8e-2, rtol=8e-2), \
        float(jnp.max(jnp.abs(x_out - x_ref)))
    assert jnp.allclose(p_out, p_ref, atol=8e-2, rtol=8e-2), \
        float(jnp.max(jnp.abs(p_out - p_ref)))
    print("KERNEL_OK")
</pallas_src>

<mosaic_0001>
module attributes {stable_mosaic.version = 11 : i64} {
  func.func @kernel(%arg0: i32, %arg1: memref<1x18x18x128xbf16, #tpu.memory_space<vmem>>, %arg2: memref<9x128x128xbf16, #tpu.memory_space<vmem>>, %arg3: memref<1x16x16x128xbf16, #tpu.memory_space<vmem>>, %arg4: memref<1x2x128xf32, #tpu.memory_space<vmem>>) attributes {dimension_semantics = [#tpu.dimension_semantics<parallel>], iteration_bounds = array<i64: 2>, scalar_prefetch = 0 : i64, scratch_operands = 0 : i64, tpu.core_type = #tpu.core_type<tc>, window_params = [{transform_indices = @transform_0, window_bounds = array<i64: 1, 18, 18, 128>}, {pipeline_mode = #tpu.pipeline_mode<synchronous>, transform_indices = @transform_1, window_bounds = array<i64: 9, 128, 128>}, {transform_indices = @transform_2, window_bounds = array<i64: 1, 16, 16, 128>}, {transform_indices = @transform_3, window_bounds = array<i64: 1, 2, 128>}]} {
    %cst = arith.constant 0.000000e+00 : f32
    %0 = vector.broadcast %cst : f32 to vector<256x128xf32>
    %c0 = arith.constant 0 : index
    %c0_0 = arith.constant 0 : index
    %c0_1 = arith.constant 0 : index
    %c0_2 = arith.constant 0 : index
    %1 = vector.load %arg1[%c0, %c0_0, %c0_1, %c0_2] : memref<1x18x18x128xbf16, #tpu.memory_space<vmem>>, vector<1x16x16x128xbf16>
    %2 = vector.shape_cast %1 : vector<1x16x16x128xbf16> to vector<16x16x128xbf16>
    %3 = vector.shape_cast %2 : vector<16x16x128xbf16> to vector<256x128xbf16>
    %c0_3 = arith.constant 0 : index
    %c0_4 = arith.constant 0 : index
    %c0_5 = arith.constant 0 : index
    %4 = vector.load %arg2[%c0_3, %c0_4, %c0_5] : memref<9x128x128xbf16, #tpu.memory_space<vmem>>, vector<1x128x128xbf16>
    %5 = vector.shape_cast %4 : vector<1x128x128xbf16> to vector<128x128xbf16>
    %cst_6 = arith.constant dense<0.000000e+00> : vector<256x128xf32>
    %6 = tpu.matmul %3, %5, %cst_6 {dimension_numbers = #tpu.dot_dimension_numbers<[1], [0], [0], [1], [0, 0, 1, 1], [], []>} : vector<256x128xbf16>, vector<128x128xbf16>, vector<256x128xf32> -> vector<256x128xf32>
    %7 = arith.addf %0, %6 : vector<256x128xf32>
    %c0_7 = arith.constant 0 : index
    %c0_8 = arith.constant 0 : index
    %c1 = arith.constant 1 : index
    %c0_9 = arith.constant 0 : index
    %8 = vector.load %arg1[%c0_7, %c0_8, %c1, %c0_9] : memref<1x18x18x128xbf16, #tpu.memory_space<vmem>>, vector<1x16x16x128xbf16>
    %9 = vector.shape_cast %8 : vector<1x16x16x128xbf16> to vector<16x16x128xbf16>
    %10 = vector.shape_cast %9 : vector<16x16x128xbf16> to vector<256x128xbf16>
    %c1_10 = arith.constant 1 : index
    %c0_11 = arith.constant 0 : index
    %c0_12 = arith.constant 0 : index
    %11 = vector.load %arg2[%c1_10, %c0_11, %c0_12] : memref<9x128x128xbf16, #tpu.memory_space<vmem>>, vector<1x128x128xbf16>
    %12 = vector.shape_cast %11 : vector<1x128x128xbf16> to vector<128x128xbf16>
    %cst_13 = arith.constant dense<0.000000e+00> : vector<256x128xf32>
    %13 = tpu.matmul %10, %12, %cst_13 {dimension_numbers = #tpu.dot_dimension_numbers<[1], [0], [0], [1], [0, 0, 1, 1], [], []>} : vector<256x128xbf16>, vector<128x128xbf16>, vector<256x128xf32> -> vector<256x128xf32>
    %14 = arith.addf %7, %13 : vector<256x128xf32>
    %c0_14 = arith.constant 0 : index
    %c0_15 = arith.constant 0 : index
    %c2 = arith.constant 2 : index
    %c0_16 = arith.constant 0 : index
    %15 = vector.load %arg1[%c0_14, %c0_15, %c2, %c0_16] : memref<1x18x18x128xbf16, #tpu.memory_space<vmem>>, vector<1x16x16x128xbf16>
    %16 = vector.shape_cast %15 : vector<1x16x16x128xbf16> to vector<16x16x128xbf16>
    %17 = vector.shape_cast %16 : vector<16x16x128xbf16> to vector<256x128xbf16>
    %c2_17 = arith.constant 2 : index
    %c0_18 = arith.constant 0 : index
    %c0_19 = arith.constant 0 : index
    %18 = vector.load %arg2[%c2_17, %c0_18, %c0_19] : memref<9x128x128xbf16, #tpu.memory_space<vmem>>, vector<1x128x128xbf16>
    %19 = vector.shape_cast %18 : vector<1x128x128xbf16> to vector<128x128xbf16>
    %cst_20 = arith.constant dense<0.000000e+00> : vector<256x128xf32>
    %20 = tpu.matmul %17, %19, %cst_20 {dimension_numbers = #tpu.dot_dimension_numbers<[1], [0], [0], [1], [0, 0, 1, 1], [], []>} : vector<256x128xbf16>, vector<128x128xbf16>, vector<256x128xf32> -> vector<256x128xf32>
    %21 = arith.addf %14, %20 : vector<256x128xf32>
    %c0_21 = arith.constant 0 : index
    %c1_22 = arith.constant 1 : index
    %c0_23 = arith.constant 0 : index
    %c0_24 = arith.constant 0 : index
    %22 = vector.load %arg1[%c0_21, %c1_22, %c0_23, %c0_24] : memref<1x18x18x128xbf16, #tpu.memory_space<vmem>>, vector<1x16x16x128xbf16>
    %23 = vector.shape_cast %22 : vector<1x16x16x128xbf16> to vector<16x16x128xbf16>
    %24 = vector.shape_cast %23 : vector<16x16x128xbf16> to vector<256x128xbf16>
    %c3 = arith.constant 3 : index
    %c0_25 = arith.constant 0 : index
    %c0_26 = arith.constant 0 : index
    %25 = vector.load %arg2[%c3, %c0_25, %c0_26] : memref<9x128x128xbf16, #tpu.memory_space<vmem>>, vector<1x128x128xbf16>
    %26 = vector.shape_cast %25 : vector<1x128x128xbf16> to vector<128x128xbf16>
    %cst_27 = arith.constant dense<0.000000e+00> : vector<256x128xf32>
    %27 = tpu.matmul %24, %26, %cst_27 {dimension_numbers = #tpu.dot_dimension_numbers<[1], [0], [0], [1], [0, 0, 1, 1], [], []>} : vector<256x128xbf16>, vector<128x128xbf16>, vector<256x128xf32> -> vector<256x128xf32>
    %28 = arith.addf %21, %27 : vector<256x128xf32>
    %c0_28 = arith.constant 0 : index
    %c1_29 = arith.constant 1 : index
    %c1_30 = arith.constant 1 : index
    %c0_31 = arith.constant 0 : index
    %29 = vector.load %arg1[%c0_28, %c1_29, %c1_30, %c0_31] : memref<1x18x18x128xbf16, #tpu.memory_space<vmem>>, vector<1x16x16x128xbf16>
    %30 = vector.shape_cast %29 : vector<1x16x16x128xbf16> to vector<16x16x128xbf16>
    %31 = vector.shape_cast %30 : vector<16x16x128xbf16> to vector<256x128xbf16>
    %c4 = arith.constant 4 : index
    %c0_32 = arith.constant 0 : index
    %c0_33 = arith.constant 0 : index
    %32 = vector.load %arg2[%c4, %c0_32, %c0_33] : memref<9x128x128xbf16, #tpu.memory_space<vmem>>, vector<1x128x128xbf16>
    %33 = vector.shape_cast %32 : vector<1x128x128xbf16> to vector<128x128xbf16>
    %cst_34 = arith.constant dense<0.000000e+00> : vector<256x128xf32>
    %34 = tpu.matmul %31, %33, %cst_34 {dimension_numbers = #tpu.dot_dimension_numbers<[1], [0], [0], [1], [0, 0, 1, 1], [], []>} : vector<256x128xbf16>, vector<128x128xbf16>, vector<256x128xf32> -> vector<256x128xf32>
    %35 = arith.addf %28, %34 : vector<256x128xf32>
    %c0_35 = arith.constant 0 : index
    %c1_36 = arith.constant 1 : index
    %c2_37 = arith.constant 2 : index
    %c0_38 = arith.constant 0 : index
    %36 = vector.load %arg1[%c0_35, %c1_36, %c2_37, %c0_38] : memref<1x18x18x128xbf16, #tpu.memory_space<vmem>>, vector<1x16x16x128xbf16>
    %37 = vector.shape_cast %36 : vector<1x16x16x128xbf16> to vector<16x16x128xbf16>
    %38 = vector.shape_cast %37 : vector<16x16x128xbf16> to vector<256x128xbf16>
    %c5 = arith.constant 5 : index
    %c0_39 = arith.constant 0 : index
    %c0_40 = arith.constant 0 : index
    %39 = vector.load %arg2[%c5, %c0_39, %c0_40] : memref<9x128x128xbf16, #tpu.memory_space<vmem>>, vector<1x128x128xbf16>
    %40 = vector.shape_cast %39 : vector<1x128x128xbf16> to vector<128x128xbf16>
    %cst_41 = arith.constant dense<0.000000e+00> : vector<256x128xf32>
    %41 = tpu.matmul %38, %40, %cst_41 {dimension_numbers = #tpu.dot_dimension_numbers<[1], [0], [0], [1], [0, 0, 1, 1], [], []>} : vector<256x128xbf16>, vector<128x128xbf16>, vector<256x128xf32> -> vector<256x128xf32>
    %42 = arith.addf %35, %41 : vector<256x128xf32>
    %c0_42 = arith.constant 0 : index
    %c2_43 = arith.constant 2 : index
    %c0_44 = arith.constant 0 : index
    %c0_45 = arith.constant 0 : index
    %43 = vector.load %arg1[%c0_42, %c2_43, %c0_44, %c0_45] : memref<1x18x18x128xbf16, #tpu.memory_space<vmem>>, vector<1x16x16x128xbf16>
    %44 = vector.shape_cast %43 : vector<1x16x16x128xbf16> to vector<16x16x128xbf16>
    %45 = vector.shape_cast %44 : vector<16x16x128xbf16> to vector<256x128xbf16>
    %c6 = arith.constant 6 : index
    %c0_46 = arith.constant 0 : index
    %c0_47 = arith.constant 0 : index
    %46 = vector.load %arg2[%c6, %c0_46, %c0_47] : memref<9x128x128xbf16, #tpu.memory_space<vmem>>, vector<1x128x128xbf16>
    %47 = vector.shape_cast %46 : vector<1x128x128xbf16> to vector<128x128xbf16>
    %cst_48 = arith.constant dense<0.000000e+00> : vector<256x128xf32>
    %48 = tpu.matmul %45, %47, %cst_48 {dimension_numbers = #tpu.dot_dimension_numbers<[1], [0], [0], [1], [0, 0, 1, 1], [], []>} : vector<256x128xbf16>, vector<128x128xbf16>, vector<256x128xf32> -> vector<256x128xf32>
    %49 = arith.addf %42, %48 : vector<256x128xf32>
    %c0_49 = arith.constant 0 : index
    %c2_50 = arith.constant 2 : index
    %c1_51 = arith.constant 1 : index
    %c0_52 = arith.constant 0 : index
    %50 = vector.load %arg1[%c0_49, %c2_50, %c1_51, %c0_52] : memref<1x18x18x128xbf16, #tpu.memory_space<vmem>>, vector<1x16x16x128xbf16>
    %51 = vector.shape_cast %50 : vector<1x16x16x128xbf16> to vector<16x16x128xbf16>
    %52 = vector.shape_cast %51 : vector<16x16x128xbf16> to vector<256x128xbf16>
    %c7 = arith.constant 7 : index
    %c0_53 = arith.constant 0 : index
    %c0_54 = arith.constant 0 : index
    %53 = vector.load %arg2[%c7, %c0_53, %c0_54] : memref<9x128x128xbf16, #tpu.memory_space<vmem>>, vector<1x128x128xbf16>
    %54 = vector.shape_cast %53 : vector<1x128x128xbf16> to vector<128x128xbf16>
    %cst_55 = arith.constant dense<0.000000e+00> : vector<256x128xf32>
    %55 = tpu.matmul %52, %54, %cst_55 {dimension_numbers = #tpu.dot_dimension_numbers<[1], [0], [0], [1], [0, 0, 1, 1], [], []>} : vector<256x128xbf16>, vector<128x128xbf16>, vector<256x128xf32> -> vector<256x128xf32>
    %56 = arith.addf %49, %55 : vector<256x128xf32>
    %c0_56 = arith.constant 0 : index
    %c2_57 = arith.constant 2 : index
    %c2_58 = arith.constant 2 : index
    %c0_59 = arith.constant 0 : index
    %57 = vector.load %arg1[%c0_56, %c2_57, %c2_58, %c0_59] : memref<1x18x18x128xbf16, #tpu.memory_space<vmem>>, vector<1x16x16x128xbf16>
    %58 = vector.shape_cast %57 : vector<1x16x16x128xbf16> to vector<16x16x128xbf16>
    %59 = vector.shape_cast %58 : vector<16x16x128xbf16> to vector<256x128xbf16>
    %c8 = arith.constant 8 : index
    %c0_60 = arith.constant 0 : index
    %c0_61 = arith.constant 0 : index
    %60 = vector.load %arg2[%c8, %c0_60, %c0_61] : memref<9x128x128xbf16, #tpu.memory_space<vmem>>, vector<1x128x128xbf16>
    %61 = vector.shape_cast %60 : vector<1x128x128xbf16> to vector<128x128xbf16>
    %cst_62 = arith.constant dense<0.000000e+00> : vector<256x128xf32>
    %62 = tpu.matmul %59, %61, %cst_62 {dimension_numbers = #tpu.dot_dimension_numbers<[1], [0], [0], [1], [0, 0, 1, 1], [], []>} : vector<256x128xbf16>, vector<128x128xbf16>, vector<256x128xf32> -> vector<256x128xf32>
    %63 = arith.addf %56, %62 : vector<256x128xf32>
    %64 = vector.shape_cast %63 : vector<256x128xf32> to vector<16x16x128xf32>
    %65 = arith.truncf %64 : vector<16x16x128xf32> to vector<16x16x128xbf16>
    %c0_63 = arith.constant 0 : index
    %c0_64 = arith.constant 0 : index
    %c0_65 = arith.constant 0 : index
    %c0_66 = arith.constant 0 : index
    %66 = vector.load %arg3[%c0_63, %c0_64, %c0_65, %c0_66] : memref<1x16x16x128xbf16, #tpu.memory_space<vmem>>, vector<1x16x16x128xbf16>
    %67 = vector.shape_cast %66 : vector<1x16x16x128xbf16> to vector<16x16x128xbf16>
    %68 = vector.shape_cast %65 : vector<16x16x128xbf16> to vector<1x16x16x128xbf16>
    tpu.vector_store %arg3[%c0_63, %c0_64, %c0_65, %c0_66], %68 {strides = array<i32>} : memref<1x16x16x128xbf16, #tpu.memory_space<vmem>>, vector<1x16x16x128xbf16>,
    %cst_67 = arith.constant dense<0.000000e+00> : vector<128xf32>
    %69 = vector.multi_reduction <add>, %63, %cst_67 [0] : vector<256x128xf32> to vector<128xf32>
    %70 = vector.shape_cast %69 : vector<128xf32> to vector<1x128xf32>
    %c0_68 = arith.constant 0 : index
    %c0_69 = arith.constant 0 : index
    %c0_70 = arith.constant 0 : index
    %71 = vector.load %arg4[%c0_68, %c0_69, %c0_70] : memref<1x2x128xf32, #tpu.memory_space<vmem>>, vector<1x1x128xf32>
    %72 = vector.shape_cast %71 : vector<1x1x128xf32> to vector<1x128xf32>
    %73 = vector.shape_cast %70 : vector<1x128xf32> to vector<1x1x128xf32>
    tpu.vector_store %arg4[%c0_68, %c0_69, %c0_70], %73 {strides = array<i32>} : memref<1x2x128xf32, #tpu.memory_space<vmem>>, vector<1x1x128xf32>,
    %74 = arith.mulf %63, %63 : vector<256x128xf32>
    %cst_71 = arith.constant dense<0.000000e+00> : vector<128xf32>
    %75 = vector.multi_reduction <add>, %74, %cst_71 [0] : vector<256x128xf32> to vector<128xf32>
    %76 = vector.shape_cast %75 : vector<128xf32> to vector<1x128xf32>
    %c0_72 = arith.constant 0 : index
    %c1_73 = arith.constant 1 : index
    %c0_74 = arith.constant 0 : index
    %77 = vector.load %arg4[%c0_72, %c1_73, %c0_74] : memref<1x2x128xf32, #tpu.memory_space<vmem>>, vector<1x1x128xf32>
    %78 = vector.shape_cast %77 : vector<1x1x128xf32> to vector<1x128xf32>
    %79 = vector.shape_cast %76 : vector<1x128xf32> to vector<1x1x128xf32>
    tpu.vector_store %arg4[%c0_72, %c1_73, %c0_74], %79 {strides = array<i32>} : memref<1x2x128xf32, #tpu.memory_space<vmem>>, vector<1x1x128xf32>,
    return
  }
  func.func @transform_0(%arg0: i32) -> (i32, i32, i32, i32) {
    %c0_i32 = arith.constant 0 : i32
    %c0_i32_0 = arith.constant 0 : i32
    %c0_i32_1 = arith.constant 0 : i32
    %c0_i32_2 = arith.constant 0 : i32
    return %arg0, %c0_i32, %c0_i32_0, %c0_i32_1 : i32, i32, i32, i32
  }
  func.func @transform_1(%arg0: i32) -> (i32, i32, i32) {
    %c0_i32 = arith.constant 0 : i32
    %c0_i32_0 = arith.constant 0 : i32
    %c0_i32_1 = arith.constant 0 : i32
    %c0_i32_2 = arith.constant 0 : i32
    return %c0_i32, %c0_i32_0, %c0_i32_1 : i32, i32, i32
  }
  func.func @transform_2(%arg0: i32) -> (i32, i32, i32, i32) {
    %c0_i32 = arith.constant 0 : i32
    %c0_i32_0 = arith.constant 0 : i32
    %c0_i32_1 = arith.constant 0 : i32
    %c0_i32_2 = arith.constant 0 : i32
    return %arg0, %c0_i32, %c0_i32_0, %c0_i32_1 : i32, i32, i32, i32
  }
  func.func @transform_3(%arg0: i32) -> (i32, i32, i32) {
    %c0_i32 = arith.constant 0 : i32
    %c0_i32_0 = arith.constant 0 : i32
    %c0_i32_1 = arith.constant 0 : i32
    return %arg0, %c0_i32, %c0_i32_0 : i32, i32, i32
  }
}

module attributes {stable_mosaic.version = 11 : i64} {
  func.func @kernel(%arg0: i32, %arg1: memref<1x16x16x128xbf16, #tpu.memory_space<vmem>>, %arg2: memref<1x128xf32, #tpu.memory_space<vmem>>, %arg3: memref<1x128xf32, #tpu.memory_space<vmem>>, %arg4: memref<9x128x128xbf16, #tpu.memory_space<vmem>>, %arg5: memref<1x16x16x128xbf16, #tpu.memory_space<vmem>>, %arg6: memref<1x2x128xf32, #tpu.memory_space<vmem>>, %arg7: memref<18x18x128xbf16, #tpu.memory_space<vmem>>) attributes {dimension_semantics = [#tpu.dimension_semantics<parallel>], iteration_bounds = array<i64: 2>, scalar_prefetch = 0 : i64, scratch_operands = 1 : i64, tpu.core_type = #tpu.core_type<tc>, window_params = [{transform_indices = @transform_0, window_bounds = array<i64: 1, 16, 16, 128>}, {pipeline_mode = #tpu.pipeline_mode<synchronous>, transform_indices = @transform_1, window_bounds = array<i64: 1, 128>}, {pipeline_mode = #tpu.pipeline_mode<synchronous>, transform_indices = @transform_2, window_bounds = array<i64: 1, 128>}, {pipeline_mode = #tpu.pipeline_mode<synchronous>, transform_indices = @transform_3, window_bounds = array<i64: 9, 128, 128>}, {transform_indices = @transform_4, window_bounds = array<i64: 1, 16, 16, 128>}, {transform_indices = @transform_5, window_bounds = array<i64: 1, 2, 128>}]} {
    %c0 = arith.constant 0 : index
    %c0_0 = arith.constant 0 : index
    %c0_1 = arith.constant 0 : index
    %c0_2 = arith.constant 0 : index
    %0 = vector.load %arg1[%c0, %c0_0, %c0_1, %c0_2] : memref<1x16x16x128xbf16, #tpu.memory_space<vmem>>, vector<1x16x16x128xbf16>
    %1 = vector.shape_cast %0 : vector<1x16x16x128xbf16> to vector<16x16x128xbf16>
    %2 = arith.extf %1 : vector<16x16x128xbf16> to vector<16x16x128xf32>
    %c0_3 = arith.constant 0 : index
    %c0_4 = arith.constant 0 : index
    %3 = vector.load %arg2[%c0_3, %c0_4] : memref<1x128xf32, #tpu.memory_space<vmem>>, vector<1x128xf32>
    %4 = vector.shape_cast %3 : vector<1x128xf32> to vector<1x1x128xf32>
    %5 = vector.broadcast %4 : vector<1x1x128xf32> to vector<16x16x128xf32>
    %6 = arith.mulf %2, %5 : vector<16x16x128xf32>
    %c0_5 = arith.constant 0 : index
    %c0_6 = arith.constant 0 : index
    %7 = vector.load %arg3[%c0_5, %c0_6] : memref<1x128xf32, #tpu.memory_space<vmem>>, vector<1x128xf32>
    %8 = vector.shape_cast %7 : vector<1x128xf32> to vector<1x1x128xf32>
    %9 = vector.broadcast %8 : vector<1x1x128xf32> to vector<16x16x128xf32>
    %10 = arith.addf %6, %9 : vector<16x16x128xf32>
    %cst = arith.constant 0.000000e+00 : f32
    %11 = vector.broadcast %cst : f32 to vector<16x16x128xf32>
    %12 = arith.maximumf %10, %11 : vector<16x16x128xf32>
    %cst_7 = arith.constant 0.000000e+00 : bf16
    %13 = vector.broadcast %cst_7 : bf16 to vector<18x18x128xbf16>
    %c0_8 = arith.constant 0 : index
    %c0_9 = arith.constant 0 : index
    %c0_10 = arith.constant 0 : index
    %14 = vector.load %arg7[%c0_8, %c0_9, %c0_10] : memref<18x18x128xbf16, #tpu.memory_space<vmem>>, vector<18x18x128xbf16>
    tpu.vector_store %arg7[%c0_8, %c0_9, %c0_10], %13 {strides = array<i32>} : memref<18x18x128xbf16, #tpu.memory_space<vmem>>, vector<18x18x128xbf16>,
    %15 = arith.truncf %12 : vector<16x16x128xf32> to vector<16x16x128xbf16>
    %c1 = arith.constant 1 : index
    %c1_11 = arith.constant 1 : index
    %c0_12 = arith.constant 0 : index
    %16 = vector.load %arg7[%c1, %c1_11, %c0_12] : memref<18x18x128xbf16, #tpu.memory_space<vmem>>, vector<16x16x128xbf16>
    tpu.vector_store %arg7[%c1, %c1_11, %c0_12], %15 {strides = array<i32>} : memref<18x18x128xbf16, #tpu.memory_space<vmem>>, vector<16x16x128xbf16>,
    %cst_13 = arith.constant 0.000000e+00 : f32
    %17 = vector.broadcast %cst_13 : f32 to vector<256x128xf32>
    %c0_14 = arith.constant 0 : index
    %c0_15 = arith.constant 0 : index
    %c0_16 = arith.constant 0 : index
    %18 = vector.load %arg7[%c0_14, %c0_15, %c0_16] : memref<18x18x128xbf16, #tpu.memory_space<vmem>>, vector<16x16x128xbf16>
    %19 = vector.shape_cast %18 : vector<16x16x128xbf16> to vector<256x128xbf16>
    %c0_17 = arith.constant 0 : index
    %c0_18 = arith.constant 0 : index
    %c0_19 = arith.constant 0 : index
    %20 = vector.load %arg4[%c0_17, %c0_18, %c0_19] : memref<9x128x128xbf16, #tpu.memory_space<vmem>>, vector<1x128x128xbf16>
    %21 = vector.shape_cast %20 : vector<1x128x128xbf16> to vector<128x128xbf16>
    %cst_20 = arith.constant dense<0.000000e+00> : vector<256x128xf32>
    %22 = tpu.matmul %19, %21, %cst_20 {dimension_numbers = #tpu.dot_dimension_numbers<[1], [0], [0], [1], [0, 0, 1, 1], [], []>} : vector<256x128xbf16>, vector<128x128xbf16>, vector<256x128xf32> -> vector<256x128xf32>
    %23 = arith.addf %17, %22 : vector<256x128xf32>
    %c0_21 = arith.constant 0 : index
    %c1_22 = arith.constant 1 : index
    %c0_23 = arith.constant 0 : index
    %24 = vector.load %arg7[%c0_21, %c1_22, %c0_23] : memref<18x18x128xbf16, #tpu.memory_space<vmem>>, vector<16x16x128xbf16>
    %25 = vector.shape_cast %24 : vector<16x16x128xbf16> to vector<256x128xbf16>
    %c1_24 = arith.constant 1 : index
    %c0_25 = arith.constant 0 : index
    %c0_26 = arith.constant 0 : index
    %26 = vector.load %arg4[%c1_24, %c0_25, %c0_26] : memref<9x128x128xbf16, #tpu.memory_space<vmem>>, vector<1x128x128xbf16>
    %27 = vector.shape_cast %26 : vector<1x128x128xbf16> to vector<128x128xbf16>
    %cst_27 = arith.constant dense<0.000000e+00> : vector<256x128xf32>
    %28 = tpu.matmul %25, %27, %cst_27 {dimension_numbers = #tpu.dot_dimension_numbers<[1], [0], [0], [1], [0, 0, 1, 1], [], []>} : vector<256x128xbf16>, vector<128x128xbf16>, vector<256x128xf32> -> vector<256x128xf32>
    %29 = arith.addf %23, %28 : vector<256x128xf32>
    %c0_28 = arith.constant 0 : index
    %c2 = arith.constant 2 : index
    %c0_29 = arith.constant 0 : index
    %30 = vector.load %arg7[%c0_28, %c2, %c0_29] : memref<18x18x128xbf16, #tpu.memory_space<vmem>>, vector<16x16x128xbf16>
    %31 = vector.shape_cast %30 : vector<16x16x128xbf16> to vector<256x128xbf16>
    %c2_30 = arith.constant 2 : index
    %c0_31 = arith.constant 0 : index
    %c0_32 = arith.constant 0 : index
    %32 = vector.load %arg4[%c2_30, %c0_31, %c0_32] : memref<9x128x128xbf16, #tpu.memory_space<vmem>>, vector<1x128x128xbf16>
    %33 = vector.shape_cast %32 : vector<1x128x128xbf16> to vector<128x128xbf16>
    %cst_33 = arith.constant dense<0.000000e+00> : vector<256x128xf32>
    %34 = tpu.matmul %31, %33, %cst_33 {dimension_numbers = #tpu.dot_dimension_numbers<[1], [0], [0], [1], [0, 0, 1, 1], [], []>} : vector<256x128xbf16>, vector<128x128xbf16>, vector<256x128xf32> -> vector<256x128xf32>
    %35 = arith.addf %29, %34 : vector<256x128xf32>
    %c1_34 = arith.constant 1 : index
    %c0_35 = arith.constant 0 : index
    %c0_36 = arith.constant 0 : index
    %36 = vector.load %arg7[%c1_34, %c0_35, %c0_36] : memref<18x18x128xbf16, #tpu.memory_space<vmem>>, vector<16x16x128xbf16>
    %37 = vector.shape_cast %36 : vector<16x16x128xbf16> to vector<256x128xbf16>
    %c3 = arith.constant 3 : index
    %c0_37 = arith.constant 0 : index
    %c0_38 = arith.constant 0 : index
    %38 = vector.load %arg4[%c3, %c0_37, %c0_38] : memref<9x128x128xbf16, #tpu.memory_space<vmem>>, vector<1x128x128xbf16>
    %39 = vector.shape_cast %38 : vector<1x128x128xbf16> to vector<128x128xbf16>
    %cst_39 = arith.constant dense<0.000000e+00> : vector<256x128xf32>
    %40 = tpu.matmul %37, %39, %cst_39 {dimension_numbers = #tpu.dot_dimension_numbers<[1], [0], [0], [1], [0, 0, 1, 1], [], []>} : vector<256x128xbf16>, vector<128x128xbf16>, vector<256x128xf32> -> vector<256x128xf32>
    %41 = arith.addf %35, %40 : vector<256x128xf32>
    %c1_40 = arith.constant 1 : index
    %c1_41 = arith.constant 1 : index
    %c0_42 = arith.constant 0 : index
    %42 = vector.load %arg7[%c1_40, %c1_41, %c0_42] : memref<18x18x128xbf16, #tpu.memory_space<vmem>>, vector<16x16x128xbf16>
    %43 = vector.shape_cast %42 : vector<16x16x128xbf16> to vector<256x128xbf16>
    %c4 = arith.constant 4 : index
    %c0_43 = arith.constant 0 : index
    %c0_44 = arith.constant 0 : index
    %44 = vector.load %arg4[%c4, %c0_43, %c0_44] : memref<9x128x128xbf16, #tpu.memory_space<vmem>>, vector<1x128x128xbf16>
    %45 = vector.shape_cast %44 : vector<1x128x128xbf16> to vector<128x128xbf16>
    %cst_45 = arith.constant dense<0.000000e+00> : vector<256x128xf32>
    %46 = tpu.matmul %43, %45, %cst_45 {dimension_numbers = #tpu.dot_dimension_numbers<[1], [0], [0], [1], [0, 0, 1, 1], [], []>} : vector<256x128xbf16>, vector<128x128xbf16>, vector<256x128xf32> -> vector<256x128xf32>
    %47 = arith.addf %41, %46 : vector<256x128xf32>
    %c1_46 = arith.constant 1 : index
    %c2_47 = arith.constant 2 : index
    %c0_48 = arith.constant 0 : index
    %48 = vector.load %arg7[%c1_46, %c2_47, %c0_48] : memref<18x18x128xbf16, #tpu.memory_space<vmem>>, vector<16x16x128xbf16>
    %49 = vector.shape_cast %48 : vector<16x16x128xbf16> to vector<256x128xbf16>
    %c5 = arith.constant 5 : index
    %c0_49 = arith.constant 0 : index
    %c0_50 = arith.constant 0 : index
    %50 = vector.load %arg4[%c5, %c0_49, %c0_50] : memref<9x128x128xbf16, #tpu.memory_space<vmem>>, vector<1x128x128xbf16>
    %51 = vector.shape_cast %50 : vector<1x128x128xbf16> to vector<128x128xbf16>
    %cst_51 = arith.constant dense<0.000000e+00> : vector<256x128xf32>
    %52 = tpu.matmul %49, %51, %cst_51 {dimension_numbers = #tpu.dot_dimension_numbers<[1], [0], [0], [1], [0, 0, 1, 1], [], []>} : vector<256x128xbf16>, vector<128x128xbf16>, vector<256x128xf32> -> vector<256x128xf32>
    %53 = arith.addf %47, %52 : vector<256x128xf32>
    %c2_52 = arith.constant 2 : index
    %c0_53 = arith.constant 0 : index
    %c0_54 = arith.constant 0 : index
    %54 = vector.load %arg7[%c2_52, %c0_53, %c0_54] : memref<18x18x128xbf16, #tpu.memory_space<vmem>>, vector<16x16x128xbf16>
    %55 = vector.shape_cast %54 : vector<16x16x128xbf16> to vector<256x128xbf16>
    %c6 = arith.constant 6 : index
    %c0_55 = arith.constant 0 : index
    %c0_56 = arith.constant 0 : index
    %56 = vector.load %arg4[%c6, %c0_55, %c0_56] : memref<9x128x128xbf16, #tpu.memory_space<vmem>>, vector<1x128x128xbf16>
    %57 = vector.shape_cast %56 : vector<1x128x128xbf16> to vector<128x128xbf16>
    %cst_57 = arith.constant dense<0.000000e+00> : vector<256x128xf32>
    %58 = tpu.matmul %55, %57, %cst_57 {dimension_numbers = #tpu.dot_dimension_numbers<[1], [0], [0], [1], [0, 0, 1, 1], [], []>} : vector<256x128xbf16>, vector<128x128xbf16>, vector<256x128xf32> -> vector<256x128xf32>
    %59 = arith.addf %53, %58 : vector<256x128xf32>
    %c2_58 = arith.constant 2 : index
    %c1_59 = arith.constant 1 : index
    %c0_60 = arith.constant 0 : index
    %60 = vector.load %arg7[%c2_58, %c1_59, %c0_60] : memref<18x18x128xbf16, #tpu.memory_space<vmem>>, vector<16x16x128xbf16>
    %61 = vector.shape_cast %60 : vector<16x16x128xbf16> to vector<256x128xbf16>
    %c7 = arith.constant 7 : index
    %c0_61 = arith.constant 0 : index
    %c0_62 = arith.constant 0 : index
    %62 = vector.load %arg4[%c7, %c0_61, %c0_62] : memref<9x128x128xbf16, #tpu.memory_space<vmem>>, vector<1x128x128xbf16>
    %63 = vector.shape_cast %62 : vector<1x128x128xbf16> to vector<128x128xbf16>
    %cst_63 = arith.constant dense<0.000000e+00> : vector<256x128xf32>
    %64 = tpu.matmul %61, %63, %cst_63 {dimension_numbers = #tpu.dot_dimension_numbers<[1], [0], [0], [1], [0, 0, 1, 1], [], []>} : vector<256x128xbf16>, vector<128x128xbf16>, vector<256x128xf32> -> vector<256x128xf32>
    %65 = arith.addf %59, %64 : vector<256x128xf32>
    %c2_64 = arith.constant 2 : index
    %c2_65 = arith.constant 2 : index
    %c0_66 = arith.constant 0 : index
    %66 = vector.load %arg7[%c2_64, %c2_65, %c0_66] : memref<18x18x128xbf16, #tpu.memory_space<vmem>>, vector<16x16x128xbf16>
    %67 = vector.shape_cast %66 : vector<16x16x128xbf16> to vector<256x128xbf16>
    %c8 = arith.constant 8 : index
    %c0_67 = arith.constant 0 : index
    %c0_68 = arith.constant 0 : index
    %68 = vector.load %arg4[%c8, %c0_67, %c0_68] : memref<9x128x128xbf16, #tpu.memory_space<vmem>>, vector<1x128x128xbf16>
    %69 = vector.shape_cast %68 : vector<1x128x128xbf16> to vector<128x128xbf16>
    %cst_69 = arith.constant dense<0.000000e+00> : vector<256x128xf32>
    %70 = tpu.matmul %67, %69, %cst_69 {dimension_numbers = #tpu.dot_dimension_numbers<[1], [0], [0], [1], [0, 0, 1, 1], [], []>} : vector<256x128xbf16>, vector<128x128xbf16>, vector<256x128xf32> -> vector<256x128xf32>
    %71 = arith.addf %65, %70 : vector<256x128xf32>
    %72 = vector.shape_cast %71 : vector<256x128xf32> to vector<16x16x128xf32>
    %73 = arith.truncf %72 : vector<16x16x128xf32> to vector<16x16x128xbf16>
    %c0_70 = arith.constant 0 : index
    %c0_71 = arith.constant 0 : index
    %c0_72 = arith.constant 0 : index
    %c0_73 = arith.constant 0 : index
    %74 = vector.load %arg5[%c0_70, %c0_71, %c0_72, %c0_73] : memref<1x16x16x128xbf16, #tpu.memory_space<vmem>>, vector<1x16x16x128xbf16>
    %75 = vector.shape_cast %74 : vector<1x16x16x128xbf16> to vector<16x16x128xbf16>
    %76 = vector.shape_cast %73 : vector<16x16x128xbf16> to vector<1x16x16x128xbf16>
    tpu.vector_store %arg5[%c0_70, %c0_71, %c0_72, %c0_73], %76 {strides = array<i32>} : memref<1x16x16x128xbf16, #tpu.memory_space<vmem>>, vector<1x16x16x128xbf16>,
    %cst_74 = arith.constant dense<0.000000e+00> : vector<128xf32>
    %77 = vector.multi_reduction <add>, %71, %cst_74 [0] : vector<256x128xf32> to vector<128xf32>
    %78 = vector.shape_cast %77 : vector<128xf32> to vector<1x128xf32>
    %c0_75 = arith.constant 0 : index
    %c0_76 = arith.constant 0 : index
    %c0_77 = arith.constant 0 : index
    %79 = vector.load %arg6[%c0_75, %c0_76, %c0_77] : memref<1x2x128xf32, #tpu.memory_space<vmem>>, vector<1x1x128xf32>
    %80 = vector.shape_cast %79 : vector<1x1x128xf32> to vector<1x128xf32>
    %81 = vector.shape_cast %78 : vector<1x128xf32> to vector<1x1x128xf32>
    tpu.vector_store %arg6[%c0_75, %c0_76, %c0_77], %81 {strides = array<i32>} : memref<1x2x128xf32, #tpu.memory_space<vmem>>, vector<1x1x128xf32>,
    %82 = arith.mulf %71, %71 : vector<256x128xf32>
    %cst_78 = arith.constant dense<0.000000e+00> : vector<128xf32>
    %83 = vector.multi_reduction <add>, %82, %cst_78 [0] : vector<256x128xf32> to vector<128xf32>
    %84 = vector.shape_cast %83 : vector<128xf32> to vector<1x128xf32>
    %c0_79 = arith.constant 0 : index
    %c1_80 = arith.constant 1 : index
    %c0_81 = arith.constant 0 : index
    %85 = vector.load %arg6[%c0_79, %c1_80, %c0_81] : memref<1x2x128xf32, #tpu.memory_space<vmem>>, vector<1x1x128xf32>
    %86 = vector.shape_cast %85 : vector<1x1x128xf32> to vector<1x128xf32>
    %87 = vector.shape_cast %84 : vector<1x128xf32> to vector<1x1x128xf32>
    tpu.vector_store %arg6[%c0_79, %c1_80, %c0_81], %87 {strides = array<i32>} : memref<1x2x128xf32, #tpu.memory_space<vmem>>, vector<1x1x128xf32>,
    return
  }
  func.func @transform_0(%arg0: i32) -> (i32, i32, i32, i32) {
    %c0_i32 = arith.constant 0 : i32
    %c0_i32_0 = arith.constant 0 : i32
    %c0_i32_1 = arith.constant 0 : i32
    %c0_i32_2 = arith.constant 0 : i32
    return %arg0, %c0_i32, %c0_i32_0, %c0_i32_1 : i32, i32, i32, i32
  }
  func.func @transform_1(%arg0: i32) -> (i32, i32) {
    %c0_i32 = arith.constant 0 : i32
    %c0_i32_0 = arith.constant 0 : i32
    %c0_i32_1 = arith.constant 0 : i32
    return %c0_i32, %c0_i32_0 : i32, i32
  }
  func.func @transform_2(%arg0: i32) -> (i32, i32) {
    %c0_i32 = arith.constant 0 : i32
    %c0_i32_0 = arith.constant 0 : i32
    %c0_i32_1 = arith.constant 0 : i32
    return %c0_i32, %c0_i32_0 : i32, i32
  }
  func.func @transform_3(%arg0: i32) -> (i32, i32, i32) {
    %c0_i32 = arith.constant 0 : i32
    %c0_i32_0 = arith.constant 0 : i32
    %c0_i32_1 = arith.constant 0 : i32
    %c0_i32_2 = arith.constant 0 : i32
    return %c0_i32, %c0_i32_0, %c0_i32_1 : i32, i32, i32
  }
  func.func @transform_4(%arg0: i32) -> (i32, i32, i32, i32) {
    %c0_i32 = arith.constant 0 : i32
    %c0_i32_0 = arith.constant 0 : i32
    %c0_i32_1 = arith.constant 0 : i32
    %c0_i32_2 = arith.constant 0 : i32
    return %arg0, %c0_i32, %c0_i32_0, %c0_i32_1 : i32, i32, i32, i32
  }
  func.func @transform_5(%arg0: i32) -> (i32, i32, i32) {
    %c0_i32 = arith.constant 0 : i32
    %c0_i32_0 = arith.constant 0 : i32
    %c0_i32_1 = arith.constant 0 : i32
    return %arg0, %c0_i32, %c0_i32_0 : i32, i32, i32
  }
}

module attributes {stable_mosaic.version = 11 : i64} {
  func.func @kernel(%arg0: i32, %arg1: memref<1x16x16x128xbf16, #tpu.memory_space<vmem>>, %arg2: memref<1x128xf32, #tpu.memory_space<vmem>>, %arg3: memref<1x128xf32, #tpu.memory_space<vmem>>, %arg4: memref<1x16x16x128xf32, #tpu.memory_space<vmem>>, %arg5: memref<1x8x1024xf32, #tpu.memory_space<vmem>>) attributes {dimension_semantics = [#tpu.dimension_semantics<parallel>], iteration_bounds = array<i64: 2>, scalar_prefetch = 0 : i64, scratch_operands = 0 : i64, tpu.core_type = #tpu.core_type<tc>, window_params = [{transform_indices = @transform_0, window_bounds = array<i64: 1, 16, 16, 128>}, {pipeline_mode = #tpu.pipeline_mode<synchronous>, transform_indices = @transform_1, window_bounds = array<i64: 1, 128>}, {pipeline_mode = #tpu.pipeline_mode<synchronous>, transform_indices = @transform_2, window_bounds = array<i64: 1, 128>}, {transform_indices = @transform_3, window_bounds = array<i64: 1, 16, 16, 128>}, {transform_indices = @transform_4, window_bounds = array<i64: 1, 8, 1024>}]} {
    %c0 = arith.constant 0 : index
    %c0_0 = arith.constant 0 : index
    %c0_1 = arith.constant 0 : index
    %c0_2 = arith.constant 0 : index
    %0 = vector.load %arg1[%c0, %c0_0, %c0_1, %c0_2] : memref<1x16x16x128xbf16, #tpu.memory_space<vmem>>, vector<1x16x16x128xbf16>
    %1 = vector.shape_cast %0 : vector<1x16x16x128xbf16> to vector<16x16x128xbf16>
    %2 = arith.extf %1 : vector<16x16x128xbf16> to vector<16x16x128xf32>
    %c0_3 = arith.constant 0 : index
    %c0_4 = arith.constant 0 : index
    %3 = vector.load %arg2[%c0_3, %c0_4] : memref<1x128xf32, #tpu.memory_space<vmem>>, vector<1x128xf32>
    %4 = vector.shape_cast %3 : vector<1x128xf32> to vector<1x1x128xf32>
    %5 = vector.broadcast %4 : vector<1x1x128xf32> to vector<16x16x128xf32>
    %6 = arith.mulf %2, %5 : vector<16x16x128xf32>
    %c0_5 = arith.constant 0 : index
    %c0_6 = arith.constant 0 : index
    %7 = vector.load %arg3[%c0_5, %c0_6] : memref<1x128xf32, #tpu.memory_space<vmem>>, vector<1x128xf32>
    %8 = vector.shape_cast %7 : vector<1x128xf32> to vector<1x1x128xf32>
    %9 = vector.broadcast %8 : vector<1x1x128xf32> to vector<16x16x128xf32>
    %10 = arith.addf %6, %9 : vector<16x16x128xf32>
    %cst = arith.constant 0.000000e+00 : f32
    %11 = vector.broadcast %cst : f32 to vector<16x16x128xf32>
    %12 = arith.maximumf %10, %11 : vector<16x16x128xf32>
    %c0_7 = arith.constant 0 : index
    %c0_8 = arith.constant 0 : index
    %c0_9 = arith.constant 0 : index
    %c0_10 = arith.constant 0 : index
    %13 = vector.load %arg4[%c0_7, %c0_8, %c0_9, %c0_10] : memref<1x16x16x128xf32, #tpu.memory_space<vmem>>, vector<1x16x16x128xf32>
    %14 = vector.shape_cast %13 : vector<1x16x16x128xf32> to vector<16x16x128xf32>
    %15 = vector.shape_cast %12 : vector<16x16x128xf32> to vector<1x16x16x128xf32>
    tpu.vector_store %arg4[%c0_7, %c0_8, %c0_9, %c0_10], %15 {strides = array<i32>} : memref<1x16x16x128xf32, #tpu.memory_space<vmem>>, vector<1x16x16x128xf32>,
    %16 = vector.shape_cast %12 : vector<16x16x128xf32> to vector<8x2x16x128xf32>
    %17 = vector.extract_strided_slice %16 {offsets = [0, 0, 0, 0], sizes = [8, 1, 16, 128], strides = [1, 1, 1, 1]} : vector<8x2x16x128xf32> to vector<8x1x16x128xf32>
    %18 = vector.shape_cast %17 : vector<8x1x16x128xf32> to vector<8x16x128xf32>
    %19 = vector.extract_strided_slice %16 {offsets = [0, 1, 0, 0], sizes = [8, 1, 16, 128], strides = [1, 1, 1, 1]} : vector<8x2x16x128xf32> to vector<8x1x16x128xf32>
    %20 = vector.shape_cast %19 : vector<8x1x16x128xf32> to vector<8x16x128xf32>
    %21 = arith.maximumf %18, %20 : vector<8x16x128xf32>
    %22 = vector.extract_strided_slice %21 {offsets = [0, 0, 0], sizes = [8, 2, 128], strides = [1, 1, 1]} : vector<8x16x128xf32> to vector<8x2x128xf32>
    %cst_11 = arith.constant dense<0xFF800000> : vector<8x128xf32>
    %23 = vector.multi_reduction <maximumf>, %22, %cst_11 [1] : vector<8x2x128xf32> to vector<8x128xf32>
    %c0_12 = arith.constant 0 : index
    %c0_13 = arith.constant 0 : index
    %c0_14 = arith.constant 0 : index
    %24 = vector.load %arg5[%c0_12, %c0_13, %c0_14] : memref<1x8x1024xf32, #tpu.memory_space<vmem>>, vector<1x8x128xf32>
    %25 = vector.shape_cast %24 : vector<1x8x128xf32> to vector<8x128xf32>
    %26 = vector.shape_cast %23 : vector<8x128xf32> to vector<1x8x128xf32>
    tpu.vector_store %arg5[%c0_12, %c0_13, %c0_14], %26 {strides = array<i32>} : memref<1x8x1024xf32, #tpu.memory_space<vmem>>, vector<1x8x128xf32>,
    %27 = vector.extract_strided_slice %21 {offsets = [0, 2, 0], sizes = [8, 2, 128], strides = [1, 1, 1]} : vector<8x16x128xf32> to vector<8x2x128xf32>
    %cst_15 = arith.constant dense<0xFF800000> : vector<8x128xf32>
    %28 = vector.multi_reduction <maximumf>, %27, %cst_15 [1] : vector<8x2x128xf32> to vector<8x128xf32>
    %c0_16 = arith.constant 0 : index
    %c0_17 = arith.constant 0 : index
    %c128 = arith.constant 128 : index
    %29 = vector.load %arg5[%c0_16, %c0_17, %c128] : memref<1x8x1024xf32, #tpu.memory_space<vmem>>, vector<1x8x128xf32>
    %30 = vector.shape_cast %29 : vector<1x8x128xf32> to vector<8x128xf32>
    %31 = vector.shape_cast %28 : vector<8x128xf32> to vector<1x8x128xf32>
    tpu.vector_store %arg5[%c0_16, %c0_17, %c128], %31 {strides = array<i32>} : memref<1x8x1024xf32, #tpu.memory_space<vmem>>, vector<1x8x128xf32>,
    %32 = vector.extract_strided_slice %21 {offsets = [0, 4, 0], sizes = [8, 2, 128], strides = [1, 1, 1]} : vector<8x16x128xf32> to vector<8x2x128xf32>
    %cst_18 = arith.constant dense<0xFF800000> : vector<8x128xf32>
    %33 = vector.multi_reduction <maximumf>, %32, %cst_18 [1] : vector<8x2x128xf32> to vector<8x128xf32>
    %c0_19 = arith.constant 0 : index
    %c0_20 = arith.constant 0 : index
    %c256 = arith.constant 256 : index
    %34 = vector.load %arg5[%c0_19, %c0_20, %c256] : memref<1x8x1024xf32, #tpu.memory_space<vmem>>, vector<1x8x128xf32>
    %35 = vector.shape_cast %34 : vector<1x8x128xf32> to vector<8x128xf32>
    %36 = vector.shape_cast %33 : vector<8x128xf32> to vector<1x8x128xf32>
    tpu.vector_store %arg5[%c0_19, %c0_20, %c256], %36 {strides = array<i32>} : memref<1x8x1024xf32, #tpu.memory_space<vmem>>, vector<1x8x128xf32>,
    %37 = vector.extract_strided_slice %21 {offsets = [0, 6, 0], sizes = [8, 2, 128], strides = [1, 1, 1]} : vector<8x16x128xf32> to vector<8x2x128xf32>
    %cst_21 = arith.constant dense<0xFF800000> : vector<8x128xf32>
    %38 = vector.multi_reduction <maximumf>, %37, %cst_21 [1] : vector<8x2x128xf32> to vector<8x128xf32>
    %c0_22 = arith.constant 0 : index
    %c0_23 = arith.constant 0 : index
    %c384 = arith.constant 384 : index
    %39 = vector.load %arg5[%c0_22, %c0_23, %c384] : memref<1x8x1024xf32, #tpu.memory_space<vmem>>, vector<1x8x128xf32>
    %40 = vector.shape_cast %39 : vector<1x8x128xf32> to vector<8x128xf32>
    %41 = vector.shape_cast %38 : vector<8x128xf32> to vector<1x8x128xf32>
    tpu.vector_store %arg5[%c0_22, %c0_23, %c384], %41 {strides = array<i32>} : memref<1x8x1024xf32, #tpu.memory_space<vmem>>, vector<1x8x128xf32>,
    %42 = vector.extract_strided_slice %21 {offsets = [0, 8, 0], sizes = [8, 2, 128], strides = [1, 1, 1]} : vector<8x16x128xf32> to vector<8x2x128xf32>
    %cst_24 = arith.constant dense<0xFF800000> : vector<8x128xf32>
    %43 = vector.multi_reduction <maximumf>, %42, %cst_24 [1] : vector<8x2x128xf32> to vector<8x128xf32>
    %c0_25 = arith.constant 0 : index
    %c0_26 = arith.constant 0 : index
    %c512 = arith.constant 512 : index
    %44 = vector.load %arg5[%c0_25, %c0_26, %c512] : memref<1x8x1024xf32, #tpu.memory_space<vmem>>, vector<1x8x128xf32>
    %45 = vector.shape_cast %44 : vector<1x8x128xf32> to vector<8x128xf32>
    %46 = vector.shape_cast %43 : vector<8x128xf32> to vector<1x8x128xf32>
    tpu.vector_store %arg5[%c0_25, %c0_26, %c512], %46 {strides = array<i32>} : memref<1x8x1024xf32, #tpu.memory_space<vmem>>, vector<1x8x128xf32>,
    %47 = vector.extract_strided_slice %21 {offsets = [0, 10, 0], sizes = [8, 2, 128], strides = [1, 1, 1]} : vector<8x16x128xf32> to vector<8x2x128xf32>
    %cst_27 = arith.constant dense<0xFF800000> : vector<8x128xf32>
    %48 = vector.multi_reduction <maximumf>, %47, %cst_27 [1] : vector<8x2x128xf32> to vector<8x128xf32>
    %c0_28 = arith.constant 0 : index
    %c0_29 = arith.constant 0 : index
    %c640 = arith.constant 640 : index
    %49 = vector.load %arg5[%c0_28, %c0_29, %c640] : memref<1x8x1024xf32, #tpu.memory_space<vmem>>, vector<1x8x128xf32>
    %50 = vector.shape_cast %49 : vector<1x8x128xf32> to vector<8x128xf32>
    %51 = vector.shape_cast %48 : vector<8x128xf32> to vector<1x8x128xf32>
    tpu.vector_store %arg5[%c0_28, %c0_29, %c640], %51 {strides = array<i32>} : memref<1x8x1024xf32, #tpu.memory_space<vmem>>, vector<1x8x128xf32>,
    %52 = vector.extract_strided_slice %21 {offsets = [0, 12, 0], sizes = [8, 2, 128], strides = [1, 1, 1]} : vector<8x16x128xf32> to vector<8x2x128xf32>
    %cst_30 = arith.constant dense<0xFF800000> : vector<8x128xf32>
    %53 = vector.multi_reduction <maximumf>, %52, %cst_30 [1] : vector<8x2x128xf32> to vector<8x128xf32>
    %c0_31 = arith.constant 0 : index
    %c0_32 = arith.constant 0 : index
    %c768 = arith.constant 768 : index
    %54 = vector.load %arg5[%c0_31, %c0_32, %c768] : memref<1x8x1024xf32, #tpu.memory_space<vmem>>, vector<1x8x128xf32>
    %55 = vector.shape_cast %54 : vector<1x8x128xf32> to vector<8x128xf32>
    %56 = vector.shape_cast %53 : vector<8x128xf32> to vector<1x8x128xf32>
    tpu.vector_store %arg5[%c0_31, %c0_32, %c768], %56 {strides = array<i32>} : memref<1x8x1024xf32, #tpu.memory_space<vmem>>, vector<1x8x128xf32>,
    %57 = vector.extract_strided_slice %21 {offsets = [0, 14, 0], sizes = [8, 2, 128], strides = [1, 1, 1]} : vector<8x16x128xf32> to vector<8x2x128xf32>
    %cst_33 = arith.constant dense<0xFF800000> : vector<8x128xf32>
    %58 = vector.multi_reduction <maximumf>, %57, %cst_33 [1] : vector<8x2x128xf32> to vector<8x128xf32>
    %c0_34 = arith.constant 0 : index
    %c0_35 = arith.constant 0 : index
    %c896 = arith.constant 896 : index
    %59 = vector.load %arg5[%c0_34, %c0_35, %c896] : memref<1x8x1024xf32, #tpu.memory_space<vmem>>, vector<1x8x128xf32>
    %60 = vector.shape_cast %59 : vector<1x8x128xf32> to vector<8x128xf32>
    %61 = vector.shape_cast %58 : vector<8x128xf32> to vector<1x8x128xf32>
    tpu.vector_store %arg5[%c0_34, %c0_35, %c896], %61 {strides = array<i32>} : memref<1x8x1024xf32, #tpu.memory_space<vmem>>, vector<1x8x128xf32>,
    return
  }
  func.func @transform_0(%arg0: i32) -> (i32, i32, i32, i32) {
    %c0_i32 = arith.constant 0 : i32
    %c0_i32_0 = arith.constant 0 : i32
    %c0_i32_1 = arith.constant 0 : i32
    %c0_i32_2 = arith.constant 0 : i32
    return %arg0, %c0_i32, %c0_i32_0, %c0_i32_1 : i32, i32, i32, i32
  }
  func.func @transform_1(%arg0: i32) -> (i32, i32) {
    %c0_i32 = arith.constant 0 : i32
    %c0_i32_0 = arith.constant 0 : i32
    %c0_i32_1 = arith.constant 0 : i32
    return %c0_i32, %c0_i32_0 : i32, i32
  }
  func.func @transform_2(%arg0: i32) -> (i32, i32) {
    %c0_i32 = arith.constant 0 : i32
    %c0_i32_0 = arith.constant 0 : i32
    %c0_i32_1 = arith.constant 0 : i32
    return %c0_i32, %c0_i32_0 : i32, i32
  }
  func.func @transform_3(%arg0: i32) -> (i32, i32, i32, i32) {
    %c0_i32 = arith.constant 0 : i32
    %c0_i32_0 = arith.constant 0 : i32
    %c0_i32_1 = arith.constant 0 : i32
    %c0_i32_2 = arith.constant 0 : i32
    return %arg0, %c0_i32, %c0_i32_0, %c0_i32_1 : i32, i32, i32, i32
  }
  func.func @transform_4(%arg0: i32) -> (i32, i32, i32) {
    %c0_i32 = arith.constant 0 : i32
    %c0_i32_0 = arith.constant 0 : i32
    %c0_i32_1 = arith.constant 0 : i32
    return %arg0, %c0_i32, %c0_i32_0 : i32, i32, i32
  }
}

</mosaic_0001>

<llo_original>
// kernel: encoder_block.5
$region0: #{encoder_block.5}
  #allocation0 [shape = 'u32[]', space=smem, size = 0x4, offset = 0x4, fixed_abs, tag = 'smem constant byte address 0x4 - core index']
  #allocation1 [shape = 'u32[72,128]{1,0:T(1,128)}', space=vmem, size = 0x9000, scoped, tag = 'internal scratch']
  %s0 = inlined_call_operand.vmem [shape: bf16[2,16,16,128], index: 0, kind: input, shape index: {}]
  %s1 = inlined_call_operand.vmem [shape: f32[1,128], index: 1, kind: input, shape index: {}]
  %s2 = inlined_call_operand.vmem [shape: f32[1,128], index: 2, kind: input, shape index: {}]
  %s3 = inlined_call_operand.vmem [shape: f32[2,16,16,128], index: 3, kind: output, shape index: {0}]
  %s4 = inlined_call_operand.vmem [shape: f32[2,8,1024], index: 4, kind: output, shape index: {1}]
  %5 = xla_tuple %s3, %s4
  %s6 = sld [smem:[#allocation0]]
  $region53: #{encoder_block.5} parent=0
    _
  %s8 = ssub.s32 1, %s6
  %s9 = scalar_select 0, %s8, %s6
  loop: start=0, step=1, limit=4
  $region2: #{encoder_block.5} parent=0 // loop_pre_header
    _
  $region3: #{encoder_block.5} parent=0 // loop_header
    %s11 = sphi 0, %s15
    %p12 = scmp.ge.s32.totalorder %s11, 4
    %s21 = sphi 0, %s23
    %s24 = sphi 0, %s21
    %s25 = sphi 0, %s24
    %s41 = sphi 0, %s25
    %s45 = sphi 0, %s45
    %s47 = sphi 0, %s45
    %s48 = sphi 0, %s47
    %s62 = sphi 0, %s48
    %s66 = sphi 0, %s66
    %s68 = sphi 0, %s66
    %s69 = sphi 0, %s68
    %s83 = sphi 0, %s69
    %s89 = sphi 0, %s91
    %s92 = sphi 0, %s89
    %s93 = sphi 0, %s92
    %s109 = sphi 0, %s93
    %s115 = sphi 0, %s117
    %s118 = sphi 0, %s115
    %s119 = sphi 0, %s118
    %s135 = sphi 0, %s119
  $region4: #{encoder_block.5} parent=0 // loop_header_branch
    %14 = sbr.rel (%p12) target = $region8
  $region5: #{encoder_block.5} parent=0 // loop_body
    %s16 = ssub.s32 %s11, 1
    %s17 = ssub.s32 %s11, 2
    %s18 = sadd.s32 %s11, 1
    %s19 = ssub.s32 %s11, %s18
    %p20 = scmp.eq.s32.totalorder %s19, 0
    %s22 = sadd.s32 %s21, 1
    %s23 = scalar_select %p20, %s21, %s22
    %p26 = pneg %p20
    %p27 = scmp.eq.s32.totalorder %s11, 1
    %p28 = por %p26, %p27
    %p29 = scmp.ne.s32.totalorder %s21, %s24
    %p30 = scmp.eq.s32.totalorder %s11, 0
    %p31 = por %p29, %p30
    %p32 = scmp.ne.s32.totalorder %s21, %s24
    %p33 = scmp.eq.s32.totalorder %s16, 1
    %p34 = por %p32, %p33
    %p35 = scmp.ne.s32.totalorder %s24, %s25
    %p36 = scmp.eq.s32.totalorder %s16, 0
    %p37 = por %p35, %p36
    %p38 = scmp.ne.s32.totalorder %s24, %s25
    %p39 = scmp.eq.s32.totalorder %s17, 1
    %p40 = por %p38, %p39
    %p42 = scmp.ne.s32.totalorder %s25, %s41
    %p43 = scmp.eq.s32.totalorder %s17, 0
    %p44 = por %p42, %p43
    %s46 = sadd.s32 %s45, 1
    %p49 = scmp.eq.s32.totalorder %s11, 1
    %p50 = scmp.ne.s32.totalorder %s45, %s47
    %p51 = scmp.eq.s32.totalorder %s11, 0
    %p52 = por %p50, %p51
    %p53 = scmp.ne.s32.totalorder %s45, %s47
    %p54 = scmp.eq.s32.totalorder %s16, 1
    %p55 = por %p53, %p54
    %p56 = scmp.ne.s32.totalorder %s47, %s48
    %p57 = scmp.eq.s32.totalorder %s16, 0
    %p58 = por %p56, %p57
    %p59 = scmp.ne.s32.totalorder %s47, %s48
    %p60 = scmp.eq.s32.totalorder %s17, 1
    %p61 = por %p59, %p60
    %p63 = scmp.ne.s32.totalorder %s48, %s62
    %p64 = scmp.eq.s32.totalorder %s17, 0
    %p65 = por %p63, %p64
    %s67 = sadd.s32 %s66, 1
    %p70 = scmp.eq.s32.totalorder %s11, 1
    %p71 = scmp.ne.s32.totalorder %s66, %s68
    %p72 = scmp.eq.s32.totalorder %s11, 0
    %p73 = por %p71, %p72
    %p74 = scmp.ne.s32.totalorder %s66, %s68
    %p75 = scmp.eq.s32.totalorder %s16, 1
    %p76 = por %p74, %p75
    %p77 = scmp.ne.s32.totalorder %s68, %s69
    %p78 = scmp.eq.s32.totalorder %s16, 0
    %p79 = por %p77, %p78
    %p80 = scmp.ne.s32.totalorder %s68, %s69
    %p81 = scmp.eq.s32.totalorder %s17, 1
    %p82 = por %p80, %p81
    %p84 = scmp.ne.s32.totalorder %s69, %s83
    %p85 = scmp.eq.s32.totalorder %s17, 0
    %p86 = por %p84, %p85
    %s87 = ssub.s32 %s11, %s18
    %p88 = scmp.eq.s32.totalorder %s87, 0
    %s90 = sadd.s32 %s89, 1
    %s91 = scalar_select %p88, %s89, %s90
    %p94 = pneg %p88
    %p95 = scmp.eq.s32.totalorder %s11, 1
    %p96 = por %p94, %p95
    %p97 = scmp.ne.s32.totalorder %s89, %s92
    %p98 = scmp.eq.s32.totalorder %s11, 0
    %p99 = por %p97, %p98
    %p100 = scmp.ne.s32.totalorder %s89, %s92
    %p101 = scmp.eq.s32.totalorder %s16, 1
    %p102 = por %p100, %p101
    %p103 = scmp.ne.s32.totalorder %s92, %s93
    %p104 = scmp.eq.s32.totalorder %s16, 0
    %p105 = por %p103, %p104
    %p106 = scmp.ne.s32.totalorder %s92, %s93
    %p107 = scmp.eq.s32.totalorder %s17, 1
    %p108 = por %p106, %p107
    %p110 = scmp.ne.s32.totalorder %s93, %s109
    %p111 = scmp.eq.s32.totalorder %s17, 0
    %p112 = por %p110, %p111
    %s113 = ssub.s32 %s11, %s18
    %p114 = scmp.eq.s32.totalorder %s113, 0
    %s116 = sadd.s32 %s115, 1
    %s117 = scalar_select %p114, %s115, %s116
    %p120 = pneg %p114
    %p121 = scmp.eq.s32.totalorder %s11, 1
    %p122 = por %p120, %p121
    %p123 = scmp.ne.s32.totalorder %s115, %s118
    %p124 = scmp.eq.s32.totalorder %s11, 0
    %p125 = por %p123, %p124
    %p126 = scmp.ne.s32.totalorder %s115, %s118
    %p127 = scmp.eq.s32.totalorder %s16, 1
    %p128 = por %p126, %p127
    %p129 = scmp.ne.s32.totalorder %s118, %s119
    %p130 = scmp.eq.s32.totalorder %s16, 0
    %p131 = por %p129, %p130
    %p132 = scmp.ne.s32.totalorder %s118, %s119
    %p133 = scmp.eq.s32.totalorder %s17, 1
    %p134 = por %p132, %p133
    %p136 = scmp.ne.s32.totalorder %s119, %s135
    %p137 = scmp.eq.s32.totalorder %s17, 0
    %p138 = por %p136, %p137
    %p139 = scmp.le.s32.totalorder 1, %s11
    %p140 = scmp.lt.s32.totalorder %s11, 3
    %p141 = pnand %p139, %p140
    %p142 = pneg %p141
    // Predicated region
    $region9: #{encoder_block.5} parent=5 // pred_check
      _
    $region10: #{encoder_block.5} parent=5 // pred_check_branch
      %144 = sbr.rel (%p141) target = $region12
    $region11: #{encoder_block.5} parent=5 // pred_region
      %s145 = ssub.s32 %s11, 1
      // Predicated region
      $region13: #{encoder_block.5} parent=11 // pred_check
        %p146 = pneg %p58
      $region14: #{encoder_block.5} parent=11 // pred_check_branch
        %148 = sbr.rel (%p146) target = $region16
      $region15: #{encoder_block.5} parent=11 // pred_region
        _
      $region16: #{encoder_block.5} parent=11 // pred_fallthru
        _
      // Predicated region
      $region17: #{encoder_block.5} parent=11 // pred_check
        %p149 = pneg %p79
      $region18: #{encoder_block.5} parent=11 // pred_check_branch
        %151 = sbr.rel (%p149) target = $region20
      $region19: #{encoder_block.5} parent=11 // pred_region
        _
      $region20: #{encoder_block.5} parent=11 // pred_fallthru
        _
    $region12: #{encoder_block.5} parent=5 // pred_fallthru
      _
    %p152 = scmp.lt.s32.totalorder %s11, 2
    // Predicated region
    $region21: #{encoder_block.5} parent=5 // pred_check
      %p153 = pneg %p152
    $region22: #{encoder_block.5} parent=5 // pred_check_branch
      %155 = sbr.rel (%p153) target = $region24
    $region23: #{encoder_block.5} parent=5 // pred_region
      // Predicated region
      $region25: #{encoder_block.5} parent=23 // pred_check
        %p156 = pneg %p31
      $region26: #{encoder_block.5} parent=23 // pred_check_branch
        %158 = sbr.rel (%p156) target = $region28
      $region27: #{encoder_block.5} parent=23 // pred_region
        %p159 = scmp.lt.s32.totalorder %s11, 1
        %s160 = scalar_select %p159, %s11, 1
        %s161 = smul.addr %s160, 32
        %s162 = smul.addr %s161, 4
        %s163 = scalar_lea.vmem %s0, %s162
      $region28: #{encoder_block.5} parent=23 // pred_fallthru
        _
    $region24: #{encoder_block.5} parent=5 // pred_fallthru
      _
    %p164 = scmp.le.s32.totalorder 1, %s11
    %p165 = scmp.lt.s32.totalorder %s11, 3
    %p166 = pnand %p164, %p165
    %p167 = pneg %p166
    // Predicated region
    $region29: #{encoder_block.5} parent=5 // pred_check
      _
    $region30: #{encoder_block.5} parent=5 // pred_check_branch
      %169 = sbr.rel (%p166) target = $region32
    $region31: #{encoder_block.5} parent=5 // pred_region
      %s170 = ssub.s32 %s11, 1
      %p171 = scmp.lt.s32.totalorder %s16, 1
      %s172 = scalar_select %p171, %s16, 1
      %s173 = smul.addr %s172, 32
      %s174 = smul.addr %s173, 4
      %s175 = scalar_lea.vmem %s0, %s174
      %p176 = pneg %p37
      %p177 = pneg %p34
      %p178 = pneg %p58
      %p179 = pneg %p55
      %p180 = pneg %p79
      %p181 = pneg %p76
      %p182 = pneg %p105
      %p183 = pneg %p102
      %p184 = scmp.lt.s32.totalorder %s16, 1
      %s185 = scalar_select %p184, %s16, 1
      %s186 = smul.addr %s185, 32
      %s187 = smul.addr %s186, 8
      %s188 = scalar_lea.vmem %s3, %s187
      %p189 = pneg %p131
      %p190 = pneg %p128
      %p191 = scmp.lt.s32.totalorder %s16, 1
      %s192 = scalar_select %p191, %s16, 1
      %s193 = smul.addr %s192, 8
      %s194 = smul.addr %s193, 8
      %s195 = scalar_lea.vmem %s4, %s194
      %p196 = scmp.lt.s32.totalorder %s16, 1
      %s197 = scalar_select %p196, %s16, 1
      %s198 = smul.addr %s197, 32
      %s199 = smul.addr %s198, 4
      %s200 = scalar_lea.vmem %s0, %s199
      %p201 = scmp.lt.s32.totalorder %s16, 1
      %s202 = scalar_select %p201, %s16, 1
      %s203 = smul.addr %s202, 32
      %s204 = smul.addr %s203, 8
      %s205 = scalar_lea.vmem %s3, %s204
      %p206 = scmp.lt.s32.totalorder %s16, 1
      %s207 = scalar_select %p206, %s16, 1
      %s208 = smul.addr %s207, 8
      %s209 = smul.addr %s208, 8
      %s210 = scalar_lea.vmem %s4, %s209
      %v211 = vld [vmem:[%s200] sm:$0xf]
      %v212 = vld [vmem:[%s200 + $0x4] sm:$0xf]
      %v213 = vld [vmem:[%s200 + $0x8] sm:$0xf]
      %v214 = vld [vmem:[%s200 + $0xc] sm:$0xf]
      %v215 = vld [vmem:[%s200 + $0x10] sm:$0xf]
      %v216 = vld [vmem:[%s200 + $0x14] sm:$0xf]
      %v217 = vld [vmem:[%s200 + $0x18] sm:$0xf]
      %v218 = vld [vmem:[%s200 + $0x1c] sm:$0xf]
      %v219 = vld [vmem:[%s200 + $0x20] sm:$0xf]
      %v220 = vld [vmem:[%s200 + $0x24] sm:$0xf]
      %v221 = vld [vmem:[%s200 + $0x28] sm:$0xf]
      %v222 = vld [vmem:[%s200 + $0x2c] sm:$0xf]
      %v223 = vld [vmem:[%s200 + $0x30] sm:$0xf]
      %v224 = vld [vmem:[%s200 + $0x34] sm:$0xf]
      %v225 = vld [vmem:[%s200 + $0x38] sm:$0xf]
      %v226 = vld [vmem:[%s200 + $0x3c] sm:$0xf]
      %v227 = vld [vmem:[%s200 + $0x40] sm:$0xf]
      %v228 = vld [vmem:[%s200 + $0x44] sm:$0xf]
      %v229 = vld [vmem:[%s200 + $0x48] sm:$0xf]
      %v230 = vld [vmem:[%s200 + $0x4c] sm:$0xf]
      %v231 = vld [vmem:[%s200 + $0x50] sm:$0xf]
      %v232 = vld [vmem:[%s200 + $0x54] sm:$0xf]
      %v233 = vld [vmem:[%s200 + $0x58] sm:$0xf]
      %v234 = vld [vmem:[%s200 + $0x5c] sm:$0xf]
      %v235 = vld [vmem:[%s200 + $0x60] sm:$0xf]
      %v236 = vld [vmem:[%s200 + $0x64] sm:$0xf]
      %v237 = vld [vmem:[%s200 + $0x68] sm:$0xf]
      %v238 = vld [vmem:[%s200 + $0x6c] sm:$0xf]
      %v239 = vld [vmem:[%s200 + $0x70] sm:$0xf]
      %v240 = vld [vmem:[%s200 + $0x74] sm:$0xf]
      %v241 = vld [vmem:[%s200 + $0x78] sm:$0xf]
      %v242 = vld [vmem:[%s200 + $0x7c] sm:$0xf]
      %v243 = vunpack.c.l.bf16 %v211
      %v244 = vunpack.c.l.bf16 %v212
      %v245 = vunpack.c.l.bf16 %v213
      %v246 = vunpack.c.l.bf16 %v214
      %v247 = vunpack.c.l.bf16 %v215
      %v248 = vunpack.c.l.bf16 %v216
      %v249 = vunpack.c.l.bf16 %v217
      %v250 = vunpack.c.l.bf16 %v218
      %v251 = vunpack.c.l.bf16 %v219
      %v252 = vunpack.c.l.bf16 %v220
      %v253 = vunpack.c.l.bf16 %v221
      %v254 = vunpack.c.l.bf16 %v222
      %v255 = vunpack.c.l.bf16 %v223
      %v256 = vunpack.c.l.bf16 %v224
      %v257 = vunpack.c.l.bf16 %v225
      %v258 = vunpack.c.l.bf16 %v226
      %v259 = vunpack.c.l.bf16 %v227
      %v260 = vunpack.c.l.bf16 %v228
      %v261 = vunpack.c.l.bf16 %v229
      %v262 = vunpack.c.l.bf16 %v230
      %v263 = vunpack.c.l.bf16 %v231
      %v264 = vunpack.c.l.bf16 %v232
      %v265 = vunpack.c.l.bf16 %v233
      %v266 = vunpack.c.l.bf16 %v234
      %v267 = vunpack.c.l.bf16 %v235
      %v268 = vunpack.c.l.bf16 %v236
      %v269 = vunpack.c.l.bf16 %v237
      %v270 = vunpack.c.l.bf16 %v238
      %v271 = vunpack.c.l.bf16 %v239
      %v272 = vunpack.c.l.bf16 %v240
      %v273 = vunpack.c.l.bf16 %v241
      %v274 = vunpack.c.l.bf16 %v242
      %v275 = vld [vmem:[%s1] sm:$0x1]
      %v277 = vperm.slane %v275, 0
      %v279 = vmul.f32 %v243, %v277
      %v280 = vmul.f32 %v244, %v277
      %v281 = vmul.f32 %v245, %v277
      %v282 = vmul.f32 %v246, %v277
      %v283 = vmul.f32 %v247, %v277
      %v284 = vmul.f32 %v248, %v277
      %v285 = vmul.f32 %v249, %v277
      %v286 = vmul.f32 %v250, %v277
      %v287 = vmul.f32 %v251, %v277
      %v288 = vmul.f32 %v252, %v277
      %v289 = vmul.f32 %v253, %v277
      %v290 = vmul.f32 %v254, %v277
      %v291 = vmul.f32 %v255, %v277
      %v292 = vmul.f32 %v256, %v277
      %v293 = vmul.f32 %v257, %v277
      %v294 = vmul.f32 %v258, %v277
      %v295 = vmul.f32 %v259, %v277
      %v296 = vmul.f32 %v260, %v277
      %v297 = vmul.f32 %v261, %v277
      %v298 = vmul.f32 %v262, %v277
      %v299 = vmul.f32 %v263, %v277
      %v300 = vmul.f32 %v264, %v277
      %v301 = vmul.f32 %v265, %v277
      %v302 = vmul.f32 %v266, %v277
      %v303 = vmul.f32 %v267, %v277
      %v304 = vmul.f32 %v268, %v277
      %v305 = vmul.f32 %v269, %v277
      %v306 = vmul.f32 %v270, %v277
      %v307 = vmul.f32 %v271, %v277
      %v308 = vmul.f32 %v272, %v277
      %v309 = vmul.f32 %v273, %v277
      %v310 = vmul.f32 %v274, %v277
      %v311 = vld [vmem:[%s2] sm:$0x1]
      %v313 = vperm.slane %v311, 0
      %v315 = vadd.f32 %v279, %v313
      %v316 = vadd.f32 %v280, %v313
      %v317 = vadd.f32 %v281, %v313
      %v318 = vadd.f32 %v282, %v313
      %v319 = vadd.f32 %v283, %v313
      %v320 = vadd.f32 %v284, %v313
      %v321 = vadd.f32 %v285, %v313
      %v322 = vadd.f32 %v286, %v313
      %v323 = vadd.f32 %v287, %v313
      %v324 = vadd.f32 %v288, %v313
      %v325 = vadd.f32 %v289, %v313
      %v326 = vadd.f32 %v290, %v313
      %v327 = vadd.f32 %v291, %v313
      %v328 = vadd.f32 %v292, %v313
      %v329 = vadd.f32 %v293, %v313
      %v330 = vadd.f32 %v294, %v313
      %v331 = vadd.f32 %v295, %v313
      %v332 = vadd.f32 %v296, %v313
      %v333 = vadd.f32 %v297, %v313
      %v334 = vadd.f32 %v298, %v313
      %v335 = vadd.f32 %v299, %v313
      %v336 = vadd.f32 %v300, %v313
      %v337 = vadd.f32 %v301, %v313
      %v338 = vadd.f32 %v302, %v313
      %v339 = vadd.f32 %v303, %v313
      %v340 = vadd.f32 %v304, %v313
      %v341 = vadd.f32 %v305, %v313
      %v342 = vadd.f32 %v306, %v313
      %v343 = vadd.f32 %v307, %v313
      %v344 = vadd.f32 %v308, %v313
      %v345 = vadd.f32 %v309, %v313
      %v346 = vadd.f32 %v310, %v313
      %v347 = vmax.f32 %v315, 0.0
      %v348 = vmax.f32 %v316, 0.0
      %v349 = vmax.f32 %v317, 0.0
      %v350 = vmax.f32 %v318, 0.0
      %v351 = vmax.f32 %v319, 0.0
      %v352 = vmax.f32 %v320, 0.0
      %v353 = vmax.f32 %v321, 0.0
      %v354 = vmax.f32 %v322, 0.0
      %v355 = vmax.f32 %v323, 0.0
      %v356 = vmax.f32 %v324, 0.0
      %v357 = vmax.f32 %v325, 0.0
      %v358 = vmax.f32 %v326, 0.0
      %v359 = vmax.f32 %v327, 0.0
      %v360 = vmax.f32 %v328, 0.0
      %v361 = vmax.f32 %v329, 0.0
      %v362 = vmax.f32 %v330, 0.0
      %v363 = vmax.f32 %v331, 0.0
      %v364 = vmax.f32 %v332, 0.0
      %v365 = vmax.f32 %v333, 0.0
      %v366 = vmax.f32 %v334, 0.0
      %v367 = vmax.f32 %v335, 0.0
      %v368 = vmax.f32 %v336, 0.0
      %v369 = vmax.f32 %v337, 0.0
      %v370 = vmax.f32 %v338, 0.0
      %v371 = vmax.f32 %v339, 0.0
      %v372 = vmax.f32 %v340, 0.0
      %v373 = vmax.f32 %v341, 0.0
      %v374 = vmax.f32 %v342, 0.0
      %v375 = vmax.f32 %v343, 0.0
      %v376 = vmax.f32 %v344, 0.0
      %v377 = vmax.f32 %v345, 0.0
      %v378 = vmax.f32 %v346, 0.0
      %379 = vst [vmem:[%s205] sm:$0xff] %v347
      %380 = vst [vmem:[%s205 + $0x8] sm:$0xff] %v348
      %381 = vst [vmem:[%s205 + $0x10] sm:$0xff] %v349
      %382 = vst [vmem:[%s205 + $0x18] sm:$0xff] %v350
      %383 = vst [vmem:[%s205 + $0x20] sm:$0xff] %v351
      %384 = vst [vmem:[%s205 + $0x28] sm:$0xff] %v352
      %385 = vst [vmem:[%s205 + $0x30] sm:$0xff] %v353
      %386 = vst [vmem:[%s205 + $0x38] sm:$0xff] %v354
      %387 = vst [vmem:[%s205 + $0x40] sm:$0xff] %v355
      %388 = vst [vmem:[%s205 + $0x48] sm:$0xff] %v356
      %389 = vst [vmem:[%s205 + $0x50] sm:$0xff] %v357
      %390 = vst [vmem:[%s205 + $0x58] sm:$0xff] %v358
      %391 = vst [vmem:[%s205 + $0x60] sm:$0xff] %v359
      %392 = vst [vmem:[%s205 + $0x68] sm:$0xff] %v360
      %393 = vst [vmem:[%s205 + $0x70] sm:$0xff] %v361
      %394 = vst [vmem:[%s205 + $0x78] sm:$0xff] %v362
      %395 = vst [vmem:[%s205 + $0x80] sm:$0xff] %v363
      %396 = vst [vmem:[%s205 + $0x88] sm:$0xff] %v364
      %397 = vst [vmem:[%s205 + $0x90] sm:$0xff] %v365
      %398 = vst [vmem:[%s205 + $0x98] sm:$0xff] %v366
      %399 = vst [vmem:[%s205 + $0xa0] sm:$0xff] %v367
      %400 = vst [vmem:[%s205 + $0xa8] sm:$0xff] %v368
      %401 = vst [vmem:[%s205 + $0xb0] sm:$0xff] %v369
      %402 = vst [vmem:[%s205 + $0xb8] sm:$0xff] %v370
      %403 = vst [vmem:[%s205 + $0xc0] sm:$0xff] %v371
      %404 = vst [vmem:[%s205 + $0xc8] sm:$0xff] %v372
      %405 = vst [vmem:[%s205 + $0xd0] sm:$0xff] %v373
      %406 = vst [vmem:[%s205 + $0xd8] sm:$0xff] %v374
      %407 = vst [vmem:[%s205 + $0xe0] sm:$0xff] %v375
      %408 = vst [vmem:[%s205 + $0xe8] sm:$0xff] %v376
      %409 = vst [vmem:[%s205 + $0xf0] sm:$0xff] %v377
      %410 = vst [vmem:[%s205 + $0xf8] sm:$0xff] %v378
      %v411 = vmax.f32 %v347, %v349
      %v412 = vmax.f32 %v348, %v350
      %v413 = vmax.f32 %v351, %v353
      %v414 = vmax.f32 %v352, %v354
      %v415 = vmax.f32 %v355, %v357
      %v416 = vmax.f32 %v356, %v358
      %v417 = vmax.f32 %v359, %v361
      %v418 = vmax.f32 %v360, %v362
      %v419 = vmax.f32 %v363, %v365
      %v420 = vmax.f32 %v364, %v366
      %v421 = vmax.f32 %v367, %v369
      %v422 = vmax.f32 %v368, %v370
      %v423 = vmax.f32 %v371, %v373
      %v424 = vmax.f32 %v372, %v374
      %v425 = vmax.f32 %v375, %v377
      %v426 = vmax.f32 %v376, %v378
      %vm427 = vcmask 1041408
      %v428 = vsel %vm427, %v411, -inf
      %v429 = vrot.slane %v428, 4
      %v430 = vmax.f32 %v428, %v429
      %v431 = vrot.slane %v430, 2
      %v432 = vmax.f32 %v430, %v431
      %v433 = vrot.slane %v432, 1
      %v434 = vmax.f32 %v432, %v433
      %v435 = vsel %vm427, %v413, -inf
      %v436 = vrot.slane %v435, 4
      %v437 = vmax.f32 %v435, %v436
      %v438 = vrot.slane %v437, 2
      %v439 = vmax.f32 %v437, %v438
      %v440 = vrot.slane %v439, 1
      %v441 = vmax.f32 %v439, %v440
      %v442 = vsel %vm427, %v415, -inf
      %v443 = vrot.slane %v442, 4
      %v444 = vmax.f32 %v442, %v443
      %v445 = vrot.slane %v444, 2
      %v446 = vmax.f32 %v444, %v445
      %v447 = vrot.slane %v446, 1
      %v448 = vmax.f32 %v446, %v447
      %v449 = vsel %vm427, %v417, -inf
      %v450 = vrot.slane %v449, 4
      %v451 = vmax.f32 %v449, %v450
      %v452 = vrot.slane %v451, 2
      %v453 = vmax.f32 %v451, %v452
      %v454 = vrot.slane %v453, 1
      %v455 = vmax.f32 %v453, %v454
      %v456 = vsel %vm427, %v419, -inf
      %v457 = vrot.slane %v456, 4
      %v458 = vmax.f32 %v456, %v457
      %v459 = vrot.slane %v458, 2
      %v460 = vmax.f32 %v458, %v459
      %v461 = vrot.slane %v460, 1
      %v462 = vmax.f32 %v460, %v461
      %v463 = vsel %vm427, %v421, -inf
      %v464 = vrot.slane %v463, 4
      %v465 = vmax.f32 %v463, %v464
      %v466 = vrot.slane %v465, 2
      %v467 = vmax.f32 %v465, %v466
      %v468 = vrot.slane %v467, 1
      %v469 = vmax.f32 %v467, %v468
      %v470 = vsel %vm427, %v423, -inf
      %v471 = vrot.slane %v470, 4
      %v472 = vmax.f32 %v470, %v471
      %v473 = vrot.slane %v472, 2
      %v474 = vmax.f32 %v472, %v473
      %v475 = vrot.slane %v474, 1
      %v476 = vmax.f32 %v474, %v475
      %v477 = vsel %vm427, %v425, -inf
      %v478 = vrot.slane %v477, 4
      %v479 = vmax.f32 %v477, %v478
      %v480 = vrot.slane %v479, 2
      %v481 = vmax.f32 %v479, %v480
      %v482 = vrot.slane %v481, 1
      %v483 = vmax.f32 %v481, %v482
      %vm492 = vcmask 1041409
      %v493 = vsel %vm492, %v441, %v434
      %vm494 = vcmask 1042434
      %v495 = vsel %vm494, %v448, %v493
      %vm496 = vcmask 1043459
      %v497 = vsel %vm496, %v455, %v495
      %vm498 = vcmask 1044484
      %v499 = vsel %vm498, %v462, %v497
      %vm500 = vcmask 1045509
      %v501 = vsel %vm500, %v469, %v499
      %vm502 = vcmask 1046534
      %v503 = vsel %vm502, %v476, %v501
      %vm504 = vcmask 1047559
      %v505 = vsel %vm504, %v483, %v503
      %507 = vst [vmem:[%s210] sm:$0xff] %v505
      %vm508 = vcmask 1043458
      %v509 = vsel %vm508, %v411, -inf
      %v510 = vrot.slane %v509, 4
      %v511 = vmax.f32 %v509, %v510
      %v512 = vrot.slane %v511, 2
      %v513 = vmax.f32 %v511, %v512
      %v514 = vrot.slane %v513, 1
      %v515 = vmax.f32 %v513, %v514
      %v516 = vsel %vm508, %v413, -inf
      %v517 = vrot.slane %v516, 4
      %v518 = vmax.f32 %v516, %v517
      %v519 = vrot.slane %v518, 2
      %v520 = vmax.f32 %v518, %v519
      %v521 = vrot.slane %v520, 1
      %v522 = vmax.f32 %v520, %v521
      %v523 = vsel %vm508, %v415, -inf
      %v524 = vrot.slane %v523, 4
      %v525 = vmax.f32 %v523, %v524
      %v526 = vrot.slane %v525, 2
      %v527 = vmax.f32 %v525, %v526
      %v528 = vrot.slane %v527, 1
      %v529 = vmax.f32 %v527, %v528
      %v530 = vsel %vm508, %v417, -inf
      %v531 = vrot.slane %v530, 4
      %v532 = vmax.f32 %v530, %v531
      %v533 = vrot.slane %v532, 2
      %v534 = vmax.f32 %v532, %v533
      %v535 = vrot.slane %v534, 1
      %v536 = vmax.f32 %v534, %v535
      %v537 = vsel %vm508, %v419, -inf
      %v538 = vrot.slane %v537, 4
      %v539 = vmax.f32 %v537, %v538
      %v540 = vrot.slane %v539, 2
      %v541 = vmax.f32 %v539, %v540
      %v542 = vrot.slane %v541, 1
      %v543 = vmax.f32 %v541, %v542
      %v544 = vsel %vm508, %v421, -inf
      %v545 = vrot.slane %v544, 4
      %v546 = vmax.f32 %v544, %v545
      %v547 = vrot.slane %v546, 2
      %v548 = vmax.f32 %v546, %v547
      %v549 = vrot.slane %v548, 1
      %v550 = vmax.f32 %v548, %v549
      %v551 = vsel %vm508, %v423, -inf
      %v552 = vrot.slane %v551, 4
      %v553 = vmax.f32 %v551, %v552
      %v554 = vrot.slane %v553, 2
      %v555 = vmax.f32 %v553, %v554
      %v556 = vrot.slane %v555, 1
      %v557 = vmax.f32 %v555, %v556
      %v558 = vsel %vm508, %v425, -inf
      %v559 = vrot.slane %v558, 4
      %v560 = vmax.f32 %v558, %v559
      %v561 = vrot.slane %v560, 2
      %v562 = vmax.f32 %v560, %v561
      %v563 = vrot.slane %v562, 1
      %v564 = vmax.f32 %v562, %v563
      %v573 = vsel %vm492, %v522, %v515
      %v574 = vsel %vm494, %v529, %v573
      %v575 = vsel %vm496, %v536, %v574
      %v576 = vsel %vm498, %v543, %v575
      %v577 = vsel %vm500, %v550, %v576
      %v578 = vsel %vm502, %v557, %v577
      %v579 = vsel %vm504, %v564, %v578
      %581 = vst [vmem:[%s210 + $0x8] sm:$0xff] %v579
      %vm582 = vcmask 1045508
      %v583 = vsel %vm582, %v411, -inf
      %v584 = vrot.slane %v583, 4
      %v585 = vmax.f32 %v583, %v584
      %v586 = vrot.slane %v585, 2
      %v587 = vmax.f32 %v585, %v586
      %v588 = vrot.slane %v587, 1
      %v589 = vmax.f32 %v587, %v588
      %v590 = vsel %vm582, %v413, -inf
      %v591 = vrot.slane %v590, 4
      %v592 = vmax.f32 %v590, %v591
      %v593 = vrot.slane %v592, 2
      %v594 = vmax.f32 %v592, %v593
      %v595 = vrot.slane %v594, 1
      %v596 = vmax.f32 %v594, %v595
      %v597 = vsel %vm582, %v415, -inf
      %v598 = vrot.slane %v597, 4
      %v599 = vmax.f32 %v597, %v598
      %v600 = vrot.slane %v599, 2
      %v601 = vmax.f32 %v599, %v600
      %v602 = vrot.slane %v601, 1
      %v603 = vmax.f32 %v601, %v602
      %v604 = vsel %vm582, %v417, -inf
      %v605 = vrot.slane %v604, 4
      %v606 = vmax.f32 %v604, %v605
      %v607 = vrot.slane %v606, 2
      %v608 = vmax.f32 %v606, %v607
      %v609 = vrot.slane %v608, 1
      %v610 = vmax.f32 %v608, %v609
      %v611 = vsel %vm582, %v419, -inf
      %v612 = vrot.slane %v611, 4
      %v613 = vmax.f32 %v611, %v612
      %v614 = vrot.slane %v613, 2
      %v615 = vmax.f32 %v613, %v614
      %v616 = vrot.slane %v615, 1
      %v617 = vmax.f32 %v615, %v616
      %v618 = vsel %vm582, %v421, -inf
      %v619 = vrot.slane %v618, 4
      %v620 = vmax.f32 %v618, %v619
      %v621 = vrot.slane %v620, 2
      %v622 = vmax.f32 %v620, %v621
      %v623 = vrot.slane %v622, 1
      %v624 = vmax.f32 %v622, %v623
      %v625 = vsel %vm582, %v423, -inf
      %v626 = vrot.slane %v625, 4
      %v627 = vmax.f32 %v625, %v626
      %v628 = vrot.slane %v627, 2
      %v629 = vmax.f32 %v627, %v628
      %v630 = vrot.slane %v629, 1
      %v631 = vmax.f32 %v629, %v630
      %v632 = vsel %vm582, %v425, -inf
      %v633 = vrot.slane %v632, 4
      %v634 = vmax.f32 %v632, %v633
      %v635 = vrot.slane %v634, 2
      %v636 = vmax.f32 %v634, %v635
      %v637 = vrot.slane %v636, 1
      %v638 = vmax.f32 %v636, %v637
      %v647 = vsel %vm492, %v596, %v589
      %v648 = vsel %vm494, %v603, %v647
      %v649 = vsel %vm496, %v610, %v648
      %v650 = vsel %vm498, %v617, %v649
      %v651 = vsel %vm500, %v624, %v650
      %v652 = vsel %vm502, %v631, %v651
      %v653 = vsel %vm504, %v638, %v652
      %655 = vst [vmem:[%s210 + $0x10] sm:$0xff] %v653
      %vm656 = vcmask 1047558
      %v657 = vsel %vm656, %v411, -inf
      %v658 = vrot.slane %v657, 4
      %v659 = vmax.f32 %v657, %v658
      %v660 = vrot.slane %v659, 2
      %v661 = vmax.f32 %v659, %v660
      %v662 = vrot.slane %v661, 1
      %v663 = vmax.f32 %v661, %v662
      %v664 = vsel %vm656, %v413, -inf
      %v665 = vrot.slane %v664, 4
      %v666 = vmax.f32 %v664, %v665
      %v667 = vrot.slane %v666, 2
      %v668 = vmax.f32 %v666, %v667
      %v669 = vrot.slane %v668, 1
      %v670 = vmax.f32 %v668, %v669
      %v671 = vsel %vm656, %v415, -inf
      %v672 = vrot.slane %v671, 4
      %v673 = vmax.f32 %v671, %v672
      %v674 = vrot.slane %v673, 2
      %v675 = vmax.f32 %v673, %v674
      %v676 = vrot.slane %v675, 1
      %v677 = vmax.f32 %v675, %v676
      %v678 = vsel %vm656, %v417, -inf
      %v679 = vrot.slane %v678, 4
      %v680 = vmax.f32 %v678, %v679
      %v681 = vrot.slane %v680, 2
      %v682 = vmax.f32 %v680, %v681
      %v683 = vrot.slane %v682, 1
      %v684 = vmax.f32 %v682, %v683
      %v685 = vsel %vm656, %v419, -inf
      %v686 = vrot.slane %v685, 4
      %v687 = vmax.f32 %v685, %v686
      %v688 = vrot.slane %v687, 2
      %v689 = vmax.f32 %v687, %v688
      %v690 = vrot.slane %v689, 1
      %v691 = vmax.f32 %v689, %v690
      %v692 = vsel %vm656, %v421, -inf
      %v693 = vrot.slane %v692, 4
      %v694 = vmax.f32 %v692, %v693
      %v695 = vrot.slane %v694, 2
      %v696 = vmax.f32 %v694, %v695
      %v697 = vrot.slane %v696, 1
      %v698 = vmax.f32 %v696, %v697
      %v699 = vsel %vm656, %v423, -inf
      %v700 = vrot.slane %v699, 4
      %v701 = vmax.f32 %v699, %v700
      %v702 = vrot.slane %v701, 2
      %v703 = vmax.f32 %v701, %v702
      %v704 = vrot.slane %v703, 1
      %v705 = vmax.f32 %v703, %v704
      %v706 = vsel %vm656, %v425, -inf
      %v707 = vrot.slane %v706, 4
      %v708 = vmax.f32 %v706, %v707
      %v709 = vrot.slane %v708, 2
      %v710 = vmax.f32 %v708, %v709
      %v711 = vrot.slane %v710, 1
      %v712 = vmax.f32 %v710, %v711
      %v721 = vsel %vm492, %v670, %v663
      %v722 = vsel %vm494, %v677, %v721
      %v723 = vsel %vm496, %v684, %v722
      %v724 = vsel %vm498, %v691, %v723
      %v725 = vsel %vm500, %v698, %v724
      %v726 = vsel %vm502, %v705, %v725
      %v727 = vsel %vm504, %v712, %v726
      %729 = vst [vmem:[%s210 + $0x18] sm:$0xff] %v727
      %v730 = vsel %vm427, %v412, -inf
      %v731 = vrot.slane %v730, 4
      %v732 = vmax.f32 %v730, %v731
      %v733 = vrot.slane %v732, 2
      %v734 = vmax.f32 %v732, %v733
      %v735 = vrot.slane %v734, 1
      %v736 = vmax.f32 %v734, %v735
      %v737 = vsel %vm427, %v414, -inf
      %v738 = vrot.slane %v737, 4
      %v739 = vmax.f32 %v737, %v738
      %v740 = vrot.slane %v739, 2
      %v741 = vmax.f32 %v739, %v740
      %v742 = vrot.slane %v741, 1
      %v743 = vmax.f32 %v741, %v742
      %v744 = vsel %vm427, %v416, -inf
      %v745 = vrot.slane %v744, 4
      %v746 = vmax.f32 %v744, %v745
      %v747 = vrot.slane %v746, 2
      %v748 = vmax.f32 %v746, %v747
      %v749 = vrot.slane %v748, 1
      %v750 = vmax.f32 %v748, %v749
      %v751 = vsel %vm427, %v418, -inf
      %v752 = vrot.slane %v751, 4
      %v753 = vmax.f32 %v751, %v752
      %v754 = vrot.slane %v753, 2
      %v755 = vmax.f32 %v753, %v754
      %v756 = vrot.slane %v755, 1
      %v757 = vmax.f32 %v755, %v756
      %v758 = vsel %vm427, %v420, -inf
      %v759 = vrot.slane %v758, 4
      %v760 = vmax.f32 %v758, %v759
      %v761 = vrot.slane %v760, 2
      %v762 = vmax.f32 %v760, %v761
      %v763 = vrot.slane %v762, 1
      %v764 = vmax.f32 %v762, %v763
      %v765 = vsel %vm427, %v422, -inf
      %v766 = vrot.slane %v765, 4
      %v767 = vmax.f32 %v765, %v766
      %v768 = vrot.slane %v767, 2
      %v769 = vmax.f32 %v767, %v768
      %v770 = vrot.slane %v769, 1
      %v771 = vmax.f32 %v769, %v770
      %v772 = vsel %vm427, %v424, -inf
      %v773 = vrot.slane %v772, 4
      %v774 = vmax.f32 %v772, %v773
      %v775 = vrot.slane %v774, 2
      %v776 = vmax.f32 %v774, %v775
      %v777 = vrot.slane %v776, 1
      %v778 = vmax.f32 %v776, %v777
      %v779 = vsel %vm427, %v426, -inf
      %v780 = vrot.slane %v779, 4
      %v781 = vmax.f32 %v779, %v780
      %v782 = vrot.slane %v781, 2
      %v783 = vmax.f32 %v781, %v782
      %v784 = vrot.slane %v783, 1
      %v785 = vmax.f32 %v783, %v784
      %v794 = vsel %vm492, %v743, %v736
      %v795 = vsel %vm494, %v750, %v794
      %v796 = vsel %vm496, %v757, %v795
      %v797 = vsel %vm498, %v764, %v796
      %v798 = vsel %vm500, %v771, %v797
      %v799 = vsel %vm502, %v778, %v798
      %v800 = vsel %vm504, %v785, %v799
      %802 = vst [vmem:[%s210 + $0x20] sm:$0xff] %v800
      %v803 = vsel %vm508, %v412, -inf
      %v804 = vrot.slane %v803, 4
      %v805 = vmax.f32 %v803, %v804
      %v806 = vrot.slane %v805, 2
      %v807 = vmax.f32 %v805, %v806
      %v808 = vrot.slane %v807, 1
      %v809 = vmax.f32 %v807, %v808
      %v810 = vsel %vm508, %v414, -inf
      %v811 = vrot.slane %v810, 4
      %v812 = vmax.f32 %v810, %v811
      %v813 = vrot.slane %v812, 2
      %v814 = vmax.f32 %v812, %v813
      %v815 = vrot.slane %v814, 1
      %v816 = vmax.f32 %v814, %v815
      %v817 = vsel %vm508, %v416, -inf
      %v818 = vrot.slane %v817, 4
      %v819 = vmax.f32 %v817, %v818
      %v820 = vrot.slane %v819, 2
      %v821 = vmax.f32 %v819, %v820
      %v822 = vrot.slane %v821, 1
      %v823 = vmax.f32 %v821, %v822
      %v824 = vsel %vm508, %v418, -inf
      %v825 = vrot.slane %v824, 4
      %v826 = vmax.f32 %v824, %v825
      %v827 = vrot.slane %v826, 2
      %v828 = vmax.f32 %v826, %v827
      %v829 = vrot.slane %v828, 1
      %v830 = vmax.f32 %v828, %v829
      %v831 = vsel %vm508, %v420, -inf
      %v832 = vrot.slane %v831, 4
      %v833 = vmax.f32 %v831, %v832
      %v834 = vrot.slane %v833, 2
      %v835 = vmax.f32 %v833, %v834
      %v836 = vrot.slane %v835, 1
      %v837 = vmax.f32 %v835, %v836
      %v838 = vsel %vm508, %v422, -inf
      %v839 = vrot.slane %v838, 4
      %v840 = vmax.f32 %v838, %v839
      %v841 = vrot.slane %v840, 2
      %v842 = vmax.f32 %v840, %v841
      %v843 = vrot.slane %v842, 1
      %v844 = vmax.f32 %v842, %v843
      %v845 = vsel %vm508, %v424, -inf
      %v846 = vrot.slane %v845, 4
      %v847 = vmax.f32 %v845, %v846
      %v848 = vrot.slane %v847, 2
      %v849 = vmax.f32 %v847, %v848
      %v850 = vrot.slane %v849, 1
      %v851 = vmax.f32 %v849, %v850
      %v852 = vsel %vm508, %v426, -inf
      %v853 = vrot.slane %v852, 4
      %v854 = vmax.f32 %v852, %v853
      %v855 = vrot.slane %v854, 2
      %v856 = vmax.f32 %v854, %v855
      %v857 = vrot.slane %v856, 1
      %v858 = vmax.f32 %v856, %v857
      %v867 = vsel %vm492, %v816, %v809
      %v868 = vsel %vm494, %v823, %v867
      %v869 = vsel %vm496, %v830, %v868
      %v870 = vsel %vm498, %v837, %v869
      %v871 = vsel %vm500, %v844, %v870
      %v872 = vsel %vm502, %v851, %v871
      %v873 = vsel %vm504, %v858, %v872
      %875 = vst [vmem:[%s210 + $0x28] sm:$0xff] %v873
      %v876 = vsel %vm582, %v412, -inf
      %v877 = vrot.slane %v876, 4
      %v878 = vmax.f32 %v876, %v877
      %v879 = vrot.slane %v878, 2
      %v880 = vmax.f32 %v878, %v879
      %v881 = vrot.slane %v880, 1
      %v882 = vmax.f32 %v880, %v881
      %v883 = vsel %vm582, %v414, -inf
      %v884 = vrot.slane %v883, 4
      %v885 = vmax.f32 %v883, %v884
      %v886 = vrot.slane %v885, 2
      %v887 = vmax.f32 %v885, %v886
      %v888 = vrot.slane %v887, 1
      %v889 = vmax.f32 %v887, %v888
      %v890 = vsel %vm582, %v416, -inf
      %v891 = vrot.slane %v890, 4
      %v892 = vmax.f32 %v890, %v891
      %v893 = vrot.slane %v892, 2
      %v894 = vmax.f32 %v892, %v893
      %v895 = vrot.slane %v894, 1
      %v896 = vmax.f32 %v894, %v895
      %v897 = vsel %vm582, %v418, -inf
      %v898 = vrot.slane %v897, 4
      %v899 = vmax.f32 %v897, %v898
      %v900 = vrot.slane %v899, 2
      %v901 = vmax.f32 %v899, %v900
      %v902 = vrot.slane %v901, 1
      %v903 = vmax.f32 %v901, %v902
      %v904 = vsel %vm582, %v420, -inf
      %v905 = vrot.slane %v904, 4
      %v906 = vmax.f32 %v904, %v905
      %v907 = vrot.slane %v906, 2
      %v908 = vmax.f32 %v906, %v907
      %v909 = vrot.slane %v908, 1
      %v910 = vmax.f32 %v908, %v909
      %v911 = vsel %vm582, %v422, -inf
      %v912 = vrot.slane %v911, 4
      %v913 = vmax.f32 %v911, %v912
      %v914 = vrot.slane %v913, 2
      %v915 = vmax.f32 %v913, %v914
      %v916 = vrot.slane %v915, 1
      %v917 = vmax.f32 %v915, %v916
      %v918 = vsel %vm582, %v424, -inf
      %v919 = vrot.slane %v918, 4
      %v920 = vmax.f32 %v918, %v919
      %v921 = vrot.slane %v920, 2
      %v922 = vmax.f32 %v920, %v921
      %v923 = vrot.slane %v922, 1
      %v924 = vmax.f32 %v922, %v923
      %v925 = vsel %vm582, %v426, -inf
      %v926 = vrot.slane %v925, 4
      %v927 = vmax.f32 %v925, %v926
      %v928 = vrot.slane %v927, 2
      %v929 = vmax.f32 %v927, %v928
      %v930 = vrot.slane %v929, 1
      %v931 = vmax.f32 %v929, %v930
      %v940 = vsel %vm492, %v889, %v882
      %v941 = vsel %vm494, %v896, %v940
      %v942 = vsel %vm496, %v903, %v941
      %v943 = vsel %vm498, %v910, %v942
      %v944 = vsel %vm500, %v917, %v943
      %v945 = vsel %vm502, %v924, %v944
      %v946 = vsel %vm504, %v931, %v945
      %948 = vst [vmem:[%s210 + $0x30] sm:$0xff] %v946
      %v949 = vsel %vm656, %v412, -inf
      %v950 = vrot.slane %v949, 4
      %v951 = vmax.f32 %v949, %v950
      %v952 = vrot.slane %v951, 2
      %v953 = vmax.f32 %v951, %v952
      %v954 = vrot.slane %v953, 1
      %v955 = vmax.f32 %v953, %v954
      %v956 = vsel %vm656, %v414, -inf
      %v957 = vrot.slane %v956, 4
      %v958 = vmax.f32 %v956, %v957
      %v959 = vrot.slane %v958, 2
      %v960 = vmax.f32 %v958, %v959
      %v961 = vrot.slane %v960, 1
      %v962 = vmax.f32 %v960, %v961
      %v963 = vsel %vm656, %v416, -inf
      %v964 = vrot.slane %v963, 4
      %v965 = vmax.f32 %v963, %v964
      %v966 = vrot.slane %v965, 2
      %v967 = vmax.f32 %v965, %v966
      %v968 = vrot.slane %v967, 1
      %v969 = vmax.f32 %v967, %v968
      %v970 = vsel %vm656, %v418, -inf
      %v971 = vrot.slane %v970, 4
      %v972 = vmax.f32 %v970, %v971
      %v973 = vrot.slane %v972, 2
      %v974 = vmax.f32 %v972, %v973
      %v975 = vrot.slane %v974, 1
      %v976 = vmax.f32 %v974, %v975
      %v977 = vsel %vm656, %v420, -inf
      %v978 = vrot.slane %v977, 4
      %v979 = vmax.f32 %v977, %v978
      %v980 = vrot.slane %v979, 2
      %v981 = vmax.f32 %v979, %v980
      %v982 = vrot.slane %v981, 1
      %v983 = vmax.f32 %v981, %v982
      %v984 = vsel %vm656, %v422, -inf
      %v985 = vrot.slane %v984, 4
      %v986 = vmax.f32 %v984, %v985
      %v987 = vrot.slane %v986, 2
      %v988 = vmax.f32 %v986, %v987
      %v989 = vrot.slane %v988, 1
      %v990 = vmax.f32 %v988, %v989
      %v991 = vsel %vm656, %v424, -inf
      %v992 = vrot.slane %v991, 4
      %v993 = vmax.f32 %v991, %v992
      %v994 = vrot.slane %v993, 2
      %v995 = vmax.f32 %v993, %v994
      %v996 = vrot.slane %v995, 1
      %v997 = vmax.f32 %v995, %v996
      %v998 = vsel %vm656, %v426, -inf
      %v999 = vrot.slane %v998, 4
      %v1000 = vmax.f32 %v998, %v999
      %v1001 = vrot.slane %v1000, 2
      %v1002 = vmax.f32 %v1000, %v1001
      %v1003 = vrot.slane %v1002, 1
      %v1004 = vmax.f32 %v1002, %v1003
      %v1013 = vsel %vm492, %v962, %v955
      %v1014 = vsel %vm494, %v969, %v1013
      %v1015 = vsel %vm496, %v976, %v1014
      %v1016 = vsel %vm498, %v983, %v1015
      %v1017 = vsel %vm500, %v990, %v1016
      %v1018 = vsel %vm502, %v997, %v1017
      %v1019 = vsel %vm504, %v1004, %v1018
      %1021 = vst [vmem:[%s210 + $0x38] sm:$0xff] %v1019
      %p1022 = scmp.lt.s32.totalorder %s16, 1
      %s1023 = scalar_select %p1022, %s16, 1
      %s1024 = smul.addr %s1023, 32
      %s1025 = smul.addr %s1024, 8
      %s1026 = scalar_lea.vmem %s3, %s1025
      %p1027 = scmp.lt.s32.totalorder %s16, 1
      %s1028 = scalar_select %p1027, %s16, 1
      %s1029 = smul.addr %s1028, 8
      %s1030 = smul.addr %s1029, 8
      %s1031 = scalar_lea.vmem %s4, %s1030
      // Predicated region
      $region33: #{encoder_block.5} parent=31 // pred_check
        %p1032 = pneg %p102
      $region34: #{encoder_block.5} parent=31 // pred_check_branch
        %1034 = sbr.rel (%p1032) target = $region36
      $region35: #{encoder_block.5} parent=31 // pred_region
        _
      $region36: #{encoder_block.5} parent=31 // pred_fallthru
        _
      // Predicated region
      $region37: #{encoder_block.5} parent=31 // pred_check
        %p1035 = pneg %p128
      $region38: #{encoder_block.5} parent=31 // pred_check_branch
        %1037 = sbr.rel (%p1035) target = $region40
      $region39: #{encoder_block.5} parent=31 // pred_region
        _
      $region40: #{encoder_block.5} parent=31 // pred_fallthru
        _
    $region32: #{encoder_block.5} parent=5 // pred_fallthru
      _
    %p1038 = scmp.le.s32.totalorder 2, %s11
    // Predicated region
    $region41: #{encoder_block.5} parent=5 // pred_check
      %p1039 = pneg %p1038
    $region42: #{encoder_block.5} parent=5 // pred_check_branch
      %1041 = sbr.rel (%p1039) target = $region44
    $region43: #{encoder_block.5} parent=5 // pred_region
      %s1042 = ssub.s32 %s11, 2
      // Predicated region
      $region45: #{encoder_block.5} parent=43 // pred_check
        %p1043 = pneg %p108
      $region46: #{encoder_block.5} parent=43 // pred_check_branch
        %1045 = sbr.rel (%p1043) target = $region48
      $region47: #{encoder_block.5} parent=43 // pred_region
        %p1046 = scmp.lt.s32.totalorder %s17, 1
        %s1047 = scalar_select %p1046, %s17, 1
        %s1048 = smul.addr %s1047, 32
        %s1049 = smul.addr %s1048, 8
        %s1050 = scalar_lea.vmem %s3, %s1049
      $region48: #{encoder_block.5} parent=43 // pred_fallthru
        _
      // Predicated region
      $region49: #{encoder_block.5} parent=43 // pred_check
        %p1051 = pneg %p134
      $region50: #{encoder_block.5} parent=43 // pred_check_branch
        %1053 = sbr.rel (%p1051) target = $region52
      $region51: #{encoder_block.5} parent=43 // pred_region
        %p1054 = scmp.lt.s32.totalorder %s17, 1
        %s1055 = scalar_select %p1054, %s17, 1
        %s1056 = smul.addr %s1055, 8
        %s1057 = smul.addr %s1056, 8
        %s1058 = scalar_lea.vmem %s4, %s1057
      $region52: #{encoder_block.5} parent=43 // pred_fallthru
        _
    $region44: #{encoder_block.5} parent=5 // pred_fallthru
      _
  $region6: #{encoder_block.5} parent=0 // loop_footer
    %s15 = sadd.s32 1, %s11
  $region7: #{encoder_block.5} parent=0 // loop_footer_branch
    %10 = sbr.rel target = $region3
  $region8: #{encoder_block.5} parent=0 // loop_exit
    _

// kernel: encoder_block.3
$region0: #{encoder_block.3}
  #allocation0 [shape = 'u32[]', space=smem, size = 0x4, offset = 0x4, fixed_abs, tag = 'smem constant byte address 0x4 - core index']
  #allocation1 [shape = 'u32[72,128]{1,0:T(1,128)}', space=vmem, size = 0x9000, scoped, tag = 'internal scratch']
  %s0 = inlined_call_operand.vmem [shape: bf16[2,18,18,128], index: 0, kind: input, shape index: {}]
  %s1 = inlined_call_operand.vmem [shape: bf16[9,128,128], index: 1, kind: input, shape index: {}]
  %s2 = inlined_call_operand.vmem [shape: bf16[2,16,16,128], index: 2, kind: output, shape index: {0}]
  %s3 = inlined_call_operand.vmem [shape: f32[2,2,128], index: 3, kind: output, shape index: {1}]
  %4 = xla_tuple %s2, %s3
  %s5 = sld [smem:[#allocation0]]
  $region49: #{encoder_block.3} parent=0
    _
  %s7 = ssub.s32 1, %s5
  %s8 = scalar_select 0, %s7, %s5
  loop: start=0, step=1, limit=4
  $region2: #{encoder_block.3} parent=0 // loop_pre_header
    _
  $region3: #{encoder_block.3} parent=0 // loop_header
    %s10 = sphi 0, %s14
    %p11 = scmp.ge.s32.totalorder %s10, 4
    %s20 = sphi 0, %s22
    %s23 = sphi 0, %s20
    %s24 = sphi 0, %s23
    %s40 = sphi 0, %s24
    %s44 = sphi 0, %s44
    %s46 = sphi 0, %s44
    %s47 = sphi 0, %s46
    %s61 = sphi 0, %s47
    %s67 = sphi 0, %s69
    %s70 = sphi 0, %s67
    %s71 = sphi 0, %s70
    %s87 = sphi 0, %s71
    %s93 = sphi 0, %s95
    %s96 = sphi 0, %s93
    %s97 = sphi 0, %s96
    %s113 = sphi 0, %s97
  $region4: #{encoder_block.3} parent=0 // loop_header_branch
    %13 = sbr.rel (%p11) target = $region8
  $region5: #{encoder_block.3} parent=0 // loop_body
    %s15 = ssub.s32 %s10, 1
    %s16 = ssub.s32 %s10, 2
    %s17 = sadd.s32 %s10, 1
    %s18 = ssub.s32 %s10, %s17
    %p19 = scmp.eq.s32.totalorder %s18, 0
    %s21 = sadd.s32 %s20, 1
    %s22 = scalar_select %p19, %s20, %s21
    %p25 = pneg %p19
    %p26 = scmp.eq.s32.totalorder %s10, 1
    %p27 = por %p25, %p26
    %p28 = scmp.ne.s32.totalorder %s20, %s23
    %p29 = scmp.eq.s32.totalorder %s10, 0
    %p30 = por %p28, %p29
    %p31 = scmp.ne.s32.totalorder %s20, %s23
    %p32 = scmp.eq.s32.totalorder %s15, 1
    %p33 = por %p31, %p32
    %p34 = scmp.ne.s32.totalorder %s23, %s24
    %p35 = scmp.eq.s32.totalorder %s15, 0
    %p36 = por %p34, %p35
    %p37 = scmp.ne.s32.totalorder %s23, %s24
    %p38 = scmp.eq.s32.totalorder %s16, 1
    %p39 = por %p37, %p38
    %p41 = scmp.ne.s32.totalorder %s24, %s40
    %p42 = scmp.eq.s32.totalorder %s16, 0
    %p43 = por %p41, %p42
    %s45 = sadd.s32 %s44, 1
    %p48 = scmp.eq.s32.totalorder %s10, 1
    %p49 = scmp.ne.s32.totalorder %s44, %s46
    %p50 = scmp.eq.s32.totalorder %s10, 0
    %p51 = por %p49, %p50
    %p52 = scmp.ne.s32.totalorder %s44, %s46
    %p53 = scmp.eq.s32.totalorder %s15, 1
    %p54 = por %p52, %p53
    %p55 = scmp.ne.s32.totalorder %s46, %s47
    %p56 = scmp.eq.s32.totalorder %s15, 0
    %p57 = por %p55, %p56
    %p58 = scmp.ne.s32.totalorder %s46, %s47
    %p59 = scmp.eq.s32.totalorder %s16, 1
    %p60 = por %p58, %p59
    %p62 = scmp.ne.s32.totalorder %s47, %s61
    %p63 = scmp.eq.s32.totalorder %s16, 0
    %p64 = por %p62, %p63
    %s65 = ssub.s32 %s10, %s17
    %p66 = scmp.eq.s32.totalorder %s65, 0
    %s68 = sadd.s32 %s67, 1
    %s69 = scalar_select %p66, %s67, %s68
    %p72 = pneg %p66
    %p73 = scmp.eq.s32.totalorder %s10, 1
    %p74 = por %p72, %p73
    %p75 = scmp.ne.s32.totalorder %s67, %s70
    %p76 = scmp.eq.s32.totalorder %s10, 0
    %p77 = por %p75, %p76
    %p78 = scmp.ne.s32.totalorder %s67, %s70
    %p79 = scmp.eq.s32.totalorder %s15, 1
    %p80 = por %p78, %p79
    %p81 = scmp.ne.s32.totalorder %s70, %s71
    %p82 = scmp.eq.s32.totalorder %s15, 0
    %p83 = por %p81, %p82
    %p84 = scmp.ne.s32.totalorder %s70, %s71
    %p85 = scmp.eq.s32.totalorder %s16, 1
    %p86 = por %p84, %p85
    %p88 = scmp.ne.s32.totalorder %s71, %s87
    %p89 = scmp.eq.s32.totalorder %s16, 0
    %p90 = por %p88, %p89
    %s91 = ssub.s32 %s10, %s17
    %p92 = scmp.eq.s32.totalorder %s91, 0
    %s94 = sadd.s32 %s93, 1
    %s95 = scalar_select %p92, %s93, %s94
    %p98 = pneg %p92
    %p99 = scmp.eq.s32.totalorder %s10, 1
    %p100 = por %p98, %p99
    %p101 = scmp.ne.s32.totalorder %s93, %s96
    %p102 = scmp.eq.s32.totalorder %s10, 0
    %p103 = por %p101, %p102
    %p104 = scmp.ne.s32.totalorder %s93, %s96
    %p105 = scmp.eq.s32.totalorder %s15, 1
    %p106 = por %p104, %p105
    %p107 = scmp.ne.s32.totalorder %s96, %s97
    %p108 = scmp.eq.s32.totalorder %s15, 0
    %p109 = por %p107, %p108
    %p110 = scmp.ne.s32.totalorder %s96, %s97
    %p111 = scmp.eq.s32.totalorder %s16, 1
    %p112 = por %p110, %p111
    %p114 = scmp.ne.s32.totalorder %s97, %s113
    %p115 = scmp.eq.s32.totalorder %s16, 0
    %p116 = por %p114, %p115
    %p117 = scmp.le.s32.totalorder 1, %s10
    %p118 = scmp.lt.s32.totalorder %s10, 3
    %p119 = pnand %p117, %p118
    %p120 = pneg %p119
    // Predicated region
    $region9: #{encoder_block.3} parent=5 // pred_check
      _
    $region10: #{encoder_block.3} parent=5 // pred_check_branch
      %122 = sbr.rel (%p119) target = $region12
    $region11: #{encoder_block.3} parent=5 // pred_region
      %s123 = ssub.s32 %s10, 1
      // Predicated region
      $region13: #{encoder_block.3} parent=11 // pred_check
        %p124 = pneg %p57
      $region14: #{encoder_block.3} parent=11 // pred_check_branch
        %126 = sbr.rel (%p124) target = $region16
      $region15: #{encoder_block.3} parent=11 // pred_region
        _
      $region16: #{encoder_block.3} parent=11 // pred_fallthru
        _
    $region12: #{encoder_block.3} parent=5 // pred_fallthru
      _
    %p127 = scmp.lt.s32.totalorder %s10, 2
    // Predicated region
    $region17: #{encoder_block.3} parent=5 // pred_check
      %p128 = pneg %p127
    $region18: #{encoder_block.3} parent=5 // pred_check_branch
      %130 = sbr.rel (%p128) target = $region20
    $region19: #{encoder_block.3} parent=5 // pred_region
      // Predicated region
      $region21: #{encoder_block.3} parent=19 // pred_check
        %p131 = pneg %p30
      $region22: #{encoder_block.3} parent=19 // pred_check_branch
        %133 = sbr.rel (%p131) target = $region24
      $region23: #{encoder_block.3} parent=19 // pred_region
        %p134 = scmp.lt.s32.totalorder %s10, 1
        %s135 = scalar_select %p134, %s10, 1
        %s136 = smul.addr %s135, 54
        %s137 = smul.addr %s136, 4
        %s138 = scalar_lea.vmem %s0, %s137
      $region24: #{encoder_block.3} parent=19 // pred_fallthru
        _
    $region20: #{encoder_block.3} parent=5 // pred_fallthru
      _
    %p139 = scmp.le.s32.totalorder 1, %s10
    %p140 = scmp.lt.s32.totalorder %s10, 3
    %p141 = pnand %p139, %p140
    %p142 = pneg %p141
    // Predicated region
    $region25: #{encoder_block.3} parent=5 // pred_check
      _
    $region26: #{encoder_block.3} parent=5 // pred_check_branch
      %144 = sbr.rel (%p141) target = $region28
    $region27: #{encoder_block.3} parent=5 // pred_region
      %s145 = ssub.s32 %s10, 1
      %p146 = scmp.lt.s32.totalorder %s15, 1
      %s147 = scalar_select %p146, %s15, 1
      %s148 = smul.addr %s147, 54
      %s149 = smul.addr %s148, 4
      %s150 = scalar_lea.vmem %s0, %s149
      %p151 = pneg %p36
      %p152 = pneg %p33
      %p153 = pneg %p57
      %p154 = pneg %p54
      %p155 = pneg %p83
      %p156 = pneg %p80
      %p157 = scmp.lt.s32.totalorder %s15, 1
      %s158 = scalar_select %p157, %s15, 1
      %s159 = smul.addr %s158, 32
      %s160 = smul.addr %s159, 4
      %s161 = scalar_lea.vmem %s2, %s160
      %p162 = pneg %p109
      %p163 = pneg %p106
      %p164 = scmp.lt.s32.totalorder %s15, 1
      %s165 = scalar_select %p164, %s15, 1
      %s166 = smul.addr %s165, 2
      %s167 = scalar_lea.vmem %s3, %s166
      %p168 = scmp.lt.s32.totalorder %s15, 1
      %s169 = scalar_select %p168, %s15, 1
      %s170 = smul.addr %s169, 54
      %s171 = smul.addr %s170, 4
      %s172 = scalar_lea.vmem %s0, %s171
      %p173 = scmp.lt.s32.totalorder %s15, 1
      %s174 = scalar_select %p173, %s15, 1
      %s175 = smul.addr %s174, 32
      %s176 = smul.addr %s175, 4
      %s177 = scalar_lea.vmem %s2, %s176
      %p178 = scmp.lt.s32.totalorder %s15, 1
      %s179 = scalar_select %p178, %s15, 1
      %s180 = smul.addr %s179, 2
      %s181 = scalar_lea.vmem %s3, %s180
      %v182 = vld [vmem:[%s172] sm:$0xf]
      %v183 = vld [vmem:[%s172 + $0x4] sm:$0xf]
      %v184 = vld [vmem:[%s172 + $0xc] sm:$0xf]
      %v185 = vld [vmem:[%s172 + $0x10] sm:$0xf]
      %v186 = vld [vmem:[%s172 + $0x18] sm:$0xf]
      %v187 = vld [vmem:[%s172 + $0x1c] sm:$0xf]
      %v188 = vld [vmem:[%s172 + $0x24] sm:$0xf]
      %v189 = vld [vmem:[%s172 + $0x28] sm:$0xf]
      %v190 = vld [vmem:[%s172 + $0x30] sm:$0xf]
      %v191 = vld [vmem:[%s172 + $0x34] sm:$0xf]
      %v192 = vld [vmem:[%s172 + $0x3c] sm:$0xf]
      %v193 = vld [vmem:[%s172 + $0x40] sm:$0xf]
      %v194 = vld [vmem:[%s172 + $0x48] sm:$0xf]
      %v195 = vld [vmem:[%s172 + $0x4c] sm:$0xf]
      %v196 = vld [vmem:[%s172 + $0x54] sm:$0xf]
      %v197 = vld [vmem:[%s172 + $0x58] sm:$0xf]
      %v198 = vld [vmem:[%s172 + $0x60] sm:$0xf]
      %v199 = vld [vmem:[%s172 + $0x64] sm:$0xf]
      %v200 = vld [vmem:[%s172 + $0x6c] sm:$0xf]
      %v201 = vld [vmem:[%s172 + $0x70] sm:$0xf]
      %v202 = vld [vmem:[%s172 + $0x78] sm:$0xf]
      %v203 = vld [vmem:[%s172 + $0x7c] sm:$0xf]
      %v204 = vld [vmem:[%s172 + $0x84] sm:$0xf]
      %v205 = vld [vmem:[%s172 + $0x88] sm:$0xf]
      %v206 = vld [vmem:[%s172 + $0x90] sm:$0xf]
      %v207 = vld [vmem:[%s172 + $0x94] sm:$0xf]
      %v208 = vld [vmem:[%s172 + $0x9c] sm:$0xf]
      %v209 = vld [vmem:[%s172 + $0xa0] sm:$0xf]
      %v210 = vld [vmem:[%s172 + $0xa8] sm:$0xf]
      %v211 = vld [vmem:[%s172 + $0xac] sm:$0xf]
      %v212 = vld [vmem:[%s172 + $0xb4] sm:$0xf]
      %v213 = vld [vmem:[%s172 + $0xb8] sm:$0xf]
      %v214 = vld [vmem:[%s1] sm:$0xf]
      %v215 = vld [vmem:[%s1 + $0x4] sm:$0xf]
      %v216 = vld [vmem:[%s1 + $0x8] sm:$0xf]
      %v217 = vld [vmem:[%s1 + $0xc] sm:$0xf]
      %v218 = vld [vmem:[%s1 + $0x10] sm:$0xf]
      %v219 = vld [vmem:[%s1 + $0x14] sm:$0xf]
      %v220 = vld [vmem:[%s1 + $0x18] sm:$0xf]
      %v221 = vld [vmem:[%s1 + $0x1c] sm:$0xf]
      %v222 = vld [vmem:[%s1 + $0x20] sm:$0xf]
      %v223 = vld [vmem:[%s1 + $0x24] sm:$0xf]
      %v224 = vld [vmem:[%s1 + $0x28] sm:$0xf]
      %v225 = vld [vmem:[%s1 + $0x2c] sm:$0xf]
      %v226 = vld [vmem:[%s1 + $0x30] sm:$0xf]
      %v227 = vld [vmem:[%s1 + $0x34] sm:$0xf]
      %v228 = vld [vmem:[%s1 + $0x38] sm:$0xf]
      %v229 = vld [vmem:[%s1 + $0x3c] sm:$0xf]
      %v230 = vld [vmem:[%s172 + $0x8] sm:$0x1]
      %v231 = vld [vmem:[%s172 + $0x14] sm:$0x1]
      %v232 = vld [vmem:[%s172 + $0x20] sm:$0x1]
      %v233 = vld [vmem:[%s172 + $0x2c] sm:$0x1]
      %v234 = vld [vmem:[%s172 + $0x38] sm:$0x1]
      %v235 = vld [vmem:[%s172 + $0x44] sm:$0x1]
      %v236 = vld [vmem:[%s172 + $0x50] sm:$0x1]
      %v237 = vld [vmem:[%s172 + $0x5c] sm:$0x1]
      %v238 = vld [vmem:[%s172 + $0x68] sm:$0x1]
      %v239 = vld [vmem:[%s172 + $0x74] sm:$0x1]
      %v240 = vld [vmem:[%s172 + $0x80] sm:$0x1]
      %v241 = vld [vmem:[%s172 + $0x8c] sm:$0x1]
      %v242 = vld [vmem:[%s172 + $0x98] sm:$0x1]
      %v243 = vld [vmem:[%s172 + $0xa4] sm:$0x1]
      %v244 = vld [vmem:[%s172 + $0xb0] sm:$0x1]
      %v245 = vld [vmem:[%s172 + $0xbc] sm:$0x1]
      %vm246 = vsmask.f32 3328
      %vm247 = vsmask.f32 7440
      %vm248 = vmor %vm246, %vm247
      %v250 = vshrl.u32 %v182, 16
      %v252 = vrot.slane %v250, 4
      %v253 = vshll.u32 %v182, 16
      %v255 = vrot.slane %v253, 5
      %v256 = vor.u32 %v252, %v255
      %v257 = vrot.slane %v256, 4
      %v259 = vshll.u32 %v183, 16
      %v261 = vrot.slane %v259, 5
      %v262 = vsel %vm248, %v257, %v261
      %v263 = vshrl.u32 %v183, 16
      %v265 = vrot.slane %v263, 4
      %v266 = vor.u32 %v265, %v261
      %v267 = vrot.slane %v266, 4
      %v269 = vshll.u32 %v230, 16
      %v271 = vrot.slane %v269, 5
      %v272 = vsel %vm248, %v267, %v271
      %v274 = vshrl.u32 %v184, 16
      %v276 = vrot.slane %v274, 4
      %v277 = vshll.u32 %v184, 16
      %v279 = vrot.slane %v277, 5
      %v280 = vor.u32 %v276, %v279
      %v281 = vrot.slane %v280, 4
      %v283 = vshll.u32 %v185, 16
      %v285 = vrot.slane %v283, 5
      %v286 = vsel %vm248, %v281, %v285
      %v287 = vshrl.u32 %v185, 16
      %v289 = vrot.slane %v287, 4
      %v290 = vor.u32 %v289, %v285
      %v291 = vrot.slane %v290, 4
      %v293 = vshll.u32 %v231, 16
      %v295 = vrot.slane %v293, 5
      %v296 = vsel %vm248, %v291, %v295
      %v298 = vshrl.u32 %v186, 16
      %v300 = vrot.slane %v298, 4
      %v301 = vshll.u32 %v186, 16
      %v303 = vrot.slane %v301, 5
      %v304 = vor.u32 %v300, %v303
      %v305 = vrot.slane %v304, 4
      %v307 = vshll.u32 %v187, 16
      %v309 = vrot.slane %v307, 5
      %v310 = vsel %vm248, %v305, %v309
      %v311 = vshrl.u32 %v187, 16
      %v313 = vrot.slane %v311, 4
      %v314 = vor.u32 %v313, %v309
      %v315 = vrot.slane %v314, 4
      %v317 = vshll.u32 %v232, 16
      %v319 = vrot.slane %v317, 5
      %v320 = vsel %vm248, %v315, %v319
      %v322 = vshrl.u32 %v188, 16
      %v324 = vrot.slane %v322, 4
      %v325 = vshll.u32 %v188, 16
      %v327 = vrot.slane %v325, 5
      %v328 = vor.u32 %v324, %v327
      %v329 = vrot.slane %v328, 4
      %v331 = vshll.u32 %v189, 16
      %v333 = vrot.slane %v331, 5
      %v334 = vsel %vm248, %v329, %v333
      %v335 = vshrl.u32 %v189, 16
      %v337 = vrot.slane %v335, 4
      %v338 = vor.u32 %v337, %v333
      %v339 = vrot.slane %v338, 4
      %v341 = vshll.u32 %v233, 16
      %v343 = vrot.slane %v341, 5
      %v344 = vsel %vm248, %v339, %v343
      %v346 = vshrl.u32 %v190, 16
      %v348 = vrot.slane %v346, 4
      %v349 = vshll.u32 %v190, 16
      %v351 = vrot.slane %v349, 5
      %v352 = vor.u32 %v348, %v351
      %v353 = vrot.slane %v352, 4
      %v355 = vshll.u32 %v191, 16
      %v357 = vrot.slane %v355, 5
      %v358 = vsel %vm248, %v353, %v357
      %v359 = vshrl.u32 %v191, 16
      %v361 = vrot.slane %v359, 4
      %v362 = vor.u32 %v361, %v357
      %v363 = vrot.slane %v362, 4
      %v365 = vshll.u32 %v234, 16
      %v367 = vrot.slane %v365, 5
      %v368 = vsel %vm248, %v363, %v367
      %v370 = vshrl.u32 %v192, 16
      %v372 = vrot.slane %v370, 4
      %v373 = vshll.u32 %v192, 16
      %v375 = vrot.slane %v373, 5
      %v376 = vor.u32 %v372, %v375
      %v377 = vrot.slane %v376, 4
      %v379 = vshll.u32 %v193, 16
      %v381 = vrot.slane %v379, 5
      %v382 = vsel %vm248, %v377, %v381
      %v383 = vshrl.u32 %v193, 16
      %v385 = vrot.slane %v383, 4
      %v386 = vor.u32 %v385, %v381
      %v387 = vrot.slane %v386, 4
      %v389 = vshll.u32 %v235, 16
      %v391 = vrot.slane %v389, 5
      %v392 = vsel %vm248, %v387, %v391
      %v394 = vshrl.u32 %v194, 16
      %v396 = vrot.slane %v394, 4
      %v397 = vshll.u32 %v194, 16
      %v399 = vrot.slane %v397, 5
      %v400 = vor.u32 %v396, %v399
      %v401 = vrot.slane %v400, 4
      %v403 = vshll.u32 %v195, 16
      %v405 = vrot.slane %v403, 5
      %v406 = vsel %vm248, %v401, %v405
      %v407 = vshrl.u32 %v195, 16
      %v409 = vrot.slane %v407, 4
      %v410 = vor.u32 %v409, %v405
      %v411 = vrot.slane %v410, 4
      %v413 = vshll.u32 %v236, 16
      %v415 = vrot.slane %v413, 5
      %v416 = vsel %vm248, %v411, %v415
      %v418 = vshrl.u32 %v196, 16
      %v420 = vrot.slane %v418, 4
      %v421 = vshll.u32 %v196, 16
      %v423 = vrot.slane %v421, 5
      %v424 = vor.u32 %v420, %v423
      %v425 = vrot.slane %v424, 4
      %v427 = vshll.u32 %v197, 16
      %v429 = vrot.slane %v427, 5
      %v430 = vsel %vm248, %v425, %v429
      %v431 = vshrl.u32 %v197, 16
      %v433 = vrot.slane %v431, 4
      %v434 = vor.u32 %v433, %v429
      %v435 = vrot.slane %v434, 4
      %v437 = vshll.u32 %v237, 16
      %v439 = vrot.slane %v437, 5
      %v440 = vsel %vm248, %v435, %v439
      %v442 = vshrl.u32 %v198, 16
      %v444 = vrot.slane %v442, 4
      %v445 = vshll.u32 %v198, 16
      %v447 = vrot.slane %v445, 5
      %v448 = vor.u32 %v444, %v447
      %v449 = vrot.slane %v448, 4
      %v451 = vshll.u32 %v199, 16
      %v453 = vrot.slane %v451, 5
      %v454 = vsel %vm248, %v449, %v453
      %v455 = vshrl.u32 %v199, 16
      %v457 = vrot.slane %v455, 4
      %v458 = vor.u32 %v457, %v453
      %v459 = vrot.slane %v458, 4
      %v461 = vshll.u32 %v238, 16
      %v463 = vrot.slane %v461, 5
      %v464 = vsel %vm248, %v459, %v463
      %v466 = vshrl.u32 %v200, 16
      %v468 = vrot.slane %v466, 4
      %v469 = vshll.u32 %v200, 16
      %v471 = vrot.slane %v469, 5
      %v472 = vor.u32 %v468, %v471
      %v473 = vrot.slane %v472, 4
      %v475 = vshll.u32 %v201, 16
      %v477 = vrot.slane %v475, 5
      %v478 = vsel %vm248, %v473, %v477
      %v479 = vshrl.u32 %v201, 16
      %v481 = vrot.slane %v479, 4
      %v482 = vor.u32 %v481, %v477
      %v483 = vrot.slane %v482, 4
      %v485 = vshll.u32 %v239, 16
      %v487 = vrot.slane %v485, 5
      %v488 = vsel %vm248, %v483, %v487
      %v490 = vshrl.u32 %v202, 16
      %v492 = vrot.slane %v490, 4
      %v493 = vshll.u32 %v202, 16
      %v495 = vrot.slane %v493, 5
      %v496 = vor.u32 %v492, %v495
      %v497 = vrot.slane %v496, 4
      %v499 = vshll.u32 %v203, 16
      %v501 = vrot.slane %v499, 5
      %v502 = vsel %vm248, %v497, %v501
      %v503 = vshrl.u32 %v203, 16
      %v505 = vrot.slane %v503, 4
      %v506 = vor.u32 %v505, %v501
      %v507 = vrot.slane %v506, 4
      %v509 = vshll.u32 %v240, 16
      %v511 = vrot.slane %v509, 5
      %v512 = vsel %vm248, %v507, %v511
      %v514 = vshrl.u32 %v204, 16
      %v516 = vrot.slane %v514, 4
      %v517 = vshll.u32 %v204, 16
      %v519 = vrot.slane %v517, 5
      %v520 = vor.u32 %v516, %v519
      %v521 = vrot.slane %v520, 4
      %v523 = vshll.u32 %v205, 16
      %v525 = vrot.slane %v523, 5
      %v526 = vsel %vm248, %v521, %v525
      %v527 = vshrl.u32 %v205, 16
      %v529 = vrot.slane %v527, 4
      %v530 = vor.u32 %v529, %v525
      %v531 = vrot.slane %v530, 4
      %v533 = vshll.u32 %v241, 16
      %v535 = vrot.slane %v533, 5
      %v536 = vsel %vm248, %v531, %v535
      %v538 = vshrl.u32 %v206, 16
      %v540 = vrot.slane %v538, 4
      %v541 = vshll.u32 %v206, 16
      %v543 = vrot.slane %v541, 5
      %v544 = vor.u32 %v540, %v543
      %v545 = vrot.slane %v544, 4
      %v547 = vshll.u32 %v207, 16
      %v549 = vrot.slane %v547, 5
      %v550 = vsel %vm248, %v545, %v549
      %v551 = vshrl.u32 %v207, 16
      %v553 = vrot.slane %v551, 4
      %v554 = vor.u32 %v553, %v549
      %v555 = vrot.slane %v554, 4
      %v557 = vshll.u32 %v242, 16
      %v559 = vrot.slane %v557, 5
      %v560 = vsel %vm248, %v555, %v559
      %v562 = vshrl.u32 %v208, 16
      %v564 = vrot.slane %v562, 4
      %v565 = vshll.u32 %v208, 16
      %v567 = vrot.slane %v565, 5
      %v568 = vor.u32 %v564, %v567
      %v569 = vrot.slane %v568, 4
      %v571 = vshll.u32 %v209, 16
      %v573 = vrot.slane %v571, 5
      %v574 = vsel %vm248, %v569, %v573
      %v575 = vshrl.u32 %v209, 16
      %v577 = vrot.slane %v575, 4
      %v578 = vor.u32 %v577, %v573
      %v579 = vrot.slane %v578, 4
      %v581 = vshll.u32 %v243, 16
      %v583 = vrot.slane %v581, 5
      %v584 = vsel %vm248, %v579, %v583
      %v586 = vshrl.u32 %v210, 16
      %v588 = vrot.slane %v586, 4
      %v589 = vshll.u32 %v210, 16
      %v591 = vrot.slane %v589, 5
      %v592 = vor.u32 %v588, %v591
      %v593 = vrot.slane %v592, 4
      %v595 = vshll.u32 %v211, 16
      %v597 = vrot.slane %v595, 5
      %v598 = vsel %vm248, %v593, %v597
      %v599 = vshrl.u32 %v211, 16
      %v601 = vrot.slane %v599, 4
      %v602 = vor.u32 %v601, %v597
      %v603 = vrot.slane %v602, 4
      %v605 = vshll.u32 %v244, 16
      %v607 = vrot.slane %v605, 5
      %v608 = vsel %vm248, %v603, %v607
      %v610 = vshrl.u32 %v212, 16
      %v612 = vrot.slane %v610, 4
      %v613 = vshll.u32 %v212, 16
      %v615 = vrot.slane %v613, 5
      %v616 = vor.u32 %v612, %v615
      %v617 = vrot.slane %v616, 4
      %v619 = vshll.u32 %v213, 16
      %v621 = vrot.slane %v619, 5
      %v622 = vsel %vm248, %v617, %v621
      %v623 = vshrl.u32 %v213, 16
      %v625 = vrot.slane %v623, 4
      %v626 = vor.u32 %v625, %v621
      %v627 = vrot.slane %v626, 4
      %v629 = vshll.u32 %v245, 16
      %v631 = vrot.slane %v629, 5
      %v632 = vsel %vm248, %v627, %v631
      %s633 = scalar_lea.vmem %s1, 64
      %v634 = vld [vmem:[%s633] sm:$0xf]
      %v635 = vld [vmem:[%s633 + $0x4] sm:$0xf]
      %v636 = vld [vmem:[%s633 + $0x8] sm:$0xf]
      %v637 = vld [vmem:[%s633 + $0xc] sm:$0xf]
      %v638 = vld [vmem:[%s633 + $0x10] sm:$0xf]
      %v639 = vld [vmem:[%s633 + $0x14] sm:$0xf]
      %v640 = vld [vmem:[%s633 + $0x18] sm:$0xf]
      %v641 = vld [vmem:[%s633 + $0x1c] sm:$0xf]
      %v642 = vld [vmem:[%s633 + $0x20] sm:$0xf]
      %v643 = vld [vmem:[%s633 + $0x24] sm:$0xf]
      %v644 = vld [vmem:[%s633 + $0x28] sm:$0xf]
      %v645 = vld [vmem:[%s633 + $0x2c] sm:$0xf]
      %v646 = vld [vmem:[%s633 + $0x30] sm:$0xf]
      %v647 = vld [vmem:[%s633 + $0x34] sm:$0xf]
      %v648 = vld [vmem:[%s633 + $0x38] sm:$0xf]
      %v649 = vld [vmem:[%s633 + $0x3c] sm:$0xf]
      %v650 = vunpack.c.l.b16 %v262
      %v651 = vunpack.c.l.b16 %v272
      %v652 = vunpack.c.l.b16 %v286
      %v653 = vunpack.c.l.b16 %v296
      %v654 = vunpack.c.l.b16 %v310
      %v655 = vunpack.c.l.b16 %v320
      %v656 = vunpack.c.l.b16 %v334
      %v657 = vunpack.c.l.b16 %v344
      %v658 = vunpack.c.l.b16 %v358
      %v659 = vunpack.c.l.b16 %v368
      %v660 = vunpack.c.l.b16 %v382
      %v661 = vunpack.c.l.b16 %v392
      %v662 = vunpack.c.l.b16 %v406
      %v663 = vunpack.c.l.b16 %v416
      %v664 = vunpack.c.l.b16 %v430
      %v665 = vunpack.c.l.b16 %v440
      %v666 = vunpack.c.l.b16 %v454
      %v667 = vunpack.c.l.b16 %v464
      %v668 = vunpack.c.l.b16 %v478
      %v669 = vunpack.c.l.b16 %v488
      %v670 = vunpack.c.l.b16 %v502
      %v671 = vunpack.c.l.b16 %v512
      %v672 = vunpack.c.l.b16 %v526
      %v673 = vunpack.c.l.b16 %v536
      %v674 = vunpack.c.l.b16 %v550
      %v675 = vunpack.c.l.b16 %v560
      %v676 = vunpack.c.l.b16 %v574
      %v677 = vunpack.c.l.b16 %v584
      %v678 = vunpack.c.l.b16 %v598
      %v679 = vunpack.c.l.b16 %v608
      %v680 = vunpack.c.l.b16 %v622
      %v681 = vunpack.c.l.b16 %v632
      %v682 = vpack.c.b16 %v651, %v650
      %v683 = vpack.c.b16 %v653, %v652
      %v684 = vpack.c.b16 %v655, %v654
      %v685 = vpack.c.b16 %v657, %v656
      %v686 = vpack.c.b16 %v659, %v658
      %v687 = vpack.c.b16 %v661, %v660
      %v688 = vpack.c.b16 %v663, %v662
      %v689 = vpack.c.b16 %v665, %v664
      %v690 = vpack.c.b16 %v667, %v666
      %v691 = vpack.c.b16 %v669, %v668
      %v692 = vpack.c.b16 %v671, %v670
      %v693 = vpack.c.b16 %v673, %v672
      %v694 = vpack.c.b16 %v675, %v674
      %v695 = vpack.c.b16 %v677, %v676
      %v696 = vpack.c.b16 %v679, %v678
      %v697 = vpack.c.b16 %v681, %v680
      %v730 = vunpack.c.l.b16 %v634
      %v731 = vunpack.c.l.b16 %v635
      %v732 = vunpack.c.l.b16 %v636
      %v733 = vunpack.c.l.b16 %v637
      %v734 = vunpack.c.l.b16 %v638
      %v735 = vunpack.c.l.b16 %v639
      %v736 = vunpack.c.l.b16 %v640
      %v737 = vunpack.c.l.b16 %v641
      %v738 = vunpack.c.l.b16 %v642
      %v739 = vunpack.c.l.b16 %v643
      %v740 = vunpack.c.l.b16 %v644
      %v741 = vunpack.c.l.b16 %v645
      %v742 = vunpack.c.l.b16 %v646
      %v743 = vunpack.c.l.b16 %v647
      %v744 = vunpack.c.l.b16 %v648
      %v745 = vunpack.c.l.b16 %v649
      %v746 = vpack.c.b16 %v731, %v730
      %v747 = vpack.c.b16 %v733, %v732
      %v748 = vpack.c.b16 %v735, %v734
      %v749 = vpack.c.b16 %v737, %v736
      %v750 = vpack.c.b16 %v739, %v738
      %v751 = vpack.c.b16 %v741, %v740
      %v752 = vpack.c.b16 %v743, %v742
      %v753 = vpack.c.b16 %v745, %v744
      %762 = vmatpush.bf16.msra.mxu0 %v753
      %763 = vmatpush.bf16.msra.mxu0 %v752
      %764 = vmatpush.bf16.msra.mxu0 %v751
      %765 = vmatpush.bf16.msra.mxu0 %v750
      %766 = vmatpush.bf16.msra.mxu0 %v749
      %767 = vmatpush.bf16.msra.mxu0 %v748
      %768 = vmatpush.bf16.msra.mxu0 %v747
      %769 = vmatpush.bf16.msra.mxu0 %v746
      %770 = vmatmul.bf16.gmra.mxu0 %v682
      %v771 = vpop.f32.mrf.mxu0
      %v772 = vadd.f32 0.0, %v771
      %v773 = vpop.f32.mrf.mxu0
      %v774 = vadd.f32 0.0, %v773
      %775 = vmatmul.bf16.gmra.mxu0 %v683
      %v776 = vpop.f32.mrf.mxu0
      %v777 = vadd.f32 0.0, %v776
      %v778 = vpop.f32.mrf.mxu0
      %v779 = vadd.f32 0.0, %v778
      %780 = vmatmul.bf16.gmra.mxu0 %v684
      %v781 = vpop.f32.mrf.mxu0
      %v782 = vadd.f32 0.0, %v781
      %v783 = vpop.f32.mrf.mxu0
      %v784 = vadd.f32 0.0, %v783
      %785 = vmatmul.bf16.gmra.mxu0 %v685
      %v786 = vpop.f32.mrf.mxu0
      %v787 = vadd.f32 0.0, %v786
      %v788 = vpop.f32.mrf.mxu0
      %v789 = vadd.f32 0.0, %v788
      %790 = vmatmul.bf16.gmra.mxu0 %v686
      %v791 = vpop.f32.mrf.mxu0
      %v792 = vadd.f32 0.0, %v791
      %v793 = vpop.f32.mrf.mxu0
      %v794 = vadd.f32 0.0, %v793
      %795 = vmatmul.bf16.gmra.mxu0 %v687
      %v796 = vpop.f32.mrf.mxu0
      %v797 = vadd.f32 0.0, %v796
      %v798 = vpop.f32.mrf.mxu0
      %v799 = vadd.f32 0.0, %v798
      %800 = vmatmul.bf16.gmra.mxu0 %v688
      %v801 = vpop.f32.mrf.mxu0
      %v802 = vadd.f32 0.0, %v801
      %v803 = vpop.f32.mrf.mxu0
      %v804 = vadd.f32 0.0, %v803
      %805 = vmatmul.bf16.gmra.mxu0 %v689
      %v806 = vpop.f32.mrf.mxu0
      %v807 = vadd.f32 0.0, %v806
      %v808 = vpop.f32.mrf.mxu0
      %v809 = vadd.f32 0.0, %v808
      %810 = vmatmul.bf16.gmra.mxu0 %v690
      %v811 = vpop.f32.mrf.mxu0
      %v812 = vadd.f32 0.0, %v811
      %v813 = vpop.f32.mrf.mxu0
      %v814 = vadd.f32 0.0, %v813
      %815 = vmatmul.bf16.gmra.mxu0 %v691
      %v816 = vpop.f32.mrf.mxu0
      %v817 = vadd.f32 0.0, %v816
      %v818 = vpop.f32.mrf.mxu0
      %v819 = vadd.f32 0.0, %v818
      %820 = vmatmul.bf16.gmra.mxu0 %v692
      %v821 = vpop.f32.mrf.mxu0
      %v822 = vadd.f32 0.0, %v821
      %v823 = vpop.f32.mrf.mxu0
      %v824 = vadd.f32 0.0, %v823
      %825 = vmatmul.bf16.gmra.mxu0 %v693
      %v826 = vpop.f32.mrf.mxu0
      %v827 = vadd.f32 0.0, %v826
      %v828 = vpop.f32.mrf.mxu0
      %v829 = vadd.f32 0.0, %v828
      %830 = vmatmul.bf16.gmra.mxu0 %v694
      %v831 = vpop.f32.mrf.mxu0
      %v832 = vadd.f32 0.0, %v831
      %v833 = vpop.f32.mrf.mxu0
      %v834 = vadd.f32 0.0, %v833
      %835 = vmatmul.bf16.gmra.mxu0 %v695
      %v836 = vpop.f32.mrf.mxu0
      %v837 = vadd.f32 0.0, %v836
      %v838 = vpop.f32.mrf.mxu0
      %v839 = vadd.f32 0.0, %v838
      %840 = vmatmul.bf16.gmra.mxu0 %v696
      %v841 = vpop.f32.mrf.mxu0
      %v842 = vadd.f32 0.0, %v841
      %v843 = vpop.f32.mrf.mxu0
      %v844 = vadd.f32 0.0, %v843
      %845 = vmatmul.bf16.gmra.mxu0 %v697
      %v846 = vpop.f32.mrf.mxu0
      %v847 = vadd.f32 0.0, %v846
      %v848 = vpop.f32.mrf.mxu0
      %v849 = vadd.f32 0.0, %v848
      %850 = vdwg.mxu0
      %v883 = vunpack.c.l.b16 %v182
      %v884 = vunpack.c.l.b16 %v183
      %v885 = vunpack.c.l.b16 %v184
      %v886 = vunpack.c.l.b16 %v185
      %v887 = vunpack.c.l.b16 %v186
      %v888 = vunpack.c.l.b16 %v187
      %v889 = vunpack.c.l.b16 %v188
      %v890 = vunpack.c.l.b16 %v189
      %v891 = vunpack.c.l.b16 %v190
      %v892 = vunpack.c.l.b16 %v191
      %v893 = vunpack.c.l.b16 %v192
      %v894 = vunpack.c.l.b16 %v193
      %v895 = vunpack.c.l.b16 %v194
      %v896 = vunpack.c.l.b16 %v195
      %v897 = vunpack.c.l.b16 %v196
      %v898 = vunpack.c.l.b16 %v197
      %v899 = vunpack.c.l.b16 %v198
      %v900 = vunpack.c.l.b16 %v199
      %v901 = vunpack.c.l.b16 %v200
      %v902 = vunpack.c.l.b16 %v201
      %v903 = vunpack.c.l.b16 %v202
      %v904 = vunpack.c.l.b16 %v203
      %v905 = vunpack.c.l.b16 %v204
      %v906 = vunpack.c.l.b16 %v205
      %v907 = vunpack.c.l.b16 %v206
      %v908 = vunpack.c.l.b16 %v207
      %v909 = vunpack.c.l.b16 %v208
      %v910 = vunpack.c.l.b16 %v209
      %v911 = vunpack.c.l.b16 %v210
      %v912 = vunpack.c.l.b16 %v211
      %v913 = vunpack.c.l.b16 %v212
      %v914 = vunpack.c.l.b16 %v213
      %v915 = vpack.c.b16 %v884, %v883
      %v916 = vpack.c.b16 %v886, %v885
      %v917 = vpack.c.b16 %v888, %v887
      %v918 = vpack.c.b16 %v890, %v889
      %v919 = vpack.c.b16 %v892, %v891
      %v920 = vpack.c.b16 %v894, %v893
      %v921 = vpack.c.b16 %v896, %v895
      %v922 = vpack.c.b16 %v898, %v897
      %v923 = vpack.c.b16 %v900, %v899
      %v924 = vpack.c.b16 %v902, %v901
      %v925 = vpack.c.b16 %v904, %v903
      %v926 = vpack.c.b16 %v906, %v905
      %v927 = vpack.c.b16 %v908, %v907
      %v928 = vpack.c.b16 %v910, %v909
      %v929 = vpack.c.b16 %v912, %v911
      %v930 = vpack.c.b16 %v914, %v913
      %v963 = vunpack.c.l.b16 %v214
      %v964 = vunpack.c.l.b16 %v215
      %v965 = vunpack.c.l.b16 %v216
      %v966 = vunpack.c.l.b16 %v217
      %v967 = vunpack.c.l.b16 %v218
      %v968 = vunpack.c.l.b16 %v219
      %v969 = vunpack.c.l.b16 %v220
      %v970 = vunpack.c.l.b16 %v221
      %v971 = vunpack.c.l.b16 %v222
      %v972 = vunpack.c.l.b16 %v223
      %v973 = vunpack.c.l.b16 %v224
      %v974 = vunpack.c.l.b16 %v225
      %v975 = vunpack.c.l.b16 %v226
      %v976 = vunpack.c.l.b16 %v227
      %v977 = vunpack.c.l.b16 %v228
      %v978 = vunpack.c.l.b16 %v229
      %v979 = vpack.c.b16 %v964, %v963
      %v980 = vpack.c.b16 %v966, %v965
      %v981 = vpack.c.b16 %v968, %v967
      %v982 = vpack.c.b16 %v970, %v969
      %v983 = vpack.c.b16 %v972, %v971
      %v984 = vpack.c.b16 %v974, %v973
      %v985 = vpack.c.b16 %v976, %v975
      %v986 = vpack.c.b16 %v978, %v977
      %995 = vmatpush.bf16.msra.mxu0 %v986
      %996 = vmatpush.bf16.msra.mxu0 %v985
      %997 = vmatpush.bf16.msra.mxu0 %v984
      %998 = vmatpush.bf16.msra.mxu0 %v983
      %999 = vmatpush.bf16.msra.mxu0 %v982
      %1000 = vmatpush.bf16.msra.mxu0 %v981
      %1001 = vmatpush.bf16.msra.mxu0 %v980
      %1002 = vmatpush.bf16.msra.mxu0 %v979
      %1003 = vmatmul.bf16.gmra.mxu0 %v915
      %v1004 = vpop.f32.mrf.mxu0
      %v1005 = vadd.f32 %v772, %v1004
      %v1006 = vpop.f32.mrf.mxu0
      %v1007 = vadd.f32 %v774, %v1006
      %1008 = vmatmul.bf16.gmra.mxu0 %v916
      %v1009 = vpop.f32.mrf.mxu0
      %v1010 = vadd.f32 %v777, %v1009
      %v1011 = vpop.f32.mrf.mxu0
      %v1012 = vadd.f32 %v779, %v1011
      %1013 = vmatmul.bf16.gmra.mxu0 %v917
      %v1014 = vpop.f32.mrf.mxu0
      %v1015 = vadd.f32 %v782, %v1014
      %v1016 = vpop.f32.mrf.mxu0
      %v1017 = vadd.f32 %v784, %v1016
      %1018 = vmatmul.bf16.gmra.mxu0 %v918
      %v1019 = vpop.f32.mrf.mxu0
      %v1020 = vadd.f32 %v787, %v1019
      %v1021 = vpop.f32.mrf.mxu0
      %v1022 = vadd.f32 %v789, %v1021
      %1023 = vmatmul.bf16.gmra.mxu0 %v919
      %v1024 = vpop.f32.mrf.mxu0
      %v1025 = vadd.f32 %v792, %v1024
      %v1026 = vpop.f32.mrf.mxu0
      %v1027 = vadd.f32 %v794, %v1026
      %1028 = vmatmul.bf16.gmra.mxu0 %v920
      %v1029 = vpop.f32.mrf.mxu0
      %v1030 = vadd.f32 %v797, %v1029
      %v1031 = vpop.f32.mrf.mxu0
      %v1032 = vadd.f32 %v799, %v1031
      %1033 = vmatmul.bf16.gmra.mxu0 %v921
      %v1034 = vpop.f32.mrf.mxu0
      %v1035 = vadd.f32 %v802, %v1034
      %v1036 = vpop.f32.mrf.mxu0
      %v1037 = vadd.f32 %v804, %v1036
      %1038 = vmatmul.bf16.gmra.mxu0 %v922
      %v1039 = vpop.f32.mrf.mxu0
      %v1040 = vadd.f32 %v807, %v1039
      %v1041 = vpop.f32.mrf.mxu0
      %v1042 = vadd.f32 %v809, %v1041
      %1043 = vmatmul.bf16.gmra.mxu0 %v923
      %v1044 = vpop.f32.mrf.mxu0
      %v1045 = vadd.f32 %v812, %v1044
      %v1046 = vpop.f32.mrf.mxu0
      %v1047 = vadd.f32 %v814, %v1046
      %1048 = vmatmul.bf16.gmra.mxu0 %v924
      %v1049 = vpop.f32.mrf.mxu0
      %v1050 = vadd.f32 %v817, %v1049
      %v1051 = vpop.f32.mrf.mxu0
      %v1052 = vadd.f32 %v819, %v1051
      %1053 = vmatmul.bf16.gmra.mxu0 %v925
      %v1054 = vpop.f32.mrf.mxu0
      %v1055 = vadd.f32 %v822, %v1054
      %v1056 = vpop.f32.mrf.mxu0
      %v1057 = vadd.f32 %v824, %v1056
      %1058 = vmatmul.bf16.gmra.mxu0 %v926
      %v1059 = vpop.f32.mrf.mxu0
      %v1060 = vadd.f32 %v827, %v1059
      %v1061 = vpop.f32.mrf.mxu0
      %v1062 = vadd.f32 %v829, %v1061
      %1063 = vmatmul.bf16.gmra.mxu0 %v927
      %v1064 = vpop.f32.mrf.mxu0
      %v1065 = vadd.f32 %v832, %v1064
      %v1066 = vpop.f32.mrf.mxu0
      %v1067 = vadd.f32 %v834, %v1066
      %1068 = vmatmul.bf16.gmra.mxu0 %v928
      %v1069 = vpop.f32.mrf.mxu0
      %v1070 = vadd.f32 %v837, %v1069
      %v1071 = vpop.f32.mrf.mxu0
      %v1072 = vadd.f32 %v839, %v1071
      %1073 = vmatmul.bf16.gmra.mxu0 %v929
      %v1074 = vpop.f32.mrf.mxu0
      %v1075 = vadd.f32 %v842, %v1074
      %v1076 = vpop.f32.mrf.mxu0
      %v1077 = vadd.f32 %v844, %v1076
      %1078 = vmatmul.bf16.gmra.mxu0 %v930
      %v1079 = vpop.f32.mrf.mxu0
      %v1080 = vadd.f32 %v847, %v1079
      %v1081 = vpop.f32.mrf.mxu0
      %v1082 = vadd.f32 %v849, %v1081
      %1083 = vdwg.mxu0
      %v1084 = vld [vmem:[%s172] sm:$0xe]
      %v1085 = vld [vmem:[%s172 + $0xc] sm:$0xe]
      %v1086 = vld [vmem:[%s172 + $0x18] sm:$0xe]
      %v1087 = vld [vmem:[%s172 + $0x24] sm:$0xe]
      %v1088 = vld [vmem:[%s172 + $0x30] sm:$0xe]
      %v1089 = vld [vmem:[%s172 + $0x3c] sm:$0xe]
      %v1090 = vld [vmem:[%s172 + $0x48] sm:$0xe]
      %v1091 = vld [vmem:[%s172 + $0x54] sm:$0xe]
      %v1092 = vld [vmem:[%s172 + $0x60] sm:$0xe]
      %v1093 = vld [vmem:[%s172 + $0x6c] sm:$0xe]
      %v1094 = vld [vmem:[%s172 + $0x78] sm:$0xe]
      %v1095 = vld [vmem:[%s172 + $0x84] sm:$0xe]
      %v1096 = vld [vmem:[%s172 + $0x90] sm:$0xe]
      %v1097 = vld [vmem:[%s172 + $0x9c] sm:$0xe]
      %v1098 = vld [vmem:[%s172 + $0xa8] sm:$0xe]
      %v1099 = vld [vmem:[%s172 + $0xb4] sm:$0xe]
      %vm1132 = vcmask 1042432
      %vm1133 = vcmask 1046532
      %vm1134 = vmor %vm1132, %vm1133
      %v1135 = vrot.slane %v1084, 5
      %v1136 = vrot.slane %v1135, 4
      %v1137 = vrot.slane %v183, 5
      %v1138 = vsel %vm1134, %v1136, %v1137
      %v1139 = vrot.slane %v1137, 4
      %v1140 = vrot.slane %v230, 5
      %v1141 = vsel %vm1134, %v1139, %v1140
      %v1142 = vrot.slane %v1085, 5
      %v1143 = vrot.slane %v1142, 4
      %v1144 = vrot.slane %v185, 5
      %v1145 = vsel %vm1134, %v1143, %v1144
      %v1146 = vrot.slane %v1144, 4
      %v1147 = vrot.slane %v231, 5
      %v1148 = vsel %vm1134, %v1146, %v1147
      %v1149 = vrot.slane %v1086, 5
      %v1150 = vrot.slane %v1149, 4
      %v1151 = vrot.slane %v187, 5
      %v1152 = vsel %vm1134, %v1150, %v1151
      %v1153 = vrot.slane %v1151, 4
      %v1154 = vrot.slane %v232, 5
      %v1155 = vsel %vm1134, %v1153, %v1154
      %v1156 = vrot.slane %v1087, 5
      %v1157 = vrot.slane %v1156, 4
      %v1158 = vrot.slane %v189, 5
      %v1159 = vsel %vm1134, %v1157, %v1158
      %v1160 = vrot.slane %v1158, 4
      %v1161 = vrot.slane %v233, 5
      %v1162 = vsel %vm1134, %v1160, %v1161
      %v1163 = vrot.slane %v1088, 5
      %v1164 = vrot.slane %v1163, 4
      %v1165 = vrot.slane %v191, 5
      %v1166 = vsel %vm1134, %v1164, %v1165
      %v1167 = vrot.slane %v1165, 4
      %v1168 = vrot.slane %v234, 5
      %v1169 = vsel %vm1134, %v1167, %v1168
      %v1170 = vrot.slane %v1089, 5
      %v1171 = vrot.slane %v1170, 4
      %v1172 = vrot.slane %v193, 5
      %v1173 = vsel %vm1134, %v1171, %v1172
      %v1174 = vrot.slane %v1172, 4
      %v1175 = vrot.slane %v235, 5
      %v1176 = vsel %vm1134, %v1174, %v1175
      %v1177 = vrot.slane %v1090, 5
      %v1178 = vrot.slane %v1177, 4
      %v1179 = vrot.slane %v195, 5
      %v1180 = vsel %vm1134, %v1178, %v1179
      %v1181 = vrot.slane %v1179, 4
      %v1182 = vrot.slane %v236, 5
      %v1183 = vsel %vm1134, %v1181, %v1182
      %v1184 = vrot.slane %v1091, 5
      %v1185 = vrot.slane %v1184, 4
      %v1186 = vrot.slane %v197, 5
      %v1187 = vsel %vm1134, %v1185, %v1186
      %v1188 = vrot.slane %v1186, 4
      %v1189 = vrot.slane %v237, 5
      %v1190 = vsel %vm1134, %v1188, %v1189
      %v1191 = vrot.slane %v1092, 5
      %v1192 = vrot.slane %v1191, 4
      %v1193 = vrot.slane %v199, 5
      %v1194 = vsel %vm1134, %v1192, %v1193
      %v1195 = vrot.slane %v1193, 4
      %v1196 = vrot.slane %v238, 5
      %v1197 = vsel %vm1134, %v1195, %v1196
      %v1198 = vrot.slane %v1093, 5
      %v1199 = vrot.slane %v1198, 4
      %v1200 = vrot.slane %v201, 5
      %v1201 = vsel %vm1134, %v1199, %v1200
      %v1202 = vrot.slane %v1200, 4
      %v1203 = vrot.slane %v239, 5
      %v1204 = vsel %vm1134, %v1202, %v1203
      %v1205 = vrot.slane %v1094, 5
      %v1206 = vrot.slane %v1205, 4
      %v1207 = vrot.slane %v203, 5
      %v1208 = vsel %vm1134, %v1206, %v1207
      %v1209 = vrot.slane %v1207, 4
      %v1210 = vrot.slane %v240, 5
      %v1211 = vsel %vm1134, %v1209, %v1210
      %v1212 = vrot.slane %v1095, 5
      %v1213 = vrot.slane %v1212, 4
      %v1214 = vrot.slane %v205, 5
      %v1215 = vsel %vm1134, %v1213, %v1214
      %v1216 = vrot.slane %v1214, 4
      %v1217 = vrot.slane %v241, 5
      %v1218 = vsel %vm1134, %v1216, %v1217
      %v1219 = vrot.slane %v1096, 5
      %v1220 = vrot.slane %v1219, 4
      %v1221 = vrot.slane %v207, 5
      %v1222 = vsel %vm1134, %v1220, %v1221
      %v1223 = vrot.slane %v1221, 4
      %v1224 = vrot.slane %v242, 5
      %v1225 = vsel %vm1134, %v1223, %v1224
      %v1226 = vrot.slane %v1097, 5
      %v1227 = vrot.slane %v1226, 4
      %v1228 = vrot.slane %v209, 5
      %v1229 = vsel %vm1134, %v1227, %v1228
      %v1230 = vrot.slane %v1228, 4
      %v1231 = vrot.slane %v243, 5
      %v1232 = vsel %vm1134, %v1230, %v1231
      %v1233 = vrot.slane %v1098, 5
      %v1234 = vrot.slane %v1233, 4
      %v1235 = vrot.slane %v211, 5
      %v1236 = vsel %vm1134, %v1234, %v1235
      %v1237 = vrot.slane %v1235, 4
      %v1238 = vrot.slane %v244, 5
      %v1239 = vsel %vm1134, %v1237, %v1238
      %v1240 = vrot.slane %v1099, 5
      %v1241 = vrot.slane %v1240, 4
      %v1242 = vrot.slane %v213, 5
      %v1243 = vsel %vm1134, %v1241, %v1242
      %v1244 = vrot.slane %v1242, 4
      %v1245 = vrot.slane %v245, 5
      %v1246 = vsel %vm1134, %v1244, %v1245
      %s1247 = scalar_lea.vmem %s1, 128
      %v1248 = vld [vmem:[%s1247] sm:$0xf]
      %v1249 = vld [vmem:[%s1247 + $0x4] sm:$0xf]
      %v1250 = vld [vmem:[%s1247 + $0x8] sm:$0xf]
      %v1251 = vld [vmem:[%s1247 + $0xc] sm:$0xf]
      %v1252 = vld [vmem:[%s1247 + $0x10] sm:$0xf]
      %v1253 = vld [vmem:[%s1247 + $0x14] sm:$0xf]
      %v1254 = vld [vmem:[%s1247 + $0x18] sm:$0xf]
      %v1255 = vld [vmem:[%s1247 + $0x1c] sm:$0xf]
      %v1256 = vld [vmem:[%s1247 + $0x20] sm:$0xf]
      %v1257 = vld [vmem:[%s1247 + $0x24] sm:$0xf]
      %v1258 = vld [vmem:[%s1247 + $0x28] sm:$0xf]
      %v1259 = vld [vmem:[%s1247 + $0x2c] sm:$0xf]
      %v1260 = vld [vmem:[%s1247 + $0x30] sm:$0xf]
      %v1261 = vld [vmem:[%s1247 + $0x34] sm:$0xf]
      %v1262 = vld [vmem:[%s1247 + $0x38] sm:$0xf]
      %v1263 = vld [vmem:[%s1247 + $0x3c] sm:$0xf]
      %v1264 = vunpack.c.l.b16 %v1138
      %v1265 = vunpack.c.l.b16 %v1141
      %v1266 = vunpack.c.l.b16 %v1145
      %v1267 = vunpack.c.l.b16 %v1148
      %v1268 = vunpack.c.l.b16 %v1152
      %v1269 = vunpack.c.l.b16 %v1155
      %v1270 = vunpack.c.l.b16 %v1159
      %v1271 = vunpack.c.l.b16 %v1162
      %v1272 = vunpack.c.l.b16 %v1166
      %v1273 = vunpack.c.l.b16 %v1169
      %v1274 = vunpack.c.l.b16 %v1173
      %v1275 = vunpack.c.l.b16 %v1176
      %v1276 = vunpack.c.l.b16 %v1180
      %v1277 = vunpack.c.l.b16 %v1183
      %v1278 = vunpack.c.l.b16 %v1187
      %v1279 = vunpack.c.l.b16 %v1190
      %v1280 = vunpack.c.l.b16 %v1194
      %v1281 = vunpack.c.l.b16 %v1197
      %v1282 = vunpack.c.l.b16 %v1201
      %v1283 = vunpack.c.l.b16 %v1204
      %v1284 = vunpack.c.l.b16 %v1208
      %v1285 = vunpack.c.l.b16 %v1211
      %v1286 = vunpack.c.l.b16 %v1215
      %v1287 = vunpack.c.l.b16 %v1218
      %v1288 = vunpack.c.l.b16 %v1222
      %v1289 = vunpack.c.l.b16 %v1225
      %v1290 = vunpack.c.l.b16 %v1229
      %v1291 = vunpack.c.l.b16 %v1232
      %v1292 = vunpack.c.l.b16 %v1236
      %v1293 = vunpack.c.l.b16 %v1239
      %v1294 = vunpack.c.l.b16 %v1243
      %v1295 = vunpack.c.l.b16 %v1246
      %v1296 = vpack.c.b16 %v1265, %v1264
      %v1297 = vpack.c.b16 %v1267, %v1266
      %v1298 = vpack.c.b16 %v1269, %v1268
      %v1299 = vpack.c.b16 %v1271, %v1270
      %v1300 = vpack.c.b16 %v1273, %v1272
      %v1301 = vpack.c.b16 %v1275, %v1274
      %v1302 = vpack.c.b16 %v1277, %v1276
      %v1303 = vpack.c.b16 %v1279, %v1278
      %v1304 = vpack.c.b16 %v1281, %v1280
      %v1305 = vpack.c.b16 %v1283, %v1282
      %v1306 = vpack.c.b16 %v1285, %v1284
      %v1307 = vpack.c.b16 %v1287, %v1286
      %v1308 = vpack.c.b16 %v1289, %v1288
      %v1309 = vpack.c.b16 %v1291, %v1290
      %v1310 = vpack.c.b16 %v1293, %v1292
      %v1311 = vpack.c.b16 %v1295, %v1294
      %v1344 = vunpack.c.l.b16 %v1248
      %v1345 = vunpack.c.l.b16 %v1249
      %v1346 = vunpack.c.l.b16 %v1250
      %v1347 = vunpack.c.l.b16 %v1251
      %v1348 = vunpack.c.l.b16 %v1252
      %v1349 = vunpack.c.l.b16 %v1253
      %v1350 = vunpack.c.l.b16 %v1254
      %v1351 = vunpack.c.l.b16 %v1255
      %v1352 = vunpack.c.l.b16 %v1256
      %v1353 = vunpack.c.l.b16 %v1257
      %v1354 = vunpack.c.l.b16 %v1258
      %v1355 = vunpack.c.l.b16 %v1259
      %v1356 = vunpack.c.l.b16 %v1260
      %v1357 = vunpack.c.l.b16 %v1261
      %v1358 = vunpack.c.l.b16 %v1262
      %v1359 = vunpack.c.l.b16 %v1263
      %v1360 = vpack.c.b16 %v1345, %v1344
      %v1361 = vpack.c.b16 %v1347, %v1346
      %v1362 = vpack.c.b16 %v1349, %v1348
      %v1363 = vpack.c.b16 %v1351, %v1350
      %v1364 = vpack.c.b16 %v1353, %v1352
      %v1365 = vpack.c.b16 %v1355, %v1354
      %v1366 = vpack.c.b16 %v1357, %v1356
      %v1367 = vpack.c.b16 %v1359, %v1358
      %1376 = vmatpush.bf16.msra.mxu0 %v1367
      %1377 = vmatpush.bf16.msra.mxu0 %v1366
      %1378 = vmatpush.bf16.msra.mxu0 %v1365
      %1379 = vmatpush.bf16.msra.mxu0 %v1364
      %1380 = vmatpush.bf16.msra.mxu0 %v1363
      %1381 = vmatpush.bf16.msra.mxu0 %v1362
      %1382 = vmatpush.bf16.msra.mxu0 %v1361
      %1383 = vmatpush.bf16.msra.mxu0 %v1360
      %1384 = vmatmul.bf16.gmra.mxu0 %v1296
      %v1385 = vpop.f32.mrf.mxu0
      %v1386 = vadd.f32 0.0, %v1385
      %v1387 = vpop.f32.mrf.mxu0
      %v1388 = vadd.f32 0.0, %v1387
      %1389 = vmatmul.bf16.gmra.mxu0 %v1297
      %v1390 = vpop.f32.mrf.mxu0
      %v1391 = vadd.f32 0.0, %v1390
      %v1392 = vpop.f32.mrf.mxu0
      %v1393 = vadd.f32 0.0, %v1392
      %1394 = vmatmul.bf16.gmra.mxu0 %v1298
      %v1395 = vpop.f32.mrf.mxu0
      %v1396 = vadd.f32 0.0, %v1395
      %v1397 = vpop.f32.mrf.mxu0
      %v1398 = vadd.f32 0.0, %v1397
      %1399 = vmatmul.bf16.gmra.mxu0 %v1299
      %v1400 = vpop.f32.mrf.mxu0
      %v1401 = vadd.f32 0.0, %v1400
      %v1402 = vpop.f32.mrf.mxu0
      %v1403 = vadd.f32 0.0, %v1402
      %1404 = vmatmul.bf16.gmra.mxu0 %v1300
      %v1405 = vpop.f32.mrf.mxu0
      %v1406 = vadd.f32 0.0, %v1405
      %v1407 = vpop.f32.mrf.mxu0
      %v1408 = vadd.f32 0.0, %v1407
      %1409 = vmatmul.bf16.gmra.mxu0 %v1301
      %v1410 = vpop.f32.mrf.mxu0
      %v1411 = vadd.f32 0.0, %v1410
      %v1412 = vpop.f32.mrf.mxu0
      %v1413 = vadd.f32 0.0, %v1412
      %1414 = vmatmul.bf16.gmra.mxu0 %v1302
      %v1415 = vpop.f32.mrf.mxu0
      %v1416 = vadd.f32 0.0, %v1415
      %v1417 = vpop.f32.mrf.mxu0
      %v1418 = vadd.f32 0.0, %v1417
      %1419 = vmatmul.bf16.gmra.mxu0 %v1303
      %v1420 = vpop.f32.mrf.mxu0
      %v1421 = vadd.f32 0.0, %v1420
      %v1422 = vpop.f32.mrf.mxu0
      %v1423 = vadd.f32 0.0, %v1422
      %1424 = vmatmul.bf16.gmra.mxu0 %v1304
      %v1425 = vpop.f32.mrf.mxu0
      %v1426 = vadd.f32 0.0, %v1425
      %v1427 = vpop.f32.mrf.mxu0
      %v1428 = vadd.f32 0.0, %v1427
      %1429 = vmatmul.bf16.gmra.mxu0 %v1305
      %v1430 = vpop.f32.mrf.mxu0
      %v1431 = vadd.f32 0.0, %v1430
      %v1432 = vpop.f32.mrf.mxu0
      %v1433 = vadd.f32 0.0, %v1432
      %1434 = vmatmul.bf16.gmra.mxu0 %v1306
      %v1435 = vpop.f32.mrf.mxu0
      %v1436 = vadd.f32 0.0, %v1435
      %v1437 = vpop.f32.mrf.mxu0
      %v1438 = vadd.f32 0.0, %v1437
      %1439 = vmatmul.bf16.gmra.mxu0 %v1307
      %v1440 = vpop.f32.mrf.mxu0
      %v1441 = vadd.f32 0.0, %v1440
      %v1442 = vpop.f32.mrf.mxu0
      %v1443 = vadd.f32 0.0, %v1442
      %1444 = vmatmul.bf16.gmra.mxu0 %v1308
      %v1445 = vpop.f32.mrf.mxu0
      %v1446 = vadd.f32 0.0, %v1445
      %v1447 = vpop.f32.mrf.mxu0
      %v1448 = vadd.f32 0.0, %v1447
      %1449 = vmatmul.bf16.gmra.mxu0 %v1309
      %v1450 = vpop.f32.mrf.mxu0
      %v1451 = vadd.f32 0.0, %v1450
      %v1452 = vpop.f32.mrf.mxu0
      %v1453 = vadd.f32 0.0, %v1452
      %1454 = vmatmul.bf16.gmra.mxu0 %v1310
      %v1455 = vpop.f32.mrf.mxu0
      %v1456 = vadd.f32 0.0, %v1455
      %v1457 = vpop.f32.mrf.mxu0
      %v1458 = vadd.f32 0.0, %v1457
      %1459 = vmatmul.bf16.gmra.mxu0 %v1311
      %v1460 = vpop.f32.mrf.mxu0
      %v1461 = vadd.f32 0.0, %v1460
      %v1462 = vpop.f32.mrf.mxu0
      %v1463 = vadd.f32 0.0, %v1462
      %1464 = vdwg.mxu0
      %v1465 = vadd.f32 %v1005, %v1386
      %v1466 = vadd.f32 %v1007, %v1388
      %v1467 = vadd.f32 %v1010, %v1391
      %v1468 = vadd.f32 %v1012, %v1393
      %v1469 = vadd.f32 %v1015, %v1396
      %v1470 = vadd.f32 %v1017, %v1398
      %v1471 = vadd.f32 %v1020, %v1401
      %v1472 = vadd.f32 %v1022, %v1403
      %v1473 = vadd.f32 %v1025, %v1406
      %v1474 = vadd.f32 %v1027, %v1408
      %v1475 = vadd.f32 %v1030, %v1411
      %v1476 = vadd.f32 %v1032, %v1413
      %v1477 = vadd.f32 %v1035, %v1416
      %v1478 = vadd.f32 %v1037, %v1418
      %v1479 = vadd.f32 %v1040, %v1421
      %v1480 = vadd.f32 %v1042, %v1423
      %v1481 = vadd.f32 %v1045, %v1426
      %v1482 = vadd.f32 %v1047, %v1428
      %v1483 = vadd.f32 %v1050, %v1431
      %v1484 = vadd.f32 %v1052, %v1433
      %v1485 = vadd.f32 %v1055, %v1436
      %v1486 = vadd.f32 %v1057, %v1438
      %v1487 = vadd.f32 %v1060, %v1441
      %v1488 = vadd.f32 %v1062, %v1443
      %v1489 = vadd.f32 %v1065, %v1446
      %v1490 = vadd.f32 %v1067, %v1448
      %v1491 = vadd.f32 %v1070, %v1451
      %v1492 = vadd.f32 %v1072, %v1453
      %v1493 = vadd.f32 %v1075, %v1456
      %v1494 = vadd.f32 %v1077, %v1458
      %v1495 = vadd.f32 %v1080, %v1461
      %v1496 = vadd.f32 %v1082, %v1463
      %s1497 = scalar_lea.vmem %s172, 12
      %v1498 = vld [vmem:[%s1497] sm:$0xf]
      %v1499 = vld [vmem:[%s1497 + $0x4] sm:$0xf]
      %v1500 = vld [vmem:[%s1497 + $0xc] sm:$0xf]
      %v1501 = vld [vmem:[%s1497 + $0x10] sm:$0xf]
      %v1502 = vld [vmem:[%s1497 + $0x18] sm:$0xf]
      %v1503 = vld [vmem:[%s1497 + $0x1c] sm:$0xf]
      %v1504 = vld [vmem:[%s1497 + $0x24] sm:$0xf]
      %v1505 = vld [vmem:[%s1497 + $0x28] sm:$0xf]
      %v1506 = vld [vmem:[%s1497 + $0x30] sm:$0xf]
      %v1507 = vld [vmem:[%s1497 + $0x34] sm:$0xf]
      %v1508 = vld [vmem:[%s1497 + $0x3c] sm:$0xf]
      %v1509 = vld [vmem:[%s1497 + $0x40] sm:$0xf]
      %v1510 = vld [vmem:[%s1497 + $0x48] sm:$0xf]
      %v1511 = vld [vmem:[%s1497 + $0x4c] sm:$0xf]
      %v1512 = vld [vmem:[%s1497 + $0x54] sm:$0xf]
      %v1513 = vld [vmem:[%s1497 + $0x58] sm:$0xf]
      %v1514 = vld [vmem:[%s1497 + $0x60] sm:$0xf]
      %v1515 = vld [vmem:[%s1497 + $0x64] sm:$0xf]
      %v1516 = vld [vmem:[%s1497 + $0x6c] sm:$0xf]
      %v1517 = vld [vmem:[%s1497 + $0x70] sm:$0xf]
      %v1518 = vld [vmem:[%s1497 + $0x78] sm:$0xf]
      %v1519 = vld [vmem:[%s1497 + $0x7c] sm:$0xf]
      %v1520 = vld [vmem:[%s1497 + $0x84] sm:$0xf]
      %v1521 = vld [vmem:[%s1497 + $0x88] sm:$0xf]
      %v1522 = vld [vmem:[%s1497 + $0x90] sm:$0xf]
      %v1523 = vld [vmem:[%s1497 + $0x94] sm:$0xf]
      %v1524 = vld [vmem:[%s1497 + $0x9c] sm:$0xf]
      %v1525 = vld [vmem:[%s1497 + $0xa0] sm:$0xf]
      %v1526 = vld [vmem:[%s1497 + $0xa8] sm:$0xf]
      %v1527 = vld [vmem:[%s1497 + $0xac] sm:$0xf]
      %v1528 = vld [vmem:[%s1497 + $0xb4] sm:$0xf]
      %v1529 = vld [vmem:[%s1497 + $0xb8] sm:$0xf]
      %s1530 = scalar_lea.vmem %s1, 192
      %v1531 = vld [vmem:[%s1530] sm:$0xf]
      %v1532 = vld [vmem:[%s1530 + $0x4] sm:$0xf]
      %v1533 = vld [vmem:[%s1530 + $0x8] sm:$0xf]
      %v1534 = vld [vmem:[%s1530 + $0xc] sm:$0xf]
      %v1535 = vld [vmem:[%s1530 + $0x10] sm:$0xf]
      %v1536 = vld [vmem:[%s1530 + $0x14] sm:$0xf]
      %v1537 = vld [vmem:[%s1530 + $0x18] sm:$0xf]
      %v1538 = vld [vmem:[%s1530 + $0x1c] sm:$0xf]
      %v1539 = vld [vmem:[%s1530 + $0x20] sm:$0xf]
      %v1540 = vld [vmem:[%s1530 + $0x24] sm:$0xf]
      %v1541 = vld [vmem:[%s1530 + $0x28] sm:$0xf]
      %v1542 = vld [vmem:[%s1530 + $0x2c] sm:$0xf]
      %v1543 = vld [vmem:[%s1530 + $0x30] sm:$0xf]
      %v1544 = vld [vmem:[%s1530 + $0x34] sm:$0xf]
      %v1545 = vld [vmem:[%s1530 + $0x38] sm:$0xf]
      %v1546 = vld [vmem:[%s1530 + $0x3c] sm:$0xf]
      %v1579 = vunpack.c.l.b16 %v1498
      %v1580 = vunpack.c.l.b16 %v1499
      %v1581 = vunpack.c.l.b16 %v1500
      %v1582 = vunpack.c.l.b16 %v1501
      %v1583 = vunpack.c.l.b16 %v1502
      %v1584 = vunpack.c.l.b16 %v1503
      %v1585 = vunpack.c.l.b16 %v1504
      %v1586 = vunpack.c.l.b16 %v1505
      %v1587 = vunpack.c.l.b16 %v1506
      %v1588 = vunpack.c.l.b16 %v1507
      %v1589 = vunpack.c.l.b16 %v1508
      %v1590 = vunpack.c.l.b16 %v1509
      %v1591 = vunpack.c.l.b16 %v1510
      %v1592 = vunpack.c.l.b16 %v1511
      %v1593 = vunpack.c.l.b16 %v1512
      %v1594 = vunpack.c.l.b16 %v1513
      %v1595 = vunpack.c.l.b16 %v1514
      %v1596 = vunpack.c.l.b16 %v1515
      %v1597 = vunpack.c.l.b16 %v1516
      %v1598 = vunpack.c.l.b16 %v1517
      %v1599 = vunpack.c.l.b16 %v1518
      %v1600 = vunpack.c.l.b16 %v1519
      %v1601 = vunpack.c.l.b16 %v1520
      %v1602 = vunpack.c.l.b16 %v1521
      %v1603 = vunpack.c.l.b16 %v1522
      %v1604 = vunpack.c.l.b16 %v1523
      %v1605 = vunpack.c.l.b16 %v1524
      %v1606 = vunpack.c.l.b16 %v1525
      %v1607 = vunpack.c.l.b16 %v1526
      %v1608 = vunpack.c.l.b16 %v1527
      %v1609 = vunpack.c.l.b16 %v1528
      %v1610 = vunpack.c.l.b16 %v1529
      %v1611 = vpack.c.b16 %v1580, %v1579
      %v1612 = vpack.c.b16 %v1582, %v1581
      %v1613 = vpack.c.b16 %v1584, %v1583
      %v1614 = vpack.c.b16 %v1586, %v1585
      %v1615 = vpack.c.b16 %v1588, %v1587
      %v1616 = vpack.c.b16 %v1590, %v1589
      %v1617 = vpack.c.b16 %v1592, %v1591
      %v1618 = vpack.c.b16 %v1594, %v1593
      %v1619 = vpack.c.b16 %v1596, %v1595
      %v1620 = vpack.c.b16 %v1598, %v1597
      %v1621 = vpack.c.b16 %v1600, %v1599
      %v1622 = vpack.c.b16 %v1602, %v1601
      %v1623 = vpack.c.b16 %v1604, %v1603
      %v1624 = vpack.c.b16 %v1606, %v1605
      %v1625 = vpack.c.b16 %v1608, %v1607
      %v1626 = vpack.c.b16 %v1610, %v1609
      %v1659 = vunpack.c.l.b16 %v1531
      %v1660 = vunpack.c.l.b16 %v1532
      %v1661 = vunpack.c.l.b16 %v1533
      %v1662 = vunpack.c.l.b16 %v1534
      %v1663 = vunpack.c.l.b16 %v1535
      %v1664 = vunpack.c.l.b16 %v1536
      %v1665 = vunpack.c.l.b16 %v1537
      %v1666 = vunpack.c.l.b16 %v1538
      %v1667 = vunpack.c.l.b16 %v1539
      %v1668 = vunpack.c.l.b16 %v1540
      %v1669 = vunpack.c.l.b16 %v1541
      %v1670 = vunpack.c.l.b16 %v1542
      %v1671 = vunpack.c.l.b16 %v1543
      %v1672 = vunpack.c.l.b16 %v1544
      %v1673 = vunpack.c.l.b16 %v1545
      %v1674 = vunpack.c.l.b16 %v1546
      %v1675 = vpack.c.b16 %v1660, %v1659
      %v1676 = vpack.c.b16 %v1662, %v1661
      %v1677 = vpack.c.b16 %v1664, %v1663
      %v1678 = vpack.c.b16 %v1666, %v1665
      %v1679 = vpack.c.b16 %v1668, %v1667
      %v1680 = vpack.c.b16 %v1670, %v1669
      %v1681 = vpack.c.b16 %v1672, %v1671
      %v1682 = vpack.c.b16 %v1674, %v1673
      %1691 = vmatpush.bf16.msra.mxu0 %v1682
      %1692 = vmatpush.bf16.msra.mxu0 %v1681
      %1693 = vmatpush.bf16.msra.mxu0 %v1680
      %1694 = vmatpush.bf16.msra.mxu0 %v1679
      %1695 = vmatpush.bf16.msra.mxu0 %v1678
      %1696 = vmatpush.bf16.msra.mxu0 %v1677
      %1697 = vmatpush.bf16.msra.mxu0 %v1676
      %1698 = vmatpush.bf16.msra.mxu0 %v1675
      %1699 = vmatmul.bf16.gmra.mxu0 %v1611
      %v1700 = vpop.f32.mrf.mxu0
      %v1701 = vadd.f32 0.0, %v1700
      %v1702 = vpop.f32.mrf.mxu0
      %v1703 = vadd.f32 0.0, %v1702
      %1704 = vmatmul.bf16.gmra.mxu0 %v1612
      %v1705 = vpop.f32.mrf.mxu0
      %v1706 = vadd.f32 0.0, %v1705
      %v1707 = vpop.f32.mrf.mxu0
      %v1708 = vadd.f32 0.0, %v1707
      %1709 = vmatmul.bf16.gmra.mxu0 %v1613
      %v1710 = vpop.f32.mrf.mxu0
      %v1711 = vadd.f32 0.0, %v1710
      %v1712 = vpop.f32.mrf.mxu0
      %v1713 = vadd.f32 0.0, %v1712
      %1714 = vmatmul.bf16.gmra.mxu0 %v1614
      %v1715 = vpop.f32.mrf.mxu0
      %v1716 = vadd.f32 0.0, %v1715
      %v1717 = vpop.f32.mrf.mxu0
      %v1718 = vadd.f32 0.0, %v1717
      %1719 = vmatmul.bf16.gmra.mxu0 %v1615
      %v1720 = vpop.f32.mrf.mxu0
      %v1721 = vadd.f32 0.0, %v1720
      %v1722 = vpop.f32.mrf.mxu0
      %v1723 = vadd.f32 0.0, %v1722
      %1724 = vmatmul.bf16.gmra.mxu0 %v1616
      %v1725 = vpop.f32.mrf.mxu0
      %v1726 = vadd.f32 0.0, %v1725
      %v1727 = vpop.f32.mrf.mxu0
      %v1728 = vadd.f32 0.0, %v1727
      %1729 = vmatmul.bf16.gmra.mxu0 %v1617
      %v1730 = vpop.f32.mrf.mxu0
      %v1731 = vadd.f32 0.0, %v1730
      %v1732 = vpop.f32.mrf.mxu0
      %v1733 = vadd.f32 0.0, %v1732
      %1734 = vmatmul.bf16.gmra.mxu0 %v1618
      %v1735 = vpop.f32.mrf.mxu0
      %v1736 = vadd.f32 0.0, %v1735
      %v1737 = vpop.f32.mrf.mxu0
      %v1738 = vadd.f32 0.0, %v1737
      %1739 = vmatmul.bf16.gmra.mxu0 %v1619
      %v1740 = vpop.f32.mrf.mxu0
      %v1741 = vadd.f32 0.0, %v1740
      %v1742 = vpop.f32.mrf.mxu0
      %v1743 = vadd.f32 0.0, %v1742
      %1744 = vmatmul.bf16.gmra.mxu0 %v1620
      %v1745 = vpop.f32.mrf.mxu0
      %v1746 = vadd.f32 0.0, %v1745
      %v1747 = vpop.f32.mrf.mxu0
      %v1748 = vadd.f32 0.0, %v1747
      %1749 = vmatmul.bf16.gmra.mxu0 %v1621
      %v1750 = vpop.f32.mrf.mxu0
      %v1751 = vadd.f32 0.0, %v1750
      %v1752 = vpop.f32.mrf.mxu0
      %v1753 = vadd.f32 0.0, %v1752
      %1754 = vmatmul.bf16.gmra.mxu0 %v1622
      %v1755 = vpop.f32.mrf.mxu0
      %v1756 = vadd.f32 0.0, %v1755
      %v1757 = vpop.f32.mrf.mxu0
      %v1758 = vadd.f32 0.0, %v1757
      %1759 = vmatmul.bf16.gmra.mxu0 %v1623
      %v1760 = vpop.f32.mrf.mxu0
      %v1761 = vadd.f32 0.0, %v1760
      %v1762 = vpop.f32.mrf.mxu0
      %v1763 = vadd.f32 0.0, %v1762
      %1764 = vmatmul.bf16.gmra.mxu0 %v1624
      %v1765 = vpop.f32.mrf.mxu0
      %v1766 = vadd.f32 0.0, %v1765
      %v1767 = vpop.f32.mrf.mxu0
      %v1768 = vadd.f32 0.0, %v1767
      %1769 = vmatmul.bf16.gmra.mxu0 %v1625
      %v1770 = vpop.f32.mrf.mxu0
      %v1771 = vadd.f32 0.0, %v1770
      %v1772 = vpop.f32.mrf.mxu0
      %v1773 = vadd.f32 0.0, %v1772
      %1774 = vmatmul.bf16.gmra.mxu0 %v1626
      %v1775 = vpop.f32.mrf.mxu0
      %v1776 = vadd.f32 0.0, %v1775
      %v1777 = vpop.f32.mrf.mxu0
      %v1778 = vadd.f32 0.0, %v1777
      %1779 = vdwg.mxu0
      %v1780 = vadd.f32 %v1465, %v1701
      %v1781 = vadd.f32 %v1466, %v1703
      %v1782 = vadd.f32 %v1467, %v1706
      %v1783 = vadd.f32 %v1468, %v1708
      %v1784 = vadd.f32 %v1469, %v1711
      %v1785 = vadd.f32 %v1470, %v1713
      %v1786 = vadd.f32 %v1471, %v1716
      %v1787 = vadd.f32 %v1472, %v1718
      %v1788 = vadd.f32 %v1473, %v1721
      %v1789 = vadd.f32 %v1474, %v1723
      %v1790 = vadd.f32 %v1475, %v1726
      %v1791 = vadd.f32 %v1476, %v1728
      %v1792 = vadd.f32 %v1477, %v1731
      %v1793 = vadd.f32 %v1478, %v1733
      %v1794 = vadd.f32 %v1479, %v1736
      %v1795 = vadd.f32 %v1480, %v1738
      %v1796 = vadd.f32 %v1481, %v1741
      %v1797 = vadd.f32 %v1482, %v1743
      %v1798 = vadd.f32 %v1483, %v1746
      %v1799 = vadd.f32 %v1484, %v1748
      %v1800 = vadd.f32 %v1485, %v1751
      %v1801 = vadd.f32 %v1486, %v1753
      %v1802 = vadd.f32 %v1487, %v1756
      %v1803 = vadd.f32 %v1488, %v1758
      %v1804 = vadd.f32 %v1489, %v1761
      %v1805 = vadd.f32 %v1490, %v1763
      %v1806 = vadd.f32 %v1491, %v1766
      %v1807 = vadd.f32 %v1492, %v1768
      %v1808 = vadd.f32 %v1493, %v1771
      %v1809 = vadd.f32 %v1494, %v1773
      %v1810 = vadd.f32 %v1495, %v1776
      %v1811 = vadd.f32 %v1496, %v1778
      %v1812 = vld [vmem:[%s1497] sm:$0xf]
      %v1813 = vld [vmem:[%s1497 + $0x4] sm:$0xf]
      %v1814 = vld [vmem:[%s1497 + $0x8] sm:$0x1]
      %v1815 = vld [vmem:[%s1497 + $0xc] sm:$0xf]
      %v1816 = vld [vmem:[%s1497 + $0x10] sm:$0xf]
      %v1817 = vld [vmem:[%s1497 + $0x14] sm:$0x1]
      %v1818 = vld [vmem:[%s1497 + $0x18] sm:$0xf]
      %v1819 = vld [vmem:[%s1497 + $0x1c] sm:$0xf]
      %v1820 = vld [vmem:[%s1497 + $0x20] sm:$0x1]
      %v1821 = vld [vmem:[%s1497 + $0x24] sm:$0xf]
      %v1822 = vld [vmem:[%s1497 + $0x28] sm:$0xf]
      %v1823 = vld [vmem:[%s1497 + $0x2c] sm:$0x1]
      %v1824 = vld [vmem:[%s1497 + $0x30] sm:$0xf]
      %v1825 = vld [vmem:[%s1497 + $0x34] sm:$0xf]
      %v1826 = vld [vmem:[%s1497 + $0x38] sm:$0x1]
      %v1827 = vld [vmem:[%s1497 + $0x3c] sm:$0xf]
      %v1828 = vld [vmem:[%s1497 + $0x40] sm:$0xf]
      %v1829 = vld [vmem:[%s1497 + $0x44] sm:$0x1]
      %v1830 = vld [vmem:[%s1497 + $0x48] sm:$0xf]
      %v1831 = vld [vmem:[%s1497 + $0x4c] sm:$0xf]
      %v1832 = vld [vmem:[%s1497 + $0x50] sm:$0x1]
      %v1833 = vld [vmem:[%s1497 + $0x54] sm:$0xf]
      %v1834 = vld [vmem:[%s1497 + $0x58] sm:$0xf]
      %v1835 = vld [vmem:[%s1497 + $0x5c] sm:$0x1]
      %v1836 = vld [vmem:[%s1497 + $0x60] sm:$0xf]
      %v1837 = vld [vmem:[%s1497 + $0x64] sm:$0xf]
      %v1838 = vld [vmem:[%s1497 + $0x68] sm:$0x1]
      %v1839 = vld [vmem:[%s1497 + $0x6c] sm:$0xf]
      %v1840 = vld [vmem:[%s1497 + $0x70] sm:$0xf]
      %v1841 = vld [vmem:[%s1497 + $0x74] sm:$0x1]
      %v1842 = vld [vmem:[%s1497 + $0x78] sm:$0xf]
      %v1843 = vld [vmem:[%s1497 + $0x7c] sm:$0xf]
      %v1844 = vld [vmem:[%s1497 + $0x80] sm:$0x1]
      %v1845 = vld [vmem:[%s1497 + $0x84] sm:$0xf]
      %v1846 = vld [vmem:[%s1497 + $0x88] sm:$0xf]
      %v1847 = vld [vmem:[%s1497 + $0x8c] sm:$0x1]
      %v1848 = vld [vmem:[%s1497 + $0x90] sm:$0xf]
      %v1849 = vld [vmem:[%s1497 + $0x94] sm:$0xf]
      %v1850 = vld [vmem:[%s1497 + $0x98] sm:$0x1]
      %v1851 = vld [vmem:[%s1497 + $0x9c] sm:$0xf]
      %v1852 = vld [vmem:[%s1497 + $0xa0] sm:$0xf]
      %v1853 = vld [vmem:[%s1497 + $0xa4] sm:$0x1]
      %v1854 = vld [vmem:[%s1497 + $0xa8] sm:$0xf]
      %v1855 = vld [vmem:[%s1497 + $0xac] sm:$0xf]
      %v1856 = vld [vmem:[%s1497 + $0xb0] sm:$0x1]
      %v1857 = vld [vmem:[%s1497 + $0xb4] sm:$0xf]
      %v1858 = vld [vmem:[%s1497 + $0xb8] sm:$0xf]
      %v1859 = vld [vmem:[%s1497 + $0xbc] sm:$0x1]
      %v1861 = vshrl.u32 %v1812, 16
      %v1863 = vrot.slane %v1861, 4
      %v1864 = vshll.u32 %v1812, 16
      %v1866 = vrot.slane %v1864, 5
      %v1867 = vor.u32 %v1863, %v1866
      %v1868 = vrot.slane %v1867, 4
      %v1870 = vshll.u32 %v1813, 16
      %v1872 = vrot.slane %v1870, 5
      %v1873 = vsel %vm248, %v1868, %v1872
      %v1874 = vshrl.u32 %v1813, 16
      %v1876 = vrot.slane %v1874, 4
      %v1877 = vor.u32 %v1876, %v1872
      %v1878 = vrot.slane %v1877, 4
      %v1880 = vshll.u32 %v1814, 16
      %v1882 = vrot.slane %v1880, 5
      %v1883 = vsel %vm248, %v1878, %v1882
      %v1885 = vshrl.u32 %v1815, 16
      %v1887 = vrot.slane %v1885, 4
      %v1888 = vshll.u32 %v1815, 16
      %v1890 = vrot.slane %v1888, 5
      %v1891 = vor.u32 %v1887, %v1890
      %v1892 = vrot.slane %v1891, 4
      %v1894 = vshll.u32 %v1816, 16
      %v1896 = vrot.slane %v1894, 5
      %v1897 = vsel %vm248, %v1892, %v1896
      %v1898 = vshrl.u32 %v1816, 16
      %v1900 = vrot.slane %v1898, 4
      %v1901 = vor.u32 %v1900, %v1896
      %v1902 = vrot.slane %v1901, 4
      %v1904 = vshll.u32 %v1817, 16
      %v1906 = vrot.slane %v1904, 5
      %v1907 = vsel %vm248, %v1902, %v1906
      %v1909 = vshrl.u32 %v1818, 16
      %v1911 = vrot.slane %v1909, 4
      %v1912 = vshll.u32 %v1818, 16
      %v1914 = vrot.slane %v1912, 5
      %v1915 = vor.u32 %v1911, %v1914
      %v1916 = vrot.slane %v1915, 4
      %v1918 = vshll.u32 %v1819, 16
      %v1920 = vrot.slane %v1918, 5
      %v1921 = vsel %vm248, %v1916, %v1920
      %v1922 = vshrl.u32 %v1819, 16
      %v1924 = vrot.slane %v1922, 4
      %v1925 = vor.u32 %v1924, %v1920
      %v1926 = vrot.slane %v1925, 4
      %v1928 = vshll.u32 %v1820, 16
      %v1930 = vrot.slane %v1928, 5
      %v1931 = vsel %vm248, %v1926, %v1930
      %v1933 = vshrl.u32 %v1821, 16
      %v1935 = vrot.slane %v1933, 4
      %v1936 = vshll.u32 %v1821, 16
      %v1938 = vrot.slane %v1936, 5
      %v1939 = vor.u32 %v1935, %v1938
      %v1940 = vrot.slane %v1939, 4
      %v1942 = vshll.u32 %v1822, 16
      %v1944 = vrot.slane %v1942, 5
      %v1945 = vsel %vm248, %v1940, %v1944
      %v1946 = vshrl.u32 %v1822, 16
      %v1948 = vrot.slane %v1946, 4
      %v1949 = vor.u32 %v1948, %v1944
      %v1950 = vrot.slane %v1949, 4
      %v1952 = vshll.u32 %v1823, 16
      %v1954 = vrot.slane %v1952, 5
      %v1955 = vsel %vm248, %v1950, %v1954
      %v1957 = vshrl.u32 %v1824, 16
      %v1959 = vrot.slane %v1957, 4
      %v1960 = vshll.u32 %v1824, 16
      %v1962 = vrot.slane %v1960, 5
      %v1963 = vor.u32 %v1959, %v1962
      %v1964 = vrot.slane %v1963, 4
      %v1966 = vshll.u32 %v1825, 16
      %v1968 = vrot.slane %v1966, 5
      %v1969 = vsel %vm248, %v1964, %v1968
      %v1970 = vshrl.u32 %v1825, 16
      %v1972 = vrot.slane %v1970, 4
      %v1973 = vor.u32 %v1972, %v1968
      %v1974 = vrot.slane %v1973, 4
      %v1976 = vshll.u32 %v1826, 16
      %v1978 = vrot.slane %v1976, 5
      %v1979 = vsel %vm248, %v1974, %v1978
      %v1981 = vshrl.u32 %v1827, 16
      %v1983 = vrot.slane %v1981, 4
      %v1984 = vshll.u32 %v1827, 16
      %v1986 = vrot.slane %v1984, 5
      %v1987 = vor.u32 %v1983, %v1986
      %v1988 = vrot.slane %v1987, 4
      %v1990 = vshll.u32 %v1828, 16
      %v1992 = vrot.slane %v1990, 5
      %v1993 = vsel %vm248, %v1988, %v1992
      %v1994 = vshrl.u32 %v1828, 16
      %v1996 = vrot.slane %v1994, 4
      %v1997 = vor.u32 %v1996, %v1992
      %v1998 = vrot.slane %v1997, 4
      %v2000 = vshll.u32 %v1829, 16
      %v2002 = vrot.slane %v2000, 5
      %v2003 = vsel %vm248, %v1998, %v2002
      %v2005 = vshrl.u32 %v1830, 16
      %v2007 = vrot.slane %v2005, 4
      %v2008 = vshll.u32 %v1830, 16
      %v2010 = vrot.slane %v2008, 5
      %v2011 = vor.u32 %v2007, %v2010
      %v2012 = vrot.slane %v2011, 4
      %v2014 = vshll.u32 %v1831, 16
      %v2016 = vrot.slane %v2014, 5
      %v2017 = vsel %vm248, %v2012, %v2016
      %v2018 = vshrl.u32 %v1831, 16
      %v2020 = vrot.slane %v2018, 4
      %v2021 = vor.u32 %v2020, %v2016
      %v2022 = vrot.slane %v2021, 4
      %v2024 = vshll.u32 %v1832, 16
      %v2026 = vrot.slane %v2024, 5
      %v2027 = vsel %vm248, %v2022, %v2026
      %v2029 = vshrl.u32 %v1833, 16
      %v2031 = vrot.slane %v2029, 4
      %v2032 = vshll.u32 %v1833, 16
      %v2034 = vrot.slane %v2032, 5
      %v2035 = vor.u32 %v2031, %v2034
      %v2036 = vrot.slane %v2035, 4
      %v2038 = vshll.u32 %v1834, 16
      %v2040 = vrot.slane %v2038, 5
      %v2041 = vsel %vm248, %v2036, %v2040
      %v2042 = vshrl.u32 %v1834, 16
      %v2044 = vrot.slane %v2042, 4
      %v2045 = vor.u32 %v2044, %v2040
      %v2046 = vrot.slane %v2045, 4
      %v2048 = vshll.u32 %v1835, 16
      %v2050 = vrot.slane %v2048, 5
      %v2051 = vsel %vm248, %v2046, %v2050
      %v2053 = vshrl.u32 %v1836, 16
      %v2055 = vrot.slane %v2053, 4
      %v2056 = vshll.u32 %v1836, 16
      %v2058 = vrot.slane %v2056, 5
      %v2059 = vor.u32 %v2055, %v2058
      %v2060 = vrot.slane %v2059, 4
      %v2062 = vshll.u32 %v1837, 16
      %v2064 = vrot.slane %v2062, 5
      %v2065 = vsel %vm248, %v2060, %v2064
      %v2066 = vshrl.u32 %v1837, 16
      %v2068 = vrot.slane %v2066, 4
      %v2069 = vor.u32 %v2068, %v2064
      %v2070 = vrot.slane %v2069, 4
      %v2072 = vshll.u32 %v1838, 16
      %v2074 = vrot.slane %v2072, 5
      %v2075 = vsel %vm248, %v2070, %v2074
      %v2077 = vshrl.u32 %v1839, 16
      %v2079 = vrot.slane %v2077, 4
      %v2080 = vshll.u32 %v1839, 16
      %v2082 = vrot.slane %v2080, 5
      %v2083 = vor.u32 %v2079, %v2082
      %v2084 = vrot.slane %v2083, 4
      %v2086 = vshll.u32 %v1840, 16
      %v2088 = vrot.slane %v2086, 5
      %v2089 = vsel %vm248, %v2084, %v2088
      %v2090 = vshrl.u32 %v1840, 16
      %v2092 = vrot.slane %v2090, 4
      %v2093 = vor.u32 %v2092, %v2088
      %v2094 = vrot.slane %v2093, 4
      %v2096 = vshll.u32 %v1841, 16
      %v2098 = vrot.slane %v2096, 5
      %v2099 = vsel %vm248, %v2094, %v2098
      %v2101 = vshrl.u32 %v1842, 16
      %v2103 = vrot.slane %v2101, 4
      %v2104 = vshll.u32 %v1842, 16
      %v2106 = vrot.slane %v2104, 5
      %v2107 = vor.u32 %v2103, %v2106
      %v2108 = vrot.slane %v2107, 4
      %v2110 = vshll.u32 %v1843, 16
      %v2112 = vrot.slane %v2110, 5
      %v2113 = vsel %vm248, %v2108, %v2112
      %v2114 = vshrl.u32 %v1843, 16
      %v2116 = vrot.slane %v2114, 4
      %v2117 = vor.u32 %v2116, %v2112
      %v2118 = vrot.slane %v2117, 4
      %v2120 = vshll.u32 %v1844, 16
      %v2122 = vrot.slane %v2120, 5
      %v2123 = vsel %vm248, %v2118, %v2122
      %v2125 = vshrl.u32 %v1845, 16
      %v2127 = vrot.slane %v2125, 4
      %v2128 = vshll.u32 %v1845, 16
      %v2130 = vrot.slane %v2128, 5
      %v2131 = vor.u32 %v2127, %v2130
      %v2132 = vrot.slane %v2131, 4
      %v2134 = vshll.u32 %v1846, 16
      %v2136 = vrot.slane %v2134, 5
      %v2137 = vsel %vm248, %v2132, %v2136
      %v2138 = vshrl.u32 %v1846, 16
      %v2140 = vrot.slane %v2138, 4
      %v2141 = vor.u32 %v2140, %v2136
      %v2142 = vrot.slane %v2141, 4
      %v2144 = vshll.u32 %v1847, 16
      %v2146 = vrot.slane %v2144, 5
      %v2147 = vsel %vm248, %v2142, %v2146
      %v2149 = vshrl.u32 %v1848, 16
      %v2151 = vrot.slane %v2149, 4
      %v2152 = vshll.u32 %v1848, 16
      %v2154 = vrot.slane %v2152, 5
      %v2155 = vor.u32 %v2151, %v2154
      %v2156 = vrot.slane %v2155, 4
      %v2158 = vshll.u32 %v1849, 16
      %v2160 = vrot.slane %v2158, 5
      %v2161 = vsel %vm248, %v2156, %v2160
      %v2162 = vshrl.u32 %v1849, 16
      %v2164 = vrot.slane %v2162, 4
      %v2165 = vor.u32 %v2164, %v2160
      %v2166 = vrot.slane %v2165, 4
      %v2168 = vshll.u32 %v1850, 16
      %v2170 = vrot.slane %v2168, 5
      %v2171 = vsel %vm248, %v2166, %v2170
      %v2173 = vshrl.u32 %v1851, 16
      %v2175 = vrot.slane %v2173, 4
      %v2176 = vshll.u32 %v1851, 16
      %v2178 = vrot.slane %v2176, 5
      %v2179 = vor.u32 %v2175, %v2178
      %v2180 = vrot.slane %v2179, 4
      %v2182 = vshll.u32 %v1852, 16
      %v2184 = vrot.slane %v2182, 5
      %v2185 = vsel %vm248, %v2180, %v2184
      %v2186 = vshrl.u32 %v1852, 16
      %v2188 = vrot.slane %v2186, 4
      %v2189 = vor.u32 %v2188, %v2184
      %v2190 = vrot.slane %v2189, 4
      %v2192 = vshll.u32 %v1853, 16
      %v2194 = vrot.slane %v2192, 5
      %v2195 = vsel %vm248, %v2190, %v2194
      %v2197 = vshrl.u32 %v1854, 16
      %v2199 = vrot.slane %v2197, 4
      %v2200 = vshll.u32 %v1854, 16
      %v2202 = vrot.slane %v2200, 5
      %v2203 = vor.u32 %v2199, %v2202
      %v2204 = vrot.slane %v2203, 4
      %v2206 = vshll.u32 %v1855, 16
      %v2208 = vrot.slane %v2206, 5
      %v2209 = vsel %vm248, %v2204, %v2208
      %v2210 = vshrl.u32 %v1855, 16
      %v2212 = vrot.slane %v2210, 4
      %v2213 = vor.u32 %v2212, %v2208
      %v2214 = vrot.slane %v2213, 4
      %v2216 = vshll.u32 %v1856, 16
      %v2218 = vrot.slane %v2216, 5
      %v2219 = vsel %vm248, %v2214, %v2218
      %v2221 = vshrl.u32 %v1857, 16
      %v2223 = vrot.slane %v2221, 4
      %v2224 = vshll.u32 %v1857, 16
      %v2226 = vrot.slane %v2224, 5
      %v2227 = vor.u32 %v2223, %v2226
      %v2228 = vrot.slane %v2227, 4
      %v2230 = vshll.u32 %v1858, 16
      %v2232 = vrot.slane %v2230, 5
      %v2233 = vsel %vm248, %v2228, %v2232
      %v2234 = vshrl.u32 %v1858, 16
      %v2236 = vrot.slane %v2234, 4
      %v2237 = vor.u32 %v2236, %v2232
      %v2238 = vrot.slane %v2237, 4
      %v2240 = vshll.u32 %v1859, 16
      %v2242 = vrot.slane %v2240, 5
      %v2243 = vsel %vm248, %v2238, %v2242
      %s2244 = scalar_lea.vmem %s1, 256
      %v2245 = vld [vmem:[%s2244] sm:$0xf]
      %v2246 = vld [vmem:[%s2244 + $0x4] sm:$0xf]
      %v2247 = vld [vmem:[%s2244 + $0x8] sm:$0xf]
      %v2248 = vld [vmem:[%s2244 + $0xc] sm:$0xf]
      %v2249 = vld [vmem:[%s2244 + $0x10] sm:$0xf]
      %v2250 = vld [vmem:[%s2244 + $0x14] sm:$0xf]
      %v2251 = vld [vmem:[%s2244 + $0x18] sm:$0xf]
      %v2252 = vld [vmem:[%s2244 + $0x1c] sm:$0xf]
      %v2253 = vld [vmem:[%s2244 + $0x20] sm:$0xf]
      %v2254 = vld [vmem:[%s2244 + $0x24] sm:$0xf]
      %v2255 = vld [vmem:[%s2244 + $0x28] sm:$0xf]
      %v2256 = vld [vmem:[%s2244 + $0x2c] sm:$0xf]
      %v2257 = vld [vmem:[%s2244 + $0x30] sm:$0xf]
      %v2258 = vld [vmem:[%s2244 + $0x34] sm:$0xf]
      %v2259 = vld [vmem:[%s2244 + $0x38] sm:$0xf]
      %v2260 = vld [vmem:[%s2244 + $0x3c] sm:$0xf]
      %v2261 = vunpack.c.l.b16 %v1873
      %v2262 = vunpack.c.l.b16 %v1883
      %v2263 = vunpack.c.l.b16 %v1897
      %v2264 = vunpack.c.l.b16 %v1907
      %v2265 = vunpack.c.l.b16 %v1921
      %v2266 = vunpack.c.l.b16 %v1931
      %v2267 = vunpack.c.l.b16 %v1945
      %v2268 = vunpack.c.l.b16 %v1955
      %v2269 = vunpack.c.l.b16 %v1969
      %v2270 = vunpack.c.l.b16 %v1979
      %v2271 = vunpack.c.l.b16 %v1993
      %v2272 = vunpack.c.l.b16 %v2003
      %v2273 = vunpack.c.l.b16 %v2017
      %v2274 = vunpack.c.l.b16 %v2027
      %v2275 = vunpack.c.l.b16 %v2041
      %v2276 = vunpack.c.l.b16 %v2051
      %v2277 = vunpack.c.l.b16 %v2065
      %v2278 = vunpack.c.l.b16 %v2075
      %v2279 = vunpack.c.l.b16 %v2089
      %v2280 = vunpack.c.l.b16 %v2099
      %v2281 = vunpack.c.l.b16 %v2113
      %v2282 = vunpack.c.l.b16 %v2123
      %v2283 = vunpack.c.l.b16 %v2137
      %v2284 = vunpack.c.l.b16 %v2147
      %v2285 = vunpack.c.l.b16 %v2161
      %v2286 = vunpack.c.l.b16 %v2171
      %v2287 = vunpack.c.l.b16 %v2185
      %v2288 = vunpack.c.l.b16 %v2195
      %v2289 = vunpack.c.l.b16 %v2209
      %v2290 = vunpack.c.l.b16 %v2219
      %v2291 = vunpack.c.l.b16 %v2233
      %v2292 = vunpack.c.l.b16 %v2243
      %v2293 = vpack.c.b16 %v2262, %v2261
      %v2294 = vpack.c.b16 %v2264, %v2263
      %v2295 = vpack.c.b16 %v2266, %v2265
      %v2296 = vpack.c.b16 %v2268, %v2267
      %v2297 = vpack.c.b16 %v2270, %v2269
      %v2298 = vpack.c.b16 %v2272, %v2271
      %v2299 = vpack.c.b16 %v2274, %v2273
      %v2300 = vpack.c.b16 %v2276, %v2275
      %v2301 = vpack.c.b16 %v2278, %v2277
      %v2302 = vpack.c.b16 %v2280, %v2279
      %v2303 = vpack.c.b16 %v2282, %v2281
      %v2304 = vpack.c.b16 %v2284, %v2283
      %v2305 = vpack.c.b16 %v2286, %v2285
      %v2306 = vpack.c.b16 %v2288, %v2287
      %v2307 = vpack.c.b16 %v2290, %v2289
      %v2308 = vpack.c.b16 %v2292, %v2291
      %v2341 = vunpack.c.l.b16 %v2245
      %v2342 = vunpack.c.l.b16 %v2246
      %v2343 = vunpack.c.l.b16 %v2247
      %v2344 = vunpack.c.l.b16 %v2248
      %v2345 = vunpack.c.l.b16 %v2249
      %v2346 = vunpack.c.l.b16 %v2250
      %v2347 = vunpack.c.l.b16 %v2251
      %v2348 = vunpack.c.l.b16 %v2252
      %v2349 = vunpack.c.l.b16 %v2253
      %v2350 = vunpack.c.l.b16 %v2254
      %v2351 = vunpack.c.l.b16 %v2255
      %v2352 = vunpack.c.l.b16 %v2256
      %v2353 = vunpack.c.l.b16 %v2257
      %v2354 = vunpack.c.l.b16 %v2258
      %v2355 = vunpack.c.l.b16 %v2259
      %v2356 = vunpack.c.l.b16 %v2260
      %v2357 = vpack.c.b16 %v2342, %v2341
      %v2358 = vpack.c.b16 %v2344, %v2343
      %v2359 = vpack.c.b16 %v2346, %v2345
      %v2360 = vpack.c.b16 %v2348, %v2347
      %v2361 = vpack.c.b16 %v2350, %v2349
      %v2362 = vpack.c.b16 %v2352, %v2351
      %v2363 = vpack.c.b16 %v2354, %v2353
      %v2364 = vpack.c.b16 %v2356, %v2355
      %2373 = vmatpush.bf16.msra.mxu0 %v2364
      %2374 = vmatpush.bf16.msra.mxu0 %v2363
      %2375 = vmatpush.bf16.msra.mxu0 %v2362
      %2376 = vmatpush.bf16.msra.mxu0 %v2361
      %2377 = vmatpush.bf16.msra.mxu0 %v2360
      %2378 = vmatpush.bf16.msra.mxu0 %v2359
      %2379 = vmatpush.bf16.msra.mxu0 %v2358
      %2380 = vmatpush.bf16.msra.mxu0 %v2357
      %2381 = vmatmul.bf16.gmra.mxu0 %v2293
      %v2382 = vpop.f32.mrf.mxu0
      %v2383 = vadd.f32 0.0, %v2382
      %v2384 = vpop.f32.mrf.mxu0
      %v2385 = vadd.f32 0.0, %v2384
      %2386 = vmatmul.bf16.gmra.mxu0 %v2294
      %v2387 = vpop.f32.mrf.mxu0
      %v2388 = vadd.f32 0.0, %v2387
      %v2389 = vpop.f32.mrf.mxu0
      %v2390 = vadd.f32 0.0, %v2389
      %2391 = vmatmul.bf16.gmra.mxu0 %v2295
      %v2392 = vpop.f32.mrf.mxu0
      %v2393 = vadd.f32 0.0, %v2392
      %v2394 = vpop.f32.mrf.mxu0
      %v2395 = vadd.f32 0.0, %v2394
      %2396 = vmatmul.bf16.gmra.mxu0 %v2296
      %v2397 = vpop.f32.mrf.mxu0
      %v2398 = vadd.f32 0.0, %v2397
      %v2399 = vpop.f32.mrf.mxu0
      %v2400 = vadd.f32 0.0, %v2399
      %2401 = vmatmul.bf16.gmra.mxu0 %v2297
      %v2402 = vpop.f32.mrf.mxu0
      %v2403 = vadd.f32 0.0, %v2402
      %v2404 = vpop.f32.mrf.mxu0
      %v2405 = vadd.f32 0.0, %v2404
      %2406 = vmatmul.bf16.gmra.mxu0 %v2298
      %v2407 = vpop.f32.mrf.mxu0
      %v2408 = vadd.f32 0.0, %v2407
      %v2409 = vpop.f32.mrf.mxu0
      %v2410 = vadd.f32 0.0, %v2409
      %2411 = vmatmul.bf16.gmra.mxu0 %v2299
      %v2412 = vpop.f32.mrf.mxu0
      %v2413 = vadd.f32 0.0, %v2412
      %v2414 = vpop.f32.mrf.mxu0
      %v2415 = vadd.f32 0.0, %v2414
      %2416 = vmatmul.bf16.gmra.mxu0 %v2300
      %v2417 = vpop.f32.mrf.mxu0
      %v2418 = vadd.f32 0.0, %v2417
      %v2419 = vpop.f32.mrf.mxu0
      %v2420 = vadd.f32 0.0, %v2419
      %2421 = vmatmul.bf16.gmra.mxu0 %v2301
      %v2422 = vpop.f32.mrf.mxu0
      %v2423 = vadd.f32 0.0, %v2422
      %v2424 = vpop.f32.mrf.mxu0
      %v2425 = vadd.f32 0.0, %v2424
      %2426 = vmatmul.bf16.gmra.mxu0 %v2302
      %v2427 = vpop.f32.mrf.mxu0
      %v2428 = vadd.f32 0.0, %v2427
      %v2429 = vpop.f32.mrf.mxu0
      %v2430 = vadd.f32 0.0, %v2429
      %2431 = vmatmul.bf16.gmra.mxu0 %v2303
      %v2432 = vpop.f32.mrf.mxu0
      %v2433 = vadd.f32 0.0, %v2432
      %v2434 = vpop.f32.mrf.mxu0
      %v2435 = vadd.f32 0.0, %v2434
      %2436 = vmatmul.bf16.gmra.mxu0 %v2304
      %v2437 = vpop.f32.mrf.mxu0
      %v2438 = vadd.f32 0.0, %v2437
      %v2439 = vpop.f32.mrf.mxu0
      %v2440 = vadd.f32 0.0, %v2439
      %2441 = vmatmul.bf16.gmra.mxu0 %v2305
      %v2442 = vpop.f32.mrf.mxu0
      %v2443 = vadd.f32 0.0, %v2442
      %v2444 = vpop.f32.mrf.mxu0
      %v2445 = vadd.f32 0.0, %v2444
      %2446 = vmatmul.bf16.gmra.mxu0 %v2306
      %v2447 = vpop.f32.mrf.mxu0
      %v2448 = vadd.f32 0.0, %v2447
      %v2449 = vpop.f32.mrf.mxu0
      %v2450 = vadd.f32 0.0, %v2449
      %2451 = vmatmul.bf16.gmra.mxu0 %v2307
      %v2452 = vpop.f32.mrf.mxu0
      %v2453 = vadd.f32 0.0, %v2452
      %v2454 = vpop.f32.mrf.mxu0
      %v2455 = vadd.f32 0.0, %v2454
      %2456 = vmatmul.bf16.gmra.mxu0 %v2308
      %v2457 = vpop.f32.mrf.mxu0
      %v2458 = vadd.f32 0.0, %v2457
      %v2459 = vpop.f32.mrf.mxu0
      %v2460 = vadd.f32 0.0, %v2459
      %2461 = vdwg.mxu0
      %v2462 = vadd.f32 %v1780, %v2383
      %v2463 = vadd.f32 %v1781, %v2385
      %v2464 = vadd.f32 %v1782, %v2388
      %v2465 = vadd.f32 %v1783, %v2390
      %v2466 = vadd.f32 %v1784, %v2393
      %v2467 = vadd.f32 %v1785, %v2395
      %v2468 = vadd.f32 %v1786, %v2398
      %v2469 = vadd.f32 %v1787, %v2400
      %v2470 = vadd.f32 %v1788, %v2403
      %v2471 = vadd.f32 %v1789, %v2405
      %v2472 = vadd.f32 %v1790, %v2408
      %v2473 = vadd.f32 %v1791, %v2410
      %v2474 = vadd.f32 %v1792, %v2413
      %v2475 = vadd.f32 %v1793, %v2415
      %v2476 = vadd.f32 %v1794, %v2418
      %v2477 = vadd.f32 %v1795, %v2420
      %v2478 = vadd.f32 %v1796, %v2423
      %v2479 = vadd.f32 %v1797, %v2425
      %v2480 = vadd.f32 %v1798, %v2428
      %v2481 = vadd.f32 %v1799, %v2430
      %v2482 = vadd.f32 %v1800, %v2433
      %v2483 = vadd.f32 %v1801, %v2435
      %v2484 = vadd.f32 %v1802, %v2438
      %v2485 = vadd.f32 %v1803, %v2440
      %v2486 = vadd.f32 %v1804, %v2443
      %v2487 = vadd.f32 %v1805, %v2445
      %v2488 = vadd.f32 %v1806, %v2448
      %v2489 = vadd.f32 %v1807, %v2450
      %v2490 = vadd.f32 %v1808, %v2453
      %v2491 = vadd.f32 %v1809, %v2455
      %v2492 = vadd.f32 %v1810, %v2458
      %v2493 = vadd.f32 %v1811, %v2460
      %v2494 = vld [vmem:[%s1497] sm:$0xe]
      %v2495 = vld [vmem:[%s1497 + $0xc] sm:$0xe]
      %v2496 = vld [vmem:[%s1497 + $0x18] sm:$0xe]
      %v2497 = vld [vmem:[%s1497 + $0x24] sm:$0xe]
      %v2498 = vld [vmem:[%s1497 + $0x30] sm:$0xe]
      %v2499 = vld [vmem:[%s1497 + $0x3c] sm:$0xe]
      %v2500 = vld [vmem:[%s1497 + $0x48] sm:$0xe]
      %v2501 = vld [vmem:[%s1497 + $0x54] sm:$0xe]
      %v2502 = vld [vmem:[%s1497 + $0x60] sm:$0xe]
      %v2503 = vld [vmem:[%s1497 + $0x6c] sm:$0xe]
      %v2504 = vld [vmem:[%s1497 + $0x78] sm:$0xe]
      %v2505 = vld [vmem:[%s1497 + $0x84] sm:$0xe]
      %v2506 = vld [vmem:[%s1497 + $0x90] sm:$0xe]
      %v2507 = vld [vmem:[%s1497 + $0x9c] sm:$0xe]
      %v2508 = vld [vmem:[%s1497 + $0xa8] sm:$0xe]
      %v2509 = vld [vmem:[%s1497 + $0xb4] sm:$0xe]
      %v2558 = vrot.slane %v2494, 5
      %v2559 = vrot.slane %v2558, 4
      %v2560 = vrot.slane %v1813, 5
      %v2561 = vsel %vm1134, %v2559, %v2560
      %v2562 = vrot.slane %v2560, 4
      %v2563 = vrot.slane %v1814, 5
      %v2564 = vsel %vm1134, %v2562, %v2563
      %v2565 = vrot.slane %v2495, 5
      %v2566 = vrot.slane %v2565, 4
      %v2567 = vrot.slane %v1816, 5
      %v2568 = vsel %vm1134, %v2566, %v2567
      %v2569 = vrot.slane %v2567, 4
      %v2570 = vrot.slane %v1817, 5
      %v2571 = vsel %vm1134, %v2569, %v2570
      %v2572 = vrot.slane %v2496, 5
      %v2573 = vrot.slane %v2572, 4
      %v2574 = vrot.slane %v1819, 5
      %v2575 = vsel %vm1134, %v2573, %v2574
      %v2576 = vrot.slane %v2574, 4
      %v2577 = vrot.slane %v1820, 5
      %v2578 = vsel %vm1134, %v2576, %v2577
      %v2579 = vrot.slane %v2497, 5
      %v2580 = vrot.slane %v2579, 4
      %v2581 = vrot.slane %v1822, 5
      %v2582 = vsel %vm1134, %v2580, %v2581
      %v2583 = vrot.slane %v2581, 4
      %v2584 = vrot.slane %v1823, 5
      %v2585 = vsel %vm1134, %v2583, %v2584
      %v2586 = vrot.slane %v2498, 5
      %v2587 = vrot.slane %v2586, 4
      %v2588 = vrot.slane %v1825, 5
      %v2589 = vsel %vm1134, %v2587, %v2588
      %v2590 = vrot.slane %v2588, 4
      %v2591 = vrot.slane %v1826, 5
      %v2592 = vsel %vm1134, %v2590, %v2591
      %v2593 = vrot.slane %v2499, 5
      %v2594 = vrot.slane %v2593, 4
      %v2595 = vrot.slane %v1828, 5
      %v2596 = vsel %vm1134, %v2594, %v2595
      %v2597 = vrot.slane %v2595, 4
      %v2598 = vrot.slane %v1829, 5
      %v2599 = vsel %vm1134, %v2597, %v2598
      %v2600 = vrot.slane %v2500, 5
      %v2601 = vrot.slane %v2600, 4
      %v2602 = vrot.slane %v1831, 5
      %v2603 = vsel %vm1134, %v2601, %v2602
      %v2604 = vrot.slane %v2602, 4
      %v2605 = vrot.slane %v1832, 5
      %v2606 = vsel %vm1134, %v2604, %v2605
      %v2607 = vrot.slane %v2501, 5
      %v2608 = vrot.slane %v2607, 4
      %v2609 = vrot.slane %v1834, 5
      %v2610 = vsel %vm1134, %v2608, %v2609
      %v2611 = vrot.slane %v2609, 4
      %v2612 = vrot.slane %v1835, 5
      %v2613 = vsel %vm1134, %v2611, %v2612
      %v2614 = vrot.slane %v2502, 5
      %v2615 = vrot.slane %v2614, 4
      %v2616 = vrot.slane %v1837, 5
      %v2617 = vsel %vm1134, %v2615, %v2616
      %v2618 = vrot.slane %v2616, 4
      %v2619 = vrot.slane %v1838, 5
      %v2620 = vsel %vm1134, %v2618, %v2619
      %v2621 = vrot.slane %v2503, 5
      %v2622 = vrot.slane %v2621, 4
      %v2623 = vrot.slane %v1840, 5
      %v2624 = vsel %vm1134, %v2622, %v2623
      %v2625 = vrot.slane %v2623, 4
      %v2626 = vrot.slane %v1841, 5
      %v2627 = vsel %vm1134, %v2625, %v2626
      %v2628 = vrot.slane %v2504, 5
      %v2629 = vrot.slane %v2628, 4
      %v2630 = vrot.slane %v1843, 5
      %v2631 = vsel %vm1134, %v2629, %v2630
      %v2632 = vrot.slane %v2630, 4
      %v2633 = vrot.slane %v1844, 5
      %v2634 = vsel %vm1134, %v2632, %v2633
      %v2635 = vrot.slane %v2505, 5
      %v2636 = vrot.slane %v2635, 4
      %v2637 = vrot.slane %v1846, 5
      %v2638 = vsel %vm1134, %v2636, %v2637
      %v2639 = vrot.slane %v2637, 4
      %v2640 = vrot.slane %v1847, 5
      %v2641 = vsel %vm1134, %v2639, %v2640
      %v2642 = vrot.slane %v2506, 5
      %v2643 = vrot.slane %v2642, 4
      %v2644 = vrot.slane %v1849, 5
      %v2645 = vsel %vm1134, %v2643, %v2644
      %v2646 = vrot.slane %v2644, 4
      %v2647 = vrot.slane %v1850, 5
      %v2648 = vsel %vm1134, %v2646, %v2647
      %v2649 = vrot.slane %v2507, 5
      %v2650 = vrot.slane %v2649, 4
      %v2651 = vrot.slane %v1852, 5
      %v2652 = vsel %vm1134, %v2650, %v2651
      %v2653 = vrot.slane %v2651, 4
      %v2654 = vrot.slane %v1853, 5
      %v2655 = vsel %vm1134, %v2653, %v2654
      %v2656 = vrot.slane %v2508, 5
      %v2657 = vrot.slane %v2656, 4
      %v2658 = vrot.slane %v1855, 5
      %v2659 = vsel %vm1134, %v2657, %v2658
      %v2660 = vrot.slane %v2658, 4
      %v2661 = vrot.slane %v1856, 5
      %v2662 = vsel %vm1134, %v2660, %v2661
      %v2663 = vrot.slane %v2509, 5
      %v2664 = vrot.slane %v2663, 4
      %v2665 = vrot.slane %v1858, 5
      %v2666 = vsel %vm1134, %v2664, %v2665
      %v2667 = vrot.slane %v2665, 4
      %v2668 = vrot.slane %v1859, 5
      %v2669 = vsel %vm1134, %v2667, %v2668
      %s2670 = scalar_lea.vmem %s1, 320
      %v2671 = vld [vmem:[%s2670] sm:$0xf]
      %v2672 = vld [vmem:[%s2670 + $0x4] sm:$0xf]
      %v2673 = vld [vmem:[%s2670 + $0x8] sm:$0xf]
      %v2674 = vld [vmem:[%s2670 + $0xc] sm:$0xf]
      %v2675 = vld [vmem:[%s2670 + $0x10] sm:$0xf]
      %v2676 = vld [vmem:[%s2670 + $0x14] sm:$0xf]
      %v2677 = vld [vmem:[%s2670 + $0x18] sm:$0xf]
      %v2678 = vld [vmem:[%s2670 + $0x1c] sm:$0xf]
      %v2679 = vld [vmem:[%s2670 + $0x20] sm:$0xf]
      %v2680 = vld [vmem:[%s2670 + $0x24] sm:$0xf]
      %v2681 = vld [vmem:[%s2670 + $0x28] sm:$0xf]
      %v2682 = vld [vmem:[%s2670 + $0x2c] sm:$0xf]
      %v2683 = vld [vmem:[%s2670 + $0x30] sm:$0xf]
      %v2684 = vld [vmem:[%s2670 + $0x34] sm:$0xf]
      %v2685 = vld [vmem:[%s2670 + $0x38] sm:$0xf]
      %v2686 = vld [vmem:[%s2670 + $0x3c] sm:$0xf]
      %v2687 = vunpack.c.l.b16 %v2561
      %v2688 = vunpack.c.l.b16 %v2564
      %v2689 = vunpack.c.l.b16 %v2568
      %v2690 = vunpack.c.l.b16 %v2571
      %v2691 = vunpack.c.l.b16 %v2575
      %v2692 = vunpack.c.l.b16 %v2578
      %v2693 = vunpack.c.l.b16 %v2582
      %v2694 = vunpack.c.l.b16 %v2585
      %v2695 = vunpack.c.l.b16 %v2589
      %v2696 = vunpack.c.l.b16 %v2592
      %v2697 = vunpack.c.l.b16 %v2596
      %v2698 = vunpack.c.l.b16 %v2599
      %v2699 = vunpack.c.l.b16 %v2603
      %v2700 = vunpack.c.l.b16 %v2606
      %v2701 = vunpack.c.l.b16 %v2610
      %v2702 = vunpack.c.l.b16 %v2613
      %v2703 = vunpack.c.l.b16 %v2617
      %v2704 = vunpack.c.l.b16 %v2620
      %v2705 = vunpack.c.l.b16 %v2624
      %v2706 = vunpack.c.l.b16 %v2627
      %v2707 = vunpack.c.l.b16 %v2631
      %v2708 = vunpack.c.l.b16 %v2634
      %v2709 = vunpack.c.l.b16 %v2638
      %v2710 = vunpack.c.l.b16 %v2641
      %v2711 = vunpack.c.l.b16 %v2645
      %v2712 = vunpack.c.l.b16 %v2648
      %v2713 = vunpack.c.l.b16 %v2652
      %v2714 = vunpack.c.l.b16 %v2655
      %v2715 = vunpack.c.l.b16 %v2659
      %v2716 = vunpack.c.l.b16 %v2662
      %v2717 = vunpack.c.l.b16 %v2666
      %v2718 = vunpack.c.l.b16 %v2669
      %v2719 = vpack.c.b16 %v2688, %v2687
      %v2720 = vpack.c.b16 %v2690, %v2689
      %v2721 = vpack.c.b16 %v2692, %v2691
      %v2722 = vpack.c.b16 %v2694, %v2693
      %v2723 = vpack.c.b16 %v2696, %v2695
      %v2724 = vpack.c.b16 %v2698, %v2697
      %v2725 = vpack.c.b16 %v2700, %v2699
      %v2726 = vpack.c.b16 %v2702, %v2701
      %v2727 = vpack.c.b16 %v2704, %v2703
      %v2728 = vpack.c.b16 %v2706, %v2705
      %v2729 = vpack.c.b16 %v2708, %v2707
      %v2730 = vpack.c.b16 %v2710, %v2709
      %v2731 = vpack.c.b16 %v2712, %v2711
      %v2732 = vpack.c.b16 %v2714, %v2713
      %v2733 = vpack.c.b16 %v2716, %v2715
      %v2734 = vpack.c.b16 %v2718, %v2717
      %v2767 = vunpack.c.l.b16 %v2671
      %v2768 = vunpack.c.l.b16 %v2672
      %v2769 = vunpack.c.l.b16 %v2673
      %v2770 = vunpack.c.l.b16 %v2674
      %v2771 = vunpack.c.l.b16 %v2675
      %v2772 = vunpack.c.l.b16 %v2676
      %v2773 = vunpack.c.l.b16 %v2677
      %v2774 = vunpack.c.l.b16 %v2678
      %v2775 = vunpack.c.l.b16 %v2679
      %v2776 = vunpack.c.l.b16 %v2680
      %v2777 = vunpack.c.l.b16 %v2681
      %v2778 = vunpack.c.l.b16 %v2682
      %v2779 = vunpack.c.l.b16 %v2683
      %v2780 = vunpack.c.l.b16 %v2684
      %v2781 = vunpack.c.l.b16 %v2685
      %v2782 = vunpack.c.l.b16 %v2686
      %v2783 = vpack.c.b16 %v2768, %v2767
      %v2784 = vpack.c.b16 %v2770, %v2769
      %v2785 = vpack.c.b16 %v2772, %v2771
      %v2786 = vpack.c.b16 %v2774, %v2773
      %v2787 = vpack.c.b16 %v2776, %v2775
      %v2788 = vpack.c.b16 %v2778, %v2777
      %v2789 = vpack.c.b16 %v2780, %v2779
      %v2790 = vpack.c.b16 %v2782, %v2781
      %2799 = vmatpush.bf16.msra.mxu0 %v2790
      %2800 = vmatpush.bf16.msra.mxu0 %v2789
      %2801 = vmatpush.bf16.msra.mxu0 %v2788
      %2802 = vmatpush.bf16.msra.mxu0 %v2787
      %2803 = vmatpush.bf16.msra.mxu0 %v2786
      %2804 = vmatpush.bf16.msra.mxu0 %v2785
      %2805 = vmatpush.bf16.msra.mxu0 %v2784
      %2806 = vmatpush.bf16.msra.mxu0 %v2783
      %2807 = vmatmul.bf16.gmra.mxu0 %v2719
      %v2808 = vpop.f32.mrf.mxu0
      %v2809 = vadd.f32 0.0, %v2808
      %v2810 = vpop.f32.mrf.mxu0
      %v2811 = vadd.f32 0.0, %v2810
      %2812 = vmatmul.bf16.gmra.mxu0 %v2720
      %v2813 = vpop.f32.mrf.mxu0
      %v2814 = vadd.f32 0.0, %v2813
      %v2815 = vpop.f32.mrf.mxu0
      %v2816 = vadd.f32 0.0, %v2815
      %2817 = vmatmul.bf16.gmra.mxu0 %v2721
      %v2818 = vpop.f32.mrf.mxu0
      %v2819 = vadd.f32 0.0, %v2818
      %v2820 = vpop.f32.mrf.mxu0
      %v2821 = vadd.f32 0.0, %v2820
      %2822 = vmatmul.bf16.gmra.mxu0 %v2722
      %v2823 = vpop.f32.mrf.mxu0
      %v2824 = vadd.f32 0.0, %v2823
      %v2825 = vpop.f32.mrf.mxu0
      %v2826 = vadd.f32 0.0, %v2825
      %2827 = vmatmul.bf16.gmra.mxu0 %v2723
      %v2828 = vpop.f32.mrf.mxu0
      %v2829 = vadd.f32 0.0, %v2828
      %v2830 = vpop.f32.mrf.mxu0
      %v2831 = vadd.f32 0.0, %v2830
      %2832 = vmatmul.bf16.gmra.mxu0 %v2724
      %v2833 = vpop.f32.mrf.mxu0
      %v2834 = vadd.f32 0.0, %v2833
      %v2835 = vpop.f32.mrf.mxu0
      %v2836 = vadd.f32 0.0, %v2835
      %2837 = vmatmul.bf16.gmra.mxu0 %v2725
      %v2838 = vpop.f32.mrf.mxu0
      %v2839 = vadd.f32 0.0, %v2838
      %v2840 = vpop.f32.mrf.mxu0
      %v2841 = vadd.f32 0.0, %v2840
      %2842 = vmatmul.bf16.gmra.mxu0 %v2726
      %v2843 = vpop.f32.mrf.mxu0
      %v2844 = vadd.f32 0.0, %v2843
      %v2845 = vpop.f32.mrf.mxu0
      %v2846 = vadd.f32 0.0, %v2845
      %2847 = vmatmul.bf16.gmra.mxu0 %v2727
      %v2848 = vpop.f32.mrf.mxu0
      %v2849 = vadd.f32 0.0, %v2848
      %v2850 = vpop.f32.mrf.mxu0
      %v2851 = vadd.f32 0.0, %v2850
      %2852 = vmatmul.bf16.gmra.mxu0 %v2728
      %v2853 = vpop.f32.mrf.mxu0
      %v2854 = vadd.f32 0.0, %v2853
      %v2855 = vpop.f32.mrf.mxu0
      %v2856 = vadd.f32 0.0, %v2855
      %2857 = vmatmul.bf16.gmra.mxu0 %v2729
      %v2858 = vpop.f32.mrf.mxu0
      %v2859 = vadd.f32 0.0, %v2858
      %v2860 = vpop.f32.mrf.mxu0
      %v2861 = vadd.f32 0.0, %v2860
      %2862 = vmatmul.bf16.gmra.mxu0 %v2730
      %v2863 = vpop.f32.mrf.mxu0
      %v2864 = vadd.f32 0.0, %v2863
      %v2865 = vpop.f32.mrf.mxu0
      %v2866 = vadd.f32 0.0, %v2865
      %2867 = vmatmul.bf16.gmra.mxu0 %v2731
      %v2868 = vpop.f32.mrf.mxu0
      %v2869 = vadd.f32 0.0, %v2868
      %v2870 = vpop.f32.mrf.mxu0
      %v2871 = vadd.f32 0.0, %v2870
      %2872 = vmatmul.bf16.gmra.mxu0 %v2732
      %v2873 = vpop.f32.mrf.mxu0
      %v2874 = vadd.f32 0.0, %v2873
      %v2875 = vpop.f32.mrf.mxu0
      %v2876 = vadd.f32 0.0, %v2875
      %2877 = vmatmul.bf16.gmra.mxu0 %v2733
      %v2878 = vpop.f32.mrf.mxu0
      %v2879 = vadd.f32 0.0, %v2878
      %v2880 = vpop.f32.mrf.mxu0
      %v2881 = vadd.f32 0.0, %v2880
      %2882 = vmatmul.bf16.gmra.mxu0 %v2734
      %v2883 = vpop.f32.mrf.mxu0
      %v2884 = vadd.f32 0.0, %v2883
      %v2885 = vpop.f32.mrf.mxu0
      %v2886 = vadd.f32 0.0, %v2885
      %2887 = vdwg.mxu0
      %v2888 = vadd.f32 %v2462, %v2809
      %v2889 = vadd.f32 %v2463, %v2811
      %v2890 = vadd.f32 %v2464, %v2814
      %v2891 = vadd.f32 %v2465, %v2816
      %v2892 = vadd.f32 %v2466, %v2819
      %v2893 = vadd.f32 %v2467, %v2821
      %v2894 = vadd.f32 %v2468, %v2824
      %v2895 = vadd.f32 %v2469, %v2826
      %v2896 = vadd.f32 %v2470, %v2829
      %v2897 = vadd.f32 %v2471, %v2831
      %v2898 = vadd.f32 %v2472, %v2834
      %v2899 = vadd.f32 %v2473, %v2836
      %v2900 = vadd.f32 %v2474, %v2839
      %v2901 = vadd.f32 %v2475, %v2841
      %v2902 = vadd.f32 %v2476, %v2844
      %v2903 = vadd.f32 %v2477, %v2846
      %v2904 = vadd.f32 %v2478, %v2849
      %v2905 = vadd.f32 %v2479, %v2851
      %v2906 = vadd.f32 %v2480, %v2854
      %v2907 = vadd.f32 %v2481, %v2856
      %v2908 = vadd.f32 %v2482, %v2859
      %v2909 = vadd.f32 %v2483, %v2861
      %v2910 = vadd.f32 %v2484, %v2864
      %v2911 = vadd.f32 %v2485, %v2866
      %v2912 = vadd.f32 %v2486, %v2869
      %v2913 = vadd.f32 %v2487, %v2871
      %v2914 = vadd.f32 %v2488, %v2874
      %v2915 = vadd.f32 %v2489, %v2876
      %v2916 = vadd.f32 %v2490, %v2879
      %v2917 = vadd.f32 %v2491, %v2881
      %v2918 = vadd.f32 %v2492, %v2884
      %v2919 = vadd.f32 %v2493, %v2886
      %s2920 = scalar_lea.vmem %s172, 24
      %v2921 = vld [vmem:[%s2920] sm:$0xf]
      %v2922 = vld [vmem:[%s2920 + $0x4] sm:$0xf]
      %v2923 = vld [vmem:[%s2920 + $0xc] sm:$0xf]
      %v2924 = vld [vmem:[%s2920 + $0x10] sm:$0xf]
      %v2925 = vld [vmem:[%s2920 + $0x18] sm:$0xf]
      %v2926 = vld [vmem:[%s2920 + $0x1c] sm:$0xf]
      %v2927 = vld [vmem:[%s2920 + $0x24] sm:$0xf]
      %v2928 = vld [vmem:[%s2920 + $0x28] sm:$0xf]
      %v2929 = vld [vmem:[%s2920 + $0x30] sm:$0xf]
      %v2930 = vld [vmem:[%s2920 + $0x34] sm:$0xf]
      %v2931 = vld [vmem:[%s2920 + $0x3c] sm:$0xf]
      %v2932 = vld [vmem:[%s2920 + $0x40] sm:$0xf]
      %v2933 = vld [vmem:[%s2920 + $0x48] sm:$0xf]
      %v2934 = vld [vmem:[%s2920 + $0x4c] sm:$0xf]
      %v2935 = vld [vmem:[%s2920 + $0x54] sm:$0xf]
      %v2936 = vld [vmem:[%s2920 + $0x58] sm:$0xf]
      %v2937 = vld [vmem:[%s2920 + $0x60] sm:$0xf]
      %v2938 = vld [vmem:[%s2920 + $0x64] sm:$0xf]
      %v2939 = vld [vmem:[%s2920 + $0x6c] sm:$0xf]
      %v2940 = vld [vmem:[%s2920 + $0x70] sm:$0xf]
      %v2941 = vld [vmem:[%s2920 + $0x78] sm:$0xf]
      %v2942 = vld [vmem:[%s2920 + $0x7c] sm:$0xf]
      %v2943 = vld [vmem:[%s2920 + $0x84] sm:$0xf]
      %v2944 = vld [vmem:[%s2920 + $0x88] sm:$0xf]
      %v2945 = vld [vmem:[%s2920 + $0x90] sm:$0xf]
      %v2946 = vld [vmem:[%s2920 + $0x94] sm:$0xf]
      %v2947 = vld [vmem:[%s2920 + $0x9c] sm:$0xf]
      %v2948 = vld [vmem:[%s2920 + $0xa0] sm:$0xf]
      %v2949 = vld [vmem:[%s2920 + $0xa8] sm:$0xf]
      %v2950 = vld [vmem:[%s2920 + $0xac] sm:$0xf]
      %v2951 = vld [vmem:[%s2920 + $0xb4] sm:$0xf]
      %v2952 = vld [vmem:[%s2920 + $0xb8] sm:$0xf]
      %s2953 = scalar_lea.vmem %s1, 384
      %v2954 = vld [vmem:[%s2953] sm:$0xf]
      %v2955 = vld [vmem:[%s2953 + $0x4] sm:$0xf]
      %v2956 = vld [vmem:[%s2953 + $0x8] sm:$0xf]
      %v2957 = vld [vmem:[%s2953 + $0xc] sm:$0xf]
      %v2958 = vld [vmem:[%s2953 + $0x10] sm:$0xf]
      %v2959 = vld [vmem:[%s2953 + $0x14] sm:$0xf]
      %v2960 = vld [vmem:[%s2953 + $0x18] sm:$0xf]
      %v2961 = vld [vmem:[%s2953 + $0x1c] sm:$0xf]
      %v2962 = vld [vmem:[%s2953 + $0x20] sm:$0xf]
      %v2963 = vld [vmem:[%s2953 + $0x24] sm:$0xf]
      %v2964 = vld [vmem:[%s2953 + $0x28] sm:$0xf]
      %v2965 = vld [vmem:[%s2953 + $0x2c] sm:$0xf]
      %v2966 = vld [vmem:[%s2953 + $0x30] sm:$0xf]
      %v2967 = vld [vmem:[%s2953 + $0x34] sm:$0xf]
      %v2968 = vld [vmem:[%s2953 + $0x38] sm:$0xf]
      %v2969 = vld [vmem:[%s2953 + $0x3c] sm:$0xf]
      %v3002 = vunpack.c.l.b16 %v2921
      %v3003 = vunpack.c.l.b16 %v2922
      %v3004 = vunpack.c.l.b16 %v2923
      %v3005 = vunpack.c.l.b16 %v2924
      %v3006 = vunpack.c.l.b16 %v2925
      %v3007 = vunpack.c.l.b16 %v2926
      %v3008 = vunpack.c.l.b16 %v2927
      %v3009 = vunpack.c.l.b16 %v2928
      %v3010 = vunpack.c.l.b16 %v2929
      %v3011 = vunpack.c.l.b16 %v2930
      %v3012 = vunpack.c.l.b16 %v2931
      %v3013 = vunpack.c.l.b16 %v2932
      %v3014 = vunpack.c.l.b16 %v2933
      %v3015 = vunpack.c.l.b16 %v2934
      %v3016 = vunpack.c.l.b16 %v2935
      %v3017 = vunpack.c.l.b16 %v2936
      %v3018 = vunpack.c.l.b16 %v2937
      %v3019 = vunpack.c.l.b16 %v2938
      %v3020 = vunpack.c.l.b16 %v2939
      %v3021 = vunpack.c.l.b16 %v2940
      %v3022 = vunpack.c.l.b16 %v2941
      %v3023 = vunpack.c.l.b16 %v2942
      %v3024 = vunpack.c.l.b16 %v2943
      %v3025 = vunpack.c.l.b16 %v2944
      %v3026 = vunpack.c.l.b16 %v2945
      %v3027 = vunpack.c.l.b16 %v2946
      %v3028 = vunpack.c.l.b16 %v2947
      %v3029 = vunpack.c.l.b16 %v2948
      %v3030 = vunpack.c.l.b16 %v2949
      %v3031 = vunpack.c.l.b16 %v2950
      %v3032 = vunpack.c.l.b16 %v2951
      %v3033 = vunpack.c.l.b16 %v2952
      %v3034 = vpack.c.b16 %v3003, %v3002
      %v3035 = vpack.c.b16 %v3005, %v3004
      %v3036 = vpack.c.b16 %v3007, %v3006
      %v3037 = vpack.c.b16 %v3009, %v3008
      %v3038 = vpack.c.b16 %v3011, %v3010
      %v3039 = vpack.c.b16 %v3013, %v3012
      %v3040 = vpack.c.b16 %v3015, %v3014
      %v3041 = vpack.c.b16 %v3017, %v3016
      %v3042 = vpack.c.b16 %v3019, %v3018
      %v3043 = vpack.c.b16 %v3021, %v3020
      %v3044 = vpack.c.b16 %v3023, %v3022
      %v3045 = vpack.c.b16 %v3025, %v3024
      %v3046 = vpack.c.b16 %v3027, %v3026
      %v3047 = vpack.c.b16 %v3029, %v3028
      %v3048 = vpack.c.b16 %v3031, %v3030
      %v3049 = vpack.c.b16 %v3033, %v3032
      %v3082 = vunpack.c.l.b16 %v2954
      %v3083 = vunpack.c.l.b16 %v2955
      %v3084 = vunpack.c.l.b16 %v2956
      %v3085 = vunpack.c.l.b16 %v2957
      %v3086 = vunpack.c.l.b16 %v2958
      %v3087 = vunpack.c.l.b16 %v2959
      %v3088 = vunpack.c.l.b16 %v2960
      %v3089 = vunpack.c.l.b16 %v2961
      %v3090 = vunpack.c.l.b16 %v2962
      %v3091 = vunpack.c.l.b16 %v2963
      %v3092 = vunpack.c.l.b16 %v2964
      %v3093 = vunpack.c.l.b16 %v2965
      %v3094 = vunpack.c.l.b16 %v2966
      %v3095 = vunpack.c.l.b16 %v2967
      %v3096 = vunpack.c.l.b16 %v2968
      %v3097 = vunpack.c.l.b16 %v2969
      %v3098 = vpack.c.b16 %v3083, %v3082
      %v3099 = vpack.c.b16 %v3085, %v3084
      %v3100 = vpack.c.b16 %v3087, %v3086
      %v3101 = vpack.c.b16 %v3089, %v3088
      %v3102 = vpack.c.b16 %v3091, %v3090
      %v3103 = vpack.c.b16 %v3093, %v3092
      %v3104 = vpack.c.b16 %v3095, %v3094
      %v3105 = vpack.c.b16 %v3097, %v3096
      %3114 = vmatpush.bf16.msra.mxu0 %v3105
      %3115 = vmatpush.bf16.msra.mxu0 %v3104
      %3116 = vmatpush.bf16.msra.mxu0 %v3103
      %3117 = vmatpush.bf16.msra.mxu0 %v3102
      %3118 = vmatpush.bf16.msra.mxu0 %v3101
      %3119 = vmatpush.bf16.msra.mxu0 %v3100
      %3120 = vmatpush.bf16.msra.mxu0 %v3099
      %3121 = vmatpush.bf16.msra.mxu0 %v3098
      %3122 = vmatmul.bf16.gmra.mxu0 %v3034
      %v3123 = vpop.f32.mrf.mxu0
      %v3124 = vadd.f32 0.0, %v3123
      %v3125 = vpop.f32.mrf.mxu0
      %v3126 = vadd.f32 0.0, %v3125
      %3127 = vmatmul.bf16.gmra.mxu0 %v3035
      %v3128 = vpop.f32.mrf.mxu0
      %v3129 = vadd.f32 0.0, %v3128
      %v3130 = vpop.f32.mrf.mxu0
      %v3131 = vadd.f32 0.0, %v3130
      %3132 = vmatmul.bf16.gmra.mxu0 %v3036
      %v3133 = vpop.f32.mrf.mxu0
      %v3134 = vadd.f32 0.0, %v3133
      %v3135 = vpop.f32.mrf.mxu0
      %v3136 = vadd.f32 0.0, %v3135
      %3137 = vmatmul.bf16.gmra.mxu0 %v3037
      %v3138 = vpop.f32.mrf.mxu0
      %v3139 = vadd.f32 0.0, %v3138
      %v3140 = vpop.f32.mrf.mxu0
      %v3141 = vadd.f32 0.0, %v3140
      %3142 = vmatmul.bf16.gmra.mxu0 %v3038
      %v3143 = vpop.f32.mrf.mxu0
      %v3144 = vadd.f32 0.0, %v3143
      %v3145 = vpop.f32.mrf.mxu0
      %v3146 = vadd.f32 0.0, %v3145
      %3147 = vmatmul.bf16.gmra.mxu0 %v3039
      %v3148 = vpop.f32.mrf.mxu0
      %v3149 = vadd.f32 0.0, %v3148
      %v3150 = vpop.f32.mrf.mxu0
      %v3151 = vadd.f32 0.0, %v3150
      %3152 = vmatmul.bf16.gmra.mxu0 %v3040
      %v3153 = vpop.f32.mrf.mxu0
      %v3154 = vadd.f32 0.0, %v3153
      %v3155 = vpop.f32.mrf.mxu0
      %v3156 = vadd.f32 0.0, %v3155
      %3157 = vmatmul.bf16.gmra.mxu0 %v3041
      %v3158 = vpop.f32.mrf.mxu0
      %v3159 = vadd.f32 0.0, %v3158
      %v3160 = vpop.f32.mrf.mxu0
      %v3161 = vadd.f32 0.0, %v3160
      %3162 = vmatmul.bf16.gmra.mxu0 %v3042
      %v3163 = vpop.f32.mrf.mxu0
      %v3164 = vadd.f32 0.0, %v3163
      %v3165 = vpop.f32.mrf.mxu0
      %v3166 = vadd.f32 0.0, %v3165
      %3167 = vmatmul.bf16.gmra.mxu0 %v3043
      %v3168 = vpop.f32.mrf.mxu0
      %v3169 = vadd.f32 0.0, %v3168
      %v3170 = vpop.f32.mrf.mxu0
      %v3171 = vadd.f32 0.0, %v3170
      %3172 = vmatmul.bf16.gmra.mxu0 %v3044
      %v3173 = vpop.f32.mrf.mxu0
      %v3174 = vadd.f32 0.0, %v3173
      %v3175 = vpop.f32.mrf.mxu0
      %v3176 = vadd.f32 0.0, %v3175
      %3177 = vmatmul.bf16.gmra.mxu0 %v3045
      %v3178 = vpop.f32.mrf.mxu0
      %v3179 = vadd.f32 0.0, %v3178
      %v3180 = vpop.f32.mrf.mxu0
      %v3181 = vadd.f32 0.0, %v3180
      %3182 = vmatmul.bf16.gmra.mxu0 %v3046
      %v3183 = vpop.f32.mrf.mxu0
      %v3184 = vadd.f32 0.0, %v3183
      %v3185 = vpop.f32.mrf.mxu0
      %v3186 = vadd.f32 0.0, %v3185
      %3187 = vmatmul.bf16.gmra.mxu0 %v3047
      %v3188 = vpop.f32.mrf.mxu0
      %v3189 = vadd.f32 0.0, %v3188
      %v3190 = vpop.f32.mrf.mxu0
      %v3191 = vadd.f32 0.0, %v3190
      %3192 = vmatmul.bf16.gmra.mxu0 %v3048
      %v3193 = vpop.f32.mrf.mxu0
      %v3194 = vadd.f32 0.0, %v3193
      %v3195 = vpop.f32.mrf.mxu0
      %v3196 = vadd.f32 0.0, %v3195
      %3197 = vmatmul.bf16.gmra.mxu0 %v3049
      %v3198 = vpop.f32.mrf.mxu0
      %v3199 = vadd.f32 0.0, %v3198
      %v3200 = vpop.f32.mrf.mxu0
      %v3201 = vadd.f32 0.0, %v3200
      %3202 = vdwg.mxu0
      %v3203 = vadd.f32 %v2888, %v3124
      %v3204 = vadd.f32 %v2889, %v3126
      %v3205 = vadd.f32 %v2890, %v3129
      %v3206 = vadd.f32 %v2891, %v3131
      %v3207 = vadd.f32 %v2892, %v3134
      %v3208 = vadd.f32 %v2893, %v3136
      %v3209 = vadd.f32 %v2894, %v3139
      %v3210 = vadd.f32 %v2895, %v3141
      %v3211 = vadd.f32 %v2896, %v3144
      %v3212 = vadd.f32 %v2897, %v3146
      %v3213 = vadd.f32 %v2898, %v3149
      %v3214 = vadd.f32 %v2899, %v3151
      %v3215 = vadd.f32 %v2900, %v3154
      %v3216 = vadd.f32 %v2901, %v3156
      %v3217 = vadd.f32 %v2902, %v3159
      %v3218 = vadd.f32 %v2903, %v3161
      %v3219 = vadd.f32 %v2904, %v3164
      %v3220 = vadd.f32 %v2905, %v3166
      %v3221 = vadd.f32 %v2906, %v3169
      %v3222 = vadd.f32 %v2907, %v3171
      %v3223 = vadd.f32 %v2908, %v3174
      %v3224 = vadd.f32 %v2909, %v3176
      %v3225 = vadd.f32 %v2910, %v3179
      %v3226 = vadd.f32 %v2911, %v3181
      %v3227 = vadd.f32 %v2912, %v3184
      %v3228 = vadd.f32 %v2913, %v3186
      %v3229 = vadd.f32 %v2914, %v3189
      %v3230 = vadd.f32 %v2915, %v3191
      %v3231 = vadd.f32 %v2916, %v3194
      %v3232 = vadd.f32 %v2917, %v3196
      %v3233 = vadd.f32 %v2918, %v3199
      %v3234 = vadd.f32 %v2919, %v3201
      %v3235 = vld [vmem:[%s2920] sm:$0xf]
      %v3236 = vld [vmem:[%s2920 + $0x4] sm:$0xf]
      %v3237 = vld [vmem:[%s2920 + $0x8] sm:$0x1]
      %v3238 = vld [vmem:[%s2920 + $0xc] sm:$0xf]
      %v3239 = vld [vmem:[%s2920 + $0x10] sm:$0xf]
      %v3240 = vld [vmem:[%s2920 + $0x14] sm:$0x1]
      %v3241 = vld [vmem:[%s2920 + $0x18] sm:$0xf]
      %v3242 = vld [vmem:[%s2920 + $0x1c] sm:$0xf]
      %v3243 = vld [vmem:[%s2920 + $0x20] sm:$0x1]
      %v3244 = vld [vmem:[%s2920 + $0x24] sm:$0xf]
      %v3245 = vld [vmem:[%s2920 + $0x28] sm:$0xf]
      %v3246 = vld [vmem:[%s2920 + $0x2c] sm:$0x1]
      %v3247 = vld [vmem:[%s2920 + $0x30] sm:$0xf]
      %v3248 = vld [vmem:[%s2920 + $0x34] sm:$0xf]
      %v3249 = vld [vmem:[%s2920 + $0x38] sm:$0x1]
      %v3250 = vld [vmem:[%s2920 + $0x3c] sm:$0xf]
      %v3251 = vld [vmem:[%s2920 + $0x40] sm:$0xf]
      %v3252 = vld [vmem:[%s2920 + $0x44] sm:$0x1]
      %v3253 = vld [vmem:[%s2920 + $0x48] sm:$0xf]
      %v3254 = vld [vmem:[%s2920 + $0x4c] sm:$0xf]
      %v3255 = vld [vmem:[%s2920 + $0x50] sm:$0x1]
      %v3256 = vld [vmem:[%s2920 + $0x54] sm:$0xf]
      %v3257 = vld [vmem:[%s2920 + $0x58] sm:$0xf]
      %v3258 = vld [vmem:[%s2920 + $0x5c] sm:$0x1]
      %v3259 = vld [vmem:[%s2920 + $0x60] sm:$0xf]
      %v3260 = vld [vmem:[%s2920 + $0x64] sm:$0xf]
      %v3261 = vld [vmem:[%s2920 + $0x68] sm:$0x1]
      %v3262 = vld [vmem:[%s2920 + $0x6c] sm:$0xf]
      %v3263 = vld [vmem:[%s2920 + $0x70] sm:$0xf]
      %v3264 = vld [vmem:[%s2920 + $0x74] sm:$0x1]
      %v3265 = vld [vmem:[%s2920 + $0x78] sm:$0xf]
      %v3266 = vld [vmem:[%s2920 + $0x7c] sm:$0xf]
      %v3267 = vld [vmem:[%s2920 + $0x80] sm:$0x1]
      %v3268 = vld [vmem:[%s2920 + $0x84] sm:$0xf]
      %v3269 = vld [vmem:[%s2920 + $0x88] sm:$0xf]
      %v3270 = vld [vmem:[%s2920 + $0x8c] sm:$0x1]
      %v3271 = vld [vmem:[%s2920 + $0x90] sm:$0xf]
      %v3272 = vld [vmem:[%s2920 + $0x94] sm:$0xf]
      %v3273 = vld [vmem:[%s2920 + $0x98] sm:$0x1]
      %v3274 = vld [vmem:[%s2920 + $0x9c] sm:$0xf]
      %v3275 = vld [vmem:[%s2920 + $0xa0] sm:$0xf]
      %v3276 = vld [vmem:[%s2920 + $0xa4] sm:$0x1]
      %v3277 = vld [vmem:[%s2920 + $0xa8] sm:$0xf]
      %v3278 = vld [vmem:[%s2920 + $0xac] sm:$0xf]
      %v3279 = vld [vmem:[%s2920 + $0xb0] sm:$0x1]
      %v3280 = vld [vmem:[%s2920 + $0xb4] sm:$0xf]
      %v3281 = vld [vmem:[%s2920 + $0xb8] sm:$0xf]
      %v3282 = vld [vmem:[%s2920 + $0xbc] sm:$0x1]
      %v3284 = vshrl.u32 %v3235, 16
      %v3286 = vrot.slane %v3284, 4
      %v3287 = vshll.u32 %v3235, 16
      %v3289 = vrot.slane %v3287, 5
      %v3290 = vor.u32 %v3286, %v3289
      %v3291 = vrot.slane %v3290, 4
      %v3293 = vshll.u32 %v3236, 16
      %v3295 = vrot.slane %v3293, 5
      %v3296 = vsel %vm248, %v3291, %v3295
      %v3297 = vshrl.u32 %v3236, 16
      %v3299 = vrot.slane %v3297, 4
      %v3300 = vor.u32 %v3299, %v3295
      %v3301 = vrot.slane %v3300, 4
      %v3303 = vshll.u32 %v3237, 16
      %v3305 = vrot.slane %v3303, 5
      %v3306 = vsel %vm248, %v3301, %v3305
      %v3308 = vshrl.u32 %v3238, 16
      %v3310 = vrot.slane %v3308, 4
      %v3311 = vshll.u32 %v3238, 16
      %v3313 = vrot.slane %v3311, 5
      %v3314 = vor.u32 %v3310, %v3313
      %v3315 = vrot.slane %v3314, 4
      %v3317 = vshll.u32 %v3239, 16
      %v3319 = vrot.slane %v3317, 5
      %v3320 = vsel %vm248, %v3315, %v3319
      %v3321 = vshrl.u32 %v3239, 16
      %v3323 = vrot.slane %v3321, 4
      %v3324 = vor.u32 %v3323, %v3319
      %v3325 = vrot.slane %v3324, 4
      %v3327 = vshll.u32 %v3240, 16
      %v3329 = vrot.slane %v3327, 5
      %v3330 = vsel %vm248, %v3325, %v3329
      %v3332 = vshrl.u32 %v3241, 16
      %v3334 = vrot.slane %v3332, 4
      %v3335 = vshll.u32 %v3241, 16
      %v3337 = vrot.slane %v3335, 5
      %v3338 = vor.u32 %v3334, %v3337
      %v3339 = vrot.slane %v3338, 4
      %v3341 = vshll.u32 %v3242, 16
      %v3343 = vrot.slane %v3341, 5
      %v3344 = vsel %vm248, %v3339, %v3343
      %v3345 = vshrl.u32 %v3242, 16
      %v3347 = vrot.slane %v3345, 4
      %v3348 = vor.u32 %v3347, %v3343
      %v3349 = vrot.slane %v3348, 4
      %v3351 = vshll.u32 %v3243, 16
      %v3353 = vrot.slane %v3351, 5
      %v3354 = vsel %vm248, %v3349, %v3353
      %v3356 = vshrl.u32 %v3244, 16
      %v3358 = vrot.slane %v3356, 4
      %v3359 = vshll.u32 %v3244, 16
      %v3361 = vrot.slane %v3359, 5
      %v3362 = vor.u32 %v3358, %v3361
      %v3363 = vrot.slane %v3362, 4
      %v3365 = vshll.u32 %v3245, 16
      %v3367 = vrot.slane %v3365, 5
      %v3368 = vsel %vm248, %v3363, %v3367
      %v3369 = vshrl.u32 %v3245, 16
      %v3371 = vrot.slane %v3369, 4
      %v3372 = vor.u32 %v3371, %v3367
      %v3373 = vrot.slane %v3372, 4
      %v3375 = vshll.u32 %v3246, 16
      %v3377 = vrot.slane %v3375, 5
      %v3378 = vsel %vm248, %v3373, %v3377
      %v3380 = vshrl.u32 %v3247, 16
      %v3382 = vrot.slane %v3380, 4
      %v3383 = vshll.u32 %v3247, 16
      %v3385 = vrot.slane %v3383, 5
      %v3386 = vor.u32 %v3382, %v3385
      %v3387 = vrot.slane %v3386, 4
      %v3389 = vshll.u32 %v3248, 16
      %v3391 = vrot.slane %v3389, 5
      %v3392 = vsel %vm248, %v3387, %v3391
      %v3393 = vshrl.u32 %v3248, 16
      %v3395 = vrot.slane %v3393, 4
      %v3396 = vor.u32 %v3395, %v3391
      %v3397 = vrot.slane %v3396, 4
      %v3399 = vshll.u32 %v3249, 16
      %v3401 = vrot.slane %v3399, 5
      %v3402 = vsel %vm248, %v3397, %v3401
      %v3404 = vshrl.u32 %v3250, 16
      %v3406 = vrot.slane %v3404, 4
      %v3407 = vshll.u32 %v3250, 16
      %v3409 = vrot.slane %v3407, 5
      %v3410 = vor.u32 %v3406, %v3409
      %v3411 = vrot.slane %v3410, 4
      %v3413 = vshll.u32 %v3251, 16
      %v3415 = vrot.slane %v3413, 5
      %v3416 = vsel %vm248, %v3411, %v3415
      %v3417 = vshrl.u32 %v3251, 16
      %v3419 = vrot.slane %v3417, 4
      %v3420 = vor.u32 %v3419, %v3415
      %v3421 = vrot.slane %v3420, 4
      %v3423 = vshll.u32 %v3252, 16
      %v3425 = vrot.slane %v3423, 5
      %v3426 = vsel %vm248, %v3421, %v3425
      %v3428 = vshrl.u32 %v3253, 16
      %v3430 = vrot.slane %v3428, 4
      %v3431 = vshll.u32 %v3253, 16
      %v3433 = vrot.slane %v3431, 5
      %v3434 = vor.u32 %v3430, %v3433
      %v3435 = vrot.slane %v3434, 4
      %v3437 = vshll.u32 %v3254, 16
      %v3439 = vrot.slane %v3437, 5
      %v3440 = vsel %vm248, %v3435, %v3439
      %v3441 = vshrl.u32 %v3254, 16
      %v3443 = vrot.slane %v3441, 4
      %v3444 = vor.u32 %v3443, %v3439
      %v3445 = vrot.slane %v3444, 4
      %v3447 = vshll.u32 %v3255, 16
      %v3449 = vrot.slane %v3447, 5
      %v3450 = vsel %vm248, %v3445, %v3449
      %v3452 = vshrl.u32 %v3256, 16
      %v3454 = vrot.slane %v3452, 4
      %v3455 = vshll.u32 %v3256, 16
      %v3457 = vrot.slane %v3455, 5
      %v3458 = vor.u32 %v3454, %v3457
      %v3459 = vrot.slane %v3458, 4
      %v3461 = vshll.u32 %v3257, 16
      %v3463 = vrot.slane %v3461, 5
      %v3464 = vsel %vm248, %v3459, %v3463
      %v3465 = vshrl.u32 %v3257, 16
      %v3467 = vrot.slane %v3465, 4
      %v3468 = vor.u32 %v3467, %v3463
      %v3469 = vrot.slane %v3468, 4
      %v3471 = vshll.u32 %v3258, 16
      %v3473 = vrot.slane %v3471, 5
      %v3474 = vsel %vm248, %v3469, %v3473
      %v3476 = vshrl.u32 %v3259, 16
      %v3478 = vrot.slane %v3476, 4
      %v3479 = vshll.u32 %v3259, 16
      %v3481 = vrot.slane %v3479, 5
      %v3482 = vor.u32 %v3478, %v3481
      %v3483 = vrot.slane %v3482, 4
      %v3485 = vshll.u32 %v3260, 16
      %v3487 = vrot.slane %v3485, 5
      %v3488 = vsel %vm248, %v3483, %v3487
      %v3489 = vshrl.u32 %v3260, 16
      %v3491 = vrot.slane %v3489, 4
      %v3492 = vor.u32 %v3491, %v3487
      %v3493 = vrot.slane %v3492, 4
      %v3495 = vshll.u32 %v3261, 16
      %v3497 = vrot.slane %v3495, 5
      %v3498 = vsel %vm248, %v3493, %v3497
      %v3500 = vshrl.u32 %v3262, 16
      %v3502 = vrot.slane %v3500, 4
      %v3503 = vshll.u32 %v3262, 16
      %v3505 = vrot.slane %v3503, 5
      %v3506 = vor.u32 %v3502, %v3505
      %v3507 = vrot.slane %v3506, 4
      %v3509 = vshll.u32 %v3263, 16
      %v3511 = vrot.slane %v3509, 5
      %v3512 = vsel %vm248, %v3507, %v3511
      %v3513 = vshrl.u32 %v3263, 16
      %v3515 = vrot.slane %v3513, 4
      %v3516 = vor.u32 %v3515, %v3511
      %v3517 = vrot.slane %v3516, 4
      %v3519 = vshll.u32 %v3264, 16
      %v3521 = vrot.slane %v3519, 5
      %v3522 = vsel %vm248, %v3517, %v3521
      %v3524 = vshrl.u32 %v3265, 16
      %v3526 = vrot.slane %v3524, 4
      %v3527 = vshll.u32 %v3265, 16
      %v3529 = vrot.slane %v3527, 5
      %v3530 = vor.u32 %v3526, %v3529
      %v3531 = vrot.slane %v3530, 4
      %v3533 = vshll.u32 %v3266, 16
      %v3535 = vrot.slane %v3533, 5
      %v3536 = vsel %vm248, %v3531, %v3535
      %v3537 = vshrl.u32 %v3266, 16
      %v3539 = vrot.slane %v3537, 4
      %v3540 = vor.u32 %v3539, %v3535
      %v3541 = vrot.slane %v3540, 4
      %v3543 = vshll.u32 %v3267, 16
      %v3545 = vrot.slane %v3543, 5
      %v3546 = vsel %vm248, %v3541, %v3545
      %v3548 = vshrl.u32 %v3268, 16
      %v3550 = vrot.slane %v3548, 4
      %v3551 = vshll.u32 %v3268, 16
      %v3553 = vrot.slane %v3551, 5
      %v3554 = vor.u32 %v3550, %v3553
      %v3555 = vrot.slane %v3554, 4
      %v3557 = vshll.u32 %v3269, 16
      %v3559 = vrot.slane %v3557, 5
      %v3560 = vsel %vm248, %v3555, %v3559
      %v3561 = vshrl.u32 %v3269, 16
      %v3563 = vrot.slane %v3561, 4
      %v3564 = vor.u32 %v3563, %v3559
      %v3565 = vrot.slane %v3564, 4
      %v3567 = vshll.u32 %v3270, 16
      %v3569 = vrot.slane %v3567, 5
      %v3570 = vsel %vm248, %v3565, %v3569
      %v3572 = vshrl.u32 %v3271, 16
      %v3574 = vrot.slane %v3572, 4
      %v3575 = vshll.u32 %v3271, 16
      %v3577 = vrot.slane %v3575, 5
      %v3578 = vor.u32 %v3574, %v3577
      %v3579 = vrot.slane %v3578, 4
      %v3581 = vshll.u32 %v3272, 16
      %v3583 = vrot.slane %v3581, 5
      %v3584 = vsel %vm248, %v3579, %v3583
      %v3585 = vshrl.u32 %v3272, 16
      %v3587 = vrot.slane %v3585, 4
      %v3588 = vor.u32 %v3587, %v3583
      %v3589 = vrot.slane %v3588, 4
      %v3591 = vshll.u32 %v3273, 16
      %v3593 = vrot.slane %v3591, 5
      %v3594 = vsel %vm248, %v3589, %v3593
      %v3596 = vshrl.u32 %v3274, 16
      %v3598 = vrot.slane %v3596, 4
      %v3599 = vshll.u32 %v3274, 16
      %v3601 = vrot.slane %v3599, 5
      %v3602 = vor.u32 %v3598, %v3601
      %v3603 = vrot.slane %v3602, 4
      %v3605 = vshll.u32 %v3275, 16
      %v3607 = vrot.slane %v3605, 5
      %v3608 = vsel %vm248, %v3603, %v3607
      %v3609 = vshrl.u32 %v3275, 16
      %v3611 = vrot.slane %v3609, 4
      %v3612 = vor.u32 %v3611, %v3607
      %v3613 = vrot.slane %v3612, 4
      %v3615 = vshll.u32 %v3276, 16
      %v3617 = vrot.slane %v3615, 5
      %v3618 = vsel %vm248, %v3613, %v3617
      %v3620 = vshrl.u32 %v3277, 16
      %v3622 = vrot.slane %v3620, 4
      %v3623 = vshll.u32 %v3277, 16
      %v3625 = vrot.slane %v3623, 5
      %v3626 = vor.u32 %v3622, %v3625
      %v3627 = vrot.slane %v3626, 4
      %v3629 = vshll.u32 %v3278, 16
      %v3631 = vrot.slane %v3629, 5
      %v3632 = vsel %vm248, %v3627, %v3631
      %v3633 = vshrl.u32 %v3278, 16
      %v3635 = vrot.slane %v3633, 4
      %v3636 = vor.u32 %v3635, %v3631
      %v3637 = vrot.slane %v3636, 4
      %v3639 = vshll.u32 %v3279, 16
      %v3641 = vrot.slane %v3639, 5
      %v3642 = vsel %vm248, %v3637, %v3641
      %v3644 = vshrl.u32 %v3280, 16
      %v3646 = vrot.slane %v3644, 4
      %v3647 = vshll.u32 %v3280, 16
      %v3649 = vrot.slane %v3647, 5
      %v3650 = vor.u32 %v3646, %v3649
      %v3651 = vrot.slane %v3650, 4
      %v3653 = vshll.u32 %v3281, 16
      %v3655 = vrot.slane %v3653, 5
      %v3656 = vsel %vm248, %v3651, %v3655
      %v3657 = vshrl.u32 %v3281, 16
      %v3659 = vrot.slane %v3657, 4
      %v3660 = vor.u32 %v3659, %v3655
      %v3661 = vrot.slane %v3660, 4
      %v3663 = vshll.u32 %v3282, 16
      %v3665 = vrot.slane %v3663, 5
      %v3666 = vsel %vm248, %v3661, %v3665
      %s3667 = scalar_lea.vmem %s1, 448
      %v3668 = vld [vmem:[%s3667] sm:$0xf]
      %v3669 = vld [vmem:[%s3667 + $0x4] sm:$0xf]
      %v3670 = vld [vmem:[%s3667 + $0x8] sm:$0xf]
      %v3671 = vld [vmem:[%s3667 + $0xc] sm:$0xf]
      %v3672 = vld [vmem:[%s3667 + $0x10] sm:$0xf]
      %v3673 = vld [vmem:[%s3667 + $0x14] sm:$0xf]
      %v3674 = vld [vmem:[%s3667 + $0x18] sm:$0xf]
      %v3675 = vld [vmem:[%s3667 + $0x1c] sm:$0xf]
      %v3676 = vld [vmem:[%s3667 + $0x20] sm:$0xf]
      %v3677 = vld [vmem:[%s3667 + $0x24] sm:$0xf]
      %v3678 = vld [vmem:[%s3667 + $0x28] sm:$0xf]
      %v3679 = vld [vmem:[%s3667 + $0x2c] sm:$0xf]
      %v3680 = vld [vmem:[%s3667 + $0x30] sm:$0xf]
      %v3681 = vld [vmem:[%s3667 + $0x34] sm:$0xf]
      %v3682 = vld [vmem:[%s3667 + $0x38] sm:$0xf]
      %v3683 = vld [vmem:[%s3667 + $0x3c] sm:$0xf]
      %v3684 = vunpack.c.l.b16 %v3296
      %v3685 = vunpack.c.l.b16 %v3306
      %v3686 = vunpack.c.l.b16 %v3320
      %v3687 = vunpack.c.l.b16 %v3330
      %v3688 = vunpack.c.l.b16 %v3344
      %v3689 = vunpack.c.l.b16 %v3354
      %v3690 = vunpack.c.l.b16 %v3368
      %v3691 = vunpack.c.l.b16 %v3378
      %v3692 = vunpack.c.l.b16 %v3392
      %v3693 = vunpack.c.l.b16 %v3402
      %v3694 = vunpack.c.l.b16 %v3416
      %v3695 = vunpack.c.l.b16 %v3426
      %v3696 = vunpack.c.l.b16 %v3440
      %v3697 = vunpack.c.l.b16 %v3450
      %v3698 = vunpack.c.l.b16 %v3464
      %v3699 = vunpack.c.l.b16 %v3474
      %v3700 = vunpack.c.l.b16 %v3488
      %v3701 = vunpack.c.l.b16 %v3498
      %v3702 = vunpack.c.l.b16 %v3512
      %v3703 = vunpack.c.l.b16 %v3522
      %v3704 = vunpack.c.l.b16 %v3536
      %v3705 = vunpack.c.l.b16 %v3546
      %v3706 = vunpack.c.l.b16 %v3560
      %v3707 = vunpack.c.l.b16 %v3570
      %v3708 = vunpack.c.l.b16 %v3584
      %v3709 = vunpack.c.l.b16 %v3594
      %v3710 = vunpack.c.l.b16 %v3608
      %v3711 = vunpack.c.l.b16 %v3618
      %v3712 = vunpack.c.l.b16 %v3632
      %v3713 = vunpack.c.l.b16 %v3642
      %v3714 = vunpack.c.l.b16 %v3656
      %v3715 = vunpack.c.l.b16 %v3666
      %v3716 = vpack.c.b16 %v3685, %v3684
      %v3717 = vpack.c.b16 %v3687, %v3686
      %v3718 = vpack.c.b16 %v3689, %v3688
      %v3719 = vpack.c.b16 %v3691, %v3690
      %v3720 = vpack.c.b16 %v3693, %v3692
      %v3721 = vpack.c.b16 %v3695, %v3694
      %v3722 = vpack.c.b16 %v3697, %v3696
      %v3723 = vpack.c.b16 %v3699, %v3698
      %v3724 = vpack.c.b16 %v3701, %v3700
      %v3725 = vpack.c.b16 %v3703, %v3702
      %v3726 = vpack.c.b16 %v3705, %v3704
      %v3727 = vpack.c.b16 %v3707, %v3706
      %v3728 = vpack.c.b16 %v3709, %v3708
      %v3729 = vpack.c.b16 %v3711, %v3710
      %v3730 = vpack.c.b16 %v3713, %v3712
      %v3731 = vpack.c.b16 %v3715, %v3714
      %v3764 = vunpack.c.l.b16 %v3668
      %v3765 = vunpack.c.l.b16 %v3669
      %v3766 = vunpack.c.l.b16 %v3670
      %v3767 = vunpack.c.l.b16 %v3671
      %v3768 = vunpack.c.l.b16 %v3672
      %v3769 = vunpack.c.l.b16 %v3673
      %v3770 = vunpack.c.l.b16 %v3674
      %v3771 = vunpack.c.l.b16 %v3675
      %v3772 = vunpack.c.l.b16 %v3676
      %v3773 = vunpack.c.l.b16 %v3677
      %v3774 = vunpack.c.l.b16 %v3678
      %v3775 = vunpack.c.l.b16 %v3679
      %v3776 = vunpack.c.l.b16 %v3680
      %v3777 = vunpack.c.l.b16 %v3681
      %v3778 = vunpack.c.l.b16 %v3682
      %v3779 = vunpack.c.l.b16 %v3683
      %v3780 = vpack.c.b16 %v3765, %v3764
      %v3781 = vpack.c.b16 %v3767, %v3766
      %v3782 = vpack.c.b16 %v3769, %v3768
      %v3783 = vpack.c.b16 %v3771, %v3770
      %v3784 = vpack.c.b16 %v3773, %v3772
      %v3785 = vpack.c.b16 %v3775, %v3774
      %v3786 = vpack.c.b16 %v3777, %v3776
      %v3787 = vpack.c.b16 %v3779, %v3778
      %3796 = vmatpush.bf16.msra.mxu0 %v3787
      %3797 = vmatpush.bf16.msra.mxu0 %v3786
      %3798 = vmatpush.bf16.msra.mxu0 %v3785
      %3799 = vmatpush.bf16.msra.mxu0 %v3784
      %3800 = vmatpush.bf16.msra.mxu0 %v3783
      %3801 = vmatpush.bf16.msra.mxu0 %v3782
      %3802 = vmatpush.bf16.msra.mxu0 %v3781
      %3803 = vmatpush.bf16.msra.mxu0 %v3780
      %3804 = vmatmul.bf16.gmra.mxu0 %v3716
      %v3805 = vpop.f32.mrf.mxu0
      %v3806 = vadd.f32 0.0, %v3805
      %v3807 = vpop.f32.mrf.mxu0
      %v3808 = vadd.f32 0.0, %v3807
      %3809 = vmatmul.bf16.gmra.mxu0 %v3717
      %v3810 = vpop.f32.mrf.mxu0
      %v3811 = vadd.f32 0.0, %v3810
      %v3812 = vpop.f32.mrf.mxu0
      %v3813 = vadd.f32 0.0, %v3812
      %3814 = vmatmul.bf16.gmra.mxu0 %v3718
      %v3815 = vpop.f32.mrf.mxu0
      %v3816 = vadd.f32 0.0, %v3815
      %v3817 = vpop.f32.mrf.mxu0
      %v3818 = vadd.f32 0.0, %v3817
      %3819 = vmatmul.bf16.gmra.mxu0 %v3719
      %v3820 = vpop.f32.mrf.mxu0
      %v3821 = vadd.f32 0.0, %v3820
      %v3822 = vpop.f32.mrf.mxu0
      %v3823 = vadd.f32 0.0, %v3822
      %3824 = vmatmul.bf16.gmra.mxu0 %v3720
      %v3825 = vpop.f32.mrf.mxu0
      %v3826 = vadd.f32 0.0, %v3825
      %v3827 = vpop.f32.mrf.mxu0
      %v3828 = vadd.f32 0.0, %v3827
      %3829 = vmatmul.bf16.gmra.mxu0 %v3721
      %v3830 = vpop.f32.mrf.mxu0
      %v3831 = vadd.f32 0.0, %v3830
      %v3832 = vpop.f32.mrf.mxu0
      %v3833 = vadd.f32 0.0, %v3832
      %3834 = vmatmul.bf16.gmra.mxu0 %v3722
      %v3835 = vpop.f32.mrf.mxu0
      %v3836 = vadd.f32 0.0, %v3835
      %v3837 = vpop.f32.mrf.mxu0
      %v3838 = vadd.f32 0.0, %v3837
      %3839 = vmatmul.bf16.gmra.mxu0 %v3723
      %v3840 = vpop.f32.mrf.mxu0
      %v3841 = vadd.f32 0.0, %v3840
      %v3842 = vpop.f32.mrf.mxu0
      %v3843 = vadd.f32 0.0, %v3842
      %3844 = vmatmul.bf16.gmra.mxu0 %v3724
      %v3845 = vpop.f32.mrf.mxu0
      %v3846 = vadd.f32 0.0, %v3845
      %v3847 = vpop.f32.mrf.mxu0
      %v3848 = vadd.f32 0.0, %v3847
      %3849 = vmatmul.bf16.gmra.mxu0 %v3725
      %v3850 = vpop.f32.mrf.mxu0
      %v3851 = vadd.f32 0.0, %v3850
      %v3852 = vpop.f32.mrf.mxu0
      %v3853 = vadd.f32 0.0, %v3852
      %3854 = vmatmul.bf16.gmra.mxu0 %v3726
      %v3855 = vpop.f32.mrf.mxu0
      %v3856 = vadd.f32 0.0, %v3855
      %v3857 = vpop.f32.mrf.mxu0
      %v3858 = vadd.f32 0.0, %v3857
      %3859 = vmatmul.bf16.gmra.mxu0 %v3727
      %v3860 = vpop.f32.mrf.mxu0
      %v3861 = vadd.f32 0.0, %v3860
      %v3862 = vpop.f32.mrf.mxu0
      %v3863 = vadd.f32 0.0, %v3862
      %3864 = vmatmul.bf16.gmra.mxu0 %v3728
      %v3865 = vpop.f32.mrf.mxu0
      %v3866 = vadd.f32 0.0, %v3865
      %v3867 = vpop.f32.mrf.mxu0
      %v3868 = vadd.f32 0.0, %v3867
      %3869 = vmatmul.bf16.gmra.mxu0 %v3729
      %v3870 = vpop.f32.mrf.mxu0
      %v3871 = vadd.f32 0.0, %v3870
      %v3872 = vpop.f32.mrf.mxu0
      %v3873 = vadd.f32 0.0, %v3872
      %3874 = vmatmul.bf16.gmra.mxu0 %v3730
      %v3875 = vpop.f32.mrf.mxu0
      %v3876 = vadd.f32 0.0, %v3875
      %v3877 = vpop.f32.mrf.mxu0
      %v3878 = vadd.f32 0.0, %v3877
      %3879 = vmatmul.bf16.gmra.mxu0 %v3731
      %v3880 = vpop.f32.mrf.mxu0
      %v3881 = vadd.f32 0.0, %v3880
      %v3882 = vpop.f32.mrf.mxu0
      %v3883 = vadd.f32 0.0, %v3882
      %3884 = vdwg.mxu0
      %v3885 = vadd.f32 %v3203, %v3806
      %v3886 = vadd.f32 %v3204, %v3808
      %v3887 = vadd.f32 %v3205, %v3811
      %v3888 = vadd.f32 %v3206, %v3813
      %v3889 = vadd.f32 %v3207, %v3816
      %v3890 = vadd.f32 %v3208, %v3818
      %v3891 = vadd.f32 %v3209, %v3821
      %v3892 = vadd.f32 %v3210, %v3823
      %v3893 = vadd.f32 %v3211, %v3826
      %v3894 = vadd.f32 %v3212, %v3828
      %v3895 = vadd.f32 %v3213, %v3831
      %v3896 = vadd.f32 %v3214, %v3833
      %v3897 = vadd.f32 %v3215, %v3836
      %v3898 = vadd.f32 %v3216, %v3838
      %v3899 = vadd.f32 %v3217, %v3841
      %v3900 = vadd.f32 %v3218, %v3843
      %v3901 = vadd.f32 %v3219, %v3846
      %v3902 = vadd.f32 %v3220, %v3848
      %v3903 = vadd.f32 %v3221, %v3851
      %v3904 = vadd.f32 %v3222, %v3853
      %v3905 = vadd.f32 %v3223, %v3856
      %v3906 = vadd.f32 %v3224, %v3858
      %v3907 = vadd.f32 %v3225, %v3861
      %v3908 = vadd.f32 %v3226, %v3863
      %v3909 = vadd.f32 %v3227, %v3866
      %v3910 = vadd.f32 %v3228, %v3868
      %v3911 = vadd.f32 %v3229, %v3871
      %v3912 = vadd.f32 %v3230, %v3873
      %v3913 = vadd.f32 %v3231, %v3876
      %v3914 = vadd.f32 %v3232, %v3878
      %v3915 = vadd.f32 %v3233, %v3881
      %v3916 = vadd.f32 %v3234, %v3883
      %v3917 = vld [vmem:[%s2920] sm:$0xe]
      %v3918 = vld [vmem:[%s2920 + $0xc] sm:$0xe]
      %v3919 = vld [vmem:[%s2920 + $0x18] sm:$0xe]
      %v3920 = vld [vmem:[%s2920 + $0x24] sm:$0xe]
      %v3921 = vld [vmem:[%s2920 + $0x30] sm:$0xe]
      %v3922 = vld [vmem:[%s2920 + $0x3c] sm:$0xe]
      %v3923 = vld [vmem:[%s2920 + $0x48] sm:$0xe]
      %v3924 = vld [vmem:[%s2920 + $0x54] sm:$0xe]
      %v3925 = vld [vmem:[%s2920 + $0x60] sm:$0xe]
      %v3926 = vld [vmem:[%s2920 + $0x6c] sm:$0xe]
      %v3927 = vld [vmem:[%s2920 + $0x78] sm:$0xe]
      %v3928 = vld [vmem:[%s2920 + $0x84] sm:$0xe]
      %v3929 = vld [vmem:[%s2920 + $0x90] sm:$0xe]
      %v3930 = vld [vmem:[%s2920 + $0x9c] sm:$0xe]
      %v3931 = vld [vmem:[%s2920 + $0xa8] sm:$0xe]
      %v3932 = vld [vmem:[%s2920 + $0xb4] sm:$0xe]
      %v3981 = vrot.slane %v3917, 5
      %v3982 = vrot.slane %v3981, 4
      %v3983 = vrot.slane %v3236, 5
      %v3984 = vsel %vm1134, %v3982, %v3983
      %v3985 = vrot.slane %v3983, 4
      %v3986 = vrot.slane %v3237, 5
      %v3987 = vsel %vm1134, %v3985, %v3986
      %v3988 = vrot.slane %v3918, 5
      %v3989 = vrot.slane %v3988, 4
      %v3990 = vrot.slane %v3239, 5
      %v3991 = vsel %vm1134, %v3989, %v3990
      %v3992 = vrot.slane %v3990, 4
      %v3993 = vrot.slane %v3240, 5
      %v3994 = vsel %vm1134, %v3992, %v3993
      %v3995 = vrot.slane %v3919, 5
      %v3996 = vrot.slane %v3995, 4
      %v3997 = vrot.slane %v3242, 5
      %v3998 = vsel %vm1134, %v3996, %v3997
      %v3999 = vrot.slane %v3997, 4
      %v4000 = vrot.slane %v3243, 5
      %v4001 = vsel %vm1134, %v3999, %v4000
      %v4002 = vrot.slane %v3920, 5
      %v4003 = vrot.slane %v4002, 4
      %v4004 = vrot.slane %v3245, 5
      %v4005 = vsel %vm1134, %v4003, %v4004
      %v4006 = vrot.slane %v4004, 4
      %v4007 = vrot.slane %v3246, 5
      %v4008 = vsel %vm1134, %v4006, %v4007
      %v4009 = vrot.slane %v3921, 5
      %v4010 = vrot.slane %v4009, 4
      %v4011 = vrot.slane %v3248, 5
      %v4012 = vsel %vm1134, %v4010, %v4011
      %v4013 = vrot.slane %v4011, 4
      %v4014 = vrot.slane %v3249, 5
      %v4015 = vsel %vm1134, %v4013, %v4014
      %v4016 = vrot.slane %v3922, 5
      %v4017 = vrot.slane %v4016, 4
      %v4018 = vrot.slane %v3251, 5
      %v4019 = vsel %vm1134, %v4017, %v4018
      %v4020 = vrot.slane %v4018, 4
      %v4021 = vrot.slane %v3252, 5
      %v4022 = vsel %vm1134, %v4020, %v4021
      %v4023 = vrot.slane %v3923, 5
      %v4024 = vrot.slane %v4023, 4
      %v4025 = vrot.slane %v3254, 5
      %v4026 = vsel %vm1134, %v4024, %v4025
      %v4027 = vrot.slane %v4025, 4
      %v4028 = vrot.slane %v3255, 5
      %v4029 = vsel %vm1134, %v4027, %v4028
      %v4030 = vrot.slane %v3924, 5
      %v4031 = vrot.slane %v4030, 4
      %v4032 = vrot.slane %v3257, 5
      %v4033 = vsel %vm1134, %v4031, %v4032
      %v4034 = vrot.slane %v4032, 4
      %v4035 = vrot.slane %v3258, 5
      %v4036 = vsel %vm1134, %v4034, %v4035
      %v4037 = vrot.slane %v3925, 5
      %v4038 = vrot.slane %v4037, 4
      %v4039 = vrot.slane %v3260, 5
      %v4040 = vsel %vm1134, %v4038, %v4039
      %v4041 = vrot.slane %v4039, 4
      %v4042 = vrot.slane %v3261, 5
      %v4043 = vsel %vm1134, %v4041, %v4042
      %v4044 = vrot.slane %v3926, 5
      %v4045 = vrot.slane %v4044, 4
      %v4046 = vrot.slane %v3263, 5
      %v4047 = vsel %vm1134, %v4045, %v4046
      %v4048 = vrot.slane %v4046, 4
      %v4049 = vrot.slane %v3264, 5
      %v4050 = vsel %vm1134, %v4048, %v4049
      %v4051 = vrot.slane %v3927, 5
      %v4052 = vrot.slane %v4051, 4
      %v4053 = vrot.slane %v3266, 5
      %v4054 = vsel %vm1134, %v4052, %v4053
      %v4055 = vrot.slane %v4053, 4
      %v4056 = vrot.slane %v3267, 5
      %v4057 = vsel %vm1134, %v4055, %v4056
      %v4058 = vrot.slane %v3928, 5
      %v4059 = vrot.slane %v4058, 4
      %v4060 = vrot.slane %v3269, 5
      %v4061 = vsel %vm1134, %v4059, %v4060
      %v4062 = vrot.slane %v4060, 4
      %v4063 = vrot.slane %v3270, 5
      %v4064 = vsel %vm1134, %v4062, %v4063
      %v4065 = vrot.slane %v3929, 5
      %v4066 = vrot.slane %v4065, 4
      %v4067 = vrot.slane %v3272, 5
      %v4068 = vsel %vm1134, %v4066, %v4067
      %v4069 = vrot.slane %v4067, 4
      %v4070 = vrot.slane %v3273, 5
      %v4071 = vsel %vm1134, %v4069, %v4070
      %v4072 = vrot.slane %v3930, 5
      %v4073 = vrot.slane %v4072, 4
      %v4074 = vrot.slane %v3275, 5
      %v4075 = vsel %vm1134, %v4073, %v4074
      %v4076 = vrot.slane %v4074, 4
      %v4077 = vrot.slane %v3276, 5
      %v4078 = vsel %vm1134, %v4076, %v4077
      %v4079 = vrot.slane %v3931, 5
      %v4080 = vrot.slane %v4079, 4
      %v4081 = vrot.slane %v3278, 5
      %v4082 = vsel %vm1134, %v4080, %v4081
      %v4083 = vrot.slane %v4081, 4
      %v4084 = vrot.slane %v3279, 5
      %v4085 = vsel %vm1134, %v4083, %v4084
      %v4086 = vrot.slane %v3932, 5
      %v4087 = vrot.slane %v4086, 4
      %v4088 = vrot.slane %v3281, 5
      %v4089 = vsel %vm1134, %v4087, %v4088
      %v4090 = vrot.slane %v4088, 4
      %v4091 = vrot.slane %v3282, 5
      %v4092 = vsel %vm1134, %v4090, %v4091
      %s4093 = scalar_lea.vmem %s1, 512
      %v4094 = vld [vmem:[%s4093] sm:$0xf]
      %v4095 = vld [vmem:[%s4093 + $0x4] sm:$0xf]
      %v4096 = vld [vmem:[%s4093 + $0x8] sm:$0xf]
      %v4097 = vld [vmem:[%s4093 + $0xc] sm:$0xf]
      %v4098 = vld [vmem:[%s4093 + $0x10] sm:$0xf]
      %v4099 = vld [vmem:[%s4093 + $0x14] sm:$0xf]
      %v4100 = vld [vmem:[%s4093 + $0x18] sm:$0xf]
      %v4101 = vld [vmem:[%s4093 + $0x1c] sm:$0xf]
      %v4102 = vld [vmem:[%s4093 + $0x20] sm:$0xf]
      %v4103 = vld [vmem:[%s4093 + $0x24] sm:$0xf]
      %v4104 = vld [vmem:[%s4093 + $0x28] sm:$0xf]
      %v4105 = vld [vmem:[%s4093 + $0x2c] sm:$0xf]
      %v4106 = vld [vmem:[%s4093 + $0x30] sm:$0xf]
      %v4107 = vld [vmem:[%s4093 + $0x34] sm:$0xf]
      %v4108 = vld [vmem:[%s4093 + $0x38] sm:$0xf]
      %v4109 = vld [vmem:[%s4093 + $0x3c] sm:$0xf]
      %v4110 = vunpack.c.l.b16 %v3984
      %v4111 = vunpack.c.l.b16 %v3987
      %v4112 = vunpack.c.l.b16 %v3991
      %v4113 = vunpack.c.l.b16 %v3994
      %v4114 = vunpack.c.l.b16 %v3998
      %v4115 = vunpack.c.l.b16 %v4001
      %v4116 = vunpack.c.l.b16 %v4005
      %v4117 = vunpack.c.l.b16 %v4008
      %v4118 = vunpack.c.l.b16 %v4012
      %v4119 = vunpack.c.l.b16 %v4015
      %v4120 = vunpack.c.l.b16 %v4019
      %v4121 = vunpack.c.l.b16 %v4022
      %v4122 = vunpack.c.l.b16 %v4026
      %v4123 = vunpack.c.l.b16 %v4029
      %v4124 = vunpack.c.l.b16 %v4033
      %v4125 = vunpack.c.l.b16 %v4036
      %v4126 = vunpack.c.l.b16 %v4040
      %v4127 = vunpack.c.l.b16 %v4043
      %v4128 = vunpack.c.l.b16 %v4047
      %v4129 = vunpack.c.l.b16 %v4050
      %v4130 = vunpack.c.l.b16 %v4054
      %v4131 = vunpack.c.l.b16 %v4057
      %v4132 = vunpack.c.l.b16 %v4061
      %v4133 = vunpack.c.l.b16 %v4064
      %v4134 = vunpack.c.l.b16 %v4068
      %v4135 = vunpack.c.l.b16 %v4071
      %v4136 = vunpack.c.l.b16 %v4075
      %v4137 = vunpack.c.l.b16 %v4078
      %v4138 = vunpack.c.l.b16 %v4082
      %v4139 = vunpack.c.l.b16 %v4085
      %v4140 = vunpack.c.l.b16 %v4089
      %v4141 = vunpack.c.l.b16 %v4092
      %v4142 = vpack.c.b16 %v4111, %v4110
      %v4143 = vpack.c.b16 %v4113, %v4112
      %v4144 = vpack.c.b16 %v4115, %v4114
      %v4145 = vpack.c.b16 %v4117, %v4116
      %v4146 = vpack.c.b16 %v4119, %v4118
      %v4147 = vpack.c.b16 %v4121, %v4120
      %v4148 = vpack.c.b16 %v4123, %v4122
      %v4149 = vpack.c.b16 %v4125, %v4124
      %v4150 = vpack.c.b16 %v4127, %v4126
      %v4151 = vpack.c.b16 %v4129, %v4128
      %v4152 = vpack.c.b16 %v4131, %v4130
      %v4153 = vpack.c.b16 %v4133, %v4132
      %v4154 = vpack.c.b16 %v4135, %v4134
      %v4155 = vpack.c.b16 %v4137, %v4136
      %v4156 = vpack.c.b16 %v4139, %v4138
      %v4157 = vpack.c.b16 %v4141, %v4140
      %v4190 = vunpack.c.l.b16 %v4094
      %v4191 = vunpack.c.l.b16 %v4095
      %v4192 = vunpack.c.l.b16 %v4096
      %v4193 = vunpack.c.l.b16 %v4097
      %v4194 = vunpack.c.l.b16 %v4098
      %v4195 = vunpack.c.l.b16 %v4099
      %v4196 = vunpack.c.l.b16 %v4100
      %v4197 = vunpack.c.l.b16 %v4101
      %v4198 = vunpack.c.l.b16 %v4102
      %v4199 = vunpack.c.l.b16 %v4103
      %v4200 = vunpack.c.l.b16 %v4104
      %v4201 = vunpack.c.l.b16 %v4105
      %v4202 = vunpack.c.l.b16 %v4106
      %v4203 = vunpack.c.l.b16 %v4107
      %v4204 = vunpack.c.l.b16 %v4108
      %v4205 = vunpack.c.l.b16 %v4109
      %v4206 = vpack.c.b16 %v4191, %v4190
      %v4207 = vpack.c.b16 %v4193, %v4192
      %v4208 = vpack.c.b16 %v4195, %v4194
      %v4209 = vpack.c.b16 %v4197, %v4196
      %v4210 = vpack.c.b16 %v4199, %v4198
      %v4211 = vpack.c.b16 %v4201, %v4200
      %v4212 = vpack.c.b16 %v4203, %v4202
      %v4213 = vpack.c.b16 %v4205, %v4204
      %4222 = vmatpush.bf16.msra.mxu0 %v4213
      %4223 = vmatpush.bf16.msra.mxu0 %v4212
      %4224 = vmatpush.bf16.msra.mxu0 %v4211
      %4225 = vmatpush.bf16.msra.mxu0 %v4210
      %4226 = vmatpush.bf16.msra.mxu0 %v4209
      %4227 = vmatpush.bf16.msra.mxu0 %v4208
      %4228 = vmatpush.bf16.msra.mxu0 %v4207
      %4229 = vmatpush.bf16.msra.mxu0 %v4206
      %4230 = vmatmul.bf16.gmra.mxu0 %v4142
      %v4231 = vpop.f32.mrf.mxu0
      %v4232 = vadd.f32 0.0, %v4231
      %v4233 = vpop.f32.mrf.mxu0
      %v4234 = vadd.f32 0.0, %v4233
      %4235 = vmatmul.bf16.gmra.mxu0 %v4143
      %v4236 = vpop.f32.mrf.mxu0
      %v4237 = vadd.f32 0.0, %v4236
      %v4238 = vpop.f32.mrf.mxu0
      %v4239 = vadd.f32 0.0, %v4238
      %4240 = vmatmul.bf16.gmra.mxu0 %v4144
      %v4241 = vpop.f32.mrf.mxu0
      %v4242 = vadd.f32 0.0, %v4241
      %v4243 = vpop.f32.mrf.mxu0
      %v4244 = vadd.f32 0.0, %v4243
      %4245 = vmatmul.bf16.gmra.mxu0 %v4145
      %v4246 = vpop.f32.mrf.mxu0
      %v4247 = vadd.f32 0.0, %v4246
      %v4248 = vpop.f32.mrf.mxu0
      %v4249 = vadd.f32 0.0, %v4248
      %4250 = vmatmul.bf16.gmra.mxu0 %v4146
      %v4251 = vpop.f32.mrf.mxu0
      %v4252 = vadd.f32 0.0, %v4251
      %v4253 = vpop.f32.mrf.mxu0
      %v4254 = vadd.f32 0.0, %v4253
      %4255 = vmatmul.bf16.gmra.mxu0 %v4147
      %v4256 = vpop.f32.mrf.mxu0
      %v4257 = vadd.f32 0.0, %v4256
      %v4258 = vpop.f32.mrf.mxu0
      %v4259 = vadd.f32 0.0, %v4258
      %4260 = vmatmul.bf16.gmra.mxu0 %v4148
      %v4261 = vpop.f32.mrf.mxu0
      %v4262 = vadd.f32 0.0, %v4261
      %v4263 = vpop.f32.mrf.mxu0
      %v4264 = vadd.f32 0.0, %v4263
      %4265 = vmatmul.bf16.gmra.mxu0 %v4149
      %v4266 = vpop.f32.mrf.mxu0
      %v4267 = vadd.f32 0.0, %v4266
      %v4268 = vpop.f32.mrf.mxu0
      %v4269 = vadd.f32 0.0, %v4268
      %4270 = vmatmul.bf16.gmra.mxu0 %v4150
      %v4271 = vpop.f32.mrf.mxu0
      %v4272 = vadd.f32 0.0, %v4271
      %v4273 = vpop.f32.mrf.mxu0
      %v4274 = vadd.f32 0.0, %v4273
      %4275 = vmatmul.bf16.gmra.mxu0 %v4151
      %v4276 = vpop.f32.mrf.mxu0
      %v4277 = vadd.f32 0.0, %v4276
      %v4278 = vpop.f32.mrf.mxu0
      %v4279 = vadd.f32 0.0, %v4278
      %4280 = vmatmul.bf16.gmra.mxu0 %v4152
      %v4281 = vpop.f32.mrf.mxu0
      %v4282 = vadd.f32 0.0, %v4281
      %v4283 = vpop.f32.mrf.mxu0
      %v4284 = vadd.f32 0.0, %v4283
      %4285 = vmatmul.bf16.gmra.mxu0 %v4153
      %v4286 = vpop.f32.mrf.mxu0
      %v4287 = vadd.f32 0.0, %v4286
      %v4288 = vpop.f32.mrf.mxu0
      %v4289 = vadd.f32 0.0, %v4288
      %4290 = vmatmul.bf16.gmra.mxu0 %v4154
      %v4291 = vpop.f32.mrf.mxu0
      %v4292 = vadd.f32 0.0, %v4291
      %v4293 = vpop.f32.mrf.mxu0
      %v4294 = vadd.f32 0.0, %v4293
      %4295 = vmatmul.bf16.gmra.mxu0 %v4155
      %v4296 = vpop.f32.mrf.mxu0
      %v4297 = vadd.f32 0.0, %v4296
      %v4298 = vpop.f32.mrf.mxu0
      %v4299 = vadd.f32 0.0, %v4298
      %4300 = vmatmul.bf16.gmra.mxu0 %v4156
      %v4301 = vpop.f32.mrf.mxu0
      %v4302 = vadd.f32 0.0, %v4301
      %v4303 = vpop.f32.mrf.mxu0
      %v4304 = vadd.f32 0.0, %v4303
      %4305 = vmatmul.bf16.gmra.mxu0 %v4157
      %v4306 = vpop.f32.mrf.mxu0
      %v4307 = vadd.f32 0.0, %v4306
      %v4308 = vpop.f32.mrf.mxu0
      %v4309 = vadd.f32 0.0, %v4308
      %4310 = vdwg.mxu0
      %v4311 = vadd.f32 %v3885, %v4232
      %v4312 = vadd.f32 %v3886, %v4234
      %v4313 = vadd.f32 %v3887, %v4237
      %v4314 = vadd.f32 %v3888, %v4239
      %v4315 = vadd.f32 %v3889, %v4242
      %v4316 = vadd.f32 %v3890, %v4244
      %v4317 = vadd.f32 %v3891, %v4247
      %v4318 = vadd.f32 %v3892, %v4249
      %v4319 = vadd.f32 %v3893, %v4252
      %v4320 = vadd.f32 %v3894, %v4254
      %v4321 = vadd.f32 %v3895, %v4257
      %v4322 = vadd.f32 %v3896, %v4259
      %v4323 = vadd.f32 %v3897, %v4262
      %v4324 = vadd.f32 %v3898, %v4264
      %v4325 = vadd.f32 %v3899, %v4267
      %v4326 = vadd.f32 %v3900, %v4269
      %v4327 = vadd.f32 %v3901, %v4272
      %v4328 = vadd.f32 %v3902, %v4274
      %v4329 = vadd.f32 %v3903, %v4277
      %v4330 = vadd.f32 %v3904, %v4279
      %v4331 = vadd.f32 %v3905, %v4282
      %v4332 = vadd.f32 %v3906, %v4284
      %v4333 = vadd.f32 %v3907, %v4287
      %v4334 = vadd.f32 %v3908, %v4289
      %v4335 = vadd.f32 %v3909, %v4292
      %v4336 = vadd.f32 %v3910, %v4294
      %v4337 = vadd.f32 %v3911, %v4297
      %v4338 = vadd.f32 %v3912, %v4299
      %v4339 = vadd.f32 %v3913, %v4302
      %v4340 = vadd.f32 %v3914, %v4304
      %v4341 = vadd.f32 %v3915, %v4307
      %v4342 = vadd.f32 %v3916, %v4309
      %v4343 = vpack.c.bf16 %v4311, %v4311
      %v4344 = vpack.c.bf16 %v4312, %v4312
      %v4345 = vpack.c.bf16 %v4313, %v4313
      %v4346 = vpack.c.bf16 %v4314, %v4314
      %v4347 = vpack.c.bf16 %v4315, %v4315
      %v4348 = vpack.c.bf16 %v4316, %v4316
      %v4349 = vpack.c.bf16 %v4317, %v4317
      %v4350 = vpack.c.bf16 %v4318, %v4318
      %v4351 = vpack.c.bf16 %v4319, %v4319
      %v4352 = vpack.c.bf16 %v4320, %v4320
      %v4353 = vpack.c.bf16 %v4321, %v4321
      %v4354 = vpack.c.bf16 %v4322, %v4322
      %v4355 = vpack.c.bf16 %v4323, %v4323
      %v4356 = vpack.c.bf16 %v4324, %v4324
      %v4357 = vpack.c.bf16 %v4325, %v4325
      %v4358 = vpack.c.bf16 %v4326, %v4326
      %v4359 = vpack.c.bf16 %v4327, %v4327
      %v4360 = vpack.c.bf16 %v4328, %v4328
      %v4361 = vpack.c.bf16 %v4329, %v4329
      %v4362 = vpack.c.bf16 %v4330, %v4330
      %v4363 = vpack.c.bf16 %v4331, %v4331
      %v4364 = vpack.c.bf16 %v4332, %v4332
      %v4365 = vpack.c.bf16 %v4333, %v4333
      %v4366 = vpack.c.bf16 %v4334, %v4334
      %v4367 = vpack.c.bf16 %v4335, %v4335
      %v4368 = vpack.c.bf16 %v4336, %v4336
      %v4369 = vpack.c.bf16 %v4337, %v4337
      %v4370 = vpack.c.bf16 %v4338, %v4338
      %v4371 = vpack.c.bf16 %v4339, %v4339
      %v4372 = vpack.c.bf16 %v4340, %v4340
      %v4373 = vpack.c.bf16 %v4341, %v4341
      %v4374 = vpack.c.bf16 %v4342, %v4342
      %4375 = vst [vmem:[%s177] sm:$0xf] %v4343
      %4376 = vst [vmem:[%s177 + $0x4] sm:$0xf] %v4344
      %4377 = vst [vmem:[%s177 + $0x8] sm:$0xf] %v4345
      %4378 = vst [vmem:[%s177 + $0xc] sm:$0xf] %v4346
      %4379 = vst [vmem:[%s177 + $0x10] sm:$0xf] %v4347
      %4380 = vst [vmem:[%s177 + $0x14] sm:$0xf] %v4348
      %4381 = vst [vmem:[%s177 + $0x18] sm:$0xf] %v4349
      %4382 = vst [vmem:[%s177 + $0x1c] sm:$0xf] %v4350
      %4383 = vst [vmem:[%s177 + $0x20] sm:$0xf] %v4351
      %4384 = vst [vmem:[%s177 + $0x24] sm:$0xf] %v4352
      %4385 = vst [vmem:[%s177 + $0x28] sm:$0xf] %v4353
      %4386 = vst [vmem:[%s177 + $0x2c] sm:$0xf] %v4354
      %4387 = vst [vmem:[%s177 + $0x30] sm:$0xf] %v4355
      %4388 = vst [vmem:[%s177 + $0x34] sm:$0xf] %v4356
      %4389 = vst [vmem:[%s177 + $0x38] sm:$0xf] %v4357
      %4390 = vst [vmem:[%s177 + $0x3c] sm:$0xf] %v4358
      %4391 = vst [vmem:[%s177 + $0x40] sm:$0xf] %v4359
      %4392 = vst [vmem:[%s177 + $0x44] sm:$0xf] %v4360
      %4393 = vst [vmem:[%s177 + $0x48] sm:$0xf] %v4361
      %4394 = vst [vmem:[%s177 + $0x4c] sm:$0xf] %v4362
      %4395 = vst [vmem:[%s177 + $0x50] sm:$0xf] %v4363
      %4396 = vst [vmem:[%s177 + $0x54] sm:$0xf] %v4364
      %4397 = vst [vmem:[%s177 + $0x58] sm:$0xf] %v4365
      %4398 = vst [vmem:[%s177 + $0x5c] sm:$0xf] %v4366
      %4399 = vst [vmem:[%s177 + $0x60] sm:$0xf] %v4367
      %4400 = vst [vmem:[%s177 + $0x64] sm:$0xf] %v4368
      %4401 = vst [vmem:[%s177 + $0x68] sm:$0xf] %v4369
      %4402 = vst [vmem:[%s177 + $0x6c] sm:$0xf] %v4370
      %4403 = vst [vmem:[%s177 + $0x70] sm:$0xf] %v4371
      %4404 = vst [vmem:[%s177 + $0x74] sm:$0xf] %v4372
      %4405 = vst [vmem:[%s177 + $0x78] sm:$0xf] %v4373
      %4406 = vst [vmem:[%s177 + $0x7c] sm:$0xf] %v4374
      %v4407 = vadd.f32 %v4311, %v4312
      %v4408 = vadd.f32 %v4407, %v4313
      %v4409 = vadd.f32 %v4408, %v4314
      %v4410 = vadd.f32 %v4409, %v4315
      %v4411 = vadd.f32 %v4410, %v4316
      %v4412 = vadd.f32 %v4411, %v4317
      %v4413 = vadd.f32 %v4412, %v4318
      %v4414 = vadd.f32 %v4413, %v4319
      %v4415 = vadd.f32 %v4414, %v4320
      %v4416 = vadd.f32 %v4415, %v4321
      %v4417 = vadd.f32 %v4416, %v4322
      %v4418 = vadd.f32 %v4417, %v4323
      %v4419 = vadd.f32 %v4418, %v4324
      %v4420 = vadd.f32 %v4419, %v4325
      %v4421 = vadd.f32 %v4420, %v4326
      %v4422 = vadd.f32 %v4421, %v4327
      %v4423 = vadd.f32 %v4422, %v4328
      %v4424 = vadd.f32 %v4423, %v4329
      %v4425 = vadd.f32 %v4424, %v4330
      %v4426 = vadd.f32 %v4425, %v4331
      %v4427 = vadd.f32 %v4426, %v4332
      %v4428 = vadd.f32 %v4427, %v4333
      %v4429 = vadd.f32 %v4428, %v4334
      %v4430 = vadd.f32 %v4429, %v4335
      %v4431 = vadd.f32 %v4430, %v4336
      %v4432 = vadd.f32 %v4431, %v4337
      %v4433 = vadd.f32 %v4432, %v4338
      %v4434 = vadd.f32 %v4433, %v4339
      %v4435 = vadd.f32 %v4434, %v4340
      %v4436 = vadd.f32 %v4435, %v4341
      %v4437 = vadd.f32 %v4436, %v4342
      %v4438 = vrot.slane %v4437, 4
      %v4439 = vadd.f32 %v4437, %v4438
      %v4440 = vrot.slane %v4439, 2
      %v4441 = vadd.f32 %v4439, %v4440
      %v4442 = vrot.slane %v4441, 1
      %v4443 = vadd.f32 %v4441, %v4442
      %4444 = vst [vmem:[%s181] sm:$0x1] %v4443
      %v4445 = vmul.f32 %v4311, %v4311
      %v4446 = vmul.f32 %v4312, %v4312
      %v4447 = vmul.f32 %v4313, %v4313
      %v4448 = vmul.f32 %v4314, %v4314
      %v4449 = vmul.f32 %v4315, %v4315
      %v4450 = vmul.f32 %v4316, %v4316
      %v4451 = vmul.f32 %v4317, %v4317
      %v4452 = vmul.f32 %v4318, %v4318
      %v4453 = vmul.f32 %v4319, %v4319
      %v4454 = vmul.f32 %v4320, %v4320
      %v4455 = vmul.f32 %v4321, %v4321
      %v4456 = vmul.f32 %v4322, %v4322
      %v4457 = vmul.f32 %v4323, %v4323
      %v4458 = vmul.f32 %v4324, %v4324
      %v4459 = vmul.f32 %v4325, %v4325
      %v4460 = vmul.f32 %v4326, %v4326
      %v4461 = vmul.f32 %v4327, %v4327
      %v4462 = vmul.f32 %v4328, %v4328
      %v4463 = vmul.f32 %v4329, %v4329
      %v4464 = vmul.f32 %v4330, %v4330
      %v4465 = vmul.f32 %v4331, %v4331
      %v4466 = vmul.f32 %v4332, %v4332
      %v4467 = vmul.f32 %v4333, %v4333
      %v4468 = vmul.f32 %v4334, %v4334
      %v4469 = vmul.f32 %v4335, %v4335
      %v4470 = vmul.f32 %v4336, %v4336
      %v4471 = vmul.f32 %v4337, %v4337
      %v4472 = vmul.f32 %v4338, %v4338
      %v4473 = vmul.f32 %v4339, %v4339
      %v4474 = vmul.f32 %v4340, %v4340
      %v4475 = vmul.f32 %v4341, %v4341
      %v4476 = vmul.f32 %v4342, %v4342
      %v4477 = vadd.f32 %v4445, %v4446
      %v4478 = vadd.f32 %v4477, %v4447
      %v4479 = vadd.f32 %v4478, %v4448
      %v4480 = vadd.f32 %v4479, %v4449
      %v4481 = vadd.f32 %v4480, %v4450
      %v4482 = vadd.f32 %v4481, %v4451
      %v4483 = vadd.f32 %v4482, %v4452
      %v4484 = vadd.f32 %v4483, %v4453
      %v4485 = vadd.f32 %v4484, %v4454
      %v4486 = vadd.f32 %v4485, %v4455
      %v4487 = vadd.f32 %v4486, %v4456
      %v4488 = vadd.f32 %v4487, %v4457
      %v4489 = vadd.f32 %v4488, %v4458
      %v4490 = vadd.f32 %v4489, %v4459
      %v4491 = vadd.f32 %v4490, %v4460
      %v4492 = vadd.f32 %v4491, %v4461
      %v4493 = vadd.f32 %v4492, %v4462
      %v4494 = vadd.f32 %v4493, %v4463
      %v4495 = vadd.f32 %v4494, %v4464
      %v4496 = vadd.f32 %v4495, %v4465
      %v4497 = vadd.f32 %v4496, %v4466
      %v4498 = vadd.f32 %v4497, %v4467
      %v4499 = vadd.f32 %v4498, %v4468
      %v4500 = vadd.f32 %v4499, %v4469
      %v4501 = vadd.f32 %v4500, %v4470
      %v4502 = vadd.f32 %v4501, %v4471
      %v4503 = vadd.f32 %v4502, %v4472
      %v4504 = vadd.f32 %v4503, %v4473
      %v4505 = vadd.f32 %v4504, %v4474
      %v4506 = vadd.f32 %v4505, %v4475
      %v4507 = vadd.f32 %v4506, %v4476
      %v4508 = vrot.slane %v4507, 4
      %v4509 = vadd.f32 %v4507, %v4508
      %v4510 = vrot.slane %v4509, 2
      %v4511 = vadd.f32 %v4509, %v4510
      %v4512 = vrot.slane %v4511, 1
      %v4513 = vadd.f32 %v4511, %v4512
      %4514 = vst [vmem:[%s181 + $0x1] sm:$0x1] %v4513
      %p4515 = scmp.lt.s32.totalorder %s15, 1
      %s4516 = scalar_select %p4515, %s15, 1
      %s4517 = smul.addr %s4516, 32
      %s4518 = smul.addr %s4517, 4
      %s4519 = scalar_lea.vmem %s2, %s4518
      %p4520 = scmp.lt.s32.totalorder %s15, 1
      %s4521 = scalar_select %p4520, %s15, 1
      %s4522 = smul.addr %s4521, 2
      %s4523 = scalar_lea.vmem %s3, %s4522
      // Predicated region
      $region29: #{encoder_block.3} parent=27 // pred_check
        %p4524 = pneg %p80
      $region30: #{encoder_block.3} parent=27 // pred_check_branch
        %4526 = sbr.rel (%p4524) target = $region32
      $region31: #{encoder_block.3} parent=27 // pred_region
        _
      $region32: #{encoder_block.3} parent=27 // pred_fallthru
        _
      // Predicated region
      $region33: #{encoder_block.3} parent=27 // pred_check
        %p4527 = pneg %p106
      $region34: #{encoder_block.3} parent=27 // pred_check_branch
        %4529 = sbr.rel (%p4527) target = $region36
      $region35: #{encoder_block.3} parent=27 // pred_region
        _
      $region36: #{encoder_block.3} parent=27 // pred_fallthru
        _
    $region28: #{encoder_block.3} parent=5 // pred_fallthru
      _
    %p4530 = scmp.le.s32.totalorder 2, %s10
    // Predicated region
    $region37: #{encoder_block.3} parent=5 // pred_check
      %p4531 = pneg %p4530
    $region38: #{encoder_block.3} parent=5 // pred_check_branch
      %4533 = sbr.rel (%p4531) target = $region40
    $region39: #{encoder_block.3} parent=5 // pred_region
      %s4534 = ssub.s32 %s10, 2
      // Predicated region
      $region41: #{encoder_block.3} parent=39 // pred_check
        %p4535 = pneg %p86
      $region42: #{encoder_block.3} parent=39 // pred_check_branch
        %4537 = sbr.rel (%p4535) target = $region44
      $region43: #{encoder_block.3} parent=39 // pred_region
        %p4538 = scmp.lt.s32.totalorder %s16, 1
        %s4539 = scalar_select %p4538, %s16, 1
        %s4540 = smul.addr %s4539, 32
        %s4541 = smul.addr %s4540, 4
        %s4542 = scalar_lea.vmem %s2, %s4541
      $region44: #{encoder_block.3} parent=39 // pred_fallthru
        _
      // Predicated region
      $region45: #{encoder_block.3} parent=39 // pred_check
        %p4543 = pneg %p112
      $region46: #{encoder_block.3} parent=39 // pred_check_branch
        %4545 = sbr.rel (%p4543) target = $region48
      $region47: #{encoder_block.3} parent=39 // pred_region
        %p4546 = scmp.lt.s32.totalorder %s16, 1
        %s4547 = scalar_select %p4546, %s16, 1
        %s4548 = smul.addr %s4547, 2
        %s4549 = scalar_lea.vmem %s3, %s4548
      $region48: #{encoder_block.3} parent=39 // pred_fallthru
        _
    $region40: #{encoder_block.3} parent=5 // pred_fallthru
      _
  $region6: #{encoder_block.3} parent=0 // loop_footer
    %s14 = sadd.s32 1, %s10
  $region7: #{encoder_block.3} parent=0 // loop_footer_branch
    %9 = sbr.rel target = $region3
  $region8: #{encoder_block.3} parent=0 // loop_exit
    _

// kernel: encoder_block.4
$region0: #{encoder_block.4}
  #allocation0 [shape = 'u32[]', space=smem, size = 0x4, offset = 0x4, fixed_abs, tag = 'smem constant byte address 0x4 - core index']
  #allocation1 [shape = 'u32[72,128]{1,0:T(1,128)}', space=vmem, size = 0x9000, scoped, tag = 'internal scratch']
  #allocation2 [shape = 'bf16[18,18,128]{2,1,0:T(8,128)(2,1)}', space=vmem, size = 0x1b000, scoped, tag = 'scratch operand']
  %s0 = inlined_call_operand.vmem [shape: bf16[2,16,16,128], index: 0, kind: input, shape index: {}]
  %s1 = inlined_call_operand.vmem [shape: f32[1,128], index: 1, kind: input, shape index: {}]
  %s2 = inlined_call_operand.vmem [shape: f32[1,128], index: 2, kind: input, shape index: {}]
  %s3 = inlined_call_operand.vmem [shape: bf16[9,128,128], index: 3, kind: input, shape index: {}]
  %s4 = inlined_call_operand.vmem [shape: bf16[2,16,16,128], index: 4, kind: output, shape index: {0}]
  %s5 = inlined_call_operand.vmem [shape: f32[2,2,128], index: 5, kind: output, shape index: {1}]
  %6 = xla_tuple %s4, %s5
  %s7 = sld [smem:[#allocation0]]
  $region57: #{encoder_block.4} parent=0
    _
  %s9 = ssub.s32 1, %s7
  %s10 = scalar_select 0, %s9, %s7
  loop: start=0, step=1, limit=4
  $region2: #{encoder_block.4} parent=0 // loop_pre_header
    _
  $region3: #{encoder_block.4} parent=0 // loop_header
    %s12 = sphi 0, %s16
    %p13 = scmp.ge.s32.totalorder %s12, 4
    %s22 = sphi 0, %s24
    %s25 = sphi 0, %s22
    %s26 = sphi 0, %s25
    %s42 = sphi 0, %s26
    %s46 = sphi 0, %s46
    %s48 = sphi 0, %s46
    %s49 = sphi 0, %s48
    %s63 = sphi 0, %s49
    %s67 = sphi 0, %s67
    %s69 = sphi 0, %s67
    %s70 = sphi 0, %s69
    %s84 = sphi 0, %s70
    %s88 = sphi 0, %s88
    %s90 = sphi 0, %s88
    %s91 = sphi 0, %s90
    %s105 = sphi 0, %s91
    %s111 = sphi 0, %s113
    %s114 = sphi 0, %s111
    %s115 = sphi 0, %s114
    %s131 = sphi 0, %s115
    %s137 = sphi 0, %s139
    %s140 = sphi 0, %s137
    %s141 = sphi 0, %s140
    %s157 = sphi 0, %s141
  $region4: #{encoder_block.4} parent=0 // loop_header_branch
    %15 = sbr.rel (%p13) target = $region8
  $region5: #{encoder_block.4} parent=0 // loop_body
    %s17 = ssub.s32 %s12, 1
    %s18 = ssub.s32 %s12, 2
    %s19 = sadd.s32 %s12, 1
    %s20 = ssub.s32 %s12, %s19
    %p21 = scmp.eq.s32.totalorder %s20, 0
    %s23 = sadd.s32 %s22, 1
    %s24 = scalar_select %p21, %s22, %s23
    %p27 = pneg %p21
    %p28 = scmp.eq.s32.totalorder %s12, 1
    %p29 = por %p27, %p28
    %p30 = scmp.ne.s32.totalorder %s22, %s25
    %p31 = scmp.eq.s32.totalorder %s12, 0
    %p32 = por %p30, %p31
    %p33 = scmp.ne.s32.totalorder %s22, %s25
    %p34 = scmp.eq.s32.totalorder %s17, 1
    %p35 = por %p33, %p34
    %p36 = scmp.ne.s32.totalorder %s25, %s26
    %p37 = scmp.eq.s32.totalorder %s17, 0
    %p38 = por %p36, %p37
    %p39 = scmp.ne.s32.totalorder %s25, %s26
    %p40 = scmp.eq.s32.totalorder %s18, 1
    %p41 = por %p39, %p40
    %p43 = scmp.ne.s32.totalorder %s26, %s42
    %p44 = scmp.eq.s32.totalorder %s18, 0
    %p45 = por %p43, %p44
    %s47 = sadd.s32 %s46, 1
    %p50 = scmp.eq.s32.totalorder %s12, 1
    %p51 = scmp.ne.s32.totalorder %s46, %s48
    %p52 = scmp.eq.s32.totalorder %s12, 0
    %p53 = por %p51, %p52
    %p54 = scmp.ne.s32.totalorder %s46, %s48
    %p55 = scmp.eq.s32.totalorder %s17, 1
    %p56 = por %p54, %p55
    %p57 = scmp.ne.s32.totalorder %s48, %s49
    %p58 = scmp.eq.s32.totalorder %s17, 0
    %p59 = por %p57, %p58
    %p60 = scmp.ne.s32.totalorder %s48, %s49
    %p61 = scmp.eq.s32.totalorder %s18, 1
    %p62 = por %p60, %p61
    %p64 = scmp.ne.s32.totalorder %s49, %s63
    %p65 = scmp.eq.s32.totalorder %s18, 0
    %p66 = por %p64, %p65
    %s68 = sadd.s32 %s67, 1
    %p71 = scmp.eq.s32.totalorder %s12, 1
    %p72 = scmp.ne.s32.totalorder %s67, %s69
    %p73 = scmp.eq.s32.totalorder %s12, 0
    %p74 = por %p72, %p73
    %p75 = scmp.ne.s32.totalorder %s67, %s69
    %p76 = scmp.eq.s32.totalorder %s17, 1
    %p77 = por %p75, %p76
    %p78 = scmp.ne.s32.totalorder %s69, %s70
    %p79 = scmp.eq.s32.totalorder %s17, 0
    %p80 = por %p78, %p79
    %p81 = scmp.ne.s32.totalorder %s69, %s70
    %p82 = scmp.eq.s32.totalorder %s18, 1
    %p83 = por %p81, %p82
    %p85 = scmp.ne.s32.totalorder %s70, %s84
    %p86 = scmp.eq.s32.totalorder %s18, 0
    %p87 = por %p85, %p86
    %s89 = sadd.s32 %s88, 1
    %p92 = scmp.eq.s32.totalorder %s12, 1
    %p93 = scmp.ne.s32.totalorder %s88, %s90
    %p94 = scmp.eq.s32.totalorder %s12, 0
    %p95 = por %p93, %p94
    %p96 = scmp.ne.s32.totalorder %s88, %s90
    %p97 = scmp.eq.s32.totalorder %s17, 1
    %p98 = por %p96, %p97
    %p99 = scmp.ne.s32.totalorder %s90, %s91
    %p100 = scmp.eq.s32.totalorder %s17, 0
    %p101 = por %p99, %p100
    %p102 = scmp.ne.s32.totalorder %s90, %s91
    %p103 = scmp.eq.s32.totalorder %s18, 1
    %p104 = por %p102, %p103
    %p106 = scmp.ne.s32.totalorder %s91, %s105
    %p107 = scmp.eq.s32.totalorder %s18, 0
    %p108 = por %p106, %p107
    %s109 = ssub.s32 %s12, %s19
    %p110 = scmp.eq.s32.totalorder %s109, 0
    %s112 = sadd.s32 %s111, 1
    %s113 = scalar_select %p110, %s111, %s112
    %p116 = pneg %p110
    %p117 = scmp.eq.s32.totalorder %s12, 1
    %p118 = por %p116, %p117
    %p119 = scmp.ne.s32.totalorder %s111, %s114
    %p120 = scmp.eq.s32.totalorder %s12, 0
    %p121 = por %p119, %p120
    %p122 = scmp.ne.s32.totalorder %s111, %s114
    %p123 = scmp.eq.s32.totalorder %s17, 1
    %p124 = por %p122, %p123
    %p125 = scmp.ne.s32.totalorder %s114, %s115
    %p126 = scmp.eq.s32.totalorder %s17, 0
    %p127 = por %p125, %p126
    %p128 = scmp.ne.s32.totalorder %s114, %s115
    %p129 = scmp.eq.s32.totalorder %s18, 1
    %p130 = por %p128, %p129
    %p132 = scmp.ne.s32.totalorder %s115, %s131
    %p133 = scmp.eq.s32.totalorder %s18, 0
    %p134 = por %p132, %p133
    %s135 = ssub.s32 %s12, %s19
    %p136 = scmp.eq.s32.totalorder %s135, 0
    %s138 = sadd.s32 %s137, 1
    %s139 = scalar_select %p136, %s137, %s138
    %p142 = pneg %p136
    %p143 = scmp.eq.s32.totalorder %s12, 1
    %p144 = por %p142, %p143
    %p145 = scmp.ne.s32.totalorder %s137, %s140
    %p146 = scmp.eq.s32.totalorder %s12, 0
    %p147 = por %p145, %p146
    %p148 = scmp.ne.s32.totalorder %s137, %s140
    %p149 = scmp.eq.s32.totalorder %s17, 1
    %p150 = por %p148, %p149
    %p151 = scmp.ne.s32.totalorder %s140, %s141
    %p152 = scmp.eq.s32.totalorder %s17, 0
    %p153 = por %p151, %p152
    %p154 = scmp.ne.s32.totalorder %s140, %s141
    %p155 = scmp.eq.s32.totalorder %s18, 1
    %p156 = por %p154, %p155
    %p158 = scmp.ne.s32.totalorder %s141, %s157
    %p159 = scmp.eq.s32.totalorder %s18, 0
    %p160 = por %p158, %p159
    %p161 = scmp.le.s32.totalorder 1, %s12
    %p162 = scmp.lt.s32.totalorder %s12, 3
    %p163 = pnand %p161, %p162
    %p164 = pneg %p163
    // Predicated region
    $region9: #{encoder_block.4} parent=5 // pred_check
      _
    $region10: #{encoder_block.4} parent=5 // pred_check_branch
      %166 = sbr.rel (%p163) target = $region12
    $region11: #{encoder_block.4} parent=5 // pred_region
      %s167 = ssub.s32 %s12, 1
      // Predicated region
      $region13: #{encoder_block.4} parent=11 // pred_check
        %p168 = pneg %p59
      $region14: #{encoder_block.4} parent=11 // pred_check_branch
        %170 = sbr.rel (%p168) target = $region16
      $region15: #{encoder_block.4} parent=11 // pred_region
        _
      $region16: #{encoder_block.4} parent=11 // pred_fallthru
        _
      // Predicated region
      $region17: #{encoder_block.4} parent=11 // pred_check
        %p171 = pneg %p80
      $region18: #{encoder_block.4} parent=11 // pred_check_branch
        %173 = sbr.rel (%p171) target = $region20
      $region19: #{encoder_block.4} parent=11 // pred_region
        _
      $region20: #{encoder_block.4} parent=11 // pred_fallthru
        _
      // Predicated region
      $region21: #{encoder_block.4} parent=11 // pred_check
        %p174 = pneg %p101
      $region22: #{encoder_block.4} parent=11 // pred_check_branch
        %176 = sbr.rel (%p174) target = $region24
      $region23: #{encoder_block.4} parent=11 // pred_region
        _
      $region24: #{encoder_block.4} parent=11 // pred_fallthru
        _
    $region12: #{encoder_block.4} parent=5 // pred_fallthru
      _
    %p177 = scmp.lt.s32.totalorder %s12, 2
    // Predicated region
    $region25: #{encoder_block.4} parent=5 // pred_check
      %p178 = pneg %p177
    $region26: #{encoder_block.4} parent=5 // pred_check_branch
      %180 = sbr.rel (%p178) target = $region28
    $region27: #{encoder_block.4} parent=5 // pred_region
      // Predicated region
      $region29: #{encoder_block.4} parent=27 // pred_check
        %p181 = pneg %p32
      $region30: #{encoder_block.4} parent=27 // pred_check_branch
        %183 = sbr.rel (%p181) target = $region32
      $region31: #{encoder_block.4} parent=27 // pred_region
        %p184 = scmp.lt.s32.totalorder %s12, 1
        %s185 = scalar_select %p184, %s12, 1
        %s186 = smul.addr %s185, 32
        %s187 = smul.addr %s186, 4
        %s188 = scalar_lea.vmem %s0, %s187
      $region32: #{encoder_block.4} parent=27 // pred_fallthru
        _
    $region28: #{encoder_block.4} parent=5 // pred_fallthru
      _
    %p189 = scmp.le.s32.totalorder 1, %s12
    %p190 = scmp.lt.s32.totalorder %s12, 3
    %p191 = pnand %p189, %p190
    %p192 = pneg %p191
    // Predicated region
    $region33: #{encoder_block.4} parent=5 // pred_check
      _
    $region34: #{encoder_block.4} parent=5 // pred_check_branch
      %194 = sbr.rel (%p191) target = $region36
    $region35: #{encoder_block.4} parent=5 // pred_region
      %s195 = ssub.s32 %s12, 1
      %p196 = scmp.lt.s32.totalorder %s17, 1
      %s197 = scalar_select %p196, %s17, 1
      %s198 = smul.addr %s197, 32
      %s199 = smul.addr %s198, 4
      %s200 = scalar_lea.vmem %s0, %s199
      %p201 = pneg %p38
      %p202 = pneg %p35
      %p203 = pneg %p59
      %p204 = pneg %p56
      %p205 = pneg %p80
      %p206 = pneg %p77
      %p207 = pneg %p101
      %p208 = pneg %p98
      %p209 = pneg %p127
      %p210 = pneg %p124
      %p211 = scmp.lt.s32.totalorder %s17, 1
      %s212 = scalar_select %p211, %s17, 1
      %s213 = smul.addr %s212, 32
      %s214 = smul.addr %s213, 4
      %s215 = scalar_lea.vmem %s4, %s214
      %p216 = pneg %p153
      %p217 = pneg %p150
      %p218 = scmp.lt.s32.totalorder %s17, 1
      %s219 = scalar_select %p218, %s17, 1
      %s220 = smul.addr %s219, 2
      %s221 = scalar_lea.vmem %s5, %s220
      %p222 = scmp.lt.s32.totalorder %s17, 1
      %s223 = scalar_select %p222, %s17, 1
      %s224 = smul.addr %s223, 32
      %s225 = smul.addr %s224, 4
      %s226 = scalar_lea.vmem %s0, %s225
      %p227 = scmp.lt.s32.totalorder %s17, 1
      %s228 = scalar_select %p227, %s17, 1
      %s229 = smul.addr %s228, 32
      %s230 = smul.addr %s229, 4
      %s231 = scalar_lea.vmem %s4, %s230
      %p232 = scmp.lt.s32.totalorder %s17, 1
      %s233 = scalar_select %p232, %s17, 1
      %s234 = smul.addr %s233, 2
      %s235 = scalar_lea.vmem %s5, %s234
      %v237 = vld [vmem:[%s226] sm:$0xf]
      %v238 = vld [vmem:[%s226 + $0x4] sm:$0xf]
      %v239 = vld [vmem:[%s226 + $0x8] sm:$0xf]
      %v240 = vld [vmem:[%s226 + $0xc] sm:$0xf]
      %v241 = vld [vmem:[%s226 + $0x10] sm:$0xf]
      %v242 = vld [vmem:[%s226 + $0x14] sm:$0xf]
      %v243 = vld [vmem:[%s226 + $0x18] sm:$0xf]
      %v244 = vld [vmem:[%s226 + $0x1c] sm:$0xf]
      %v245 = vld [vmem:[%s226 + $0x20] sm:$0xf]
      %v246 = vld [vmem:[%s226 + $0x24] sm:$0xf]
      %v247 = vld [vmem:[%s226 + $0x28] sm:$0xf]
      %v248 = vld [vmem:[%s226 + $0x2c] sm:$0xf]
      %v249 = vld [vmem:[%s226 + $0x30] sm:$0xf]
      %v250 = vld [vmem:[%s226 + $0x34] sm:$0xf]
      %v251 = vld [vmem:[%s226 + $0x38] sm:$0xf]
      %v252 = vld [vmem:[%s226 + $0x3c] sm:$0xf]
      %v253 = vld [vmem:[%s226 + $0x40] sm:$0xf]
      %v254 = vld [vmem:[%s226 + $0x44] sm:$0xf]
      %v255 = vld [vmem:[%s226 + $0x48] sm:$0xf]
      %v256 = vld [vmem:[%s226 + $0x4c] sm:$0xf]
      %v257 = vld [vmem:[%s226 + $0x50] sm:$0xf]
      %v258 = vld [vmem:[%s226 + $0x54] sm:$0xf]
      %v259 = vld [vmem:[%s226 + $0x58] sm:$0xf]
      %v260 = vld [vmem:[%s226 + $0x5c] sm:$0xf]
      %v261 = vld [vmem:[%s226 + $0x60] sm:$0xf]
      %v262 = vld [vmem:[%s226 + $0x64] sm:$0xf]
      %v263 = vld [vmem:[%s226 + $0x68] sm:$0xf]
      %v264 = vld [vmem:[%s226 + $0x6c] sm:$0xf]
      %v265 = vld [vmem:[%s226 + $0x70] sm:$0xf]
      %v266 = vld [vmem:[%s226 + $0x74] sm:$0xf]
      %v267 = vld [vmem:[%s226 + $0x78] sm:$0xf]
      %v268 = vld [vmem:[%s226 + $0x7c] sm:$0xf]
      %v269 = vunpack.c.l.bf16 %v237
      %v270 = vunpack.c.l.bf16 %v238
      %v271 = vunpack.c.l.bf16 %v239
      %v272 = vunpack.c.l.bf16 %v240
      %v273 = vunpack.c.l.bf16 %v241
      %v274 = vunpack.c.l.bf16 %v242
      %v275 = vunpack.c.l.bf16 %v243
      %v276 = vunpack.c.l.bf16 %v244
      %v277 = vunpack.c.l.bf16 %v245
      %v278 = vunpack.c.l.bf16 %v246
      %v279 = vunpack.c.l.bf16 %v247
      %v280 = vunpack.c.l.bf16 %v248
      %v281 = vunpack.c.l.bf16 %v249
      %v282 = vunpack.c.l.bf16 %v250
      %v283 = vunpack.c.l.bf16 %v251
      %v284 = vunpack.c.l.bf16 %v252
      %v285 = vunpack.c.l.bf16 %v253
      %v286 = vunpack.c.l.bf16 %v254
      %v287 = vunpack.c.l.bf16 %v255
      %v288 = vunpack.c.l.bf16 %v256
      %v289 = vunpack.c.l.bf16 %v257
      %v290 = vunpack.c.l.bf16 %v258
      %v291 = vunpack.c.l.bf16 %v259
      %v292 = vunpack.c.l.bf16 %v260
      %v293 = vunpack.c.l.bf16 %v261
      %v294 = vunpack.c.l.bf16 %v262
      %v295 = vunpack.c.l.bf16 %v263
      %v296 = vunpack.c.l.bf16 %v264
      %v297 = vunpack.c.l.bf16 %v265
      %v298 = vunpack.c.l.bf16 %v266
      %v299 = vunpack.c.l.bf16 %v267
      %v300 = vunpack.c.l.bf16 %v268
      %v301 = vld [vmem:[%s1] sm:$0x1]
      %v303 = vperm.slane %v301, 0
      %v305 = vmul.f32 %v269, %v303
      %v306 = vmul.f32 %v270, %v303
      %v307 = vmul.f32 %v271, %v303
      %v308 = vmul.f32 %v272, %v303
      %v309 = vmul.f32 %v273, %v303
      %v310 = vmul.f32 %v274, %v303
      %v311 = vmul.f32 %v275, %v303
      %v312 = vmul.f32 %v276, %v303
      %v313 = vmul.f32 %v277, %v303
      %v314 = vmul.f32 %v278, %v303
      %v315 = vmul.f32 %v279, %v303
      %v316 = vmul.f32 %v280, %v303
      %v317 = vmul.f32 %v281, %v303
      %v318 = vmul.f32 %v282, %v303
      %v319 = vmul.f32 %v283, %v303
      %v320 = vmul.f32 %v284, %v303
      %v321 = vmul.f32 %v285, %v303
      %v322 = vmul.f32 %v286, %v303
      %v323 = vmul.f32 %v287, %v303
      %v324 = vmul.f32 %v288, %v303
      %v325 = vmul.f32 %v289, %v303
      %v326 = vmul.f32 %v290, %v303
      %v327 = vmul.f32 %v291, %v303
      %v328 = vmul.f32 %v292, %v303
      %v329 = vmul.f32 %v293, %v303
      %v330 = vmul.f32 %v294, %v303
      %v331 = vmul.f32 %v295, %v303
      %v332 = vmul.f32 %v296, %v303
      %v333 = vmul.f32 %v297, %v303
      %v334 = vmul.f32 %v298, %v303
      %v335 = vmul.f32 %v299, %v303
      %v336 = vmul.f32 %v300, %v303
      %v337 = vld [vmem:[%s2] sm:$0x1]
      %v339 = vperm.slane %v337, 0
      %v341 = vadd.f32 %v305, %v339
      %v342 = vadd.f32 %v306, %v339
      %v343 = vadd.f32 %v307, %v339
      %v344 = vadd.f32 %v308, %v339
      %v345 = vadd.f32 %v309, %v339
      %v346 = vadd.f32 %v310, %v339
      %v347 = vadd.f32 %v311, %v339
      %v348 = vadd.f32 %v312, %v339
      %v349 = vadd.f32 %v313, %v339
      %v350 = vadd.f32 %v314, %v339
      %v351 = vadd.f32 %v315, %v339
      %v352 = vadd.f32 %v316, %v339
      %v353 = vadd.f32 %v317, %v339
      %v354 = vadd.f32 %v318, %v339
      %v355 = vadd.f32 %v319, %v339
      %v356 = vadd.f32 %v320, %v339
      %v357 = vadd.f32 %v321, %v339
      %v358 = vadd.f32 %v322, %v339
      %v359 = vadd.f32 %v323, %v339
      %v360 = vadd.f32 %v324, %v339
      %v361 = vadd.f32 %v325, %v339
      %v362 = vadd.f32 %v326, %v339
      %v363 = vadd.f32 %v327, %v339
      %v364 = vadd.f32 %v328, %v339
      %v365 = vadd.f32 %v329, %v339
      %v366 = vadd.f32 %v330, %v339
      %v367 = vadd.f32 %v331, %v339
      %v368 = vadd.f32 %v332, %v339
      %v369 = vadd.f32 %v333, %v339
      %v370 = vadd.f32 %v334, %v339
      %v371 = vadd.f32 %v335, %v339
      %v372 = vadd.f32 %v336, %v339
      %v373 = vmax.f32 %v341, 0.0
      %v374 = vmax.f32 %v342, 0.0
      %v375 = vmax.f32 %v343, 0.0
      %v376 = vmax.f32 %v344, 0.0
      %v377 = vmax.f32 %v345, 0.0
      %v378 = vmax.f32 %v346, 0.0
      %v379 = vmax.f32 %v347, 0.0
      %v380 = vmax.f32 %v348, 0.0
      %v381 = vmax.f32 %v349, 0.0
      %v382 = vmax.f32 %v350, 0.0
      %v383 = vmax.f32 %v351, 0.0
      %v384 = vmax.f32 %v352, 0.0
      %v385 = vmax.f32 %v353, 0.0
      %v386 = vmax.f32 %v354, 0.0
      %v387 = vmax.f32 %v355, 0.0
      %v388 = vmax.f32 %v356, 0.0
      %v389 = vmax.f32 %v357, 0.0
      %v390 = vmax.f32 %v358, 0.0
      %v391 = vmax.f32 %v359, 0.0
      %v392 = vmax.f32 %v360, 0.0
      %v393 = vmax.f32 %v361, 0.0
      %v394 = vmax.f32 %v362, 0.0
      %v395 = vmax.f32 %v363, 0.0
      %v396 = vmax.f32 %v364, 0.0
      %v397 = vmax.f32 %v365, 0.0
      %v398 = vmax.f32 %v366, 0.0
      %v399 = vmax.f32 %v367, 0.0
      %v400 = vmax.f32 %v368, 0.0
      %v401 = vmax.f32 %v369, 0.0
      %v402 = vmax.f32 %v370, 0.0
      %v403 = vmax.f32 %v371, 0.0
      %v404 = vmax.f32 %v372, 0.0
      %405 = vst [vmem:[#allocation2] sm:$0xf] 0
      %406 = vst [vmem:[#allocation2 + $0x4] sm:$0xf] 0
      %407 = vst [vmem:[#allocation2 + $0x8] sm:$0x1] 0
      %408 = vst [vmem:[#allocation2 + $0xc] sm:$0xf] 0
      %409 = vst [vmem:[#allocation2 + $0x10] sm:$0xf] 0
      %410 = vst [vmem:[#allocation2 + $0x14] sm:$0x1] 0
      %411 = vst [vmem:[#allocation2 + $0x18] sm:$0xf] 0
      %412 = vst [vmem:[#allocation2 + $0x1c] sm:$0xf] 0
      %413 = vst [vmem:[#allocation2 + $0x20] sm:$0x1] 0
      %414 = vst [vmem:[#allocation2 + $0x24] sm:$0xf] 0
      %415 = vst [vmem:[#allocation2 + $0x28] sm:$0xf] 0
      %416 = vst [vmem:[#allocation2 + $0x2c] sm:$0x1] 0
      %417 = vst [vmem:[#allocation2 + $0x30] sm:$0xf] 0
      %418 = vst [vmem:[#allocation2 + $0x34] sm:$0xf] 0
      %419 = vst [vmem:[#allocation2 + $0x38] sm:$0x1] 0
      %420 = vst [vmem:[#allocation2 + $0x3c] sm:$0xf] 0
      %421 = vst [vmem:[#allocation2 + $0x40] sm:$0xf] 0
      %422 = vst [vmem:[#allocation2 + $0x44] sm:$0x1] 0
      %423 = vst [vmem:[#allocation2 + $0x48] sm:$0xf] 0
      %424 = vst [vmem:[#allocation2 + $0x4c] sm:$0xf] 0
      %425 = vst [vmem:[#allocation2 + $0x50] sm:$0x1] 0
      %426 = vst [vmem:[#allocation2 + $0x54] sm:$0xf] 0
      %427 = vst [vmem:[#allocation2 + $0x58] sm:$0xf] 0
      %428 = vst [vmem:[#allocation2 + $0x5c] sm:$0x1] 0
      %429 = vst [vmem:[#allocation2 + $0x60] sm:$0xf] 0
      %430 = vst [vmem:[#allocation2 + $0x64] sm:$0xf] 0
      %431 = vst [vmem:[#allocation2 + $0x68] sm:$0x1] 0
      %432 = vst [vmem:[#allocation2 + $0x6c] sm:$0xf] 0
      %433 = vst [vmem:[#allocation2 + $0x70] sm:$0xf] 0
      %434 = vst [vmem:[#allocation2 + $0x74] sm:$0x1] 0
      %435 = vst [vmem:[#allocation2 + $0x78] sm:$0xf] 0
      %436 = vst [vmem:[#allocation2 + $0x7c] sm:$0xf] 0
      %437 = vst [vmem:[#allocation2 + $0x80] sm:$0x1] 0
      %438 = vst [vmem:[#allocation2 + $0x84] sm:$0xf] 0
      %439 = vst [vmem:[#allocation2 + $0x88] sm:$0xf] 0
      %440 = vst [vmem:[#allocation2 + $0x8c] sm:$0x1] 0
      %441 = vst [vmem:[#allocation2 + $0x90] sm:$0xf] 0
      %442 = vst [vmem:[#allocation2 + $0x94] sm:$0xf] 0
      %443 = vst [vmem:[#allocation2 + $0x98] sm:$0x1] 0
      %444 = vst [vmem:[#allocation2 + $0x9c] sm:$0xf] 0
      %445 = vst [vmem:[#allocation2 + $0xa0] sm:$0xf] 0
      %446 = vst [vmem:[#allocation2 + $0xa4] sm:$0x1] 0
      %447 = vst [vmem:[#allocation2 + $0xa8] sm:$0xf] 0
      %448 = vst [vmem:[#allocation2 + $0xac] sm:$0xf] 0
      %449 = vst [vmem:[#allocation2 + $0xb0] sm:$0x1] 0
      %450 = vst [vmem:[#allocation2 + $0xb4] sm:$0xf] 0
      %451 = vst [vmem:[#allocation2 + $0xb8] sm:$0xf] 0
      %452 = vst [vmem:[#allocation2 + $0xbc] sm:$0x1] 0
      %453 = vst [vmem:[#allocation2 + $0xc0] sm:$0xf] 0
      %454 = vst [vmem:[#allocation2 + $0xc4] sm:$0xf] 0
      %455 = vst [vmem:[#allocation2 + $0xc8] sm:$0x1] 0
      %456 = vst [vmem:[#allocation2 + $0xcc] sm:$0xf] 0
      %457 = vst [vmem:[#allocation2 + $0xd0] sm:$0xf] 0
      %458 = vst [vmem:[#allocation2 + $0xd4] sm:$0x1] 0
      %v459 = vpack.c.bf16 %v373, %v373
      %v460 = vpack.c.bf16 %v374, %v374
      %v461 = vpack.c.bf16 %v375, %v375
      %v462 = vpack.c.bf16 %v376, %v376
      %v463 = vpack.c.bf16 %v377, %v377
      %v464 = vpack.c.bf16 %v378, %v378
      %v465 = vpack.c.bf16 %v379, %v379
      %v466 = vpack.c.bf16 %v380, %v380
      %v467 = vpack.c.bf16 %v381, %v381
      %v468 = vpack.c.bf16 %v382, %v382
      %v469 = vpack.c.bf16 %v383, %v383
      %v470 = vpack.c.bf16 %v384, %v384
      %v471 = vpack.c.bf16 %v385, %v385
      %v472 = vpack.c.bf16 %v386, %v386
      %v473 = vpack.c.bf16 %v387, %v387
      %v474 = vpack.c.bf16 %v388, %v388
      %v475 = vpack.c.bf16 %v389, %v389
      %v476 = vpack.c.bf16 %v390, %v390
      %v477 = vpack.c.bf16 %v391, %v391
      %v478 = vpack.c.bf16 %v392, %v392
      %v479 = vpack.c.bf16 %v393, %v393
      %v480 = vpack.c.bf16 %v394, %v394
      %v481 = vpack.c.bf16 %v395, %v395
      %v482 = vpack.c.bf16 %v396, %v396
      %v483 = vpack.c.bf16 %v397, %v397
      %v484 = vpack.c.bf16 %v398, %v398
      %v485 = vpack.c.bf16 %v399, %v399
      %v486 = vpack.c.bf16 %v400, %v400
      %v487 = vpack.c.bf16 %v401, %v401
      %v488 = vpack.c.bf16 %v402, %v402
      %v489 = vpack.c.bf16 %v403, %v403
      %v490 = vpack.c.bf16 %v404, %v404
      %vm491 = vsmask.f32 256
      %vm492 = vsmask.f32 4368
      %vm493 = vmor %vm491, %vm492
      %v495 = vshrl.u32 %v459, 16
      %v497 = vrot.slane %v495, 7
      %v498 = vshll.u32 %v459, 16
      %v500 = vor.u32 %v497, %v498
      %v501 = vrot.slane %v497, 4
      %v503 = vshrl.u32 %v460, 16
      %v505 = vrot.slane %v503, 7
      %v506 = vshll.u32 %v460, 16
      %v508 = vor.u32 %v505, %v506
      %v509 = vsel %vm493, %v501, %v508
      %v510 = vrot.slane %v505, 4
      %v512 = vshrl.u32 %v461, 16
      %v514 = vrot.slane %v512, 7
      %v515 = vshll.u32 %v461, 16
      %v517 = vor.u32 %v514, %v515
      %v518 = vrot.slane %v514, 4
      %v520 = vshrl.u32 %v462, 16
      %v522 = vrot.slane %v520, 7
      %v523 = vshll.u32 %v462, 16
      %v525 = vor.u32 %v522, %v523
      %v526 = vsel %vm493, %v518, %v525
      %v527 = vrot.slane %v522, 4
      %v529 = vshrl.u32 %v463, 16
      %v531 = vrot.slane %v529, 7
      %v532 = vshll.u32 %v463, 16
      %v534 = vor.u32 %v531, %v532
      %v535 = vrot.slane %v531, 4
      %v537 = vshrl.u32 %v464, 16
      %v539 = vrot.slane %v537, 7
      %v540 = vshll.u32 %v464, 16
      %v542 = vor.u32 %v539, %v540
      %v543 = vsel %vm493, %v535, %v542
      %v544 = vrot.slane %v539, 4
      %v546 = vshrl.u32 %v465, 16
      %v548 = vrot.slane %v546, 7
      %v549 = vshll.u32 %v465, 16
      %v551 = vor.u32 %v548, %v549
      %v552 = vrot.slane %v548, 4
      %v554 = vshrl.u32 %v466, 16
      %v556 = vrot.slane %v554, 7
      %v557 = vshll.u32 %v466, 16
      %v559 = vor.u32 %v556, %v557
      %v560 = vsel %vm493, %v552, %v559
      %v561 = vrot.slane %v556, 4
      %v563 = vshrl.u32 %v467, 16
      %v565 = vrot.slane %v563, 7
      %v566 = vshll.u32 %v467, 16
      %v568 = vor.u32 %v565, %v566
      %v569 = vrot.slane %v565, 4
      %v571 = vshrl.u32 %v468, 16
      %v573 = vrot.slane %v571, 7
      %v574 = vshll.u32 %v468, 16
      %v576 = vor.u32 %v573, %v574
      %v577 = vsel %vm493, %v569, %v576
      %v578 = vrot.slane %v573, 4
      %v580 = vshrl.u32 %v469, 16
      %v582 = vrot.slane %v580, 7
      %v583 = vshll.u32 %v469, 16
      %v585 = vor.u32 %v582, %v583
      %v586 = vrot.slane %v582, 4
      %v588 = vshrl.u32 %v470, 16
      %v590 = vrot.slane %v588, 7
      %v591 = vshll.u32 %v470, 16
      %v593 = vor.u32 %v590, %v591
      %v594 = vsel %vm493, %v586, %v593
      %v595 = vrot.slane %v590, 4
      %v597 = vshrl.u32 %v471, 16
      %v599 = vrot.slane %v597, 7
      %v600 = vshll.u32 %v471, 16
      %v602 = vor.u32 %v599, %v600
      %v603 = vrot.slane %v599, 4
      %v605 = vshrl.u32 %v472, 16
      %v607 = vrot.slane %v605, 7
      %v608 = vshll.u32 %v472, 16
      %v610 = vor.u32 %v607, %v608
      %v611 = vsel %vm493, %v603, %v610
      %v612 = vrot.slane %v607, 4
      %v614 = vshrl.u32 %v473, 16
      %v616 = vrot.slane %v614, 7
      %v617 = vshll.u32 %v473, 16
      %v619 = vor.u32 %v616, %v617
      %v620 = vrot.slane %v616, 4
      %v622 = vshrl.u32 %v474, 16
      %v624 = vrot.slane %v622, 7
      %v625 = vshll.u32 %v474, 16
      %v627 = vor.u32 %v624, %v625
      %v628 = vsel %vm493, %v620, %v627
      %v629 = vrot.slane %v624, 4
      %v631 = vshrl.u32 %v475, 16
      %v633 = vrot.slane %v631, 7
      %v634 = vshll.u32 %v475, 16
      %v636 = vor.u32 %v633, %v634
      %v637 = vrot.slane %v633, 4
      %v639 = vshrl.u32 %v476, 16
      %v641 = vrot.slane %v639, 7
      %v642 = vshll.u32 %v476, 16
      %v644 = vor.u32 %v641, %v642
      %v645 = vsel %vm493, %v637, %v644
      %v646 = vrot.slane %v641, 4
      %v648 = vshrl.u32 %v477, 16
      %v650 = vrot.slane %v648, 7
      %v651 = vshll.u32 %v477, 16
      %v653 = vor.u32 %v650, %v651
      %v654 = vrot.slane %v650, 4
      %v656 = vshrl.u32 %v478, 16
      %v658 = vrot.slane %v656, 7
      %v659 = vshll.u32 %v478, 16
      %v661 = vor.u32 %v658, %v659
      %v662 = vsel %vm493, %v654, %v661
      %v663 = vrot.slane %v658, 4
      %v665 = vshrl.u32 %v479, 16
      %v667 = vrot.slane %v665, 7
      %v668 = vshll.u32 %v479, 16
      %v670 = vor.u32 %v667, %v668
      %v671 = vrot.slane %v667, 4
      %v673 = vshrl.u32 %v480, 16
      %v675 = vrot.slane %v673, 7
      %v676 = vshll.u32 %v480, 16
      %v678 = vor.u32 %v675, %v676
      %v679 = vsel %vm493, %v671, %v678
      %v680 = vrot.slane %v675, 4
      %v682 = vshrl.u32 %v481, 16
      %v684 = vrot.slane %v682, 7
      %v685 = vshll.u32 %v481, 16
      %v687 = vor.u32 %v684, %v685
      %v688 = vrot.slane %v684, 4
      %v690 = vshrl.u32 %v482, 16
      %v692 = vrot.slane %v690, 7
      %v693 = vshll.u32 %v482, 16
      %v695 = vor.u32 %v692, %v693
      %v696 = vsel %vm493, %v688, %v695
      %v697 = vrot.slane %v692, 4
      %v699 = vshrl.u32 %v483, 16
      %v701 = vrot.slane %v699, 7
      %v702 = vshll.u32 %v483, 16
      %v704 = vor.u32 %v701, %v702
      %v705 = vrot.slane %v701, 4
      %v707 = vshrl.u32 %v484, 16
      %v709 = vrot.slane %v707, 7
      %v710 = vshll.u32 %v484, 16
      %v712 = vor.u32 %v709, %v710
      %v713 = vsel %vm493, %v705, %v712
      %v714 = vrot.slane %v709, 4
      %v716 = vshrl.u32 %v485, 16
      %v718 = vrot.slane %v716, 7
      %v719 = vshll.u32 %v485, 16
      %v721 = vor.u32 %v718, %v719
      %v722 = vrot.slane %v718, 4
      %v724 = vshrl.u32 %v486, 16
      %v726 = vrot.slane %v724, 7
      %v727 = vshll.u32 %v486, 16
      %v729 = vor.u32 %v726, %v727
      %v730 = vsel %vm493, %v722, %v729
      %v731 = vrot.slane %v726, 4
      %v733 = vshrl.u32 %v487, 16
      %v735 = vrot.slane %v733, 7
      %v736 = vshll.u32 %v487, 16
      %v738 = vor.u32 %v735, %v736
      %v739 = vrot.slane %v735, 4
      %v741 = vshrl.u32 %v488, 16
      %v743 = vrot.slane %v741, 7
      %v744 = vshll.u32 %v488, 16
      %v746 = vor.u32 %v743, %v744
      %v747 = vsel %vm493, %v739, %v746
      %v748 = vrot.slane %v743, 4
      %v750 = vshrl.u32 %v489, 16
      %v752 = vrot.slane %v750, 7
      %v753 = vshll.u32 %v489, 16
      %v755 = vor.u32 %v752, %v753
      %v756 = vrot.slane %v752, 4
      %v758 = vshrl.u32 %v490, 16
      %v760 = vrot.slane %v758, 7
      %v761 = vshll.u32 %v490, 16
      %v763 = vor.u32 %v760, %v761
      %v764 = vsel %vm493, %v756, %v763
      %v765 = vrot.slane %v760, 4
      %s814 = scalar_lea.vmem [#allocation2], 12
      %vm815 = vcmask 1043456
      %vm816 = vsmask.f32 7938
      %vm817 = vmand %vm815, %vm816
      %v818 = vld [vmem:[%s814] sm:$0xf]
      %v819 = vsel %vm817, %v500, %v818
      %820 = vst [vmem:[%s814] sm:$0xf] %v819
      %821 = vst [vmem:[%s814 + $0x4] sm:$0xf] %v509
      %vm822 = vcmask 1040384
      %vm823 = vmand %vm822, %vm491
      %v824 = vld [vmem:[%s814 + $0x8] sm:$0x1]
      %v825 = vsel %vm823, %v510, %v824
      %826 = vst [vmem:[%s814 + $0x8] sm:$0x1] %v825
      %v827 = vld [vmem:[%s814 + $0xc] sm:$0xf]
      %v828 = vsel %vm817, %v517, %v827
      %829 = vst [vmem:[%s814 + $0xc] sm:$0xf] %v828
      %830 = vst [vmem:[%s814 + $0x10] sm:$0xf] %v526
      %v831 = vld [vmem:[%s814 + $0x14] sm:$0x1]
      %v832 = vsel %vm823, %v527, %v831
      %833 = vst [vmem:[%s814 + $0x14] sm:$0x1] %v832
      %v834 = vld [vmem:[%s814 + $0x18] sm:$0xf]
      %v835 = vsel %vm817, %v534, %v834
      %836 = vst [vmem:[%s814 + $0x18] sm:$0xf] %v835
      %837 = vst [vmem:[%s814 + $0x1c] sm:$0xf] %v543
      %v838 = vld [vmem:[%s814 + $0x20] sm:$0x1]
      %v839 = vsel %vm823, %v544, %v838
      %840 = vst [vmem:[%s814 + $0x20] sm:$0x1] %v839
      %v841 = vld [vmem:[%s814 + $0x24] sm:$0xf]
      %v842 = vsel %vm817, %v551, %v841
      %843 = vst [vmem:[%s814 + $0x24] sm:$0xf] %v842
      %844 = vst [vmem:[%s814 + $0x28] sm:$0xf] %v560
      %v845 = vld [vmem:[%s814 + $0x2c] sm:$0x1]
      %v846 = vsel %vm823, %v561, %v845
      %847 = vst [vmem:[%s814 + $0x2c] sm:$0x1] %v846
      %v848 = vld [vmem:[%s814 + $0x30] sm:$0xf]
      %v849 = vsel %vm817, %v568, %v848
      %850 = vst [vmem:[%s814 + $0x30] sm:$0xf] %v849
      %851 = vst [vmem:[%s814 + $0x34] sm:$0xf] %v577
      %v852 = vld [vmem:[%s814 + $0x38] sm:$0x1]
      %v853 = vsel %vm823, %v578, %v852
      %854 = vst [vmem:[%s814 + $0x38] sm:$0x1] %v853
      %v855 = vld [vmem:[%s814 + $0x3c] sm:$0xf]
      %v856 = vsel %vm817, %v585, %v855
      %857 = vst [vmem:[%s814 + $0x3c] sm:$0xf] %v856
      %858 = vst [vmem:[%s814 + $0x40] sm:$0xf] %v594
      %v859 = vld [vmem:[%s814 + $0x44] sm:$0x1]
      %v860 = vsel %vm823, %v595, %v859
      %861 = vst [vmem:[%s814 + $0x44] sm:$0x1] %v860
      %v862 = vld [vmem:[%s814 + $0x48] sm:$0xf]
      %v863 = vsel %vm817, %v602, %v862
      %864 = vst [vmem:[%s814 + $0x48] sm:$0xf] %v863
      %865 = vst [vmem:[%s814 + $0x4c] sm:$0xf] %v611
      %v866 = vld [vmem:[%s814 + $0x50] sm:$0x1]
      %v867 = vsel %vm823, %v612, %v866
      %868 = vst [vmem:[%s814 + $0x50] sm:$0x1] %v867
      %v869 = vld [vmem:[%s814 + $0x54] sm:$0xf]
      %v870 = vsel %vm817, %v619, %v869
      %871 = vst [vmem:[%s814 + $0x54] sm:$0xf] %v870
      %872 = vst [vmem:[%s814 + $0x58] sm:$0xf] %v628
      %v873 = vld [vmem:[%s814 + $0x5c] sm:$0x1]
      %v874 = vsel %vm823, %v629, %v873
      %875 = vst [vmem:[%s814 + $0x5c] sm:$0x1] %v874
      %v876 = vld [vmem:[%s814 + $0x60] sm:$0xf]
      %v877 = vsel %vm817, %v636, %v876
      %878 = vst [vmem:[%s814 + $0x60] sm:$0xf] %v877
      %879 = vst [vmem:[%s814 + $0x64] sm:$0xf] %v645
      %v880 = vld [vmem:[%s814 + $0x68] sm:$0x1]
      %v881 = vsel %vm823, %v646, %v880
      %882 = vst [vmem:[%s814 + $0x68] sm:$0x1] %v881
      %v883 = vld [vmem:[%s814 + $0x6c] sm:$0xf]
      %v884 = vsel %vm817, %v653, %v883
      %885 = vst [vmem:[%s814 + $0x6c] sm:$0xf] %v884
      %886 = vst [vmem:[%s814 + $0x70] sm:$0xf] %v662
      %v887 = vld [vmem:[%s814 + $0x74] sm:$0x1]
      %v888 = vsel %vm823, %v663, %v887
      %889 = vst [vmem:[%s814 + $0x74] sm:$0x1] %v888
      %v890 = vld [vmem:[%s814 + $0x78] sm:$0xf]
      %v891 = vsel %vm817, %v670, %v890
      %892 = vst [vmem:[%s814 + $0x78] sm:$0xf] %v891
      %893 = vst [vmem:[%s814 + $0x7c] sm:$0xf] %v679
      %v894 = vld [vmem:[%s814 + $0x80] sm:$0x1]
      %v895 = vsel %vm823, %v680, %v894
      %896 = vst [vmem:[%s814 + $0x80] sm:$0x1] %v895
      %v897 = vld [vmem:[%s814 + $0x84] sm:$0xf]
      %v898 = vsel %vm817, %v687, %v897
      %899 = vst [vmem:[%s814 + $0x84] sm:$0xf] %v898
      %900 = vst [vmem:[%s814 + $0x88] sm:$0xf] %v696
      %v901 = vld [vmem:[%s814 + $0x8c] sm:$0x1]
      %v902 = vsel %vm823, %v697, %v901
      %903 = vst [vmem:[%s814 + $0x8c] sm:$0x1] %v902
      %v904 = vld [vmem:[%s814 + $0x90] sm:$0xf]
      %v905 = vsel %vm817, %v704, %v904
      %906 = vst [vmem:[%s814 + $0x90] sm:$0xf] %v905
      %907 = vst [vmem:[%s814 + $0x94] sm:$0xf] %v713
      %v908 = vld [vmem:[%s814 + $0x98] sm:$0x1]
      %v909 = vsel %vm823, %v714, %v908
      %910 = vst [vmem:[%s814 + $0x98] sm:$0x1] %v909
      %v911 = vld [vmem:[%s814 + $0x9c] sm:$0xf]
      %v912 = vsel %vm817, %v721, %v911
      %913 = vst [vmem:[%s814 + $0x9c] sm:$0xf] %v912
      %914 = vst [vmem:[%s814 + $0xa0] sm:$0xf] %v730
      %v915 = vld [vmem:[%s814 + $0xa4] sm:$0x1]
      %v916 = vsel %vm823, %v731, %v915
      %917 = vst [vmem:[%s814 + $0xa4] sm:$0x1] %v916
      %v918 = vld [vmem:[%s814 + $0xa8] sm:$0xf]
      %v919 = vsel %vm817, %v738, %v918
      %920 = vst [vmem:[%s814 + $0xa8] sm:$0xf] %v919
      %921 = vst [vmem:[%s814 + $0xac] sm:$0xf] %v747
      %v922 = vld [vmem:[%s814 + $0xb0] sm:$0x1]
      %v923 = vsel %vm823, %v748, %v922
      %924 = vst [vmem:[%s814 + $0xb0] sm:$0x1] %v923
      %v925 = vld [vmem:[%s814 + $0xb4] sm:$0xf]
      %v926 = vsel %vm817, %v755, %v925
      %927 = vst [vmem:[%s814 + $0xb4] sm:$0xf] %v926
      %928 = vst [vmem:[%s814 + $0xb8] sm:$0xf] %v764
      %v929 = vld [vmem:[%s814 + $0xbc] sm:$0x1]
      %v930 = vsel %vm823, %v765, %v929
      %931 = vst [vmem:[%s814 + $0xbc] sm:$0x1] %v930
      %v932 = vld [vmem:[#allocation2] sm:$0xf]
      %v933 = vld [vmem:[#allocation2 + $0x4] sm:$0xf]
      %v934 = vld [vmem:[#allocation2 + $0xc] sm:$0xf]
      %v935 = vld [vmem:[#allocation2 + $0x10] sm:$0xf]
      %v936 = vld [vmem:[#allocation2 + $0x18] sm:$0xf]
      %v937 = vld [vmem:[#allocation2 + $0x1c] sm:$0xf]
      %v938 = vld [vmem:[#allocation2 + $0x24] sm:$0xf]
      %v939 = vld [vmem:[#allocation2 + $0x28] sm:$0xf]
      %v940 = vld [vmem:[#allocation2 + $0x30] sm:$0xf]
      %v941 = vld [vmem:[#allocation2 + $0x34] sm:$0xf]
      %v942 = vld [vmem:[#allocation2 + $0x3c] sm:$0xf]
      %v943 = vld [vmem:[#allocation2 + $0x40] sm:$0xf]
      %v944 = vld [vmem:[#allocation2 + $0x48] sm:$0xf]
      %v945 = vld [vmem:[#allocation2 + $0x4c] sm:$0xf]
      %v946 = vld [vmem:[#allocation2 + $0x54] sm:$0xf]
      %v947 = vld [vmem:[#allocation2 + $0x58] sm:$0xf]
      %v948 = vld [vmem:[#allocation2 + $0x60] sm:$0xf]
      %v949 = vld [vmem:[#allocation2 + $0x64] sm:$0xf]
      %v950 = vld [vmem:[#allocation2 + $0x6c] sm:$0xf]
      %v951 = vld [vmem:[#allocation2 + $0x70] sm:$0xf]
      %v952 = vld [vmem:[#allocation2 + $0x78] sm:$0xf]
      %v953 = vld [vmem:[#allocation2 + $0x7c] sm:$0xf]
      %v954 = vld [vmem:[#allocation2 + $0x84] sm:$0xf]
      %v955 = vld [vmem:[#allocation2 + $0x88] sm:$0xf]
      %v956 = vld [vmem:[#allocation2 + $0x90] sm:$0xf]
      %v957 = vld [vmem:[#allocation2 + $0x94] sm:$0xf]
      %v958 = vld [vmem:[#allocation2 + $0x9c] sm:$0xf]
      %v959 = vld [vmem:[#allocation2 + $0xa0] sm:$0xf]
      %v960 = vld [vmem:[#allocation2 + $0xa8] sm:$0xf]
      %v961 = vld [vmem:[#allocation2 + $0xac] sm:$0xf]
      %v962 = vld [vmem:[#allocation2 + $0xb4] sm:$0xf]
      %v963 = vld [vmem:[#allocation2 + $0xb8] sm:$0xf]
      %v964 = vld [vmem:[%s3] sm:$0xf]
      %v965 = vld [vmem:[%s3 + $0x4] sm:$0xf]
      %v966 = vld [vmem:[%s3 + $0x8] sm:$0xf]
      %v967 = vld [vmem:[%s3 + $0xc] sm:$0xf]
      %v968 = vld [vmem:[%s3 + $0x10] sm:$0xf]
      %v969 = vld [vmem:[%s3 + $0x14] sm:$0xf]
      %v970 = vld [vmem:[%s3 + $0x18] sm:$0xf]
      %v971 = vld [vmem:[%s3 + $0x1c] sm:$0xf]
      %v972 = vld [vmem:[%s3 + $0x20] sm:$0xf]
      %v973 = vld [vmem:[%s3 + $0x24] sm:$0xf]
      %v974 = vld [vmem:[%s3 + $0x28] sm:$0xf]
      %v975 = vld [vmem:[%s3 + $0x2c] sm:$0xf]
      %v976 = vld [vmem:[%s3 + $0x30] sm:$0xf]
      %v977 = vld [vmem:[%s3 + $0x34] sm:$0xf]
      %v978 = vld [vmem:[%s3 + $0x38] sm:$0xf]
      %v979 = vld [vmem:[%s3 + $0x3c] sm:$0xf]
      %v980 = vld [vmem:[#allocation2 + $0x8] sm:$0x1]
      %v981 = vld [vmem:[#allocation2 + $0x14] sm:$0x1]
      %v982 = vld [vmem:[#allocation2 + $0x20] sm:$0x1]
      %v983 = vld [vmem:[#allocation2 + $0x2c] sm:$0x1]
      %v984 = vld [vmem:[#allocation2 + $0x38] sm:$0x1]
      %v985 = vld [vmem:[#allocation2 + $0x44] sm:$0x1]
      %v986 = vld [vmem:[#allocation2 + $0x50] sm:$0x1]
      %v987 = vld [vmem:[#allocation2 + $0x5c] sm:$0x1]
      %v988 = vld [vmem:[#allocation2 + $0x68] sm:$0x1]
      %v989 = vld [vmem:[#allocation2 + $0x74] sm:$0x1]
      %v990 = vld [vmem:[#allocation2 + $0x80] sm:$0x1]
      %v991 = vld [vmem:[#allocation2 + $0x8c] sm:$0x1]
      %v992 = vld [vmem:[#allocation2 + $0x98] sm:$0x1]
      %v993 = vld [vmem:[#allocation2 + $0xa4] sm:$0x1]
      %v994 = vld [vmem:[#allocation2 + $0xb0] sm:$0x1]
      %v995 = vld [vmem:[#allocation2 + $0xbc] sm:$0x1]
      %vm996 = vsmask.f32 3328
      %vm997 = vsmask.f32 7440
      %vm998 = vmor %vm996, %vm997
      %v1000 = vshrl.u32 %v932, 16
      %v1002 = vrot.slane %v1000, 4
      %v1003 = vshll.u32 %v932, 16
      %v1005 = vrot.slane %v1003, 5
      %v1006 = vor.u32 %v1002, %v1005
      %v1007 = vrot.slane %v1006, 4
      %v1009 = vshll.u32 %v933, 16
      %v1011 = vrot.slane %v1009, 5
      %v1012 = vsel %vm998, %v1007, %v1011
      %v1013 = vshrl.u32 %v933, 16
      %v1015 = vrot.slane %v1013, 4
      %v1016 = vor.u32 %v1015, %v1011
      %v1017 = vrot.slane %v1016, 4
      %v1019 = vshll.u32 %v980, 16
      %v1021 = vrot.slane %v1019, 5
      %v1022 = vsel %vm998, %v1017, %v1021
      %v1024 = vshrl.u32 %v934, 16
      %v1026 = vrot.slane %v1024, 4
      %v1027 = vshll.u32 %v934, 16
      %v1029 = vrot.slane %v1027, 5
      %v1030 = vor.u32 %v1026, %v1029
      %v1031 = vrot.slane %v1030, 4
      %v1033 = vshll.u32 %v935, 16
      %v1035 = vrot.slane %v1033, 5
      %v1036 = vsel %vm998, %v1031, %v1035
      %v1037 = vshrl.u32 %v935, 16
      %v1039 = vrot.slane %v1037, 4
      %v1040 = vor.u32 %v1039, %v1035
      %v1041 = vrot.slane %v1040, 4
      %v1043 = vshll.u32 %v981, 16
      %v1045 = vrot.slane %v1043, 5
      %v1046 = vsel %vm998, %v1041, %v1045
      %v1048 = vshrl.u32 %v936, 16
      %v1050 = vrot.slane %v1048, 4
      %v1051 = vshll.u32 %v936, 16
      %v1053 = vrot.slane %v1051, 5
      %v1054 = vor.u32 %v1050, %v1053
      %v1055 = vrot.slane %v1054, 4
      %v1057 = vshll.u32 %v937, 16
      %v1059 = vrot.slane %v1057, 5
      %v1060 = vsel %vm998, %v1055, %v1059
      %v1061 = vshrl.u32 %v937, 16
      %v1063 = vrot.slane %v1061, 4
      %v1064 = vor.u32 %v1063, %v1059
      %v1065 = vrot.slane %v1064, 4
      %v1067 = vshll.u32 %v982, 16
      %v1069 = vrot.slane %v1067, 5
      %v1070 = vsel %vm998, %v1065, %v1069
      %v1072 = vshrl.u32 %v938, 16
      %v1074 = vrot.slane %v1072, 4
      %v1075 = vshll.u32 %v938, 16
      %v1077 = vrot.slane %v1075, 5
      %v1078 = vor.u32 %v1074, %v1077
      %v1079 = vrot.slane %v1078, 4
      %v1081 = vshll.u32 %v939, 16
      %v1083 = vrot.slane %v1081, 5
      %v1084 = vsel %vm998, %v1079, %v1083
      %v1085 = vshrl.u32 %v939, 16
      %v1087 = vrot.slane %v1085, 4
      %v1088 = vor.u32 %v1087, %v1083
      %v1089 = vrot.slane %v1088, 4
      %v1091 = vshll.u32 %v983, 16
      %v1093 = vrot.slane %v1091, 5
      %v1094 = vsel %vm998, %v1089, %v1093
      %v1096 = vshrl.u32 %v940, 16
      %v1098 = vrot.slane %v1096, 4
      %v1099 = vshll.u32 %v940, 16
      %v1101 = vrot.slane %v1099, 5
      %v1102 = vor.u32 %v1098, %v1101
      %v1103 = vrot.slane %v1102, 4
      %v1105 = vshll.u32 %v941, 16
      %v1107 = vrot.slane %v1105, 5
      %v1108 = vsel %vm998, %v1103, %v1107
      %v1109 = vshrl.u32 %v941, 16
      %v1111 = vrot.slane %v1109, 4
      %v1112 = vor.u32 %v1111, %v1107
      %v1113 = vrot.slane %v1112, 4
      %v1115 = vshll.u32 %v984, 16
      %v1117 = vrot.slane %v1115, 5
      %v1118 = vsel %vm998, %v1113, %v1117
      %v1120 = vshrl.u32 %v942, 16
      %v1122 = vrot.slane %v1120, 4
      %v1123 = vshll.u32 %v942, 16
      %v1125 = vrot.slane %v1123, 5
      %v1126 = vor.u32 %v1122, %v1125
      %v1127 = vrot.slane %v1126, 4
      %v1129 = vshll.u32 %v943, 16
      %v1131 = vrot.slane %v1129, 5
      %v1132 = vsel %vm998, %v1127, %v1131
      %v1133 = vshrl.u32 %v943, 16
      %v1135 = vrot.slane %v1133, 4
      %v1136 = vor.u32 %v1135, %v1131
      %v1137 = vrot.slane %v1136, 4
      %v1139 = vshll.u32 %v985, 16
      %v1141 = vrot.slane %v1139, 5
      %v1142 = vsel %vm998, %v1137, %v1141
      %v1144 = vshrl.u32 %v944, 16
      %v1146 = vrot.slane %v1144, 4
      %v1147 = vshll.u32 %v944, 16
      %v1149 = vrot.slane %v1147, 5
      %v1150 = vor.u32 %v1146, %v1149
      %v1151 = vrot.slane %v1150, 4
      %v1153 = vshll.u32 %v945, 16
      %v1155 = vrot.slane %v1153, 5
      %v1156 = vsel %vm998, %v1151, %v1155
      %v1157 = vshrl.u32 %v945, 16
      %v1159 = vrot.slane %v1157, 4
      %v1160 = vor.u32 %v1159, %v1155
      %v1161 = vrot.slane %v1160, 4
      %v1163 = vshll.u32 %v986, 16
      %v1165 = vrot.slane %v1163, 5
      %v1166 = vsel %vm998, %v1161, %v1165
      %v1168 = vshrl.u32 %v946, 16
      %v1170 = vrot.slane %v1168, 4
      %v1171 = vshll.u32 %v946, 16
      %v1173 = vrot.slane %v1171, 5
      %v1174 = vor.u32 %v1170, %v1173
      %v1175 = vrot.slane %v1174, 4
      %v1177 = vshll.u32 %v947, 16
      %v1179 = vrot.slane %v1177, 5
      %v1180 = vsel %vm998, %v1175, %v1179
      %v1181 = vshrl.u32 %v947, 16
      %v1183 = vrot.slane %v1181, 4
      %v1184 = vor.u32 %v1183, %v1179
      %v1185 = vrot.slane %v1184, 4
      %v1187 = vshll.u32 %v987, 16
      %v1189 = vrot.slane %v1187, 5
      %v1190 = vsel %vm998, %v1185, %v1189
      %v1192 = vshrl.u32 %v948, 16
      %v1194 = vrot.slane %v1192, 4
      %v1195 = vshll.u32 %v948, 16
      %v1197 = vrot.slane %v1195, 5
      %v1198 = vor.u32 %v1194, %v1197
      %v1199 = vrot.slane %v1198, 4
      %v1201 = vshll.u32 %v949, 16
      %v1203 = vrot.slane %v1201, 5
      %v1204 = vsel %vm998, %v1199, %v1203
      %v1205 = vshrl.u32 %v949, 16
      %v1207 = vrot.slane %v1205, 4
      %v1208 = vor.u32 %v1207, %v1203
      %v1209 = vrot.slane %v1208, 4
      %v1211 = vshll.u32 %v988, 16
      %v1213 = vrot.slane %v1211, 5
      %v1214 = vsel %vm998, %v1209, %v1213
      %v1216 = vshrl.u32 %v950, 16
      %v1218 = vrot.slane %v1216, 4
      %v1219 = vshll.u32 %v950, 16
      %v1221 = vrot.slane %v1219, 5
      %v1222 = vor.u32 %v1218, %v1221
      %v1223 = vrot.slane %v1222, 4
      %v1225 = vshll.u32 %v951, 16
      %v1227 = vrot.slane %v1225, 5
      %v1228 = vsel %vm998, %v1223, %v1227
      %v1229 = vshrl.u32 %v951, 16
      %v1231 = vrot.slane %v1229, 4
      %v1232 = vor.u32 %v1231, %v1227
      %v1233 = vrot.slane %v1232, 4
      %v1235 = vshll.u32 %v989, 16
      %v1237 = vrot.slane %v1235, 5
      %v1238 = vsel %vm998, %v1233, %v1237
      %v1240 = vshrl.u32 %v952, 16
      %v1242 = vrot.slane %v1240, 4
      %v1243 = vshll.u32 %v952, 16
      %v1245 = vrot.slane %v1243, 5
      %v1246 = vor.u32 %v1242, %v1245
      %v1247 = vrot.slane %v1246, 4
      %v1249 = vshll.u32 %v953, 16
      %v1251 = vrot.slane %v1249, 5
      %v1252 = vsel %vm998, %v1247, %v1251
      %v1253 = vshrl.u32 %v953, 16
      %v1255 = vrot.slane %v1253, 4
      %v1256 = vor.u32 %v1255, %v1251
      %v1257 = vrot.slane %v1256, 4
      %v1259 = vshll.u32 %v990, 16
      %v1261 = vrot.slane %v1259, 5
      %v1262 = vsel %vm998, %v1257, %v1261
      %v1264 = vshrl.u32 %v954, 16
      %v1266 = vrot.slane %v1264, 4
      %v1267 = vshll.u32 %v954, 16
      %v1269 = vrot.slane %v1267, 5
      %v1270 = vor.u32 %v1266, %v1269
      %v1271 = vrot.slane %v1270, 4
      %v1273 = vshll.u32 %v955, 16
      %v1275 = vrot.slane %v1273, 5
      %v1276 = vsel %vm998, %v1271, %v1275
      %v1277 = vshrl.u32 %v955, 16
      %v1279 = vrot.slane %v1277, 4
      %v1280 = vor.u32 %v1279, %v1275
      %v1281 = vrot.slane %v1280, 4
      %v1283 = vshll.u32 %v991, 16
      %v1285 = vrot.slane %v1283, 5
      %v1286 = vsel %vm998, %v1281, %v1285
      %v1288 = vshrl.u32 %v956, 16
      %v1290 = vrot.slane %v1288, 4
      %v1291 = vshll.u32 %v956, 16
      %v1293 = vrot.slane %v1291, 5
      %v1294 = vor.u32 %v1290, %v1293
      %v1295 = vrot.slane %v1294, 4
      %v1297 = vshll.u32 %v957, 16
      %v1299 = vrot.slane %v1297, 5
      %v1300 = vsel %vm998, %v1295, %v1299
      %v1301 = vshrl.u32 %v957, 16
      %v1303 = vrot.slane %v1301, 4
      %v1304 = vor.u32 %v1303, %v1299
      %v1305 = vrot.slane %v1304, 4
      %v1307 = vshll.u32 %v992, 16
      %v1309 = vrot.slane %v1307, 5
      %v1310 = vsel %vm998, %v1305, %v1309
      %v1312 = vshrl.u32 %v958, 16
      %v1314 = vrot.slane %v1312, 4
      %v1315 = vshll.u32 %v958, 16
      %v1317 = vrot.slane %v1315, 5
      %v1318 = vor.u32 %v1314, %v1317
      %v1319 = vrot.slane %v1318, 4
      %v1321 = vshll.u32 %v959, 16
      %v1323 = vrot.slane %v1321, 5
      %v1324 = vsel %vm998, %v1319, %v1323
      %v1325 = vshrl.u32 %v959, 16
      %v1327 = vrot.slane %v1325, 4
      %v1328 = vor.u32 %v1327, %v1323
      %v1329 = vrot.slane %v1328, 4
      %v1331 = vshll.u32 %v993, 16
      %v1333 = vrot.slane %v1331, 5
      %v1334 = vsel %vm998, %v1329, %v1333
      %v1336 = vshrl.u32 %v960, 16
      %v1338 = vrot.slane %v1336, 4
      %v1339 = vshll.u32 %v960, 16
      %v1341 = vrot.slane %v1339, 5
      %v1342 = vor.u32 %v1338, %v1341
      %v1343 = vrot.slane %v1342, 4
      %v1345 = vshll.u32 %v961, 16
      %v1347 = vrot.slane %v1345, 5
      %v1348 = vsel %vm998, %v1343, %v1347
      %v1349 = vshrl.u32 %v961, 16
      %v1351 = vrot.slane %v1349, 4
      %v1352 = vor.u32 %v1351, %v1347
      %v1353 = vrot.slane %v1352, 4
      %v1355 = vshll.u32 %v994, 16
      %v1357 = vrot.slane %v1355, 5
      %v1358 = vsel %vm998, %v1353, %v1357
      %v1360 = vshrl.u32 %v962, 16
      %v1362 = vrot.slane %v1360, 4
      %v1363 = vshll.u32 %v962, 16
      %v1365 = vrot.slane %v1363, 5
      %v1366 = vor.u32 %v1362, %v1365
      %v1367 = vrot.slane %v1366, 4
      %v1369 = vshll.u32 %v963, 16
      %v1371 = vrot.slane %v1369, 5
      %v1372 = vsel %vm998, %v1367, %v1371
      %v1373 = vshrl.u32 %v963, 16
      %v1375 = vrot.slane %v1373, 4
      %v1376 = vor.u32 %v1375, %v1371
      %v1377 = vrot.slane %v1376, 4
      %v1379 = vshll.u32 %v995, 16
      %v1381 = vrot.slane %v1379, 5
      %v1382 = vsel %vm998, %v1377, %v1381
      %s1383 = scalar_lea.vmem %s3, 64
      %v1384 = vld [vmem:[%s1383] sm:$0xf]
      %v1385 = vld [vmem:[%s1383 + $0x4] sm:$0xf]
      %v1386 = vld [vmem:[%s1383 + $0x8] sm:$0xf]
      %v1387 = vld [vmem:[%s1383 + $0xc] sm:$0xf]
      %v1388 = vld [vmem:[%s1383 + $0x10] sm:$0xf]
      %v1389 = vld [vmem:[%s1383 + $0x14] sm:$0xf]
      %v1390 = vld [vmem:[%s1383 + $0x18] sm:$0xf]
      %v1391 = vld [vmem:[%s1383 + $0x1c] sm:$0xf]
      %v1392 = vld [vmem:[%s1383 + $0x20] sm:$0xf]
      %v1393 = vld [vmem:[%s1383 + $0x24] sm:$0xf]
      %v1394 = vld [vmem:[%s1383 + $0x28] sm:$0xf]
      %v1395 = vld [vmem:[%s1383 + $0x2c] sm:$0xf]
      %v1396 = vld [vmem:[%s1383 + $0x30] sm:$0xf]
      %v1397 = vld [vmem:[%s1383 + $0x34] sm:$0xf]
      %v1398 = vld [vmem:[%s1383 + $0x38] sm:$0xf]
      %v1399 = vld [vmem:[%s1383 + $0x3c] sm:$0xf]
      %v1400 = vunpack.c.l.b16 %v1012
      %v1401 = vunpack.c.l.b16 %v1022
      %v1402 = vunpack.c.l.b16 %v1036
      %v1403 = vunpack.c.l.b16 %v1046
      %v1404 = vunpack.c.l.b16 %v1060
      %v1405 = vunpack.c.l.b16 %v1070
      %v1406 = vunpack.c.l.b16 %v1084
      %v1407 = vunpack.c.l.b16 %v1094
      %v1408 = vunpack.c.l.b16 %v1108
      %v1409 = vunpack.c.l.b16 %v1118
      %v1410 = vunpack.c.l.b16 %v1132
      %v1411 = vunpack.c.l.b16 %v1142
      %v1412 = vunpack.c.l.b16 %v1156
      %v1413 = vunpack.c.l.b16 %v1166
      %v1414 = vunpack.c.l.b16 %v1180
      %v1415 = vunpack.c.l.b16 %v1190
      %v1416 = vunpack.c.l.b16 %v1204
      %v1417 = vunpack.c.l.b16 %v1214
      %v1418 = vunpack.c.l.b16 %v1228
      %v1419 = vunpack.c.l.b16 %v1238
      %v1420 = vunpack.c.l.b16 %v1252
      %v1421 = vunpack.c.l.b16 %v1262
      %v1422 = vunpack.c.l.b16 %v1276
      %v1423 = vunpack.c.l.b16 %v1286
      %v1424 = vunpack.c.l.b16 %v1300
      %v1425 = vunpack.c.l.b16 %v1310
      %v1426 = vunpack.c.l.b16 %v1324
      %v1427 = vunpack.c.l.b16 %v1334
      %v1428 = vunpack.c.l.b16 %v1348
      %v1429 = vunpack.c.l.b16 %v1358
      %v1430 = vunpack.c.l.b16 %v1372
      %v1431 = vunpack.c.l.b16 %v1382
      %v1432 = vpack.c.b16 %v1401, %v1400
      %v1433 = vpack.c.b16 %v1403, %v1402
      %v1434 = vpack.c.b16 %v1405, %v1404
      %v1435 = vpack.c.b16 %v1407, %v1406
      %v1436 = vpack.c.b16 %v1409, %v1408
      %v1437 = vpack.c.b16 %v1411, %v1410
      %v1438 = vpack.c.b16 %v1413, %v1412
      %v1439 = vpack.c.b16 %v1415, %v1414
      %v1440 = vpack.c.b16 %v1417, %v1416
      %v1441 = vpack.c.b16 %v1419, %v1418
      %v1442 = vpack.c.b16 %v1421, %v1420
      %v1443 = vpack.c.b16 %v1423, %v1422
      %v1444 = vpack.c.b16 %v1425, %v1424
      %v1445 = vpack.c.b16 %v1427, %v1426
      %v1446 = vpack.c.b16 %v1429, %v1428
      %v1447 = vpack.c.b16 %v1431, %v1430
      %v1480 = vunpack.c.l.b16 %v1384
      %v1481 = vunpack.c.l.b16 %v1385
      %v1482 = vunpack.c.l.b16 %v1386
      %v1483 = vunpack.c.l.b16 %v1387
      %v1484 = vunpack.c.l.b16 %v1388
      %v1485 = vunpack.c.l.b16 %v1389
      %v1486 = vunpack.c.l.b16 %v1390
      %v1487 = vunpack.c.l.b16 %v1391
      %v1488 = vunpack.c.l.b16 %v1392
      %v1489 = vunpack.c.l.b16 %v1393
      %v1490 = vunpack.c.l.b16 %v1394
      %v1491 = vunpack.c.l.b16 %v1395
      %v1492 = vunpack.c.l.b16 %v1396
      %v1493 = vunpack.c.l.b16 %v1397
      %v1494 = vunpack.c.l.b16 %v1398
      %v1495 = vunpack.c.l.b16 %v1399
      %v1496 = vpack.c.b16 %v1481, %v1480
      %v1497 = vpack.c.b16 %v1483, %v1482
      %v1498 = vpack.c.b16 %v1485, %v1484
      %v1499 = vpack.c.b16 %v1487, %v1486
      %v1500 = vpack.c.b16 %v1489, %v1488
      %v1501 = vpack.c.b16 %v1491, %v1490
      %v1502 = vpack.c.b16 %v1493, %v1492
      %v1503 = vpack.c.b16 %v1495, %v1494
      %1512 = vmatpush.bf16.msra.mxu0 %v1503
      %1513 = vmatpush.bf16.msra.mxu0 %v1502
      %1514 = vmatpush.bf16.msra.mxu0 %v1501
      %1515 = vmatpush.bf16.msra.mxu0 %v1500
      %1516 = vmatpush.bf16.msra.mxu0 %v1499
      %1517 = vmatpush.bf16.msra.mxu0 %v1498
      %1518 = vmatpush.bf16.msra.mxu0 %v1497
      %1519 = vmatpush.bf16.msra.mxu0 %v1496
      %1520 = vmatmul.bf16.gmra.mxu0 %v1432
      %v1521 = vpop.f32.mrf.mxu0
      %v1522 = vadd.f32 0.0, %v1521
      %v1523 = vpop.f32.mrf.mxu0
      %v1524 = vadd.f32 0.0, %v1523
      %1525 = vmatmul.bf16.gmra.mxu0 %v1433
      %v1526 = vpop.f32.mrf.mxu0
      %v1527 = vadd.f32 0.0, %v1526
      %v1528 = vpop.f32.mrf.mxu0
      %v1529 = vadd.f32 0.0, %v1528
      %1530 = vmatmul.bf16.gmra.mxu0 %v1434
      %v1531 = vpop.f32.mrf.mxu0
      %v1532 = vadd.f32 0.0, %v1531
      %v1533 = vpop.f32.mrf.mxu0
      %v1534 = vadd.f32 0.0, %v1533
      %1535 = vmatmul.bf16.gmra.mxu0 %v1435
      %v1536 = vpop.f32.mrf.mxu0
      %v1537 = vadd.f32 0.0, %v1536
      %v1538 = vpop.f32.mrf.mxu0
      %v1539 = vadd.f32 0.0, %v1538
      %1540 = vmatmul.bf16.gmra.mxu0 %v1436
      %v1541 = vpop.f32.mrf.mxu0
      %v1542 = vadd.f32 0.0, %v1541
      %v1543 = vpop.f32.mrf.mxu0
      %v1544 = vadd.f32 0.0, %v1543
      %1545 = vmatmul.bf16.gmra.mxu0 %v1437
      %v1546 = vpop.f32.mrf.mxu0
      %v1547 = vadd.f32 0.0, %v1546
      %v1548 = vpop.f32.mrf.mxu0
      %v1549 = vadd.f32 0.0, %v1548
      %1550 = vmatmul.bf16.gmra.mxu0 %v1438
      %v1551 = vpop.f32.mrf.mxu0
      %v1552 = vadd.f32 0.0, %v1551
      %v1553 = vpop.f32.mrf.mxu0
      %v1554 = vadd.f32 0.0, %v1553
      %1555 = vmatmul.bf16.gmra.mxu0 %v1439
      %v1556 = vpop.f32.mrf.mxu0
      %v1557 = vadd.f32 0.0, %v1556
      %v1558 = vpop.f32.mrf.mxu0
      %v1559 = vadd.f32 0.0, %v1558
      %1560 = vmatmul.bf16.gmra.mxu0 %v1440
      %v1561 = vpop.f32.mrf.mxu0
      %v1562 = vadd.f32 0.0, %v1561
      %v1563 = vpop.f32.mrf.mxu0
      %v1564 = vadd.f32 0.0, %v1563
      %1565 = vmatmul.bf16.gmra.mxu0 %v1441
      %v1566 = vpop.f32.mrf.mxu0
      %v1567 = vadd.f32 0.0, %v1566
      %v1568 = vpop.f32.mrf.mxu0
      %v1569 = vadd.f32 0.0, %v1568
      %1570 = vmatmul.bf16.gmra.mxu0 %v1442
      %v1571 = vpop.f32.mrf.mxu0
      %v1572 = vadd.f32 0.0, %v1571
      %v1573 = vpop.f32.mrf.mxu0
      %v1574 = vadd.f32 0.0, %v1573
      %1575 = vmatmul.bf16.gmra.mxu0 %v1443
      %v1576 = vpop.f32.mrf.mxu0
      %v1577 = vadd.f32 0.0, %v1576
      %v1578 = vpop.f32.mrf.mxu0
      %v1579 = vadd.f32 0.0, %v1578
      %1580 = vmatmul.bf16.gmra.mxu0 %v1444
      %v1581 = vpop.f32.mrf.mxu0
      %v1582 = vadd.f32 0.0, %v1581
      %v1583 = vpop.f32.mrf.mxu0
      %v1584 = vadd.f32 0.0, %v1583
      %1585 = vmatmul.bf16.gmra.mxu0 %v1445
      %v1586 = vpop.f32.mrf.mxu0
      %v1587 = vadd.f32 0.0, %v1586
      %v1588 = vpop.f32.mrf.mxu0
      %v1589 = vadd.f32 0.0, %v1588
      %1590 = vmatmul.bf16.gmra.mxu0 %v1446
      %v1591 = vpop.f32.mrf.mxu0
      %v1592 = vadd.f32 0.0, %v1591
      %v1593 = vpop.f32.mrf.mxu0
      %v1594 = vadd.f32 0.0, %v1593
      %1595 = vmatmul.bf16.gmra.mxu0 %v1447
      %v1596 = vpop.f32.mrf.mxu0
      %v1597 = vadd.f32 0.0, %v1596
      %v1598 = vpop.f32.mrf.mxu0
      %v1599 = vadd.f32 0.0, %v1598
      %1600 = vdwg.mxu0
      %v1633 = vunpack.c.l.b16 %v932
      %v1634 = vunpack.c.l.b16 %v933
      %v1635 = vunpack.c.l.b16 %v934
      %v1636 = vunpack.c.l.b16 %v935
      %v1637 = vunpack.c.l.b16 %v936
      %v1638 = vunpack.c.l.b16 %v937
      %v1639 = vunpack.c.l.b16 %v938
      %v1640 = vunpack.c.l.b16 %v939
      %v1641 = vunpack.c.l.b16 %v940
      %v1642 = vunpack.c.l.b16 %v941
      %v1643 = vunpack.c.l.b16 %v942
      %v1644 = vunpack.c.l.b16 %v943
      %v1645 = vunpack.c.l.b16 %v944
      %v1646 = vunpack.c.l.b16 %v945
      %v1647 = vunpack.c.l.b16 %v946
      %v1648 = vunpack.c.l.b16 %v947
      %v1649 = vunpack.c.l.b16 %v948
      %v1650 = vunpack.c.l.b16 %v949
      %v1651 = vunpack.c.l.b16 %v950
      %v1652 = vunpack.c.l.b16 %v951
      %v1653 = vunpack.c.l.b16 %v952
      %v1654 = vunpack.c.l.b16 %v953
      %v1655 = vunpack.c.l.b16 %v954
      %v1656 = vunpack.c.l.b16 %v955
      %v1657 = vunpack.c.l.b16 %v956
      %v1658 = vunpack.c.l.b16 %v957
      %v1659 = vunpack.c.l.b16 %v958
      %v1660 = vunpack.c.l.b16 %v959
      %v1661 = vunpack.c.l.b16 %v960
      %v1662 = vunpack.c.l.b16 %v961
      %v1663 = vunpack.c.l.b16 %v962
      %v1664 = vunpack.c.l.b16 %v963
      %v1665 = vpack.c.b16 %v1634, %v1633
      %v1666 = vpack.c.b16 %v1636, %v1635
      %v1667 = vpack.c.b16 %v1638, %v1637
      %v1668 = vpack.c.b16 %v1640, %v1639
      %v1669 = vpack.c.b16 %v1642, %v1641
      %v1670 = vpack.c.b16 %v1644, %v1643
      %v1671 = vpack.c.b16 %v1646, %v1645
      %v1672 = vpack.c.b16 %v1648, %v1647
      %v1673 = vpack.c.b16 %v1650, %v1649
      %v1674 = vpack.c.b16 %v1652, %v1651
      %v1675 = vpack.c.b16 %v1654, %v1653
      %v1676 = vpack.c.b16 %v1656, %v1655
      %v1677 = vpack.c.b16 %v1658, %v1657
      %v1678 = vpack.c.b16 %v1660, %v1659
      %v1679 = vpack.c.b16 %v1662, %v1661
      %v1680 = vpack.c.b16 %v1664, %v1663
      %v1713 = vunpack.c.l.b16 %v964
      %v1714 = vunpack.c.l.b16 %v965
      %v1715 = vunpack.c.l.b16 %v966
      %v1716 = vunpack.c.l.b16 %v967
      %v1717 = vunpack.c.l.b16 %v968
      %v1718 = vunpack.c.l.b16 %v969
      %v1719 = vunpack.c.l.b16 %v970
      %v1720 = vunpack.c.l.b16 %v971
      %v1721 = vunpack.c.l.b16 %v972
      %v1722 = vunpack.c.l.b16 %v973
      %v1723 = vunpack.c.l.b16 %v974
      %v1724 = vunpack.c.l.b16 %v975
      %v1725 = vunpack.c.l.b16 %v976
      %v1726 = vunpack.c.l.b16 %v977
      %v1727 = vunpack.c.l.b16 %v978
      %v1728 = vunpack.c.l.b16 %v979
      %v1729 = vpack.c.b16 %v1714, %v1713
      %v1730 = vpack.c.b16 %v1716, %v1715
      %v1731 = vpack.c.b16 %v1718, %v1717
      %v1732 = vpack.c.b16 %v1720, %v1719
      %v1733 = vpack.c.b16 %v1722, %v1721
      %v1734 = vpack.c.b16 %v1724, %v1723
      %v1735 = vpack.c.b16 %v1726, %v1725
      %v1736 = vpack.c.b16 %v1728, %v1727
      %1745 = vmatpush.bf16.msra.mxu0 %v1736
      %1746 = vmatpush.bf16.msra.mxu0 %v1735
      %1747 = vmatpush.bf16.msra.mxu0 %v1734
      %1748 = vmatpush.bf16.msra.mxu0 %v1733
      %1749 = vmatpush.bf16.msra.mxu0 %v1732
      %1750 = vmatpush.bf16.msra.mxu0 %v1731
      %1751 = vmatpush.bf16.msra.mxu0 %v1730
      %1752 = vmatpush.bf16.msra.mxu0 %v1729
      %1753 = vmatmul.bf16.gmra.mxu0 %v1665
      %v1754 = vpop.f32.mrf.mxu0
      %v1755 = vadd.f32 %v1522, %v1754
      %v1756 = vpop.f32.mrf.mxu0
      %v1757 = vadd.f32 %v1524, %v1756
      %1758 = vmatmul.bf16.gmra.mxu0 %v1666
      %v1759 = vpop.f32.mrf.mxu0
      %v1760 = vadd.f32 %v1527, %v1759
      %v1761 = vpop.f32.mrf.mxu0
      %v1762 = vadd.f32 %v1529, %v1761
      %1763 = vmatmul.bf16.gmra.mxu0 %v1667
      %v1764 = vpop.f32.mrf.mxu0
      %v1765 = vadd.f32 %v1532, %v1764
      %v1766 = vpop.f32.mrf.mxu0
      %v1767 = vadd.f32 %v1534, %v1766
      %1768 = vmatmul.bf16.gmra.mxu0 %v1668
      %v1769 = vpop.f32.mrf.mxu0
      %v1770 = vadd.f32 %v1537, %v1769
      %v1771 = vpop.f32.mrf.mxu0
      %v1772 = vadd.f32 %v1539, %v1771
      %1773 = vmatmul.bf16.gmra.mxu0 %v1669
      %v1774 = vpop.f32.mrf.mxu0
      %v1775 = vadd.f32 %v1542, %v1774
      %v1776 = vpop.f32.mrf.mxu0
      %v1777 = vadd.f32 %v1544, %v1776
      %1778 = vmatmul.bf16.gmra.mxu0 %v1670
      %v1779 = vpop.f32.mrf.mxu0
      %v1780 = vadd.f32 %v1547, %v1779
      %v1781 = vpop.f32.mrf.mxu0
      %v1782 = vadd.f32 %v1549, %v1781
      %1783 = vmatmul.bf16.gmra.mxu0 %v1671
      %v1784 = vpop.f32.mrf.mxu0
      %v1785 = vadd.f32 %v1552, %v1784
      %v1786 = vpop.f32.mrf.mxu0
      %v1787 = vadd.f32 %v1554, %v1786
      %1788 = vmatmul.bf16.gmra.mxu0 %v1672
      %v1789 = vpop.f32.mrf.mxu0
      %v1790 = vadd.f32 %v1557, %v1789
      %v1791 = vpop.f32.mrf.mxu0
      %v1792 = vadd.f32 %v1559, %v1791
      %1793 = vmatmul.bf16.gmra.mxu0 %v1673
      %v1794 = vpop.f32.mrf.mxu0
      %v1795 = vadd.f32 %v1562, %v1794
      %v1796 = vpop.f32.mrf.mxu0
      %v1797 = vadd.f32 %v1564, %v1796
      %1798 = vmatmul.bf16.gmra.mxu0 %v1674
      %v1799 = vpop.f32.mrf.mxu0
      %v1800 = vadd.f32 %v1567, %v1799
      %v1801 = vpop.f32.mrf.mxu0
      %v1802 = vadd.f32 %v1569, %v1801
      %1803 = vmatmul.bf16.gmra.mxu0 %v1675
      %v1804 = vpop.f32.mrf.mxu0
      %v1805 = vadd.f32 %v1572, %v1804
      %v1806 = vpop.f32.mrf.mxu0
      %v1807 = vadd.f32 %v1574, %v1806
      %1808 = vmatmul.bf16.gmra.mxu0 %v1676
      %v1809 = vpop.f32.mrf.mxu0
      %v1810 = vadd.f32 %v1577, %v1809
      %v1811 = vpop.f32.mrf.mxu0
      %v1812 = vadd.f32 %v1579, %v1811
      %1813 = vmatmul.bf16.gmra.mxu0 %v1677
      %v1814 = vpop.f32.mrf.mxu0
      %v1815 = vadd.f32 %v1582, %v1814
      %v1816 = vpop.f32.mrf.mxu0
      %v1817 = vadd.f32 %v1584, %v1816
      %1818 = vmatmul.bf16.gmra.mxu0 %v1678
      %v1819 = vpop.f32.mrf.mxu0
      %v1820 = vadd.f32 %v1587, %v1819
      %v1821 = vpop.f32.mrf.mxu0
      %v1822 = vadd.f32 %v1589, %v1821
      %1823 = vmatmul.bf16.gmra.mxu0 %v1679
      %v1824 = vpop.f32.mrf.mxu0
      %v1825 = vadd.f32 %v1592, %v1824
      %v1826 = vpop.f32.mrf.mxu0
      %v1827 = vadd.f32 %v1594, %v1826
      %1828 = vmatmul.bf16.gmra.mxu0 %v1680
      %v1829 = vpop.f32.mrf.mxu0
      %v1830 = vadd.f32 %v1597, %v1829
      %v1831 = vpop.f32.mrf.mxu0
      %v1832 = vadd.f32 %v1599, %v1831
      %1833 = vdwg.mxu0
      %v1834 = vld [vmem:[#allocation2] sm:$0xe]
      %v1835 = vld [vmem:[#allocation2 + $0xc] sm:$0xe]
      %v1836 = vld [vmem:[#allocation2 + $0x18] sm:$0xe]
      %v1837 = vld [vmem:[#allocation2 + $0x24] sm:$0xe]
      %v1838 = vld [vmem:[#allocation2 + $0x30] sm:$0xe]
      %v1839 = vld [vmem:[#allocation2 + $0x3c] sm:$0xe]
      %v1840 = vld [vmem:[#allocation2 + $0x48] sm:$0xe]
      %v1841 = vld [vmem:[#allocation2 + $0x54] sm:$0xe]
      %v1842 = vld [vmem:[#allocation2 + $0x60] sm:$0xe]
      %v1843 = vld [vmem:[#allocation2 + $0x6c] sm:$0xe]
      %v1844 = vld [vmem:[#allocation2 + $0x78] sm:$0xe]
      %v1845 = vld [vmem:[#allocation2 + $0x84] sm:$0xe]
      %v1846 = vld [vmem:[#allocation2 + $0x90] sm:$0xe]
      %v1847 = vld [vmem:[#allocation2 + $0x9c] sm:$0xe]
      %v1848 = vld [vmem:[#allocation2 + $0xa8] sm:$0xe]
      %v1849 = vld [vmem:[#allocation2 + $0xb4] sm:$0xe]
      %vm1882 = vcmask 1042432
      %vm1883 = vcmask 1046532
      %vm1884 = vmor %vm1882, %vm1883
      %v1885 = vrot.slane %v1834, 5
      %v1886 = vrot.slane %v1885, 4
      %v1887 = vrot.slane %v933, 5
      %v1888 = vsel %vm1884, %v1886, %v1887
      %v1889 = vrot.slane %v1887, 4
      %v1890 = vrot.slane %v980, 5
      %v1891 = vsel %vm1884, %v1889, %v1890
      %v1892 = vrot.slane %v1835, 5
      %v1893 = vrot.slane %v1892, 4
      %v1894 = vrot.slane %v935, 5
      %v1895 = vsel %vm1884, %v1893, %v1894
      %v1896 = vrot.slane %v1894, 4
      %v1897 = vrot.slane %v981, 5
      %v1898 = vsel %vm1884, %v1896, %v1897
      %v1899 = vrot.slane %v1836, 5
      %v1900 = vrot.slane %v1899, 4
      %v1901 = vrot.slane %v937, 5
      %v1902 = vsel %vm1884, %v1900, %v1901
      %v1903 = vrot.slane %v1901, 4
      %v1904 = vrot.slane %v982, 5
      %v1905 = vsel %vm1884, %v1903, %v1904
      %v1906 = vrot.slane %v1837, 5
      %v1907 = vrot.slane %v1906, 4
      %v1908 = vrot.slane %v939, 5
      %v1909 = vsel %vm1884, %v1907, %v1908
      %v1910 = vrot.slane %v1908, 4
      %v1911 = vrot.slane %v983, 5
      %v1912 = vsel %vm1884, %v1910, %v1911
      %v1913 = vrot.slane %v1838, 5
      %v1914 = vrot.slane %v1913, 4
      %v1915 = vrot.slane %v941, 5
      %v1916 = vsel %vm1884, %v1914, %v1915
      %v1917 = vrot.slane %v1915, 4
      %v1918 = vrot.slane %v984, 5
      %v1919 = vsel %vm1884, %v1917, %v1918
      %v1920 = vrot.slane %v1839, 5
      %v1921 = vrot.slane %v1920, 4
      %v1922 = vrot.slane %v943, 5
      %v1923 = vsel %vm1884, %v1921, %v1922
      %v1924 = vrot.slane %v1922, 4
      %v1925 = vrot.slane %v985, 5
      %v1926 = vsel %vm1884, %v1924, %v1925
      %v1927 = vrot.slane %v1840, 5
      %v1928 = vrot.slane %v1927, 4
      %v1929 = vrot.slane %v945, 5
      %v1930 = vsel %vm1884, %v1928, %v1929
      %v1931 = vrot.slane %v1929, 4
      %v1932 = vrot.slane %v986, 5
      %v1933 = vsel %vm1884, %v1931, %v1932
      %v1934 = vrot.slane %v1841, 5
      %v1935 = vrot.slane %v1934, 4
      %v1936 = vrot.slane %v947, 5
      %v1937 = vsel %vm1884, %v1935, %v1936
      %v1938 = vrot.slane %v1936, 4
      %v1939 = vrot.slane %v987, 5
      %v1940 = vsel %vm1884, %v1938, %v1939
      %v1941 = vrot.slane %v1842, 5
      %v1942 = vrot.slane %v1941, 4
      %v1943 = vrot.slane %v949, 5
      %v1944 = vsel %vm1884, %v1942, %v1943
      %v1945 = vrot.slane %v1943, 4
      %v1946 = vrot.slane %v988, 5
      %v1947 = vsel %vm1884, %v1945, %v1946
      %v1948 = vrot.slane %v1843, 5
      %v1949 = vrot.slane %v1948, 4
      %v1950 = vrot.slane %v951, 5
      %v1951 = vsel %vm1884, %v1949, %v1950
      %v1952 = vrot.slane %v1950, 4
      %v1953 = vrot.slane %v989, 5
      %v1954 = vsel %vm1884, %v1952, %v1953
      %v1955 = vrot.slane %v1844, 5
      %v1956 = vrot.slane %v1955, 4
      %v1957 = vrot.slane %v953, 5
      %v1958 = vsel %vm1884, %v1956, %v1957
      %v1959 = vrot.slane %v1957, 4
      %v1960 = vrot.slane %v990, 5
      %v1961 = vsel %vm1884, %v1959, %v1960
      %v1962 = vrot.slane %v1845, 5
      %v1963 = vrot.slane %v1962, 4
      %v1964 = vrot.slane %v955, 5
      %v1965 = vsel %vm1884, %v1963, %v1964
      %v1966 = vrot.slane %v1964, 4
      %v1967 = vrot.slane %v991, 5
      %v1968 = vsel %vm1884, %v1966, %v1967
      %v1969 = vrot.slane %v1846, 5
      %v1970 = vrot.slane %v1969, 4
      %v1971 = vrot.slane %v957, 5
      %v1972 = vsel %vm1884, %v1970, %v1971
      %v1973 = vrot.slane %v1971, 4
      %v1974 = vrot.slane %v992, 5
      %v1975 = vsel %vm1884, %v1973, %v1974
      %v1976 = vrot.slane %v1847, 5
      %v1977 = vrot.slane %v1976, 4
      %v1978 = vrot.slane %v959, 5
      %v1979 = vsel %vm1884, %v1977, %v1978
      %v1980 = vrot.slane %v1978, 4
      %v1981 = vrot.slane %v993, 5
      %v1982 = vsel %vm1884, %v1980, %v1981
      %v1983 = vrot.slane %v1848, 5
      %v1984 = vrot.slane %v1983, 4
      %v1985 = vrot.slane %v961, 5
      %v1986 = vsel %vm1884, %v1984, %v1985
      %v1987 = vrot.slane %v1985, 4
      %v1988 = vrot.slane %v994, 5
      %v1989 = vsel %vm1884, %v1987, %v1988
      %v1990 = vrot.slane %v1849, 5
      %v1991 = vrot.slane %v1990, 4
      %v1992 = vrot.slane %v963, 5
      %v1993 = vsel %vm1884, %v1991, %v1992
      %v1994 = vrot.slane %v1992, 4
      %v1995 = vrot.slane %v995, 5
      %v1996 = vsel %vm1884, %v1994, %v1995
      %s1997 = scalar_lea.vmem %s3, 128
      %v1998 = vld [vmem:[%s1997] sm:$0xf]
      %v1999 = vld [vmem:[%s1997 + $0x4] sm:$0xf]
      %v2000 = vld [vmem:[%s1997 + $0x8] sm:$0xf]
      %v2001 = vld [vmem:[%s1997 + $0xc] sm:$0xf]
      %v2002 = vld [vmem:[%s1997 + $0x10] sm:$0xf]
      %v2003 = vld [vmem:[%s1997 + $0x14] sm:$0xf]
      %v2004 = vld [vmem:[%s1997 + $0x18] sm:$0xf]
      %v2005 = vld [vmem:[%s1997 + $0x1c] sm:$0xf]
      %v2006 = vld [vmem:[%s1997 + $0x20] sm:$0xf]
      %v2007 = vld [vmem:[%s1997 + $0x24] sm:$0xf]
      %v2008 = vld [vmem:[%s1997 + $0x28] sm:$0xf]
      %v2009 = vld [vmem:[%s1997 + $0x2c] sm:$0xf]
      %v2010 = vld [vmem:[%s1997 + $0x30] sm:$0xf]
      %v2011 = vld [vmem:[%s1997 + $0x34] sm:$0xf]
      %v2012 = vld [vmem:[%s1997 + $0x38] sm:$0xf]
      %v2013 = vld [vmem:[%s1997 + $0x3c] sm:$0xf]
      %v2014 = vunpack.c.l.b16 %v1888
      %v2015 = vunpack.c.l.b16 %v1891
      %v2016 = vunpack.c.l.b16 %v1895
      %v2017 = vunpack.c.l.b16 %v1898
      %v2018 = vunpack.c.l.b16 %v1902
      %v2019 = vunpack.c.l.b16 %v1905
      %v2020 = vunpack.c.l.b16 %v1909
      %v2021 = vunpack.c.l.b16 %v1912
      %v2022 = vunpack.c.l.b16 %v1916
      %v2023 = vunpack.c.l.b16 %v1919
      %v2024 = vunpack.c.l.b16 %v1923
      %v2025 = vunpack.c.l.b16 %v1926
      %v2026 = vunpack.c.l.b16 %v1930
      %v2027 = vunpack.c.l.b16 %v1933
      %v2028 = vunpack.c.l.b16 %v1937
      %v2029 = vunpack.c.l.b16 %v1940
      %v2030 = vunpack.c.l.b16 %v1944
      %v2031 = vunpack.c.l.b16 %v1947
      %v2032 = vunpack.c.l.b16 %v1951
      %v2033 = vunpack.c.l.b16 %v1954
      %v2034 = vunpack.c.l.b16 %v1958
      %v2035 = vunpack.c.l.b16 %v1961
      %v2036 = vunpack.c.l.b16 %v1965
      %v2037 = vunpack.c.l.b16 %v1968
      %v2038 = vunpack.c.l.b16 %v1972
      %v2039 = vunpack.c.l.b16 %v1975
      %v2040 = vunpack.c.l.b16 %v1979
      %v2041 = vunpack.c.l.b16 %v1982
      %v2042 = vunpack.c.l.b16 %v1986
      %v2043 = vunpack.c.l.b16 %v1989
      %v2044 = vunpack.c.l.b16 %v1993
      %v2045 = vunpack.c.l.b16 %v1996
      %v2046 = vpack.c.b16 %v2015, %v2014
      %v2047 = vpack.c.b16 %v2017, %v2016
      %v2048 = vpack.c.b16 %v2019, %v2018
      %v2049 = vpack.c.b16 %v2021, %v2020
      %v2050 = vpack.c.b16 %v2023, %v2022
      %v2051 = vpack.c.b16 %v2025, %v2024
      %v2052 = vpack.c.b16 %v2027, %v2026
      %v2053 = vpack.c.b16 %v2029, %v2028
      %v2054 = vpack.c.b16 %v2031, %v2030
      %v2055 = vpack.c.b16 %v2033, %v2032
      %v2056 = vpack.c.b16 %v2035, %v2034
      %v2057 = vpack.c.b16 %v2037, %v2036
      %v2058 = vpack.c.b16 %v2039, %v2038
      %v2059 = vpack.c.b16 %v2041, %v2040
      %v2060 = vpack.c.b16 %v2043, %v2042
      %v2061 = vpack.c.b16 %v2045, %v2044
      %v2094 = vunpack.c.l.b16 %v1998
      %v2095 = vunpack.c.l.b16 %v1999
      %v2096 = vunpack.c.l.b16 %v2000
      %v2097 = vunpack.c.l.b16 %v2001
      %v2098 = vunpack.c.l.b16 %v2002
      %v2099 = vunpack.c.l.b16 %v2003
      %v2100 = vunpack.c.l.b16 %v2004
      %v2101 = vunpack.c.l.b16 %v2005
      %v2102 = vunpack.c.l.b16 %v2006
      %v2103 = vunpack.c.l.b16 %v2007
      %v2104 = vunpack.c.l.b16 %v2008
      %v2105 = vunpack.c.l.b16 %v2009
      %v2106 = vunpack.c.l.b16 %v2010
      %v2107 = vunpack.c.l.b16 %v2011
      %v2108 = vunpack.c.l.b16 %v2012
      %v2109 = vunpack.c.l.b16 %v2013
      %v2110 = vpack.c.b16 %v2095, %v2094
      %v2111 = vpack.c.b16 %v2097, %v2096
      %v2112 = vpack.c.b16 %v2099, %v2098
      %v2113 = vpack.c.b16 %v2101, %v2100
      %v2114 = vpack.c.b16 %v2103, %v2102
      %v2115 = vpack.c.b16 %v2105, %v2104
      %v2116 = vpack.c.b16 %v2107, %v2106
      %v2117 = vpack.c.b16 %v2109, %v2108
      %2126 = vmatpush.bf16.msra.mxu0 %v2117
      %2127 = vmatpush.bf16.msra.mxu0 %v2116
      %2128 = vmatpush.bf16.msra.mxu0 %v2115
      %2129 = vmatpush.bf16.msra.mxu0 %v2114
      %2130 = vmatpush.bf16.msra.mxu0 %v2113
      %2131 = vmatpush.bf16.msra.mxu0 %v2112
      %2132 = vmatpush.bf16.msra.mxu0 %v2111
      %2133 = vmatpush.bf16.msra.mxu0 %v2110
      %2134 = vmatmul.bf16.gmra.mxu0 %v2046
      %v2135 = vpop.f32.mrf.mxu0
      %v2136 = vadd.f32 0.0, %v2135
      %v2137 = vpop.f32.mrf.mxu0
      %v2138 = vadd.f32 0.0, %v2137
      %2139 = vmatmul.bf16.gmra.mxu0 %v2047
      %v2140 = vpop.f32.mrf.mxu0
      %v2141 = vadd.f32 0.0, %v2140
      %v2142 = vpop.f32.mrf.mxu0
      %v2143 = vadd.f32 0.0, %v2142
      %2144 = vmatmul.bf16.gmra.mxu0 %v2048
      %v2145 = vpop.f32.mrf.mxu0
      %v2146 = vadd.f32 0.0, %v2145
      %v2147 = vpop.f32.mrf.mxu0
      %v2148 = vadd.f32 0.0, %v2147
      %2149 = vmatmul.bf16.gmra.mxu0 %v2049
      %v2150 = vpop.f32.mrf.mxu0
      %v2151 = vadd.f32 0.0, %v2150
      %v2152 = vpop.f32.mrf.mxu0
      %v2153 = vadd.f32 0.0, %v2152
      %2154 = vmatmul.bf16.gmra.mxu0 %v2050
      %v2155 = vpop.f32.mrf.mxu0
      %v2156 = vadd.f32 0.0, %v2155
      %v2157 = vpop.f32.mrf.mxu0
      %v2158 = vadd.f32 0.0, %v2157
      %2159 = vmatmul.bf16.gmra.mxu0 %v2051
      %v2160 = vpop.f32.mrf.mxu0
      %v2161 = vadd.f32 0.0, %v2160
      %v2162 = vpop.f32.mrf.mxu0
      %v2163 = vadd.f32 0.0, %v2162
      %2164 = vmatmul.bf16.gmra.mxu0 %v2052
      %v2165 = vpop.f32.mrf.mxu0
      %v2166 = vadd.f32 0.0, %v2165
      %v2167 = vpop.f32.mrf.mxu0
      %v2168 = vadd.f32 0.0, %v2167
      %2169 = vmatmul.bf16.gmra.mxu0 %v2053
      %v2170 = vpop.f32.mrf.mxu0
      %v2171 = vadd.f32 0.0, %v2170
      %v2172 = vpop.f32.mrf.mxu0
      %v2173 = vadd.f32 0.0, %v2172
      %2174 = vmatmul.bf16.gmra.mxu0 %v2054
      %v2175 = vpop.f32.mrf.mxu0
      %v2176 = vadd.f32 0.0, %v2175
      %v2177 = vpop.f32.mrf.mxu0
      %v2178 = vadd.f32 0.0, %v2177
      %2179 = vmatmul.bf16.gmra.mxu0 %v2055
      %v2180 = vpop.f32.mrf.mxu0
      %v2181 = vadd.f32 0.0, %v2180
      %v2182 = vpop.f32.mrf.mxu0
      %v2183 = vadd.f32 0.0, %v2182
      %2184 = vmatmul.bf16.gmra.mxu0 %v2056
      %v2185 = vpop.f32.mrf.mxu0
      %v2186 = vadd.f32 0.0, %v2185
      %v2187 = vpop.f32.mrf.mxu0
      %v2188 = vadd.f32 0.0, %v2187
      %2189 = vmatmul.bf16.gmra.mxu0 %v2057
      %v2190 = vpop.f32.mrf.mxu0
      %v2191 = vadd.f32 0.0, %v2190
      %v2192 = vpop.f32.mrf.mxu0
      %v2193 = vadd.f32 0.0, %v2192
      %2194 = vmatmul.bf16.gmra.mxu0 %v2058
      %v2195 = vpop.f32.mrf.mxu0
      %v2196 = vadd.f32 0.0, %v2195
      %v2197 = vpop.f32.mrf.mxu0
      %v2198 = vadd.f32 0.0, %v2197
      %2199 = vmatmul.bf16.gmra.mxu0 %v2059
      %v2200 = vpop.f32.mrf.mxu0
      %v2201 = vadd.f32 0.0, %v2200
      %v2202 = vpop.f32.mrf.mxu0
      %v2203 = vadd.f32 0.0, %v2202
      %2204 = vmatmul.bf16.gmra.mxu0 %v2060
      %v2205 = vpop.f32.mrf.mxu0
      %v2206 = vadd.f32 0.0, %v2205
      %v2207 = vpop.f32.mrf.mxu0
      %v2208 = vadd.f32 0.0, %v2207
      %2209 = vmatmul.bf16.gmra.mxu0 %v2061
      %v2210 = vpop.f32.mrf.mxu0
      %v2211 = vadd.f32 0.0, %v2210
      %v2212 = vpop.f32.mrf.mxu0
      %v2213 = vadd.f32 0.0, %v2212
      %2214 = vdwg.mxu0
      %v2215 = vadd.f32 %v1755, %v2136
      %v2216 = vadd.f32 %v1757, %v2138
      %v2217 = vadd.f32 %v1760, %v2141
      %v2218 = vadd.f32 %v1762, %v2143
      %v2219 = vadd.f32 %v1765, %v2146
      %v2220 = vadd.f32 %v1767, %v2148
      %v2221 = vadd.f32 %v1770, %v2151
      %v2222 = vadd.f32 %v1772, %v2153
      %v2223 = vadd.f32 %v1775, %v2156
      %v2224 = vadd.f32 %v1777, %v2158
      %v2225 = vadd.f32 %v1780, %v2161
      %v2226 = vadd.f32 %v1782, %v2163
      %v2227 = vadd.f32 %v1785, %v2166
      %v2228 = vadd.f32 %v1787, %v2168
      %v2229 = vadd.f32 %v1790, %v2171
      %v2230 = vadd.f32 %v1792, %v2173
      %v2231 = vadd.f32 %v1795, %v2176
      %v2232 = vadd.f32 %v1797, %v2178
      %v2233 = vadd.f32 %v1800, %v2181
      %v2234 = vadd.f32 %v1802, %v2183
      %v2235 = vadd.f32 %v1805, %v2186
      %v2236 = vadd.f32 %v1807, %v2188
      %v2237 = vadd.f32 %v1810, %v2191
      %v2238 = vadd.f32 %v1812, %v2193
      %v2239 = vadd.f32 %v1815, %v2196
      %v2240 = vadd.f32 %v1817, %v2198
      %v2241 = vadd.f32 %v1820, %v2201
      %v2242 = vadd.f32 %v1822, %v2203
      %v2243 = vadd.f32 %v1825, %v2206
      %v2244 = vadd.f32 %v1827, %v2208
      %v2245 = vadd.f32 %v1830, %v2211
      %v2246 = vadd.f32 %v1832, %v2213
      %v2247 = vld [vmem:[%s814] sm:$0xf]
      %v2248 = vld [vmem:[%s814 + $0x4] sm:$0xf]
      %v2249 = vld [vmem:[%s814 + $0xc] sm:$0xf]
      %v2250 = vld [vmem:[%s814 + $0x10] sm:$0xf]
      %v2251 = vld [vmem:[%s814 + $0x18] sm:$0xf]
      %v2252 = vld [vmem:[%s814 + $0x1c] sm:$0xf]
      %v2253 = vld [vmem:[%s814 + $0x24] sm:$0xf]
      %v2254 = vld [vmem:[%s814 + $0x28] sm:$0xf]
      %v2255 = vld [vmem:[%s814 + $0x30] sm:$0xf]
      %v2256 = vld [vmem:[%s814 + $0x34] sm:$0xf]
      %v2257 = vld [vmem:[%s814 + $0x3c] sm:$0xf]
      %v2258 = vld [vmem:[%s814 + $0x40] sm:$0xf]
      %v2259 = vld [vmem:[%s814 + $0x48] sm:$0xf]
      %v2260 = vld [vmem:[%s814 + $0x4c] sm:$0xf]
      %v2261 = vld [vmem:[%s814 + $0x54] sm:$0xf]
      %v2262 = vld [vmem:[%s814 + $0x58] sm:$0xf]
      %v2263 = vld [vmem:[%s814 + $0x60] sm:$0xf]
      %v2264 = vld [vmem:[%s814 + $0x64] sm:$0xf]
      %v2265 = vld [vmem:[%s814 + $0x6c] sm:$0xf]
      %v2266 = vld [vmem:[%s814 + $0x70] sm:$0xf]
      %v2267 = vld [vmem:[%s814 + $0x78] sm:$0xf]
      %v2268 = vld [vmem:[%s814 + $0x7c] sm:$0xf]
      %v2269 = vld [vmem:[%s814 + $0x84] sm:$0xf]
      %v2270 = vld [vmem:[%s814 + $0x88] sm:$0xf]
      %v2271 = vld [vmem:[%s814 + $0x90] sm:$0xf]
      %v2272 = vld [vmem:[%s814 + $0x94] sm:$0xf]
      %v2273 = vld [vmem:[%s814 + $0x9c] sm:$0xf]
      %v2274 = vld [vmem:[%s814 + $0xa0] sm:$0xf]
      %v2275 = vld [vmem:[%s814 + $0xa8] sm:$0xf]
      %v2276 = vld [vmem:[%s814 + $0xac] sm:$0xf]
      %v2277 = vld [vmem:[%s814 + $0xb4] sm:$0xf]
      %v2278 = vld [vmem:[%s814 + $0xb8] sm:$0xf]
      %s2279 = scalar_lea.vmem %s3, 192
      %v2280 = vld [vmem:[%s2279] sm:$0xf]
      %v2281 = vld [vmem:[%s2279 + $0x4] sm:$0xf]
      %v2282 = vld [vmem:[%s2279 + $0x8] sm:$0xf]
      %v2283 = vld [vmem:[%s2279 + $0xc] sm:$0xf]
      %v2284 = vld [vmem:[%s2279 + $0x10] sm:$0xf]
      %v2285 = vld [vmem:[%s2279 + $0x14] sm:$0xf]
      %v2286 = vld [vmem:[%s2279 + $0x18] sm:$0xf]
      %v2287 = vld [vmem:[%s2279 + $0x1c] sm:$0xf]
      %v2288 = vld [vmem:[%s2279 + $0x20] sm:$0xf]
      %v2289 = vld [vmem:[%s2279 + $0x24] sm:$0xf]
      %v2290 = vld [vmem:[%s2279 + $0x28] sm:$0xf]
      %v2291 = vld [vmem:[%s2279 + $0x2c] sm:$0xf]
      %v2292 = vld [vmem:[%s2279 + $0x30] sm:$0xf]
      %v2293 = vld [vmem:[%s2279 + $0x34] sm:$0xf]
      %v2294 = vld [vmem:[%s2279 + $0x38] sm:$0xf]
      %v2295 = vld [vmem:[%s2279 + $0x3c] sm:$0xf]
      %v2328 = vunpack.c.l.b16 %v2247
      %v2329 = vunpack.c.l.b16 %v2248
      %v2330 = vunpack.c.l.b16 %v2249
      %v2331 = vunpack.c.l.b16 %v2250
      %v2332 = vunpack.c.l.b16 %v2251
      %v2333 = vunpack.c.l.b16 %v2252
      %v2334 = vunpack.c.l.b16 %v2253
      %v2335 = vunpack.c.l.b16 %v2254
      %v2336 = vunpack.c.l.b16 %v2255
      %v2337 = vunpack.c.l.b16 %v2256
      %v2338 = vunpack.c.l.b16 %v2257
      %v2339 = vunpack.c.l.b16 %v2258
      %v2340 = vunpack.c.l.b16 %v2259
      %v2341 = vunpack.c.l.b16 %v2260
      %v2342 = vunpack.c.l.b16 %v2261
      %v2343 = vunpack.c.l.b16 %v2262
      %v2344 = vunpack.c.l.b16 %v2263
      %v2345 = vunpack.c.l.b16 %v2264
      %v2346 = vunpack.c.l.b16 %v2265
      %v2347 = vunpack.c.l.b16 %v2266
      %v2348 = vunpack.c.l.b16 %v2267
      %v2349 = vunpack.c.l.b16 %v2268
      %v2350 = vunpack.c.l.b16 %v2269
      %v2351 = vunpack.c.l.b16 %v2270
      %v2352 = vunpack.c.l.b16 %v2271
      %v2353 = vunpack.c.l.b16 %v2272
      %v2354 = vunpack.c.l.b16 %v2273
      %v2355 = vunpack.c.l.b16 %v2274
      %v2356 = vunpack.c.l.b16 %v2275
      %v2357 = vunpack.c.l.b16 %v2276
      %v2358 = vunpack.c.l.b16 %v2277
      %v2359 = vunpack.c.l.b16 %v2278
      %v2360 = vpack.c.b16 %v2329, %v2328
      %v2361 = vpack.c.b16 %v2331, %v2330
      %v2362 = vpack.c.b16 %v2333, %v2332
      %v2363 = vpack.c.b16 %v2335, %v2334
      %v2364 = vpack.c.b16 %v2337, %v2336
      %v2365 = vpack.c.b16 %v2339, %v2338
      %v2366 = vpack.c.b16 %v2341, %v2340
      %v2367 = vpack.c.b16 %v2343, %v2342
      %v2368 = vpack.c.b16 %v2345, %v2344
      %v2369 = vpack.c.b16 %v2347, %v2346
      %v2370 = vpack.c.b16 %v2349, %v2348
      %v2371 = vpack.c.b16 %v2351, %v2350
      %v2372 = vpack.c.b16 %v2353, %v2352
      %v2373 = vpack.c.b16 %v2355, %v2354
      %v2374 = vpack.c.b16 %v2357, %v2356
      %v2375 = vpack.c.b16 %v2359, %v2358
      %v2408 = vunpack.c.l.b16 %v2280
      %v2409 = vunpack.c.l.b16 %v2281
      %v2410 = vunpack.c.l.b16 %v2282
      %v2411 = vunpack.c.l.b16 %v2283
      %v2412 = vunpack.c.l.b16 %v2284
      %v2413 = vunpack.c.l.b16 %v2285
      %v2414 = vunpack.c.l.b16 %v2286
      %v2415 = vunpack.c.l.b16 %v2287
      %v2416 = vunpack.c.l.b16 %v2288
      %v2417 = vunpack.c.l.b16 %v2289
      %v2418 = vunpack.c.l.b16 %v2290
      %v2419 = vunpack.c.l.b16 %v2291
      %v2420 = vunpack.c.l.b16 %v2292
      %v2421 = vunpack.c.l.b16 %v2293
      %v2422 = vunpack.c.l.b16 %v2294
      %v2423 = vunpack.c.l.b16 %v2295
      %v2424 = vpack.c.b16 %v2409, %v2408
      %v2425 = vpack.c.b16 %v2411, %v2410
      %v2426 = vpack.c.b16 %v2413, %v2412
      %v2427 = vpack.c.b16 %v2415, %v2414
      %v2428 = vpack.c.b16 %v2417, %v2416
      %v2429 = vpack.c.b16 %v2419, %v2418
      %v2430 = vpack.c.b16 %v2421, %v2420
      %v2431 = vpack.c.b16 %v2423, %v2422
      %2440 = vmatpush.bf16.msra.mxu0 %v2431
      %2441 = vmatpush.bf16.msra.mxu0 %v2430
      %2442 = vmatpush.bf16.msra.mxu0 %v2429
      %2443 = vmatpush.bf16.msra.mxu0 %v2428
      %2444 = vmatpush.bf16.msra.mxu0 %v2427
      %2445 = vmatpush.bf16.msra.mxu0 %v2426
      %2446 = vmatpush.bf16.msra.mxu0 %v2425
      %2447 = vmatpush.bf16.msra.mxu0 %v2424
      %2448 = vmatmul.bf16.gmra.mxu0 %v2360
      %v2449 = vpop.f32.mrf.mxu0
      %v2450 = vadd.f32 0.0, %v2449
      %v2451 = vpop.f32.mrf.mxu0
      %v2452 = vadd.f32 0.0, %v2451
      %2453 = vmatmul.bf16.gmra.mxu0 %v2361
      %v2454 = vpop.f32.mrf.mxu0
      %v2455 = vadd.f32 0.0, %v2454
      %v2456 = vpop.f32.mrf.mxu0
      %v2457 = vadd.f32 0.0, %v2456
      %2458 = vmatmul.bf16.gmra.mxu0 %v2362
      %v2459 = vpop.f32.mrf.mxu0
      %v2460 = vadd.f32 0.0, %v2459
      %v2461 = vpop.f32.mrf.mxu0
      %v2462 = vadd.f32 0.0, %v2461
      %2463 = vmatmul.bf16.gmra.mxu0 %v2363
      %v2464 = vpop.f32.mrf.mxu0
      %v2465 = vadd.f32 0.0, %v2464
      %v2466 = vpop.f32.mrf.mxu0
      %v2467 = vadd.f32 0.0, %v2466
      %2468 = vmatmul.bf16.gmra.mxu0 %v2364
      %v2469 = vpop.f32.mrf.mxu0
      %v2470 = vadd.f32 0.0, %v2469
      %v2471 = vpop.f32.mrf.mxu0
      %v2472 = vadd.f32 0.0, %v2471
      %2473 = vmatmul.bf16.gmra.mxu0 %v2365
      %v2474 = vpop.f32.mrf.mxu0
      %v2475 = vadd.f32 0.0, %v2474
      %v2476 = vpop.f32.mrf.mxu0
      %v2477 = vadd.f32 0.0, %v2476
      %2478 = vmatmul.bf16.gmra.mxu0 %v2366
      %v2479 = vpop.f32.mrf.mxu0
      %v2480 = vadd.f32 0.0, %v2479
      %v2481 = vpop.f32.mrf.mxu0
      %v2482 = vadd.f32 0.0, %v2481
      %2483 = vmatmul.bf16.gmra.mxu0 %v2367
      %v2484 = vpop.f32.mrf.mxu0
      %v2485 = vadd.f32 0.0, %v2484
      %v2486 = vpop.f32.mrf.mxu0
      %v2487 = vadd.f32 0.0, %v2486
      %2488 = vmatmul.bf16.gmra.mxu0 %v2368
      %v2489 = vpop.f32.mrf.mxu0
      %v2490 = vadd.f32 0.0, %v2489
      %v2491 = vpop.f32.mrf.mxu0
      %v2492 = vadd.f32 0.0, %v2491
      %2493 = vmatmul.bf16.gmra.mxu0 %v2369
      %v2494 = vpop.f32.mrf.mxu0
      %v2495 = vadd.f32 0.0, %v2494
      %v2496 = vpop.f32.mrf.mxu0
      %v2497 = vadd.f32 0.0, %v2496
      %2498 = vmatmul.bf16.gmra.mxu0 %v2370
      %v2499 = vpop.f32.mrf.mxu0
      %v2500 = vadd.f32 0.0, %v2499
      %v2501 = vpop.f32.mrf.mxu0
      %v2502 = vadd.f32 0.0, %v2501
      %2503 = vmatmul.bf16.gmra.mxu0 %v2371
      %v2504 = vpop.f32.mrf.mxu0
      %v2505 = vadd.f32 0.0, %v2504
      %v2506 = vpop.f32.mrf.mxu0
      %v2507 = vadd.f32 0.0, %v2506
      %2508 = vmatmul.bf16.gmra.mxu0 %v2372
      %v2509 = vpop.f32.mrf.mxu0
      %v2510 = vadd.f32 0.0, %v2509
      %v2511 = vpop.f32.mrf.mxu0
      %v2512 = vadd.f32 0.0, %v2511
      %2513 = vmatmul.bf16.gmra.mxu0 %v2373
      %v2514 = vpop.f32.mrf.mxu0
      %v2515 = vadd.f32 0.0, %v2514
      %v2516 = vpop.f32.mrf.mxu0
      %v2517 = vadd.f32 0.0, %v2516
      %2518 = vmatmul.bf16.gmra.mxu0 %v2374
      %v2519 = vpop.f32.mrf.mxu0
      %v2520 = vadd.f32 0.0, %v2519
      %v2521 = vpop.f32.mrf.mxu0
      %v2522 = vadd.f32 0.0, %v2521
      %2523 = vmatmul.bf16.gmra.mxu0 %v2375
      %v2524 = vpop.f32.mrf.mxu0
      %v2525 = vadd.f32 0.0, %v2524
      %v2526 = vpop.f32.mrf.mxu0
      %v2527 = vadd.f32 0.0, %v2526
      %2528 = vdwg.mxu0
      %v2529 = vadd.f32 %v2215, %v2450
      %v2530 = vadd.f32 %v2216, %v2452
      %v2531 = vadd.f32 %v2217, %v2455
      %v2532 = vadd.f32 %v2218, %v2457
      %v2533 = vadd.f32 %v2219, %v2460
      %v2534 = vadd.f32 %v2220, %v2462
      %v2535 = vadd.f32 %v2221, %v2465
      %v2536 = vadd.f32 %v2222, %v2467
      %v2537 = vadd.f32 %v2223, %v2470
      %v2538 = vadd.f32 %v2224, %v2472
      %v2539 = vadd.f32 %v2225, %v2475
      %v2540 = vadd.f32 %v2226, %v2477
      %v2541 = vadd.f32 %v2227, %v2480
      %v2542 = vadd.f32 %v2228, %v2482
      %v2543 = vadd.f32 %v2229, %v2485
      %v2544 = vadd.f32 %v2230, %v2487
      %v2545 = vadd.f32 %v2231, %v2490
      %v2546 = vadd.f32 %v2232, %v2492
      %v2547 = vadd.f32 %v2233, %v2495
      %v2548 = vadd.f32 %v2234, %v2497
      %v2549 = vadd.f32 %v2235, %v2500
      %v2550 = vadd.f32 %v2236, %v2502
      %v2551 = vadd.f32 %v2237, %v2505
      %v2552 = vadd.f32 %v2238, %v2507
      %v2553 = vadd.f32 %v2239, %v2510
      %v2554 = vadd.f32 %v2240, %v2512
      %v2555 = vadd.f32 %v2241, %v2515
      %v2556 = vadd.f32 %v2242, %v2517
      %v2557 = vadd.f32 %v2243, %v2520
      %v2558 = vadd.f32 %v2244, %v2522
      %v2559 = vadd.f32 %v2245, %v2525
      %v2560 = vadd.f32 %v2246, %v2527
      %v2561 = vld [vmem:[%s814] sm:$0xf]
      %v2562 = vld [vmem:[%s814 + $0x4] sm:$0xf]
      %v2563 = vld [vmem:[%s814 + $0x8] sm:$0x1]
      %v2564 = vld [vmem:[%s814 + $0xc] sm:$0xf]
      %v2565 = vld [vmem:[%s814 + $0x10] sm:$0xf]
      %v2566 = vld [vmem:[%s814 + $0x14] sm:$0x1]
      %v2567 = vld [vmem:[%s814 + $0x18] sm:$0xf]
      %v2568 = vld [vmem:[%s814 + $0x1c] sm:$0xf]
      %v2569 = vld [vmem:[%s814 + $0x20] sm:$0x1]
      %v2570 = vld [vmem:[%s814 + $0x24] sm:$0xf]
      %v2571 = vld [vmem:[%s814 + $0x28] sm:$0xf]
      %v2572 = vld [vmem:[%s814 + $0x2c] sm:$0x1]
      %v2573 = vld [vmem:[%s814 + $0x30] sm:$0xf]
      %v2574 = vld [vmem:[%s814 + $0x34] sm:$0xf]
      %v2575 = vld [vmem:[%s814 + $0x38] sm:$0x1]
      %v2576 = vld [vmem:[%s814 + $0x3c] sm:$0xf]
      %v2577 = vld [vmem:[%s814 + $0x40] sm:$0xf]
      %v2578 = vld [vmem:[%s814 + $0x44] sm:$0x1]
      %v2579 = vld [vmem:[%s814 + $0x48] sm:$0xf]
      %v2580 = vld [vmem:[%s814 + $0x4c] sm:$0xf]
      %v2581 = vld [vmem:[%s814 + $0x50] sm:$0x1]
      %v2582 = vld [vmem:[%s814 + $0x54] sm:$0xf]
      %v2583 = vld [vmem:[%s814 + $0x58] sm:$0xf]
      %v2584 = vld [vmem:[%s814 + $0x5c] sm:$0x1]
      %v2585 = vld [vmem:[%s814 + $0x60] sm:$0xf]
      %v2586 = vld [vmem:[%s814 + $0x64] sm:$0xf]
      %v2587 = vld [vmem:[%s814 + $0x68] sm:$0x1]
      %v2588 = vld [vmem:[%s814 + $0x6c] sm:$0xf]
      %v2589 = vld [vmem:[%s814 + $0x70] sm:$0xf]
      %v2590 = vld [vmem:[%s814 + $0x74] sm:$0x1]
      %v2591 = vld [vmem:[%s814 + $0x78] sm:$0xf]
      %v2592 = vld [vmem:[%s814 + $0x7c] sm:$0xf]
      %v2593 = vld [vmem:[%s814 + $0x80] sm:$0x1]
      %v2594 = vld [vmem:[%s814 + $0x84] sm:$0xf]
      %v2595 = vld [vmem:[%s814 + $0x88] sm:$0xf]
      %v2596 = vld [vmem:[%s814 + $0x8c] sm:$0x1]
      %v2597 = vld [vmem:[%s814 + $0x90] sm:$0xf]
      %v2598 = vld [vmem:[%s814 + $0x94] sm:$0xf]
      %v2599 = vld [vmem:[%s814 + $0x98] sm:$0x1]
      %v2600 = vld [vmem:[%s814 + $0x9c] sm:$0xf]
      %v2601 = vld [vmem:[%s814 + $0xa0] sm:$0xf]
      %v2602 = vld [vmem:[%s814 + $0xa4] sm:$0x1]
      %v2603 = vld [vmem:[%s814 + $0xa8] sm:$0xf]
      %v2604 = vld [vmem:[%s814 + $0xac] sm:$0xf]
      %v2605 = vld [vmem:[%s814 + $0xb0] sm:$0x1]
      %v2606 = vld [vmem:[%s814 + $0xb4] sm:$0xf]
      %v2607 = vld [vmem:[%s814 + $0xb8] sm:$0xf]
      %v2608 = vld [vmem:[%s814 + $0xbc] sm:$0x1]
      %v2610 = vshrl.u32 %v2561, 16
      %v2612 = vrot.slane %v2610, 4
      %v2613 = vshll.u32 %v2561, 16
      %v2615 = vrot.slane %v2613, 5
      %v2616 = vor.u32 %v2612, %v2615
      %v2617 = vrot.slane %v2616, 4
      %v2619 = vshll.u32 %v2562, 16
      %v2621 = vrot.slane %v2619, 5
      %v2622 = vsel %vm998, %v2617, %v2621
      %v2623 = vshrl.u32 %v2562, 16
      %v2625 = vrot.slane %v2623, 4
      %v2626 = vor.u32 %v2625, %v2621
      %v2627 = vrot.slane %v2626, 4
      %v2629 = vshll.u32 %v2563, 16
      %v2631 = vrot.slane %v2629, 5
      %v2632 = vsel %vm998, %v2627, %v2631
      %v2634 = vshrl.u32 %v2564, 16
      %v2636 = vrot.slane %v2634, 4
      %v2637 = vshll.u32 %v2564, 16
      %v2639 = vrot.slane %v2637, 5
      %v2640 = vor.u32 %v2636, %v2639
      %v2641 = vrot.slane %v2640, 4
      %v2643 = vshll.u32 %v2565, 16
      %v2645 = vrot.slane %v2643, 5
      %v2646 = vsel %vm998, %v2641, %v2645
      %v2647 = vshrl.u32 %v2565, 16
      %v2649 = vrot.slane %v2647, 4
      %v2650 = vor.u32 %v2649, %v2645
      %v2651 = vrot.slane %v2650, 4
      %v2653 = vshll.u32 %v2566, 16
      %v2655 = vrot.slane %v2653, 5
      %v2656 = vsel %vm998, %v2651, %v2655
      %v2658 = vshrl.u32 %v2567, 16
      %v2660 = vrot.slane %v2658, 4
      %v2661 = vshll.u32 %v2567, 16
      %v2663 = vrot.slane %v2661, 5
      %v2664 = vor.u32 %v2660, %v2663
      %v2665 = vrot.slane %v2664, 4
      %v2667 = vshll.u32 %v2568, 16
      %v2669 = vrot.slane %v2667, 5
      %v2670 = vsel %vm998, %v2665, %v2669
      %v2671 = vshrl.u32 %v2568, 16
      %v2673 = vrot.slane %v2671, 4
      %v2674 = vor.u32 %v2673, %v2669
      %v2675 = vrot.slane %v2674, 4
      %v2677 = vshll.u32 %v2569, 16
      %v2679 = vrot.slane %v2677, 5
      %v2680 = vsel %vm998, %v2675, %v2679
      %v2682 = vshrl.u32 %v2570, 16
      %v2684 = vrot.slane %v2682, 4
      %v2685 = vshll.u32 %v2570, 16
      %v2687 = vrot.slane %v2685, 5
      %v2688 = vor.u32 %v2684, %v2687
      %v2689 = vrot.slane %v2688, 4
      %v2691 = vshll.u32 %v2571, 16
      %v2693 = vrot.slane %v2691, 5
      %v2694 = vsel %vm998, %v2689, %v2693
      %v2695 = vshrl.u32 %v2571, 16
      %v2697 = vrot.slane %v2695, 4
      %v2698 = vor.u32 %v2697, %v2693
      %v2699 = vrot.slane %v2698, 4
      %v2701 = vshll.u32 %v2572, 16
      %v2703 = vrot.slane %v2701, 5
      %v2704 = vsel %vm998, %v2699, %v2703
      %v2706 = vshrl.u32 %v2573, 16
      %v2708 = vrot.slane %v2706, 4
      %v2709 = vshll.u32 %v2573, 16
      %v2711 = vrot.slane %v2709, 5
      %v2712 = vor.u32 %v2708, %v2711
      %v2713 = vrot.slane %v2712, 4
      %v2715 = vshll.u32 %v2574, 16
      %v2717 = vrot.slane %v2715, 5
      %v2718 = vsel %vm998, %v2713, %v2717
      %v2719 = vshrl.u32 %v2574, 16
      %v2721 = vrot.slane %v2719, 4
      %v2722 = vor.u32 %v2721, %v2717
      %v2723 = vrot.slane %v2722, 4
      %v2725 = vshll.u32 %v2575, 16
      %v2727 = vrot.slane %v2725, 5
      %v2728 = vsel %vm998, %v2723, %v2727
      %v2730 = vshrl.u32 %v2576, 16
      %v2732 = vrot.slane %v2730, 4
      %v2733 = vshll.u32 %v2576, 16
      %v2735 = vrot.slane %v2733, 5
      %v2736 = vor.u32 %v2732, %v2735
      %v2737 = vrot.slane %v2736, 4
      %v2739 = vshll.u32 %v2577, 16
      %v2741 = vrot.slane %v2739, 5
      %v2742 = vsel %vm998, %v2737, %v2741
      %v2743 = vshrl.u32 %v2577, 16
      %v2745 = vrot.slane %v2743, 4
      %v2746 = vor.u32 %v2745, %v2741
      %v2747 = vrot.slane %v2746, 4
      %v2749 = vshll.u32 %v2578, 16
      %v2751 = vrot.slane %v2749, 5
      %v2752 = vsel %vm998, %v2747, %v2751
      %v2754 = vshrl.u32 %v2579, 16
      %v2756 = vrot.slane %v2754, 4
      %v2757 = vshll.u32 %v2579, 16
      %v2759 = vrot.slane %v2757, 5
      %v2760 = vor.u32 %v2756, %v2759
      %v2761 = vrot.slane %v2760, 4
      %v2763 = vshll.u32 %v2580, 16
      %v2765 = vrot.slane %v2763, 5
      %v2766 = vsel %vm998, %v2761, %v2765
      %v2767 = vshrl.u32 %v2580, 16
      %v2769 = vrot.slane %v2767, 4
      %v2770 = vor.u32 %v2769, %v2765
      %v2771 = vrot.slane %v2770, 4
      %v2773 = vshll.u32 %v2581, 16
      %v2775 = vrot.slane %v2773, 5
      %v2776 = vsel %vm998, %v2771, %v2775
      %v2778 = vshrl.u32 %v2582, 16
      %v2780 = vrot.slane %v2778, 4
      %v2781 = vshll.u32 %v2582, 16
      %v2783 = vrot.slane %v2781, 5
      %v2784 = vor.u32 %v2780, %v2783
      %v2785 = vrot.slane %v2784, 4
      %v2787 = vshll.u32 %v2583, 16
      %v2789 = vrot.slane %v2787, 5
      %v2790 = vsel %vm998, %v2785, %v2789
      %v2791 = vshrl.u32 %v2583, 16
      %v2793 = vrot.slane %v2791, 4
      %v2794 = vor.u32 %v2793, %v2789
      %v2795 = vrot.slane %v2794, 4
      %v2797 = vshll.u32 %v2584, 16
      %v2799 = vrot.slane %v2797, 5
      %v2800 = vsel %vm998, %v2795, %v2799
      %v2802 = vshrl.u32 %v2585, 16
      %v2804 = vrot.slane %v2802, 4
      %v2805 = vshll.u32 %v2585, 16
      %v2807 = vrot.slane %v2805, 5
      %v2808 = vor.u32 %v2804, %v2807
      %v2809 = vrot.slane %v2808, 4
      %v2811 = vshll.u32 %v2586, 16
      %v2813 = vrot.slane %v2811, 5
      %v2814 = vsel %vm998, %v2809, %v2813
      %v2815 = vshrl.u32 %v2586, 16
      %v2817 = vrot.slane %v2815, 4
      %v2818 = vor.u32 %v2817, %v2813
      %v2819 = vrot.slane %v2818, 4
      %v2821 = vshll.u32 %v2587, 16
      %v2823 = vrot.slane %v2821, 5
      %v2824 = vsel %vm998, %v2819, %v2823
      %v2826 = vshrl.u32 %v2588, 16
      %v2828 = vrot.slane %v2826, 4
      %v2829 = vshll.u32 %v2588, 16
      %v2831 = vrot.slane %v2829, 5
      %v2832 = vor.u32 %v2828, %v2831
      %v2833 = vrot.slane %v2832, 4
      %v2835 = vshll.u32 %v2589, 16
      %v2837 = vrot.slane %v2835, 5
      %v2838 = vsel %vm998, %v2833, %v2837
      %v2839 = vshrl.u32 %v2589, 16
      %v2841 = vrot.slane %v2839, 4
      %v2842 = vor.u32 %v2841, %v2837
      %v2843 = vrot.slane %v2842, 4
      %v2845 = vshll.u32 %v2590, 16
      %v2847 = vrot.slane %v2845, 5
      %v2848 = vsel %vm998, %v2843, %v2847
      %v2850 = vshrl.u32 %v2591, 16
      %v2852 = vrot.slane %v2850, 4
      %v2853 = vshll.u32 %v2591, 16
      %v2855 = vrot.slane %v2853, 5
      %v2856 = vor.u32 %v2852, %v2855
      %v2857 = vrot.slane %v2856, 4
      %v2859 = vshll.u32 %v2592, 16
      %v2861 = vrot.slane %v2859, 5
      %v2862 = vsel %vm998, %v2857, %v2861
      %v2863 = vshrl.u32 %v2592, 16
      %v2865 = vrot.slane %v2863, 4
      %v2866 = vor.u32 %v2865, %v2861
      %v2867 = vrot.slane %v2866, 4
      %v2869 = vshll.u32 %v2593, 16
      %v2871 = vrot.slane %v2869, 5
      %v2872 = vsel %vm998, %v2867, %v2871
      %v2874 = vshrl.u32 %v2594, 16
      %v2876 = vrot.slane %v2874, 4
      %v2877 = vshll.u32 %v2594, 16
      %v2879 = vrot.slane %v2877, 5
      %v2880 = vor.u32 %v2876, %v2879
      %v2881 = vrot.slane %v2880, 4
      %v2883 = vshll.u32 %v2595, 16
      %v2885 = vrot.slane %v2883, 5
      %v2886 = vsel %vm998, %v2881, %v2885
      %v2887 = vshrl.u32 %v2595, 16
      %v2889 = vrot.slane %v2887, 4
      %v2890 = vor.u32 %v2889, %v2885
      %v2891 = vrot.slane %v2890, 4
      %v2893 = vshll.u32 %v2596, 16
      %v2895 = vrot.slane %v2893, 5
      %v2896 = vsel %vm998, %v2891, %v2895
      %v2898 = vshrl.u32 %v2597, 16
      %v2900 = vrot.slane %v2898, 4
      %v2901 = vshll.u32 %v2597, 16
      %v2903 = vrot.slane %v2901, 5
      %v2904 = vor.u32 %v2900, %v2903
      %v2905 = vrot.slane %v2904, 4
      %v2907 = vshll.u32 %v2598, 16
      %v2909 = vrot.slane %v2907, 5
      %v2910 = vsel %vm998, %v2905, %v2909
      %v2911 = vshrl.u32 %v2598, 16
      %v2913 = vrot.slane %v2911, 4
      %v2914 = vor.u32 %v2913, %v2909
      %v2915 = vrot.slane %v2914, 4
      %v2917 = vshll.u32 %v2599, 16
      %v2919 = vrot.slane %v2917, 5
      %v2920 = vsel %vm998, %v2915, %v2919
      %v2922 = vshrl.u32 %v2600, 16
      %v2924 = vrot.slane %v2922, 4
      %v2925 = vshll.u32 %v2600, 16
      %v2927 = vrot.slane %v2925, 5
      %v2928 = vor.u32 %v2924, %v2927
      %v2929 = vrot.slane %v2928, 4
      %v2931 = vshll.u32 %v2601, 16
      %v2933 = vrot.slane %v2931, 5
      %v2934 = vsel %vm998, %v2929, %v2933
      %v2935 = vshrl.u32 %v2601, 16
      %v2937 = vrot.slane %v2935, 4
      %v2938 = vor.u32 %v2937, %v2933
      %v2939 = vrot.slane %v2938, 4
      %v2941 = vshll.u32 %v2602, 16
      %v2943 = vrot.slane %v2941, 5
      %v2944 = vsel %vm998, %v2939, %v2943
      %v2946 = vshrl.u32 %v2603, 16
      %v2948 = vrot.slane %v2946, 4
      %v2949 = vshll.u32 %v2603, 16
      %v2951 = vrot.slane %v2949, 5
      %v2952 = vor.u32 %v2948, %v2951
      %v2953 = vrot.slane %v2952, 4
      %v2955 = vshll.u32 %v2604, 16
      %v2957 = vrot.slane %v2955, 5
      %v2958 = vsel %vm998, %v2953, %v2957
      %v2959 = vshrl.u32 %v2604, 16
      %v2961 = vrot.slane %v2959, 4
      %v2962 = vor.u32 %v2961, %v2957
      %v2963 = vrot.slane %v2962, 4
      %v2965 = vshll.u32 %v2605, 16
      %v2967 = vrot.slane %v2965, 5
      %v2968 = vsel %vm998, %v2963, %v2967
      %v2970 = vshrl.u32 %v2606, 16
      %v2972 = vrot.slane %v2970, 4
      %v2973 = vshll.u32 %v2606, 16
      %v2975 = vrot.slane %v2973, 5
      %v2976 = vor.u32 %v2972, %v2975
      %v2977 = vrot.slane %v2976, 4
      %v2979 = vshll.u32 %v2607, 16
      %v2981 = vrot.slane %v2979, 5
      %v2982 = vsel %vm998, %v2977, %v2981
      %v2983 = vshrl.u32 %v2607, 16
      %v2985 = vrot.slane %v2983, 4
      %v2986 = vor.u32 %v2985, %v2981
      %v2987 = vrot.slane %v2986, 4
      %v2989 = vshll.u32 %v2608, 16
      %v2991 = vrot.slane %v2989, 5
      %v2992 = vsel %vm998, %v2987, %v2991
      %s2993 = scalar_lea.vmem %s3, 256
      %v2994 = vld [vmem:[%s2993] sm:$0xf]
      %v2995 = vld [vmem:[%s2993 + $0x4] sm:$0xf]
      %v2996 = vld [vmem:[%s2993 + $0x8] sm:$0xf]
      %v2997 = vld [vmem:[%s2993 + $0xc] sm:$0xf]
      %v2998 = vld [vmem:[%s2993 + $0x10] sm:$0xf]
      %v2999 = vld [vmem:[%s2993 + $0x14] sm:$0xf]
      %v3000 = vld [vmem:[%s2993 + $0x18] sm:$0xf]
      %v3001 = vld [vmem:[%s2993 + $0x1c] sm:$0xf]
      %v3002 = vld [vmem:[%s2993 + $0x20] sm:$0xf]
      %v3003 = vld [vmem:[%s2993 + $0x24] sm:$0xf]
      %v3004 = vld [vmem:[%s2993 + $0x28] sm:$0xf]
      %v3005 = vld [vmem:[%s2993 + $0x2c] sm:$0xf]
      %v3006 = vld [vmem:[%s2993 + $0x30] sm:$0xf]
      %v3007 = vld [vmem:[%s2993 + $0x34] sm:$0xf]
      %v3008 = vld [vmem:[%s2993 + $0x38] sm:$0xf]
      %v3009 = vld [vmem:[%s2993 + $0x3c] sm:$0xf]
      %v3010 = vunpack.c.l.b16 %v2622
      %v3011 = vunpack.c.l.b16 %v2632
      %v3012 = vunpack.c.l.b16 %v2646
      %v3013 = vunpack.c.l.b16 %v2656
      %v3014 = vunpack.c.l.b16 %v2670
      %v3015 = vunpack.c.l.b16 %v2680
      %v3016 = vunpack.c.l.b16 %v2694
      %v3017 = vunpack.c.l.b16 %v2704
      %v3018 = vunpack.c.l.b16 %v2718
      %v3019 = vunpack.c.l.b16 %v2728
      %v3020 = vunpack.c.l.b16 %v2742
      %v3021 = vunpack.c.l.b16 %v2752
      %v3022 = vunpack.c.l.b16 %v2766
      %v3023 = vunpack.c.l.b16 %v2776
      %v3024 = vunpack.c.l.b16 %v2790
      %v3025 = vunpack.c.l.b16 %v2800
      %v3026 = vunpack.c.l.b16 %v2814
      %v3027 = vunpack.c.l.b16 %v2824
      %v3028 = vunpack.c.l.b16 %v2838
      %v3029 = vunpack.c.l.b16 %v2848
      %v3030 = vunpack.c.l.b16 %v2862
      %v3031 = vunpack.c.l.b16 %v2872
      %v3032 = vunpack.c.l.b16 %v2886
      %v3033 = vunpack.c.l.b16 %v2896
      %v3034 = vunpack.c.l.b16 %v2910
      %v3035 = vunpack.c.l.b16 %v2920
      %v3036 = vunpack.c.l.b16 %v2934
      %v3037 = vunpack.c.l.b16 %v2944
      %v3038 = vunpack.c.l.b16 %v2958
      %v3039 = vunpack.c.l.b16 %v2968
      %v3040 = vunpack.c.l.b16 %v2982
      %v3041 = vunpack.c.l.b16 %v2992
      %v3042 = vpack.c.b16 %v3011, %v3010
      %v3043 = vpack.c.b16 %v3013, %v3012
      %v3044 = vpack.c.b16 %v3015, %v3014
      %v3045 = vpack.c.b16 %v3017, %v3016
      %v3046 = vpack.c.b16 %v3019, %v3018
      %v3047 = vpack.c.b16 %v3021, %v3020
      %v3048 = vpack.c.b16 %v3023, %v3022
      %v3049 = vpack.c.b16 %v3025, %v3024
      %v3050 = vpack.c.b16 %v3027, %v3026
      %v3051 = vpack.c.b16 %v3029, %v3028
      %v3052 = vpack.c.b16 %v3031, %v3030
      %v3053 = vpack.c.b16 %v3033, %v3032
      %v3054 = vpack.c.b16 %v3035, %v3034
      %v3055 = vpack.c.b16 %v3037, %v3036
      %v3056 = vpack.c.b16 %v3039, %v3038
      %v3057 = vpack.c.b16 %v3041, %v3040
      %v3090 = vunpack.c.l.b16 %v2994
      %v3091 = vunpack.c.l.b16 %v2995
      %v3092 = vunpack.c.l.b16 %v2996
      %v3093 = vunpack.c.l.b16 %v2997
      %v3094 = vunpack.c.l.b16 %v2998
      %v3095 = vunpack.c.l.b16 %v2999
      %v3096 = vunpack.c.l.b16 %v3000
      %v3097 = vunpack.c.l.b16 %v3001
      %v3098 = vunpack.c.l.b16 %v3002
      %v3099 = vunpack.c.l.b16 %v3003
      %v3100 = vunpack.c.l.b16 %v3004
      %v3101 = vunpack.c.l.b16 %v3005
      %v3102 = vunpack.c.l.b16 %v3006
      %v3103 = vunpack.c.l.b16 %v3007
      %v3104 = vunpack.c.l.b16 %v3008
      %v3105 = vunpack.c.l.b16 %v3009
      %v3106 = vpack.c.b16 %v3091, %v3090
      %v3107 = vpack.c.b16 %v3093, %v3092
      %v3108 = vpack.c.b16 %v3095, %v3094
      %v3109 = vpack.c.b16 %v3097, %v3096
      %v3110 = vpack.c.b16 %v3099, %v3098
      %v3111 = vpack.c.b16 %v3101, %v3100
      %v3112 = vpack.c.b16 %v3103, %v3102
      %v3113 = vpack.c.b16 %v3105, %v3104
      %3122 = vmatpush.bf16.msra.mxu0 %v3113
      %3123 = vmatpush.bf16.msra.mxu0 %v3112
      %3124 = vmatpush.bf16.msra.mxu0 %v3111
      %3125 = vmatpush.bf16.msra.mxu0 %v3110
      %3126 = vmatpush.bf16.msra.mxu0 %v3109
      %3127 = vmatpush.bf16.msra.mxu0 %v3108
      %3128 = vmatpush.bf16.msra.mxu0 %v3107
      %3129 = vmatpush.bf16.msra.mxu0 %v3106
      %3130 = vmatmul.bf16.gmra.mxu0 %v3042
      %v3131 = vpop.f32.mrf.mxu0
      %v3132 = vadd.f32 0.0, %v3131
      %v3133 = vpop.f32.mrf.mxu0
      %v3134 = vadd.f32 0.0, %v3133
      %3135 = vmatmul.bf16.gmra.mxu0 %v3043
      %v3136 = vpop.f32.mrf.mxu0
      %v3137 = vadd.f32 0.0, %v3136
      %v3138 = vpop.f32.mrf.mxu0
      %v3139 = vadd.f32 0.0, %v3138
      %3140 = vmatmul.bf16.gmra.mxu0 %v3044
      %v3141 = vpop.f32.mrf.mxu0
      %v3142 = vadd.f32 0.0, %v3141
      %v3143 = vpop.f32.mrf.mxu0
      %v3144 = vadd.f32 0.0, %v3143
      %3145 = vmatmul.bf16.gmra.mxu0 %v3045
      %v3146 = vpop.f32.mrf.mxu0
      %v3147 = vadd.f32 0.0, %v3146
      %v3148 = vpop.f32.mrf.mxu0
      %v3149 = vadd.f32 0.0, %v3148
      %3150 = vmatmul.bf16.gmra.mxu0 %v3046
      %v3151 = vpop.f32.mrf.mxu0
      %v3152 = vadd.f32 0.0, %v3151
      %v3153 = vpop.f32.mrf.mxu0
      %v3154 = vadd.f32 0.0, %v3153
      %3155 = vmatmul.bf16.gmra.mxu0 %v3047
      %v3156 = vpop.f32.mrf.mxu0
      %v3157 = vadd.f32 0.0, %v3156
      %v3158 = vpop.f32.mrf.mxu0
      %v3159 = vadd.f32 0.0, %v3158
      %3160 = vmatmul.bf16.gmra.mxu0 %v3048
      %v3161 = vpop.f32.mrf.mxu0
      %v3162 = vadd.f32 0.0, %v3161
      %v3163 = vpop.f32.mrf.mxu0
      %v3164 = vadd.f32 0.0, %v3163
      %3165 = vmatmul.bf16.gmra.mxu0 %v3049
      %v3166 = vpop.f32.mrf.mxu0
      %v3167 = vadd.f32 0.0, %v3166
      %v3168 = vpop.f32.mrf.mxu0
      %v3169 = vadd.f32 0.0, %v3168
      %3170 = vmatmul.bf16.gmra.mxu0 %v3050
      %v3171 = vpop.f32.mrf.mxu0
      %v3172 = vadd.f32 0.0, %v3171
      %v3173 = vpop.f32.mrf.mxu0
      %v3174 = vadd.f32 0.0, %v3173
      %3175 = vmatmul.bf16.gmra.mxu0 %v3051
      %v3176 = vpop.f32.mrf.mxu0
      %v3177 = vadd.f32 0.0, %v3176
      %v3178 = vpop.f32.mrf.mxu0
      %v3179 = vadd.f32 0.0, %v3178
      %3180 = vmatmul.bf16.gmra.mxu0 %v3052
      %v3181 = vpop.f32.mrf.mxu0
      %v3182 = vadd.f32 0.0, %v3181
      %v3183 = vpop.f32.mrf.mxu0
      %v3184 = vadd.f32 0.0, %v3183
      %3185 = vmatmul.bf16.gmra.mxu0 %v3053
      %v3186 = vpop.f32.mrf.mxu0
      %v3187 = vadd.f32 0.0, %v3186
      %v3188 = vpop.f32.mrf.mxu0
      %v3189 = vadd.f32 0.0, %v3188
      %3190 = vmatmul.bf16.gmra.mxu0 %v3054
      %v3191 = vpop.f32.mrf.mxu0
      %v3192 = vadd.f32 0.0, %v3191
      %v3193 = vpop.f32.mrf.mxu0
      %v3194 = vadd.f32 0.0, %v3193
      %3195 = vmatmul.bf16.gmra.mxu0 %v3055
      %v3196 = vpop.f32.mrf.mxu0
      %v3197 = vadd.f32 0.0, %v3196
      %v3198 = vpop.f32.mrf.mxu0
      %v3199 = vadd.f32 0.0, %v3198
      %3200 = vmatmul.bf16.gmra.mxu0 %v3056
      %v3201 = vpop.f32.mrf.mxu0
      %v3202 = vadd.f32 0.0, %v3201
      %v3203 = vpop.f32.mrf.mxu0
      %v3204 = vadd.f32 0.0, %v3203
      %3205 = vmatmul.bf16.gmra.mxu0 %v3057
      %v3206 = vpop.f32.mrf.mxu0
      %v3207 = vadd.f32 0.0, %v3206
      %v3208 = vpop.f32.mrf.mxu0
      %v3209 = vadd.f32 0.0, %v3208
      %3210 = vdwg.mxu0
      %v3211 = vadd.f32 %v2529, %v3132
      %v3212 = vadd.f32 %v2530, %v3134
      %v3213 = vadd.f32 %v2531, %v3137
      %v3214 = vadd.f32 %v2532, %v3139
      %v3215 = vadd.f32 %v2533, %v3142
      %v3216 = vadd.f32 %v2534, %v3144
      %v3217 = vadd.f32 %v2535, %v3147
      %v3218 = vadd.f32 %v2536, %v3149
      %v3219 = vadd.f32 %v2537, %v3152
      %v3220 = vadd.f32 %v2538, %v3154
      %v3221 = vadd.f32 %v2539, %v3157
      %v3222 = vadd.f32 %v2540, %v3159
      %v3223 = vadd.f32 %v2541, %v3162
      %v3224 = vadd.f32 %v2542, %v3164
      %v3225 = vadd.f32 %v2543, %v3167
      %v3226 = vadd.f32 %v2544, %v3169
      %v3227 = vadd.f32 %v2545, %v3172
      %v3228 = vadd.f32 %v2546, %v3174
      %v3229 = vadd.f32 %v2547, %v3177
      %v3230 = vadd.f32 %v2548, %v3179
      %v3231 = vadd.f32 %v2549, %v3182
      %v3232 = vadd.f32 %v2550, %v3184
      %v3233 = vadd.f32 %v2551, %v3187
      %v3234 = vadd.f32 %v2552, %v3189
      %v3235 = vadd.f32 %v2553, %v3192
      %v3236 = vadd.f32 %v2554, %v3194
      %v3237 = vadd.f32 %v2555, %v3197
      %v3238 = vadd.f32 %v2556, %v3199
      %v3239 = vadd.f32 %v2557, %v3202
      %v3240 = vadd.f32 %v2558, %v3204
      %v3241 = vadd.f32 %v2559, %v3207
      %v3242 = vadd.f32 %v2560, %v3209
      %v3243 = vld [vmem:[%s814] sm:$0xe]
      %v3244 = vld [vmem:[%s814 + $0xc] sm:$0xe]
      %v3245 = vld [vmem:[%s814 + $0x18] sm:$0xe]
      %v3246 = vld [vmem:[%s814 + $0x24] sm:$0xe]
      %v3247 = vld [vmem:[%s814 + $0x30] sm:$0xe]
      %v3248 = vld [vmem:[%s814 + $0x3c] sm:$0xe]
      %v3249 = vld [vmem:[%s814 + $0x48] sm:$0xe]
      %v3250 = vld [vmem:[%s814 + $0x54] sm:$0xe]
      %v3251 = vld [vmem:[%s814 + $0x60] sm:$0xe]
      %v3252 = vld [vmem:[%s814 + $0x6c] sm:$0xe]
      %v3253 = vld [vmem:[%s814 + $0x78] sm:$0xe]
      %v3254 = vld [vmem:[%s814 + $0x84] sm:$0xe]
      %v3255 = vld [vmem:[%s814 + $0x90] sm:$0xe]
      %v3256 = vld [vmem:[%s814 + $0x9c] sm:$0xe]
      %v3257 = vld [vmem:[%s814 + $0xa8] sm:$0xe]
      %v3258 = vld [vmem:[%s814 + $0xb4] sm:$0xe]
      %v3307 = vrot.slane %v3243, 5
      %v3308 = vrot.slane %v3307, 4
      %v3309 = vrot.slane %v2562, 5
      %v3310 = vsel %vm1884, %v3308, %v3309
      %v3311 = vrot.slane %v3309, 4
      %v3312 = vrot.slane %v2563, 5
      %v3313 = vsel %vm1884, %v3311, %v3312
      %v3314 = vrot.slane %v3244, 5
      %v3315 = vrot.slane %v3314, 4
      %v3316 = vrot.slane %v2565, 5
      %v3317 = vsel %vm1884, %v3315, %v3316
      %v3318 = vrot.slane %v3316, 4
      %v3319 = vrot.slane %v2566, 5
      %v3320 = vsel %vm1884, %v3318, %v3319
      %v3321 = vrot.slane %v3245, 5
      %v3322 = vrot.slane %v3321, 4
      %v3323 = vrot.slane %v2568, 5
      %v3324 = vsel %vm1884, %v3322, %v3323
      %v3325 = vrot.slane %v3323, 4
      %v3326 = vrot.slane %v2569, 5
      %v3327 = vsel %vm1884, %v3325, %v3326
      %v3328 = vrot.slane %v3246, 5
      %v3329 = vrot.slane %v3328, 4
      %v3330 = vrot.slane %v2571, 5
      %v3331 = vsel %vm1884, %v3329, %v3330
      %v3332 = vrot.slane %v3330, 4
      %v3333 = vrot.slane %v2572, 5
      %v3334 = vsel %vm1884, %v3332, %v3333
      %v3335 = vrot.slane %v3247, 5
      %v3336 = vrot.slane %v3335, 4
      %v3337 = vrot.slane %v2574, 5
      %v3338 = vsel %vm1884, %v3336, %v3337
      %v3339 = vrot.slane %v3337, 4
      %v3340 = vrot.slane %v2575, 5
      %v3341 = vsel %vm1884, %v3339, %v3340
      %v3342 = vrot.slane %v3248, 5
      %v3343 = vrot.slane %v3342, 4
      %v3344 = vrot.slane %v2577, 5
      %v3345 = vsel %vm1884, %v3343, %v3344
      %v3346 = vrot.slane %v3344, 4
      %v3347 = vrot.slane %v2578, 5
      %v3348 = vsel %vm1884, %v3346, %v3347
      %v3349 = vrot.slane %v3249, 5
      %v3350 = vrot.slane %v3349, 4
      %v3351 = vrot.slane %v2580, 5
      %v3352 = vsel %vm1884, %v3350, %v3351
      %v3353 = vrot.slane %v3351, 4
      %v3354 = vrot.slane %v2581, 5
      %v3355 = vsel %vm1884, %v3353, %v3354
      %v3356 = vrot.slane %v3250, 5
      %v3357 = vrot.slane %v3356, 4
      %v3358 = vrot.slane %v2583, 5
      %v3359 = vsel %vm1884, %v3357, %v3358
      %v3360 = vrot.slane %v3358, 4
      %v3361 = vrot.slane %v2584, 5
      %v3362 = vsel %vm1884, %v3360, %v3361
      %v3363 = vrot.slane %v3251, 5
      %v3364 = vrot.slane %v3363, 4
      %v3365 = vrot.slane %v2586, 5
      %v3366 = vsel %vm1884, %v3364, %v3365
      %v3367 = vrot.slane %v3365, 4
      %v3368 = vrot.slane %v2587, 5
      %v3369 = vsel %vm1884, %v3367, %v3368
      %v3370 = vrot.slane %v3252, 5
      %v3371 = vrot.slane %v3370, 4
      %v3372 = vrot.slane %v2589, 5
      %v3373 = vsel %vm1884, %v3371, %v3372
      %v3374 = vrot.slane %v3372, 4
      %v3375 = vrot.slane %v2590, 5
      %v3376 = vsel %vm1884, %v3374, %v3375
      %v3377 = vrot.slane %v3253, 5
      %v3378 = vrot.slane %v3377, 4
      %v3379 = vrot.slane %v2592, 5
      %v3380 = vsel %vm1884, %v3378, %v3379
      %v3381 = vrot.slane %v3379, 4
      %v3382 = vrot.slane %v2593, 5
      %v3383 = vsel %vm1884, %v3381, %v3382
      %v3384 = vrot.slane %v3254, 5
      %v3385 = vrot.slane %v3384, 4
      %v3386 = vrot.slane %v2595, 5
      %v3387 = vsel %vm1884, %v3385, %v3386
      %v3388 = vrot.slane %v3386, 4
      %v3389 = vrot.slane %v2596, 5
      %v3390 = vsel %vm1884, %v3388, %v3389
      %v3391 = vrot.slane %v3255, 5
      %v3392 = vrot.slane %v3391, 4
      %v3393 = vrot.slane %v2598, 5
      %v3394 = vsel %vm1884, %v3392, %v3393
      %v3395 = vrot.slane %v3393, 4
      %v3396 = vrot.slane %v2599, 5
      %v3397 = vsel %vm1884, %v3395, %v3396
      %v3398 = vrot.slane %v3256, 5
      %v3399 = vrot.slane %v3398, 4
      %v3400 = vrot.slane %v2601, 5
      %v3401 = vsel %vm1884, %v3399, %v3400
      %v3402 = vrot.slane %v3400, 4
      %v3403 = vrot.slane %v2602, 5
      %v3404 = vsel %vm1884, %v3402, %v3403
      %v3405 = vrot.slane %v3257, 5
      %v3406 = vrot.slane %v3405, 4
      %v3407 = vrot.slane %v2604, 5
      %v3408 = vsel %vm1884, %v3406, %v3407
      %v3409 = vrot.slane %v3407, 4
      %v3410 = vrot.slane %v2605, 5
      %v3411 = vsel %vm1884, %v3409, %v3410
      %v3412 = vrot.slane %v3258, 5
      %v3413 = vrot.slane %v3412, 4
      %v3414 = vrot.slane %v2607, 5
      %v3415 = vsel %vm1884, %v3413, %v3414
      %v3416 = vrot.slane %v3414, 4
      %v3417 = vrot.slane %v2608, 5
      %v3418 = vsel %vm1884, %v3416, %v3417
      %s3419 = scalar_lea.vmem %s3, 320
      %v3420 = vld [vmem:[%s3419] sm:$0xf]
      %v3421 = vld [vmem:[%s3419 + $0x4] sm:$0xf]
      %v3422 = vld [vmem:[%s3419 + $0x8] sm:$0xf]
      %v3423 = vld [vmem:[%s3419 + $0xc] sm:$0xf]
      %v3424 = vld [vmem:[%s3419 + $0x10] sm:$0xf]
      %v3425 = vld [vmem:[%s3419 + $0x14] sm:$0xf]
      %v3426 = vld [vmem:[%s3419 + $0x18] sm:$0xf]
      %v3427 = vld [vmem:[%s3419 + $0x1c] sm:$0xf]
      %v3428 = vld [vmem:[%s3419 + $0x20] sm:$0xf]
      %v3429 = vld [vmem:[%s3419 + $0x24] sm:$0xf]
      %v3430 = vld [vmem:[%s3419 + $0x28] sm:$0xf]
      %v3431 = vld [vmem:[%s3419 + $0x2c] sm:$0xf]
      %v3432 = vld [vmem:[%s3419 + $0x30] sm:$0xf]
      %v3433 = vld [vmem:[%s3419 + $0x34] sm:$0xf]
      %v3434 = vld [vmem:[%s3419 + $0x38] sm:$0xf]
      %v3435 = vld [vmem:[%s3419 + $0x3c] sm:$0xf]
      %v3436 = vunpack.c.l.b16 %v3310
      %v3437 = vunpack.c.l.b16 %v3313
      %v3438 = vunpack.c.l.b16 %v3317
      %v3439 = vunpack.c.l.b16 %v3320
      %v3440 = vunpack.c.l.b16 %v3324
      %v3441 = vunpack.c.l.b16 %v3327
      %v3442 = vunpack.c.l.b16 %v3331
      %v3443 = vunpack.c.l.b16 %v3334
      %v3444 = vunpack.c.l.b16 %v3338
      %v3445 = vunpack.c.l.b16 %v3341
      %v3446 = vunpack.c.l.b16 %v3345
      %v3447 = vunpack.c.l.b16 %v3348
      %v3448 = vunpack.c.l.b16 %v3352
      %v3449 = vunpack.c.l.b16 %v3355
      %v3450 = vunpack.c.l.b16 %v3359
      %v3451 = vunpack.c.l.b16 %v3362
      %v3452 = vunpack.c.l.b16 %v3366
      %v3453 = vunpack.c.l.b16 %v3369
      %v3454 = vunpack.c.l.b16 %v3373
      %v3455 = vunpack.c.l.b16 %v3376
      %v3456 = vunpack.c.l.b16 %v3380
      %v3457 = vunpack.c.l.b16 %v3383
      %v3458 = vunpack.c.l.b16 %v3387
      %v3459 = vunpack.c.l.b16 %v3390
      %v3460 = vunpack.c.l.b16 %v3394
      %v3461 = vunpack.c.l.b16 %v3397
      %v3462 = vunpack.c.l.b16 %v3401
      %v3463 = vunpack.c.l.b16 %v3404
      %v3464 = vunpack.c.l.b16 %v3408
      %v3465 = vunpack.c.l.b16 %v3411
      %v3466 = vunpack.c.l.b16 %v3415
      %v3467 = vunpack.c.l.b16 %v3418
      %v3468 = vpack.c.b16 %v3437, %v3436
      %v3469 = vpack.c.b16 %v3439, %v3438
      %v3470 = vpack.c.b16 %v3441, %v3440
      %v3471 = vpack.c.b16 %v3443, %v3442
      %v3472 = vpack.c.b16 %v3445, %v3444
      %v3473 = vpack.c.b16 %v3447, %v3446
      %v3474 = vpack.c.b16 %v3449, %v3448
      %v3475 = vpack.c.b16 %v3451, %v3450
      %v3476 = vpack.c.b16 %v3453, %v3452
      %v3477 = vpack.c.b16 %v3455, %v3454
      %v3478 = vpack.c.b16 %v3457, %v3456
      %v3479 = vpack.c.b16 %v3459, %v3458
      %v3480 = vpack.c.b16 %v3461, %v3460
      %v3481 = vpack.c.b16 %v3463, %v3462
      %v3482 = vpack.c.b16 %v3465, %v3464
      %v3483 = vpack.c.b16 %v3467, %v3466
      %v3516 = vunpack.c.l.b16 %v3420
      %v3517 = vunpack.c.l.b16 %v3421
      %v3518 = vunpack.c.l.b16 %v3422
      %v3519 = vunpack.c.l.b16 %v3423
      %v3520 = vunpack.c.l.b16 %v3424
      %v3521 = vunpack.c.l.b16 %v3425
      %v3522 = vunpack.c.l.b16 %v3426
      %v3523 = vunpack.c.l.b16 %v3427
      %v3524 = vunpack.c.l.b16 %v3428
      %v3525 = vunpack.c.l.b16 %v3429
      %v3526 = vunpack.c.l.b16 %v3430
      %v3527 = vunpack.c.l.b16 %v3431
      %v3528 = vunpack.c.l.b16 %v3432
      %v3529 = vunpack.c.l.b16 %v3433
      %v3530 = vunpack.c.l.b16 %v3434
      %v3531 = vunpack.c.l.b16 %v3435
      %v3532 = vpack.c.b16 %v3517, %v3516
      %v3533 = vpack.c.b16 %v3519, %v3518
      %v3534 = vpack.c.b16 %v3521, %v3520
      %v3535 = vpack.c.b16 %v3523, %v3522
      %v3536 = vpack.c.b16 %v3525, %v3524
      %v3537 = vpack.c.b16 %v3527, %v3526
      %v3538 = vpack.c.b16 %v3529, %v3528
      %v3539 = vpack.c.b16 %v3531, %v3530
      %3548 = vmatpush.bf16.msra.mxu0 %v3539
      %3549 = vmatpush.bf16.msra.mxu0 %v3538
      %3550 = vmatpush.bf16.msra.mxu0 %v3537
      %3551 = vmatpush.bf16.msra.mxu0 %v3536
      %3552 = vmatpush.bf16.msra.mxu0 %v3535
      %3553 = vmatpush.bf16.msra.mxu0 %v3534
      %3554 = vmatpush.bf16.msra.mxu0 %v3533
      %3555 = vmatpush.bf16.msra.mxu0 %v3532
      %3556 = vmatmul.bf16.gmra.mxu0 %v3468
      %v3557 = vpop.f32.mrf.mxu0
      %v3558 = vadd.f32 0.0, %v3557
      %v3559 = vpop.f32.mrf.mxu0
      %v3560 = vadd.f32 0.0, %v3559
      %3561 = vmatmul.bf16.gmra.mxu0 %v3469
      %v3562 = vpop.f32.mrf.mxu0
      %v3563 = vadd.f32 0.0, %v3562
      %v3564 = vpop.f32.mrf.mxu0
      %v3565 = vadd.f32 0.0, %v3564
      %3566 = vmatmul.bf16.gmra.mxu0 %v3470
      %v3567 = vpop.f32.mrf.mxu0
      %v3568 = vadd.f32 0.0, %v3567
      %v3569 = vpop.f32.mrf.mxu0
      %v3570 = vadd.f32 0.0, %v3569
      %3571 = vmatmul.bf16.gmra.mxu0 %v3471
      %v3572 = vpop.f32.mrf.mxu0
      %v3573 = vadd.f32 0.0, %v3572
      %v3574 = vpop.f32.mrf.mxu0
      %v3575 = vadd.f32 0.0, %v3574
      %3576 = vmatmul.bf16.gmra.mxu0 %v3472
      %v3577 = vpop.f32.mrf.mxu0
      %v3578 = vadd.f32 0.0, %v3577
      %v3579 = vpop.f32.mrf.mxu0
      %v3580 = vadd.f32 0.0, %v3579
      %3581 = vmatmul.bf16.gmra.mxu0 %v3473
      %v3582 = vpop.f32.mrf.mxu0
      %v3583 = vadd.f32 0.0, %v3582
      %v3584 = vpop.f32.mrf.mxu0
      %v3585 = vadd.f32 0.0, %v3584
      %3586 = vmatmul.bf16.gmra.mxu0 %v3474
      %v3587 = vpop.f32.mrf.mxu0
      %v3588 = vadd.f32 0.0, %v3587
      %v3589 = vpop.f32.mrf.mxu0
      %v3590 = vadd.f32 0.0, %v3589
      %3591 = vmatmul.bf16.gmra.mxu0 %v3475
      %v3592 = vpop.f32.mrf.mxu0
      %v3593 = vadd.f32 0.0, %v3592
      %v3594 = vpop.f32.mrf.mxu0
      %v3595 = vadd.f32 0.0, %v3594
      %3596 = vmatmul.bf16.gmra.mxu0 %v3476
      %v3597 = vpop.f32.mrf.mxu0
      %v3598 = vadd.f32 0.0, %v3597
      %v3599 = vpop.f32.mrf.mxu0
      %v3600 = vadd.f32 0.0, %v3599
      %3601 = vmatmul.bf16.gmra.mxu0 %v3477
      %v3602 = vpop.f32.mrf.mxu0
      %v3603 = vadd.f32 0.0, %v3602
      %v3604 = vpop.f32.mrf.mxu0
      %v3605 = vadd.f32 0.0, %v3604
      %3606 = vmatmul.bf16.gmra.mxu0 %v3478
      %v3607 = vpop.f32.mrf.mxu0
      %v3608 = vadd.f32 0.0, %v3607
      %v3609 = vpop.f32.mrf.mxu0
      %v3610 = vadd.f32 0.0, %v3609
      %3611 = vmatmul.bf16.gmra.mxu0 %v3479
      %v3612 = vpop.f32.mrf.mxu0
      %v3613 = vadd.f32 0.0, %v3612
      %v3614 = vpop.f32.mrf.mxu0
      %v3615 = vadd.f32 0.0, %v3614
      %3616 = vmatmul.bf16.gmra.mxu0 %v3480
      %v3617 = vpop.f32.mrf.mxu0
      %v3618 = vadd.f32 0.0, %v3617
      %v3619 = vpop.f32.mrf.mxu0
      %v3620 = vadd.f32 0.0, %v3619
      %3621 = vmatmul.bf16.gmra.mxu0 %v3481
      %v3622 = vpop.f32.mrf.mxu0
      %v3623 = vadd.f32 0.0, %v3622
      %v3624 = vpop.f32.mrf.mxu0
      %v3625 = vadd.f32 0.0, %v3624
      %3626 = vmatmul.bf16.gmra.mxu0 %v3482
      %v3627 = vpop.f32.mrf.mxu0
      %v3628 = vadd.f32 0.0, %v3627
      %v3629 = vpop.f32.mrf.mxu0
      %v3630 = vadd.f32 0.0, %v3629
      %3631 = vmatmul.bf16.gmra.mxu0 %v3483
      %v3632 = vpop.f32.mrf.mxu0
      %v3633 = vadd.f32 0.0, %v3632
      %v3634 = vpop.f32.mrf.mxu0
      %v3635 = vadd.f32 0.0, %v3634
      %3636 = vdwg.mxu0
      %v3637 = vadd.f32 %v3211, %v3558
      %v3638 = vadd.f32 %v3212, %v3560
      %v3639 = vadd.f32 %v3213, %v3563
      %v3640 = vadd.f32 %v3214, %v3565
      %v3641 = vadd.f32 %v3215, %v3568
      %v3642 = vadd.f32 %v3216, %v3570
      %v3643 = vadd.f32 %v3217, %v3573
      %v3644 = vadd.f32 %v3218, %v3575
      %v3645 = vadd.f32 %v3219, %v3578
      %v3646 = vadd.f32 %v3220, %v3580
      %v3647 = vadd.f32 %v3221, %v3583
      %v3648 = vadd.f32 %v3222, %v3585
      %v3649 = vadd.f32 %v3223, %v3588
      %v3650 = vadd.f32 %v3224, %v3590
      %v3651 = vadd.f32 %v3225, %v3593
      %v3652 = vadd.f32 %v3226, %v3595
      %v3653 = vadd.f32 %v3227, %v3598
      %v3654 = vadd.f32 %v3228, %v3600
      %v3655 = vadd.f32 %v3229, %v3603
      %v3656 = vadd.f32 %v3230, %v3605
      %v3657 = vadd.f32 %v3231, %v3608
      %v3658 = vadd.f32 %v3232, %v3610
      %v3659 = vadd.f32 %v3233, %v3613
      %v3660 = vadd.f32 %v3234, %v3615
      %v3661 = vadd.f32 %v3235, %v3618
      %v3662 = vadd.f32 %v3236, %v3620
      %v3663 = vadd.f32 %v3237, %v3623
      %v3664 = vadd.f32 %v3238, %v3625
      %v3665 = vadd.f32 %v3239, %v3628
      %v3666 = vadd.f32 %v3240, %v3630
      %v3667 = vadd.f32 %v3241, %v3633
      %v3668 = vadd.f32 %v3242, %v3635
      %s3669 = scalar_lea.vmem [#allocation2], 24
      %v3670 = vld [vmem:[%s3669] sm:$0xf]
      %v3671 = vld [vmem:[%s3669 + $0x4] sm:$0xf]
      %v3672 = vld [vmem:[%s3669 + $0xc] sm:$0xf]
      %v3673 = vld [vmem:[%s3669 + $0x10] sm:$0xf]
      %v3674 = vld [vmem:[%s3669 + $0x18] sm:$0xf]
      %v3675 = vld [vmem:[%s3669 + $0x1c] sm:$0xf]
      %v3676 = vld [vmem:[%s3669 + $0x24] sm:$0xf]
      %v3677 = vld [vmem:[%s3669 + $0x28] sm:$0xf]
      %v3678 = vld [vmem:[%s3669 + $0x30] sm:$0xf]
      %v3679 = vld [vmem:[%s3669 + $0x34] sm:$0xf]
      %v3680 = vld [vmem:[%s3669 + $0x3c] sm:$0xf]
      %v3681 = vld [vmem:[%s3669 + $0x40] sm:$0xf]
      %v3682 = vld [vmem:[%s3669 + $0x48] sm:$0xf]
      %v3683 = vld [vmem:[%s3669 + $0x4c] sm:$0xf]
      %v3684 = vld [vmem:[%s3669 + $0x54] sm:$0xf]
      %v3685 = vld [vmem:[%s3669 + $0x58] sm:$0xf]
      %v3686 = vld [vmem:[%s3669 + $0x60] sm:$0xf]
      %v3687 = vld [vmem:[%s3669 + $0x64] sm:$0xf]
      %v3688 = vld [vmem:[%s3669 + $0x6c] sm:$0xf]
      %v3689 = vld [vmem:[%s3669 + $0x70] sm:$0xf]
      %v3690 = vld [vmem:[%s3669 + $0x78] sm:$0xf]
      %v3691 = vld [vmem:[%s3669 + $0x7c] sm:$0xf]
      %v3692 = vld [vmem:[%s3669 + $0x84] sm:$0xf]
      %v3693 = vld [vmem:[%s3669 + $0x88] sm:$0xf]
      %v3694 = vld [vmem:[%s3669 + $0x90] sm:$0xf]
      %v3695 = vld [vmem:[%s3669 + $0x94] sm:$0xf]
      %v3696 = vld [vmem:[%s3669 + $0x9c] sm:$0xf]
      %v3697 = vld [vmem:[%s3669 + $0xa0] sm:$0xf]
      %v3698 = vld [vmem:[%s3669 + $0xa8] sm:$0xf]
      %v3699 = vld [vmem:[%s3669 + $0xac] sm:$0xf]
      %v3700 = vld [vmem:[%s3669 + $0xb4] sm:$0xf]
      %v3701 = vld [vmem:[%s3669 + $0xb8] sm:$0xf]
      %s3702 = scalar_lea.vmem %s3, 384
      %v3703 = vld [vmem:[%s3702] sm:$0xf]
      %v3704 = vld [vmem:[%s3702 + $0x4] sm:$0xf]
      %v3705 = vld [vmem:[%s3702 + $0x8] sm:$0xf]
      %v3706 = vld [vmem:[%s3702 + $0xc] sm:$0xf]
      %v3707 = vld [vmem:[%s3702 + $0x10] sm:$0xf]
      %v3708 = vld [vmem:[%s3702 + $0x14] sm:$0xf]
      %v3709 = vld [vmem:[%s3702 + $0x18] sm:$0xf]
      %v3710 = vld [vmem:[%s3702 + $0x1c] sm:$0xf]
      %v3711 = vld [vmem:[%s3702 + $0x20] sm:$0xf]
      %v3712 = vld [vmem:[%s3702 + $0x24] sm:$0xf]
      %v3713 = vld [vmem:[%s3702 + $0x28] sm:$0xf]
      %v3714 = vld [vmem:[%s3702 + $0x2c] sm:$0xf]
      %v3715 = vld [vmem:[%s3702 + $0x30] sm:$0xf]
      %v3716 = vld [vmem:[%s3702 + $0x34] sm:$0xf]
      %v3717 = vld [vmem:[%s3702 + $0x38] sm:$0xf]
      %v3718 = vld [vmem:[%s3702 + $0x3c] sm:$0xf]
      %v3751 = vunpack.c.l.b16 %v3670
      %v3752 = vunpack.c.l.b16 %v3671
      %v3753 = vunpack.c.l.b16 %v3672
      %v3754 = vunpack.c.l.b16 %v3673
      %v3755 = vunpack.c.l.b16 %v3674
      %v3756 = vunpack.c.l.b16 %v3675
      %v3757 = vunpack.c.l.b16 %v3676
      %v3758 = vunpack.c.l.b16 %v3677
      %v3759 = vunpack.c.l.b16 %v3678
      %v3760 = vunpack.c.l.b16 %v3679
      %v3761 = vunpack.c.l.b16 %v3680
      %v3762 = vunpack.c.l.b16 %v3681
      %v3763 = vunpack.c.l.b16 %v3682
      %v3764 = vunpack.c.l.b16 %v3683
      %v3765 = vunpack.c.l.b16 %v3684
      %v3766 = vunpack.c.l.b16 %v3685
      %v3767 = vunpack.c.l.b16 %v3686
      %v3768 = vunpack.c.l.b16 %v3687
      %v3769 = vunpack.c.l.b16 %v3688
      %v3770 = vunpack.c.l.b16 %v3689
      %v3771 = vunpack.c.l.b16 %v3690
      %v3772 = vunpack.c.l.b16 %v3691
      %v3773 = vunpack.c.l.b16 %v3692
      %v3774 = vunpack.c.l.b16 %v3693
      %v3775 = vunpack.c.l.b16 %v3694
      %v3776 = vunpack.c.l.b16 %v3695
      %v3777 = vunpack.c.l.b16 %v3696
      %v3778 = vunpack.c.l.b16 %v3697
      %v3779 = vunpack.c.l.b16 %v3698
      %v3780 = vunpack.c.l.b16 %v3699
      %v3781 = vunpack.c.l.b16 %v3700
      %v3782 = vunpack.c.l.b16 %v3701
      %v3783 = vpack.c.b16 %v3752, %v3751
      %v3784 = vpack.c.b16 %v3754, %v3753
      %v3785 = vpack.c.b16 %v3756, %v3755
      %v3786 = vpack.c.b16 %v3758, %v3757
      %v3787 = vpack.c.b16 %v3760, %v3759
      %v3788 = vpack.c.b16 %v3762, %v3761
      %v3789 = vpack.c.b16 %v3764, %v3763
      %v3790 = vpack.c.b16 %v3766, %v3765
      %v3791 = vpack.c.b16 %v3768, %v3767
      %v3792 = vpack.c.b16 %v3770, %v3769
      %v3793 = vpack.c.b16 %v3772, %v3771
      %v3794 = vpack.c.b16 %v3774, %v3773
      %v3795 = vpack.c.b16 %v3776, %v3775
      %v3796 = vpack.c.b16 %v3778, %v3777
      %v3797 = vpack.c.b16 %v3780, %v3779
      %v3798 = vpack.c.b16 %v3782, %v3781
      %v3831 = vunpack.c.l.b16 %v3703
      %v3832 = vunpack.c.l.b16 %v3704
      %v3833 = vunpack.c.l.b16 %v3705
      %v3834 = vunpack.c.l.b16 %v3706
      %v3835 = vunpack.c.l.b16 %v3707
      %v3836 = vunpack.c.l.b16 %v3708
      %v3837 = vunpack.c.l.b16 %v3709
      %v3838 = vunpack.c.l.b16 %v3710
      %v3839 = vunpack.c.l.b16 %v3711
      %v3840 = vunpack.c.l.b16 %v3712
      %v3841 = vunpack.c.l.b16 %v3713
      %v3842 = vunpack.c.l.b16 %v3714
      %v3843 = vunpack.c.l.b16 %v3715
      %v3844 = vunpack.c.l.b16 %v3716
      %v3845 = vunpack.c.l.b16 %v3717
      %v3846 = vunpack.c.l.b16 %v3718
      %v3847 = vpack.c.b16 %v3832, %v3831
      %v3848 = vpack.c.b16 %v3834, %v3833
      %v3849 = vpack.c.b16 %v3836, %v3835
      %v3850 = vpack.c.b16 %v3838, %v3837
      %v3851 = vpack.c.b16 %v3840, %v3839
      %v3852 = vpack.c.b16 %v3842, %v3841
      %v3853 = vpack.c.b16 %v3844, %v3843
      %v3854 = vpack.c.b16 %v3846, %v3845
      %3863 = vmatpush.bf16.msra.mxu0 %v3854
      %3864 = vmatpush.bf16.msra.mxu0 %v3853
      %3865 = vmatpush.bf16.msra.mxu0 %v3852
      %3866 = vmatpush.bf16.msra.mxu0 %v3851
      %3867 = vmatpush.bf16.msra.mxu0 %v3850
      %3868 = vmatpush.bf16.msra.mxu0 %v3849
      %3869 = vmatpush.bf16.msra.mxu0 %v3848
      %3870 = vmatpush.bf16.msra.mxu0 %v3847
      %3871 = vmatmul.bf16.gmra.mxu0 %v3783
      %v3872 = vpop.f32.mrf.mxu0
      %v3873 = vadd.f32 0.0, %v3872
      %v3874 = vpop.f32.mrf.mxu0
      %v3875 = vadd.f32 0.0, %v3874
      %3876 = vmatmul.bf16.gmra.mxu0 %v3784
      %v3877 = vpop.f32.mrf.mxu0
      %v3878 = vadd.f32 0.0, %v3877
      %v3879 = vpop.f32.mrf.mxu0
      %v3880 = vadd.f32 0.0, %v3879
      %3881 = vmatmul.bf16.gmra.mxu0 %v3785
      %v3882 = vpop.f32.mrf.mxu0
      %v3883 = vadd.f32 0.0, %v3882
      %v3884 = vpop.f32.mrf.mxu0
      %v3885 = vadd.f32 0.0, %v3884
      %3886 = vmatmul.bf16.gmra.mxu0 %v3786
      %v3887 = vpop.f32.mrf.mxu0
      %v3888 = vadd.f32 0.0, %v3887
      %v3889 = vpop.f32.mrf.mxu0
      %v3890 = vadd.f32 0.0, %v3889
      %3891 = vmatmul.bf16.gmra.mxu0 %v3787
      %v3892 = vpop.f32.mrf.mxu0
      %v3893 = vadd.f32 0.0, %v3892
      %v3894 = vpop.f32.mrf.mxu0
      %v3895 = vadd.f32 0.0, %v3894
      %3896 = vmatmul.bf16.gmra.mxu0 %v3788
      %v3897 = vpop.f32.mrf.mxu0
      %v3898 = vadd.f32 0.0, %v3897
      %v3899 = vpop.f32.mrf.mxu0
      %v3900 = vadd.f32 0.0, %v3899
      %3901 = vmatmul.bf16.gmra.mxu0 %v3789
      %v3902 = vpop.f32.mrf.mxu0
      %v3903 = vadd.f32 0.0, %v3902
      %v3904 = vpop.f32.mrf.mxu0
      %v3905 = vadd.f32 0.0, %v3904
      %3906 = vmatmul.bf16.gmra.mxu0 %v3790
      %v3907 = vpop.f32.mrf.mxu0
      %v3908 = vadd.f32 0.0, %v3907
      %v3909 = vpop.f32.mrf.mxu0
      %v3910 = vadd.f32 0.0, %v3909
      %3911 = vmatmul.bf16.gmra.mxu0 %v3791
      %v3912 = vpop.f32.mrf.mxu0
      %v3913 = vadd.f32 0.0, %v3912
      %v3914 = vpop.f32.mrf.mxu0
      %v3915 = vadd.f32 0.0, %v3914
      %3916 = vmatmul.bf16.gmra.mxu0 %v3792
      %v3917 = vpop.f32.mrf.mxu0
      %v3918 = vadd.f32 0.0, %v3917
      %v3919 = vpop.f32.mrf.mxu0
      %v3920 = vadd.f32 0.0, %v3919
      %3921 = vmatmul.bf16.gmra.mxu0 %v3793
      %v3922 = vpop.f32.mrf.mxu0
      %v3923 = vadd.f32 0.0, %v3922
      %v3924 = vpop.f32.mrf.mxu0
      %v3925 = vadd.f32 0.0, %v3924
      %3926 = vmatmul.bf16.gmra.mxu0 %v3794
      %v3927 = vpop.f32.mrf.mxu0
      %v3928 = vadd.f32 0.0, %v3927
      %v3929 = vpop.f32.mrf.mxu0
      %v3930 = vadd.f32 0.0, %v3929
      %3931 = vmatmul.bf16.gmra.mxu0 %v3795
      %v3932 = vpop.f32.mrf.mxu0
      %v3933 = vadd.f32 0.0, %v3932
      %v3934 = vpop.f32.mrf.mxu0
      %v3935 = vadd.f32 0.0, %v3934
      %3936 = vmatmul.bf16.gmra.mxu0 %v3796
      %v3937 = vpop.f32.mrf.mxu0
      %v3938 = vadd.f32 0.0, %v3937
      %v3939 = vpop.f32.mrf.mxu0
      %v3940 = vadd.f32 0.0, %v3939
      %3941 = vmatmul.bf16.gmra.mxu0 %v3797
      %v3942 = vpop.f32.mrf.mxu0
      %v3943 = vadd.f32 0.0, %v3942
      %v3944 = vpop.f32.mrf.mxu0
      %v3945 = vadd.f32 0.0, %v3944
      %3946 = vmatmul.bf16.gmra.mxu0 %v3798
      %v3947 = vpop.f32.mrf.mxu0
      %v3948 = vadd.f32 0.0, %v3947
      %v3949 = vpop.f32.mrf.mxu0
      %v3950 = vadd.f32 0.0, %v3949
      %3951 = vdwg.mxu0
      %v3952 = vadd.f32 %v3637, %v3873
      %v3953 = vadd.f32 %v3638, %v3875
      %v3954 = vadd.f32 %v3639, %v3878
      %v3955 = vadd.f32 %v3640, %v3880
      %v3956 = vadd.f32 %v3641, %v3883
      %v3957 = vadd.f32 %v3642, %v3885
      %v3958 = vadd.f32 %v3643, %v3888
      %v3959 = vadd.f32 %v3644, %v3890
      %v3960 = vadd.f32 %v3645, %v3893
      %v3961 = vadd.f32 %v3646, %v3895
      %v3962 = vadd.f32 %v3647, %v3898
      %v3963 = vadd.f32 %v3648, %v3900
      %v3964 = vadd.f32 %v3649, %v3903
      %v3965 = vadd.f32 %v3650, %v3905
      %v3966 = vadd.f32 %v3651, %v3908
      %v3967 = vadd.f32 %v3652, %v3910
      %v3968 = vadd.f32 %v3653, %v3913
      %v3969 = vadd.f32 %v3654, %v3915
      %v3970 = vadd.f32 %v3655, %v3918
      %v3971 = vadd.f32 %v3656, %v3920
      %v3972 = vadd.f32 %v3657, %v3923
      %v3973 = vadd.f32 %v3658, %v3925
      %v3974 = vadd.f32 %v3659, %v3928
      %v3975 = vadd.f32 %v3660, %v3930
      %v3976 = vadd.f32 %v3661, %v3933
      %v3977 = vadd.f32 %v3662, %v3935
      %v3978 = vadd.f32 %v3663, %v3938
      %v3979 = vadd.f32 %v3664, %v3940
      %v3980 = vadd.f32 %v3665, %v3943
      %v3981 = vadd.f32 %v3666, %v3945
      %v3982 = vadd.f32 %v3667, %v3948
      %v3983 = vadd.f32 %v3668, %v3950
      %v3984 = vld [vmem:[%s3669] sm:$0xf]
      %v3985 = vld [vmem:[%s3669 + $0x4] sm:$0xf]
      %v3986 = vld [vmem:[%s3669 + $0x8] sm:$0x1]
      %v3987 = vld [vmem:[%s3669 + $0xc] sm:$0xf]
      %v3988 = vld [vmem:[%s3669 + $0x10] sm:$0xf]
      %v3989 = vld [vmem:[%s3669 + $0x14] sm:$0x1]
      %v3990 = vld [vmem:[%s3669 + $0x18] sm:$0xf]
      %v3991 = vld [vmem:[%s3669 + $0x1c] sm:$0xf]
      %v3992 = vld [vmem:[%s3669 + $0x20] sm:$0x1]
      %v3993 = vld [vmem:[%s3669 + $0x24] sm:$0xf]
      %v3994 = vld [vmem:[%s3669 + $0x28] sm:$0xf]
      %v3995 = vld [vmem:[%s3669 + $0x2c] sm:$0x1]
      %v3996 = vld [vmem:[%s3669 + $0x30] sm:$0xf]
      %v3997 = vld [vmem:[%s3669 + $0x34] sm:$0xf]
      %v3998 = vld [vmem:[%s3669 + $0x38] sm:$0x1]
      %v3999 = vld [vmem:[%s3669 + $0x3c] sm:$0xf]
      %v4000 = vld [vmem:[%s3669 + $0x40] sm:$0xf]
      %v4001 = vld [vmem:[%s3669 + $0x44] sm:$0x1]
      %v4002 = vld [vmem:[%s3669 + $0x48] sm:$0xf]
      %v4003 = vld [vmem:[%s3669 + $0x4c] sm:$0xf]
      %v4004 = vld [vmem:[%s3669 + $0x50] sm:$0x1]
      %v4005 = vld [vmem:[%s3669 + $0x54] sm:$0xf]
      %v4006 = vld [vmem:[%s3669 + $0x58] sm:$0xf]
      %v4007 = vld [vmem:[%s3669 + $0x5c] sm:$0x1]
      %v4008 = vld [vmem:[%s3669 + $0x60] sm:$0xf]
      %v4009 = vld [vmem:[%s3669 + $0x64] sm:$0xf]
      %v4010 = vld [vmem:[%s3669 + $0x68] sm:$0x1]
      %v4011 = vld [vmem:[%s3669 + $0x6c] sm:$0xf]
      %v4012 = vld [vmem:[%s3669 + $0x70] sm:$0xf]
      %v4013 = vld [vmem:[%s3669 + $0x74] sm:$0x1]
      %v4014 = vld [vmem:[%s3669 + $0x78] sm:$0xf]
      %v4015 = vld [vmem:[%s3669 + $0x7c] sm:$0xf]
      %v4016 = vld [vmem:[%s3669 + $0x80] sm:$0x1]
      %v4017 = vld [vmem:[%s3669 + $0x84] sm:$0xf]
      %v4018 = vld [vmem:[%s3669 + $0x88] sm:$0xf]
      %v4019 = vld [vmem:[%s3669 + $0x8c] sm:$0x1]
      %v4020 = vld [vmem:[%s3669 + $0x90] sm:$0xf]
      %v4021 = vld [vmem:[%s3669 + $0x94] sm:$0xf]
      %v4022 = vld [vmem:[%s3669 + $0x98] sm:$0x1]
      %v4023 = vld [vmem:[%s3669 + $0x9c] sm:$0xf]
      %v4024 = vld [vmem:[%s3669 + $0xa0] sm:$0xf]
      %v4025 = vld [vmem:[%s3669 + $0xa4] sm:$0x1]
      %v4026 = vld [vmem:[%s3669 + $0xa8] sm:$0xf]
      %v4027 = vld [vmem:[%s3669 + $0xac] sm:$0xf]
      %v4028 = vld [vmem:[%s3669 + $0xb0] sm:$0x1]
      %v4029 = vld [vmem:[%s3669 + $0xb4] sm:$0xf]
      %v4030 = vld [vmem:[%s3669 + $0xb8] sm:$0xf]
      %v4031 = vld [vmem:[%s3669 + $0xbc] sm:$0x1]
      %v4033 = vshrl.u32 %v3984, 16
      %v4035 = vrot.slane %v4033, 4
      %v4036 = vshll.u32 %v3984, 16
      %v4038 = vrot.slane %v4036, 5
      %v4039 = vor.u32 %v4035, %v4038
      %v4040 = vrot.slane %v4039, 4
      %v4042 = vshll.u32 %v3985, 16
      %v4044 = vrot.slane %v4042, 5
      %v4045 = vsel %vm998, %v4040, %v4044
      %v4046 = vshrl.u32 %v3985, 16
      %v4048 = vrot.slane %v4046, 4
      %v4049 = vor.u32 %v4048, %v4044
      %v4050 = vrot.slane %v4049, 4
      %v4052 = vshll.u32 %v3986, 16
      %v4054 = vrot.slane %v4052, 5
      %v4055 = vsel %vm998, %v4050, %v4054
      %v4057 = vshrl.u32 %v3987, 16
      %v4059 = vrot.slane %v4057, 4
      %v4060 = vshll.u32 %v3987, 16
      %v4062 = vrot.slane %v4060, 5
      %v4063 = vor.u32 %v4059, %v4062
      %v4064 = vrot.slane %v4063, 4
      %v4066 = vshll.u32 %v3988, 16
      %v4068 = vrot.slane %v4066, 5
      %v4069 = vsel %vm998, %v4064, %v4068
      %v4070 = vshrl.u32 %v3988, 16
      %v4072 = vrot.slane %v4070, 4
      %v4073 = vor.u32 %v4072, %v4068
      %v4074 = vrot.slane %v4073, 4
      %v4076 = vshll.u32 %v3989, 16
      %v4078 = vrot.slane %v4076, 5
      %v4079 = vsel %vm998, %v4074, %v4078
      %v4081 = vshrl.u32 %v3990, 16
      %v4083 = vrot.slane %v4081, 4
      %v4084 = vshll.u32 %v3990, 16
      %v4086 = vrot.slane %v4084, 5
      %v4087 = vor.u32 %v4083, %v4086
      %v4088 = vrot.slane %v4087, 4
      %v4090 = vshll.u32 %v3991, 16
      %v4092 = vrot.slane %v4090, 5
      %v4093 = vsel %vm998, %v4088, %v4092
      %v4094 = vshrl.u32 %v3991, 16
      %v4096 = vrot.slane %v4094, 4
      %v4097 = vor.u32 %v4096, %v4092
      %v4098 = vrot.slane %v4097, 4
      %v4100 = vshll.u32 %v3992, 16
      %v4102 = vrot.slane %v4100, 5
      %v4103 = vsel %vm998, %v4098, %v4102
      %v4105 = vshrl.u32 %v3993, 16
      %v4107 = vrot.slane %v4105, 4
      %v4108 = vshll.u32 %v3993, 16
      %v4110 = vrot.slane %v4108, 5
      %v4111 = vor.u32 %v4107, %v4110
      %v4112 = vrot.slane %v4111, 4
      %v4114 = vshll.u32 %v3994, 16
      %v4116 = vrot.slane %v4114, 5
      %v4117 = vsel %vm998, %v4112, %v4116
      %v4118 = vshrl.u32 %v3994, 16
      %v4120 = vrot.slane %v4118, 4
      %v4121 = vor.u32 %v4120, %v4116
      %v4122 = vrot.slane %v4121, 4
      %v4124 = vshll.u32 %v3995, 16
      %v4126 = vrot.slane %v4124, 5
      %v4127 = vsel %vm998, %v4122, %v4126
      %v4129 = vshrl.u32 %v3996, 16
      %v4131 = vrot.slane %v4129, 4
      %v4132 = vshll.u32 %v3996, 16
      %v4134 = vrot.slane %v4132, 5
      %v4135 = vor.u32 %v4131, %v4134
      %v4136 = vrot.slane %v4135, 4
      %v4138 = vshll.u32 %v3997, 16
      %v4140 = vrot.slane %v4138, 5
      %v4141 = vsel %vm998, %v4136, %v4140
      %v4142 = vshrl.u32 %v3997, 16
      %v4144 = vrot.slane %v4142, 4
      %v4145 = vor.u32 %v4144, %v4140
      %v4146 = vrot.slane %v4145, 4
      %v4148 = vshll.u32 %v3998, 16
      %v4150 = vrot.slane %v4148, 5
      %v4151 = vsel %vm998, %v4146, %v4150
      %v4153 = vshrl.u32 %v3999, 16
      %v4155 = vrot.slane %v4153, 4
      %v4156 = vshll.u32 %v3999, 16
      %v4158 = vrot.slane %v4156, 5
      %v4159 = vor.u32 %v4155, %v4158
      %v4160 = vrot.slane %v4159, 4
      %v4162 = vshll.u32 %v4000, 16
      %v4164 = vrot.slane %v4162, 5
      %v4165 = vsel %vm998, %v4160, %v4164
      %v4166 = vshrl.u32 %v4000, 16
      %v4168 = vrot.slane %v4166, 4
      %v4169 = vor.u32 %v4168, %v4164
      %v4170 = vrot.slane %v4169, 4
      %v4172 = vshll.u32 %v4001, 16
      %v4174 = vrot.slane %v4172, 5
      %v4175 = vsel %vm998, %v4170, %v4174
      %v4177 = vshrl.u32 %v4002, 16
      %v4179 = vrot.slane %v4177, 4
      %v4180 = vshll.u32 %v4002, 16
      %v4182 = vrot.slane %v4180, 5
      %v4183 = vor.u32 %v4179, %v4182
      %v4184 = vrot.slane %v4183, 4
      %v4186 = vshll.u32 %v4003, 16
      %v4188 = vrot.slane %v4186, 5
      %v4189 = vsel %vm998, %v4184, %v4188
      %v4190 = vshrl.u32 %v4003, 16
      %v4192 = vrot.slane %v4190, 4
      %v4193 = vor.u32 %v4192, %v4188
      %v4194 = vrot.slane %v4193, 4
      %v4196 = vshll.u32 %v4004, 16
      %v4198 = vrot.slane %v4196, 5
      %v4199 = vsel %vm998, %v4194, %v4198
      %v4201 = vshrl.u32 %v4005, 16
      %v4203 = vrot.slane %v4201, 4
      %v4204 = vshll.u32 %v4005, 16
      %v4206 = vrot.slane %v4204, 5
      %v4207 = vor.u32 %v4203, %v4206
      %v4208 = vrot.slane %v4207, 4
      %v4210 = vshll.u32 %v4006, 16
      %v4212 = vrot.slane %v4210, 5
      %v4213 = vsel %vm998, %v4208, %v4212
      %v4214 = vshrl.u32 %v4006, 16
      %v4216 = vrot.slane %v4214, 4
      %v4217 = vor.u32 %v4216, %v4212
      %v4218 = vrot.slane %v4217, 4
      %v4220 = vshll.u32 %v4007, 16
      %v4222 = vrot.slane %v4220, 5
      %v4223 = vsel %vm998, %v4218, %v4222
      %v4225 = vshrl.u32 %v4008, 16
      %v4227 = vrot.slane %v4225, 4
      %v4228 = vshll.u32 %v4008, 16
      %v4230 = vrot.slane %v4228, 5
      %v4231 = vor.u32 %v4227, %v4230
      %v4232 = vrot.slane %v4231, 4
      %v4234 = vshll.u32 %v4009, 16
      %v4236 = vrot.slane %v4234, 5
      %v4237 = vsel %vm998, %v4232, %v4236
      %v4238 = vshrl.u32 %v4009, 16
      %v4240 = vrot.slane %v4238, 4
      %v4241 = vor.u32 %v4240, %v4236
      %v4242 = vrot.slane %v4241, 4
      %v4244 = vshll.u32 %v4010, 16
      %v4246 = vrot.slane %v4244, 5
      %v4247 = vsel %vm998, %v4242, %v4246
      %v4249 = vshrl.u32 %v4011, 16
      %v4251 = vrot.slane %v4249, 4
      %v4252 = vshll.u32 %v4011, 16
      %v4254 = vrot.slane %v4252, 5
      %v4255 = vor.u32 %v4251, %v4254
      %v4256 = vrot.slane %v4255, 4
      %v4258 = vshll.u32 %v4012, 16
      %v4260 = vrot.slane %v4258, 5
      %v4261 = vsel %vm998, %v4256, %v4260
      %v4262 = vshrl.u32 %v4012, 16
      %v4264 = vrot.slane %v4262, 4
      %v4265 = vor.u32 %v4264, %v4260
      %v4266 = vrot.slane %v4265, 4
      %v4268 = vshll.u32 %v4013, 16
      %v4270 = vrot.slane %v4268, 5
      %v4271 = vsel %vm998, %v4266, %v4270
      %v4273 = vshrl.u32 %v4014, 16
      %v4275 = vrot.slane %v4273, 4
      %v4276 = vshll.u32 %v4014, 16
      %v4278 = vrot.slane %v4276, 5
      %v4279 = vor.u32 %v4275, %v4278
      %v4280 = vrot.slane %v4279, 4
      %v4282 = vshll.u32 %v4015, 16
      %v4284 = vrot.slane %v4282, 5
      %v4285 = vsel %vm998, %v4280, %v4284
      %v4286 = vshrl.u32 %v4015, 16
      %v4288 = vrot.slane %v4286, 4
      %v4289 = vor.u32 %v4288, %v4284
      %v4290 = vrot.slane %v4289, 4
      %v4292 = vshll.u32 %v4016, 16
      %v4294 = vrot.slane %v4292, 5
      %v4295 = vsel %vm998, %v4290, %v4294
      %v4297 = vshrl.u32 %v4017, 16
      %v4299 = vrot.slane %v4297, 4
      %v4300 = vshll.u32 %v4017, 16
      %v4302 = vrot.slane %v4300, 5
      %v4303 = vor.u32 %v4299, %v4302
      %v4304 = vrot.slane %v4303, 4
      %v4306 = vshll.u32 %v4018, 16
      %v4308 = vrot.slane %v4306, 5
      %v4309 = vsel %vm998, %v4304, %v4308
      %v4310 = vshrl.u32 %v4018, 16
      %v4312 = vrot.slane %v4310, 4
      %v4313 = vor.u32 %v4312, %v4308
      %v4314 = vrot.slane %v4313, 4
      %v4316 = vshll.u32 %v4019, 16
      %v4318 = vrot.slane %v4316, 5
      %v4319 = vsel %vm998, %v4314, %v4318
      %v4321 = vshrl.u32 %v4020, 16
      %v4323 = vrot.slane %v4321, 4
      %v4324 = vshll.u32 %v4020, 16
      %v4326 = vrot.slane %v4324, 5
      %v4327 = vor.u32 %v4323, %v4326
      %v4328 = vrot.slane %v4327, 4
      %v4330 = vshll.u32 %v4021, 16
      %v4332 = vrot.slane %v4330, 5
      %v4333 = vsel %vm998, %v4328, %v4332
      %v4334 = vshrl.u32 %v4021, 16
      %v4336 = vrot.slane %v4334, 4
      %v4337 = vor.u32 %v4336, %v4332
      %v4338 = vrot.slane %v4337, 4
      %v4340 = vshll.u32 %v4022, 16
      %v4342 = vrot.slane %v4340, 5
      %v4343 = vsel %vm998, %v4338, %v4342
      %v4345 = vshrl.u32 %v4023, 16
      %v4347 = vrot.slane %v4345, 4
      %v4348 = vshll.u32 %v4023, 16
      %v4350 = vrot.slane %v4348, 5
      %v4351 = vor.u32 %v4347, %v4350
      %v4352 = vrot.slane %v4351, 4
      %v4354 = vshll.u32 %v4024, 16
      %v4356 = vrot.slane %v4354, 5
      %v4357 = vsel %vm998, %v4352, %v4356
      %v4358 = vshrl.u32 %v4024, 16
      %v4360 = vrot.slane %v4358, 4
      %v4361 = vor.u32 %v4360, %v4356
      %v4362 = vrot.slane %v4361, 4
      %v4364 = vshll.u32 %v4025, 16
      %v4366 = vrot.slane %v4364, 5
      %v4367 = vsel %vm998, %v4362, %v4366
      %v4369 = vshrl.u32 %v4026, 16
      %v4371 = vrot.slane %v4369, 4
      %v4372 = vshll.u32 %v4026, 16
      %v4374 = vrot.slane %v4372, 5
      %v4375 = vor.u32 %v4371, %v4374
      %v4376 = vrot.slane %v4375, 4
      %v4378 = vshll.u32 %v4027, 16
      %v4380 = vrot.slane %v4378, 5
      %v4381 = vsel %vm998, %v4376, %v4380
      %v4382 = vshrl.u32 %v4027, 16
      %v4384 = vrot.slane %v4382, 4
      %v4385 = vor.u32 %v4384, %v4380
      %v4386 = vrot.slane %v4385, 4
      %v4388 = vshll.u32 %v4028, 16
      %v4390 = vrot.slane %v4388, 5
      %v4391 = vsel %vm998, %v4386, %v4390
      %v4393 = vshrl.u32 %v4029, 16
      %v4395 = vrot.slane %v4393, 4
      %v4396 = vshll.u32 %v4029, 16
      %v4398 = vrot.slane %v4396, 5
      %v4399 = vor.u32 %v4395, %v4398
      %v4400 = vrot.slane %v4399, 4
      %v4402 = vshll.u32 %v4030, 16
      %v4404 = vrot.slane %v4402, 5
      %v4405 = vsel %vm998, %v4400, %v4404
      %v4406 = vshrl.u32 %v4030, 16
      %v4408 = vrot.slane %v4406, 4
      %v4409 = vor.u32 %v4408, %v4404
      %v4410 = vrot.slane %v4409, 4
      %v4412 = vshll.u32 %v4031, 16
      %v4414 = vrot.slane %v4412, 5
      %v4415 = vsel %vm998, %v4410, %v4414
      %s4416 = scalar_lea.vmem %s3, 448
      %v4417 = vld [vmem:[%s4416] sm:$0xf]
      %v4418 = vld [vmem:[%s4416 + $0x4] sm:$0xf]
      %v4419 = vld [vmem:[%s4416 + $0x8] sm:$0xf]
      %v4420 = vld [vmem:[%s4416 + $0xc] sm:$0xf]
      %v4421 = vld [vmem:[%s4416 + $0x10] sm:$0xf]
      %v4422 = vld [vmem:[%s4416 + $0x14] sm:$0xf]
      %v4423 = vld [vmem:[%s4416 + $0x18] sm:$0xf]
      %v4424 = vld [vmem:[%s4416 + $0x1c] sm:$0xf]
      %v4425 = vld [vmem:[%s4416 + $0x20] sm:$0xf]
      %v4426 = vld [vmem:[%s4416 + $0x24] sm:$0xf]
      %v4427 = vld [vmem:[%s4416 + $0x28] sm:$0xf]
      %v4428 = vld [vmem:[%s4416 + $0x2c] sm:$0xf]
      %v4429 = vld [vmem:[%s4416 + $0x30] sm:$0xf]
      %v4430 = vld [vmem:[%s4416 + $0x34] sm:$0xf]
      %v4431 = vld [vmem:[%s4416 + $0x38] sm:$0xf]
      %v4432 = vld [vmem:[%s4416 + $0x3c] sm:$0xf]
      %v4433 = vunpack.c.l.b16 %v4045
      %v4434 = vunpack.c.l.b16 %v4055
      %v4435 = vunpack.c.l.b16 %v4069
      %v4436 = vunpack.c.l.b16 %v4079
      %v4437 = vunpack.c.l.b16 %v4093
      %v4438 = vunpack.c.l.b16 %v4103
      %v4439 = vunpack.c.l.b16 %v4117
      %v4440 = vunpack.c.l.b16 %v4127
      %v4441 = vunpack.c.l.b16 %v4141
      %v4442 = vunpack.c.l.b16 %v4151
      %v4443 = vunpack.c.l.b16 %v4165
      %v4444 = vunpack.c.l.b16 %v4175
      %v4445 = vunpack.c.l.b16 %v4189
      %v4446 = vunpack.c.l.b16 %v4199
      %v4447 = vunpack.c.l.b16 %v4213
      %v4448 = vunpack.c.l.b16 %v4223
      %v4449 = vunpack.c.l.b16 %v4237
      %v4450 = vunpack.c.l.b16 %v4247
      %v4451 = vunpack.c.l.b16 %v4261
      %v4452 = vunpack.c.l.b16 %v4271
      %v4453 = vunpack.c.l.b16 %v4285
      %v4454 = vunpack.c.l.b16 %v4295
      %v4455 = vunpack.c.l.b16 %v4309
      %v4456 = vunpack.c.l.b16 %v4319
      %v4457 = vunpack.c.l.b16 %v4333
      %v4458 = vunpack.c.l.b16 %v4343
      %v4459 = vunpack.c.l.b16 %v4357
      %v4460 = vunpack.c.l.b16 %v4367
      %v4461 = vunpack.c.l.b16 %v4381
      %v4462 = vunpack.c.l.b16 %v4391
      %v4463 = vunpack.c.l.b16 %v4405
      %v4464 = vunpack.c.l.b16 %v4415
      %v4465 = vpack.c.b16 %v4434, %v4433
      %v4466 = vpack.c.b16 %v4436, %v4435
      %v4467 = vpack.c.b16 %v4438, %v4437
      %v4468 = vpack.c.b16 %v4440, %v4439
      %v4469 = vpack.c.b16 %v4442, %v4441
      %v4470 = vpack.c.b16 %v4444, %v4443
      %v4471 = vpack.c.b16 %v4446, %v4445
      %v4472 = vpack.c.b16 %v4448, %v4447
      %v4473 = vpack.c.b16 %v4450, %v4449
      %v4474 = vpack.c.b16 %v4452, %v4451
      %v4475 = vpack.c.b16 %v4454, %v4453
      %v4476 = vpack.c.b16 %v4456, %v4455
      %v4477 = vpack.c.b16 %v4458, %v4457
      %v4478 = vpack.c.b16 %v4460, %v4459
      %v4479 = vpack.c.b16 %v4462, %v4461
      %v4480 = vpack.c.b16 %v4464, %v4463
      %v4513 = vunpack.c.l.b16 %v4417
      %v4514 = vunpack.c.l.b16 %v4418
      %v4515 = vunpack.c.l.b16 %v4419
      %v4516 = vunpack.c.l.b16 %v4420
      %v4517 = vunpack.c.l.b16 %v4421
      %v4518 = vunpack.c.l.b16 %v4422
      %v4519 = vunpack.c.l.b16 %v4423
      %v4520 = vunpack.c.l.b16 %v4424
      %v4521 = vunpack.c.l.b16 %v4425
      %v4522 = vunpack.c.l.b16 %v4426
      %v4523 = vunpack.c.l.b16 %v4427
      %v4524 = vunpack.c.l.b16 %v4428
      %v4525 = vunpack.c.l.b16 %v4429
      %v4526 = vunpack.c.l.b16 %v4430
      %v4527 = vunpack.c.l.b16 %v4431
      %v4528 = vunpack.c.l.b16 %v4432
      %v4529 = vpack.c.b16 %v4514, %v4513
      %v4530 = vpack.c.b16 %v4516, %v4515
      %v4531 = vpack.c.b16 %v4518, %v4517
      %v4532 = vpack.c.b16 %v4520, %v4519
      %v4533 = vpack.c.b16 %v4522, %v4521
      %v4534 = vpack.c.b16 %v4524, %v4523
      %v4535 = vpack.c.b16 %v4526, %v4525
      %v4536 = vpack.c.b16 %v4528, %v4527
      %4545 = vmatpush.bf16.msra.mxu0 %v4536
      %4546 = vmatpush.bf16.msra.mxu0 %v4535
      %4547 = vmatpush.bf16.msra.mxu0 %v4534
      %4548 = vmatpush.bf16.msra.mxu0 %v4533
      %4549 = vmatpush.bf16.msra.mxu0 %v4532
      %4550 = vmatpush.bf16.msra.mxu0 %v4531
      %4551 = vmatpush.bf16.msra.mxu0 %v4530
      %4552 = vmatpush.bf16.msra.mxu0 %v4529
      %4553 = vmatmul.bf16.gmra.mxu0 %v4465
      %v4554 = vpop.f32.mrf.mxu0
      %v4555 = vadd.f32 0.0, %v4554
      %v4556 = vpop.f32.mrf.mxu0
      %v4557 = vadd.f32 0.0, %v4556
      %4558 = vmatmul.bf16.gmra.mxu0 %v4466
      %v4559 = vpop.f32.mrf.mxu0
      %v4560 = vadd.f32 0.0, %v4559
      %v4561 = vpop.f32.mrf.mxu0
      %v4562 = vadd.f32 0.0, %v4561
      %4563 = vmatmul.bf16.gmra.mxu0 %v4467
      %v4564 = vpop.f32.mrf.mxu0
      %v4565 = vadd.f32 0.0, %v4564
      %v4566 = vpop.f32.mrf.mxu0
      %v4567 = vadd.f32 0.0, %v4566
      %4568 = vmatmul.bf16.gmra.mxu0 %v4468
      %v4569 = vpop.f32.mrf.mxu0
      %v4570 = vadd.f32 0.0, %v4569
      %v4571 = vpop.f32.mrf.mxu0
      %v4572 = vadd.f32 0.0, %v4571
      %4573 = vmatmul.bf16.gmra.mxu0 %v4469
      %v4574 = vpop.f32.mrf.mxu0
      %v4575 = vadd.f32 0.0, %v4574
      %v4576 = vpop.f32.mrf.mxu0
      %v4577 = vadd.f32 0.0, %v4576
      %4578 = vmatmul.bf16.gmra.mxu0 %v4470
      %v4579 = vpop.f32.mrf.mxu0
      %v4580 = vadd.f32 0.0, %v4579
      %v4581 = vpop.f32.mrf.mxu0
      %v4582 = vadd.f32 0.0, %v4581
      %4583 = vmatmul.bf16.gmra.mxu0 %v4471
      %v4584 = vpop.f32.mrf.mxu0
      %v4585 = vadd.f32 0.0, %v4584
      %v4586 = vpop.f32.mrf.mxu0
      %v4587 = vadd.f32 0.0, %v4586
      %4588 = vmatmul.bf16.gmra.mxu0 %v4472
      %v4589 = vpop.f32.mrf.mxu0
      %v4590 = vadd.f32 0.0, %v4589
      %v4591 = vpop.f32.mrf.mxu0
      %v4592 = vadd.f32 0.0, %v4591
      %4593 = vmatmul.bf16.gmra.mxu0 %v4473
      %v4594 = vpop.f32.mrf.mxu0
      %v4595 = vadd.f32 0.0, %v4594
      %v4596 = vpop.f32.mrf.mxu0
      %v4597 = vadd.f32 0.0, %v4596
      %4598 = vmatmul.bf16.gmra.mxu0 %v4474
      %v4599 = vpop.f32.mrf.mxu0
      %v4600 = vadd.f32 0.0, %v4599
      %v4601 = vpop.f32.mrf.mxu0
      %v4602 = vadd.f32 0.0, %v4601
      %4603 = vmatmul.bf16.gmra.mxu0 %v4475
      %v4604 = vpop.f32.mrf.mxu0
      %v4605 = vadd.f32 0.0, %v4604
      %v4606 = vpop.f32.mrf.mxu0
      %v4607 = vadd.f32 0.0, %v4606
      %4608 = vmatmul.bf16.gmra.mxu0 %v4476
      %v4609 = vpop.f32.mrf.mxu0
      %v4610 = vadd.f32 0.0, %v4609
      %v4611 = vpop.f32.mrf.mxu0
      %v4612 = vadd.f32 0.0, %v4611
      %4613 = vmatmul.bf16.gmra.mxu0 %v4477
      %v4614 = vpop.f32.mrf.mxu0
      %v4615 = vadd.f32 0.0, %v4614
      %v4616 = vpop.f32.mrf.mxu0
      %v4617 = vadd.f32 0.0, %v4616
      %4618 = vmatmul.bf16.gmra.mxu0 %v4478
      %v4619 = vpop.f32.mrf.mxu0
      %v4620 = vadd.f32 0.0, %v4619
      %v4621 = vpop.f32.mrf.mxu0
      %v4622 = vadd.f32 0.0, %v4621
      %4623 = vmatmul.bf16.gmra.mxu0 %v4479
      %v4624 = vpop.f32.mrf.mxu0
      %v4625 = vadd.f32 0.0, %v4624
      %v4626 = vpop.f32.mrf.mxu0
      %v4627 = vadd.f32 0.0, %v4626
      %4628 = vmatmul.bf16.gmra.mxu0 %v4480
      %v4629 = vpop.f32.mrf.mxu0
      %v4630 = vadd.f32 0.0, %v4629
      %v4631 = vpop.f32.mrf.mxu0
      %v4632 = vadd.f32 0.0, %v4631
      %4633 = vdwg.mxu0
      %v4634 = vadd.f32 %v3952, %v4555
      %v4635 = vadd.f32 %v3953, %v4557
      %v4636 = vadd.f32 %v3954, %v4560
      %v4637 = vadd.f32 %v3955, %v4562
      %v4638 = vadd.f32 %v3956, %v4565
      %v4639 = vadd.f32 %v3957, %v4567
      %v4640 = vadd.f32 %v3958, %v4570
      %v4641 = vadd.f32 %v3959, %v4572
      %v4642 = vadd.f32 %v3960, %v4575
      %v4643 = vadd.f32 %v3961, %v4577
      %v4644 = vadd.f32 %v3962, %v4580
      %v4645 = vadd.f32 %v3963, %v4582
      %v4646 = vadd.f32 %v3964, %v4585
      %v4647 = vadd.f32 %v3965, %v4587
      %v4648 = vadd.f32 %v3966, %v4590
      %v4649 = vadd.f32 %v3967, %v4592
      %v4650 = vadd.f32 %v3968, %v4595
      %v4651 = vadd.f32 %v3969, %v4597
      %v4652 = vadd.f32 %v3970, %v4600
      %v4653 = vadd.f32 %v3971, %v4602
      %v4654 = vadd.f32 %v3972, %v4605
      %v4655 = vadd.f32 %v3973, %v4607
      %v4656 = vadd.f32 %v3974, %v4610
      %v4657 = vadd.f32 %v3975, %v4612
      %v4658 = vadd.f32 %v3976, %v4615
      %v4659 = vadd.f32 %v3977, %v4617
      %v4660 = vadd.f32 %v3978, %v4620
      %v4661 = vadd.f32 %v3979, %v4622
      %v4662 = vadd.f32 %v3980, %v4625
      %v4663 = vadd.f32 %v3981, %v4627
      %v4664 = vadd.f32 %v3982, %v4630
      %v4665 = vadd.f32 %v3983, %v4632
      %v4666 = vld [vmem:[%s3669] sm:$0xe]
      %v4667 = vld [vmem:[%s3669 + $0xc] sm:$0xe]
      %v4668 = vld [vmem:[%s3669 + $0x18] sm:$0xe]
      %v4669 = vld [vmem:[%s3669 + $0x24] sm:$0xe]
      %v4670 = vld [vmem:[%s3669 + $0x30] sm:$0xe]
      %v4671 = vld [vmem:[%s3669 + $0x3c] sm:$0xe]
      %v4672 = vld [vmem:[%s3669 + $0x48] sm:$0xe]
      %v4673 = vld [vmem:[%s3669 + $0x54] sm:$0xe]
      %v4674 = vld [vmem:[%s3669 + $0x60] sm:$0xe]
      %v4675 = vld [vmem:[%s3669 + $0x6c] sm:$0xe]
      %v4676 = vld [vmem:[%s3669 + $0x78] sm:$0xe]
      %v4677 = vld [vmem:[%s3669 + $0x84] sm:$0xe]
      %v4678 = vld [vmem:[%s3669 + $0x90] sm:$0xe]
      %v4679 = vld [vmem:[%s3669 + $0x9c] sm:$0xe]
      %v4680 = vld [vmem:[%s3669 + $0xa8] sm:$0xe]
      %v4681 = vld [vmem:[%s3669 + $0xb4] sm:$0xe]
      %v4730 = vrot.slane %v4666, 5
      %v4731 = vrot.slane %v4730, 4
      %v4732 = vrot.slane %v3985, 5
      %v4733 = vsel %vm1884, %v4731, %v4732
      %v4734 = vrot.slane %v4732, 4
      %v4735 = vrot.slane %v3986, 5
      %v4736 = vsel %vm1884, %v4734, %v4735
      %v4737 = vrot.slane %v4667, 5
      %v4738 = vrot.slane %v4737, 4
      %v4739 = vrot.slane %v3988, 5
      %v4740 = vsel %vm1884, %v4738, %v4739
      %v4741 = vrot.slane %v4739, 4
      %v4742 = vrot.slane %v3989, 5
      %v4743 = vsel %vm1884, %v4741, %v4742
      %v4744 = vrot.slane %v4668, 5
      %v4745 = vrot.slane %v4744, 4
      %v4746 = vrot.slane %v3991, 5
      %v4747 = vsel %vm1884, %v4745, %v4746
      %v4748 = vrot.slane %v4746, 4
      %v4749 = vrot.slane %v3992, 5
      %v4750 = vsel %vm1884, %v4748, %v4749
      %v4751 = vrot.slane %v4669, 5
      %v4752 = vrot.slane %v4751, 4
      %v4753 = vrot.slane %v3994, 5
      %v4754 = vsel %vm1884, %v4752, %v4753
      %v4755 = vrot.slane %v4753, 4
      %v4756 = vrot.slane %v3995, 5
      %v4757 = vsel %vm1884, %v4755, %v4756
      %v4758 = vrot.slane %v4670, 5
      %v4759 = vrot.slane %v4758, 4
      %v4760 = vrot.slane %v3997, 5
      %v4761 = vsel %vm1884, %v4759, %v4760
      %v4762 = vrot.slane %v4760, 4
      %v4763 = vrot.slane %v3998, 5
      %v4764 = vsel %vm1884, %v4762, %v4763
      %v4765 = vrot.slane %v4671, 5
      %v4766 = vrot.slane %v4765, 4
      %v4767 = vrot.slane %v4000, 5
      %v4768 = vsel %vm1884, %v4766, %v4767
      %v4769 = vrot.slane %v4767, 4
      %v4770 = vrot.slane %v4001, 5
      %v4771 = vsel %vm1884, %v4769, %v4770
      %v4772 = vrot.slane %v4672, 5
      %v4773 = vrot.slane %v4772, 4
      %v4774 = vrot.slane %v4003, 5
      %v4775 = vsel %vm1884, %v4773, %v4774
      %v4776 = vrot.slane %v4774, 4
      %v4777 = vrot.slane %v4004, 5
      %v4778 = vsel %vm1884, %v4776, %v4777
      %v4779 = vrot.slane %v4673, 5
      %v4780 = vrot.slane %v4779, 4
      %v4781 = vrot.slane %v4006, 5
      %v4782 = vsel %vm1884, %v4780, %v4781
      %v4783 = vrot.slane %v4781, 4
      %v4784 = vrot.slane %v4007, 5
      %v4785 = vsel %vm1884, %v4783, %v4784
      %v4786 = vrot.slane %v4674, 5
      %v4787 = vrot.slane %v4786, 4
      %v4788 = vrot.slane %v4009, 5
      %v4789 = vsel %vm1884, %v4787, %v4788
      %v4790 = vrot.slane %v4788, 4
      %v4791 = vrot.slane %v4010, 5
      %v4792 = vsel %vm1884, %v4790, %v4791
      %v4793 = vrot.slane %v4675, 5
      %v4794 = vrot.slane %v4793, 4
      %v4795 = vrot.slane %v4012, 5
      %v4796 = vsel %vm1884, %v4794, %v4795
      %v4797 = vrot.slane %v4795, 4
      %v4798 = vrot.slane %v4013, 5
      %v4799 = vsel %vm1884, %v4797, %v4798
      %v4800 = vrot.slane %v4676, 5
      %v4801 = vrot.slane %v4800, 4
      %v4802 = vrot.slane %v4015, 5
      %v4803 = vsel %vm1884, %v4801, %v4802
      %v4804 = vrot.slane %v4802, 4
      %v4805 = vrot.slane %v4016, 5
      %v4806 = vsel %vm1884, %v4804, %v4805
      %v4807 = vrot.slane %v4677, 5
      %v4808 = vrot.slane %v4807, 4
      %v4809 = vrot.slane %v4018, 5
      %v4810 = vsel %vm1884, %v4808, %v4809
      %v4811 = vrot.slane %v4809, 4
      %v4812 = vrot.slane %v4019, 5
      %v4813 = vsel %vm1884, %v4811, %v4812
      %v4814 = vrot.slane %v4678, 5
      %v4815 = vrot.slane %v4814, 4
      %v4816 = vrot.slane %v4021, 5
      %v4817 = vsel %vm1884, %v4815, %v4816
      %v4818 = vrot.slane %v4816, 4
      %v4819 = vrot.slane %v4022, 5
      %v4820 = vsel %vm1884, %v4818, %v4819
      %v4821 = vrot.slane %v4679, 5
      %v4822 = vrot.slane %v4821, 4
      %v4823 = vrot.slane %v4024, 5
      %v4824 = vsel %vm1884, %v4822, %v4823
      %v4825 = vrot.slane %v4823, 4
      %v4826 = vrot.slane %v4025, 5
      %v4827 = vsel %vm1884, %v4825, %v4826
      %v4828 = vrot.slane %v4680, 5
      %v4829 = vrot.slane %v4828, 4
      %v4830 = vrot.slane %v4027, 5
      %v4831 = vsel %vm1884, %v4829, %v4830
      %v4832 = vrot.slane %v4830, 4
      %v4833 = vrot.slane %v4028, 5
      %v4834 = vsel %vm1884, %v4832, %v4833
      %v4835 = vrot.slane %v4681, 5
      %v4836 = vrot.slane %v4835, 4
      %v4837 = vrot.slane %v4030, 5
      %v4838 = vsel %vm1884, %v4836, %v4837
      %v4839 = vrot.slane %v4837, 4
      %v4840 = vrot.slane %v4031, 5
      %v4841 = vsel %vm1884, %v4839, %v4840
      %s4842 = scalar_lea.vmem %s3, 512
      %v4843 = vld [vmem:[%s4842] sm:$0xf]
      %v4844 = vld [vmem:[%s4842 + $0x4] sm:$0xf]
      %v4845 = vld [vmem:[%s4842 + $0x8] sm:$0xf]
      %v4846 = vld [vmem:[%s4842 + $0xc] sm:$0xf]
      %v4847 = vld [vmem:[%s4842 + $0x10] sm:$0xf]
      %v4848 = vld [vmem:[%s4842 + $0x14] sm:$0xf]
      %v4849 = vld [vmem:[%s4842 + $0x18] sm:$0xf]
      %v4850 = vld [vmem:[%s4842 + $0x1c] sm:$0xf]
      %v4851 = vld [vmem:[%s4842 + $0x20] sm:$0xf]
      %v4852 = vld [vmem:[%s4842 + $0x24] sm:$0xf]
      %v4853 = vld [vmem:[%s4842 + $0x28] sm:$0xf]
      %v4854 = vld [vmem:[%s4842 + $0x2c] sm:$0xf]
      %v4855 = vld [vmem:[%s4842 + $0x30] sm:$0xf]
      %v4856 = vld [vmem:[%s4842 + $0x34] sm:$0xf]
      %v4857 = vld [vmem:[%s4842 + $0x38] sm:$0xf]
      %v4858 = vld [vmem:[%s4842 + $0x3c] sm:$0xf]
      %v4859 = vunpack.c.l.b16 %v4733
      %v4860 = vunpack.c.l.b16 %v4736
      %v4861 = vunpack.c.l.b16 %v4740
      %v4862 = vunpack.c.l.b16 %v4743
      %v4863 = vunpack.c.l.b16 %v4747
      %v4864 = vunpack.c.l.b16 %v4750
      %v4865 = vunpack.c.l.b16 %v4754
      %v4866 = vunpack.c.l.b16 %v4757
      %v4867 = vunpack.c.l.b16 %v4761
      %v4868 = vunpack.c.l.b16 %v4764
      %v4869 = vunpack.c.l.b16 %v4768
      %v4870 = vunpack.c.l.b16 %v4771
      %v4871 = vunpack.c.l.b16 %v4775
      %v4872 = vunpack.c.l.b16 %v4778
      %v4873 = vunpack.c.l.b16 %v4782
      %v4874 = vunpack.c.l.b16 %v4785
      %v4875 = vunpack.c.l.b16 %v4789
      %v4876 = vunpack.c.l.b16 %v4792
      %v4877 = vunpack.c.l.b16 %v4796
      %v4878 = vunpack.c.l.b16 %v4799
      %v4879 = vunpack.c.l.b16 %v4803
      %v4880 = vunpack.c.l.b16 %v4806
      %v4881 = vunpack.c.l.b16 %v4810
      %v4882 = vunpack.c.l.b16 %v4813
      %v4883 = vunpack.c.l.b16 %v4817
      %v4884 = vunpack.c.l.b16 %v4820
      %v4885 = vunpack.c.l.b16 %v4824
      %v4886 = vunpack.c.l.b16 %v4827
      %v4887 = vunpack.c.l.b16 %v4831
      %v4888 = vunpack.c.l.b16 %v4834
      %v4889 = vunpack.c.l.b16 %v4838
      %v4890 = vunpack.c.l.b16 %v4841
      %v4891 = vpack.c.b16 %v4860, %v4859
      %v4892 = vpack.c.b16 %v4862, %v4861
      %v4893 = vpack.c.b16 %v4864, %v4863
      %v4894 = vpack.c.b16 %v4866, %v4865
      %v4895 = vpack.c.b16 %v4868, %v4867
      %v4896 = vpack.c.b16 %v4870, %v4869
      %v4897 = vpack.c.b16 %v4872, %v4871
      %v4898 = vpack.c.b16 %v4874, %v4873
      %v4899 = vpack.c.b16 %v4876, %v4875
      %v4900 = vpack.c.b16 %v4878, %v4877
      %v4901 = vpack.c.b16 %v4880, %v4879
      %v4902 = vpack.c.b16 %v4882, %v4881
      %v4903 = vpack.c.b16 %v4884, %v4883
      %v4904 = vpack.c.b16 %v4886, %v4885
      %v4905 = vpack.c.b16 %v4888, %v4887
      %v4906 = vpack.c.b16 %v4890, %v4889
      %v4939 = vunpack.c.l.b16 %v4843
      %v4940 = vunpack.c.l.b16 %v4844
      %v4941 = vunpack.c.l.b16 %v4845
      %v4942 = vunpack.c.l.b16 %v4846
      %v4943 = vunpack.c.l.b16 %v4847
      %v4944 = vunpack.c.l.b16 %v4848
      %v4945 = vunpack.c.l.b16 %v4849
      %v4946 = vunpack.c.l.b16 %v4850
      %v4947 = vunpack.c.l.b16 %v4851
      %v4948 = vunpack.c.l.b16 %v4852
      %v4949 = vunpack.c.l.b16 %v4853
      %v4950 = vunpack.c.l.b16 %v4854
      %v4951 = vunpack.c.l.b16 %v4855
      %v4952 = vunpack.c.l.b16 %v4856
      %v4953 = vunpack.c.l.b16 %v4857
      %v4954 = vunpack.c.l.b16 %v4858
      %v4955 = vpack.c.b16 %v4940, %v4939
      %v4956 = vpack.c.b16 %v4942, %v4941
      %v4957 = vpack.c.b16 %v4944, %v4943
      %v4958 = vpack.c.b16 %v4946, %v4945
      %v4959 = vpack.c.b16 %v4948, %v4947
      %v4960 = vpack.c.b16 %v4950, %v4949
      %v4961 = vpack.c.b16 %v4952, %v4951
      %v4962 = vpack.c.b16 %v4954, %v4953
      %4971 = vmatpush.bf16.msra.mxu0 %v4962
      %4972 = vmatpush.bf16.msra.mxu0 %v4961
      %4973 = vmatpush.bf16.msra.mxu0 %v4960
      %4974 = vmatpush.bf16.msra.mxu0 %v4959
      %4975 = vmatpush.bf16.msra.mxu0 %v4958
      %4976 = vmatpush.bf16.msra.mxu0 %v4957
      %4977 = vmatpush.bf16.msra.mxu0 %v4956
      %4978 = vmatpush.bf16.msra.mxu0 %v4955
      %4979 = vmatmul.bf16.gmra.mxu0 %v4891
      %v4980 = vpop.f32.mrf.mxu0
      %v4981 = vadd.f32 0.0, %v4980
      %v4982 = vpop.f32.mrf.mxu0
      %v4983 = vadd.f32 0.0, %v4982
      %4984 = vmatmul.bf16.gmra.mxu0 %v4892
      %v4985 = vpop.f32.mrf.mxu0
      %v4986 = vadd.f32 0.0, %v4985
      %v4987 = vpop.f32.mrf.mxu0
      %v4988 = vadd.f32 0.0, %v4987
      %4989 = vmatmul.bf16.gmra.mxu0 %v4893
      %v4990 = vpop.f32.mrf.mxu0
      %v4991 = vadd.f32 0.0, %v4990
      %v4992 = vpop.f32.mrf.mxu0
      %v4993 = vadd.f32 0.0, %v4992
      %4994 = vmatmul.bf16.gmra.mxu0 %v4894
      %v4995 = vpop.f32.mrf.mxu0
      %v4996 = vadd.f32 0.0, %v4995
      %v4997 = vpop.f32.mrf.mxu0
      %v4998 = vadd.f32 0.0, %v4997
      %4999 = vmatmul.bf16.gmra.mxu0 %v4895
      %v5000 = vpop.f32.mrf.mxu0
      %v5001 = vadd.f32 0.0, %v5000
      %v5002 = vpop.f32.mrf.mxu0
      %v5003 = vadd.f32 0.0, %v5002
      %5004 = vmatmul.bf16.gmra.mxu0 %v4896
      %v5005 = vpop.f32.mrf.mxu0
      %v5006 = vadd.f32 0.0, %v5005
      %v5007 = vpop.f32.mrf.mxu0
      %v5008 = vadd.f32 0.0, %v5007
      %5009 = vmatmul.bf16.gmra.mxu0 %v4897
      %v5010 = vpop.f32.mrf.mxu0
      %v5011 = vadd.f32 0.0, %v5010
      %v5012 = vpop.f32.mrf.mxu0
      %v5013 = vadd.f32 0.0, %v5012
      %5014 = vmatmul.bf16.gmra.mxu0 %v4898
      %v5015 = vpop.f32.mrf.mxu0
      %v5016 = vadd.f32 0.0, %v5015
      %v5017 = vpop.f32.mrf.mxu0
      %v5018 = vadd.f32 0.0, %v5017
      %5019 = vmatmul.bf16.gmra.mxu0 %v4899
      %v5020 = vpop.f32.mrf.mxu0
      %v5021 = vadd.f32 0.0, %v5020
      %v5022 = vpop.f32.mrf.mxu0
      %v5023 = vadd.f32 0.0, %v5022
      %5024 = vmatmul.bf16.gmra.mxu0 %v4900
      %v5025 = vpop.f32.mrf.mxu0
      %v5026 = vadd.f32 0.0, %v5025
      %v5027 = vpop.f32.mrf.mxu0
      %v5028 = vadd.f32 0.0, %v5027
      %5029 = vmatmul.bf16.gmra.mxu0 %v4901
      %v5030 = vpop.f32.mrf.mxu0
      %v5031 = vadd.f32 0.0, %v5030
      %v5032 = vpop.f32.mrf.mxu0
      %v5033 = vadd.f32 0.0, %v5032
      %5034 = vmatmul.bf16.gmra.mxu0 %v4902
      %v5035 = vpop.f32.mrf.mxu0
      %v5036 = vadd.f32 0.0, %v5035
      %v5037 = vpop.f32.mrf.mxu0
      %v5038 = vadd.f32 0.0, %v5037
      %5039 = vmatmul.bf16.gmra.mxu0 %v4903
      %v5040 = vpop.f32.mrf.mxu0
      %v5041 = vadd.f32 0.0, %v5040
      %v5042 = vpop.f32.mrf.mxu0
      %v5043 = vadd.f32 0.0, %v5042
      %5044 = vmatmul.bf16.gmra.mxu0 %v4904
      %v5045 = vpop.f32.mrf.mxu0
      %v5046 = vadd.f32 0.0, %v5045
      %v5047 = vpop.f32.mrf.mxu0
      %v5048 = vadd.f32 0.0, %v5047
      %5049 = vmatmul.bf16.gmra.mxu0 %v4905
      %v5050 = vpop.f32.mrf.mxu0
      %v5051 = vadd.f32 0.0, %v5050
      %v5052 = vpop.f32.mrf.mxu0
      %v5053 = vadd.f32 0.0, %v5052
      %5054 = vmatmul.bf16.gmra.mxu0 %v4906
      %v5055 = vpop.f32.mrf.mxu0
      %v5056 = vadd.f32 0.0, %v5055
      %v5057 = vpop.f32.mrf.mxu0
      %v5058 = vadd.f32 0.0, %v5057
      %5059 = vdwg.mxu0
      %v5060 = vadd.f32 %v4634, %v4981
      %v5061 = vadd.f32 %v4635, %v4983
      %v5062 = vadd.f32 %v4636, %v4986
      %v5063 = vadd.f32 %v4637, %v4988
      %v5064 = vadd.f32 %v4638, %v4991
      %v5065 = vadd.f32 %v4639, %v4993
      %v5066 = vadd.f32 %v4640, %v4996
      %v5067 = vadd.f32 %v4641, %v4998
      %v5068 = vadd.f32 %v4642, %v5001
      %v5069 = vadd.f32 %v4643, %v5003
      %v5070 = vadd.f32 %v4644, %v5006
      %v5071 = vadd.f32 %v4645, %v5008
      %v5072 = vadd.f32 %v4646, %v5011
      %v5073 = vadd.f32 %v4647, %v5013
      %v5074 = vadd.f32 %v4648, %v5016
      %v5075 = vadd.f32 %v4649, %v5018
      %v5076 = vadd.f32 %v4650, %v5021
      %v5077 = vadd.f32 %v4651, %v5023
      %v5078 = vadd.f32 %v4652, %v5026
      %v5079 = vadd.f32 %v4653, %v5028
      %v5080 = vadd.f32 %v4654, %v5031
      %v5081 = vadd.f32 %v4655, %v5033
      %v5082 = vadd.f32 %v4656, %v5036
      %v5083 = vadd.f32 %v4657, %v5038
      %v5084 = vadd.f32 %v4658, %v5041
      %v5085 = vadd.f32 %v4659, %v5043
      %v5086 = vadd.f32 %v4660, %v5046
      %v5087 = vadd.f32 %v4661, %v5048
      %v5088 = vadd.f32 %v4662, %v5051
      %v5089 = vadd.f32 %v4663, %v5053
      %v5090 = vadd.f32 %v4664, %v5056
      %v5091 = vadd.f32 %v4665, %v5058
      %v5092 = vpack.c.bf16 %v5060, %v5060
      %v5093 = vpack.c.bf16 %v5061, %v5061
      %v5094 = vpack.c.bf16 %v5062, %v5062
      %v5095 = vpack.c.bf16 %v5063, %v5063
      %v5096 = vpack.c.bf16 %v5064, %v5064
      %v5097 = vpack.c.bf16 %v5065, %v5065
      %v5098 = vpack.c.bf16 %v5066, %v5066
      %v5099 = vpack.c.bf16 %v5067, %v5067
      %v5100 = vpack.c.bf16 %v5068, %v5068
      %v5101 = vpack.c.bf16 %v5069, %v5069
      %v5102 = vpack.c.bf16 %v5070, %v5070
      %v5103 = vpack.c.bf16 %v5071, %v5071
      %v5104 = vpack.c.bf16 %v5072, %v5072
      %v5105 = vpack.c.bf16 %v5073, %v5073
      %v5106 = vpack.c.bf16 %v5074, %v5074
      %v5107 = vpack.c.bf16 %v5075, %v5075
      %v5108 = vpack.c.bf16 %v5076, %v5076
      %v5109 = vpack.c.bf16 %v5077, %v5077
      %v5110 = vpack.c.bf16 %v5078, %v5078
      %v5111 = vpack.c.bf16 %v5079, %v5079
      %v5112 = vpack.c.bf16 %v5080, %v5080
      %v5113 = vpack.c.bf16 %v5081, %v5081
      %v5114 = vpack.c.bf16 %v5082, %v5082
      %v5115 = vpack.c.bf16 %v5083, %v5083
      %v5116 = vpack.c.bf16 %v5084, %v5084
      %v5117 = vpack.c.bf16 %v5085, %v5085
      %v5118 = vpack.c.bf16 %v5086, %v5086
      %v5119 = vpack.c.bf16 %v5087, %v5087
      %v5120 = vpack.c.bf16 %v5088, %v5088
      %v5121 = vpack.c.bf16 %v5089, %v5089
      %v5122 = vpack.c.bf16 %v5090, %v5090
      %v5123 = vpack.c.bf16 %v5091, %v5091
      %5124 = vst [vmem:[%s231] sm:$0xf] %v5092
      %5125 = vst [vmem:[%s231 + $0x4] sm:$0xf] %v5093
      %5126 = vst [vmem:[%s231 + $0x8] sm:$0xf] %v5094
      %5127 = vst [vmem:[%s231 + $0xc] sm:$0xf] %v5095
      %5128 = vst [vmem:[%s231 + $0x10] sm:$0xf] %v5096
      %5129 = vst [vmem:[%s231 + $0x14] sm:$0xf] %v5097
      %5130 = vst [vmem:[%s231 + $0x18] sm:$0xf] %v5098
      %5131 = vst [vmem:[%s231 + $0x1c] sm:$0xf] %v5099
      %5132 = vst [vmem:[%s231 + $0x20] sm:$0xf] %v5100
      %5133 = vst [vmem:[%s231 + $0x24] sm:$0xf] %v5101
      %5134 = vst [vmem:[%s231 + $0x28] sm:$0xf] %v5102
      %5135 = vst [vmem:[%s231 + $0x2c] sm:$0xf] %v5103
      %5136 = vst [vmem:[%s231 + $0x30] sm:$0xf] %v5104
      %5137 = vst [vmem:[%s231 + $0x34] sm:$0xf] %v5105
      %5138 = vst [vmem:[%s231 + $0x38] sm:$0xf] %v5106
      %5139 = vst [vmem:[%s231 + $0x3c] sm:$0xf] %v5107
      %5140 = vst [vmem:[%s231 + $0x40] sm:$0xf] %v5108
      %5141 = vst [vmem:[%s231 + $0x44] sm:$0xf] %v5109
      %5142 = vst [vmem:[%s231 + $0x48] sm:$0xf] %v5110
      %5143 = vst [vmem:[%s231 + $0x4c] sm:$0xf] %v5111
      %5144 = vst [vmem:[%s231 + $0x50] sm:$0xf] %v5112
      %5145 = vst [vmem:[%s231 + $0x54] sm:$0xf] %v5113
      %5146 = vst [vmem:[%s231 + $0x58] sm:$0xf] %v5114
      %5147 = vst [vmem:[%s231 + $0x5c] sm:$0xf] %v5115
      %5148 = vst [vmem:[%s231 + $0x60] sm:$0xf] %v5116
      %5149 = vst [vmem:[%s231 + $0x64] sm:$0xf] %v5117
      %5150 = vst [vmem:[%s231 + $0x68] sm:$0xf] %v5118
      %5151 = vst [vmem:[%s231 + $0x6c] sm:$0xf] %v5119
      %5152 = vst [vmem:[%s231 + $0x70] sm:$0xf] %v5120
      %5153 = vst [vmem:[%s231 + $0x74] sm:$0xf] %v5121
      %5154 = vst [vmem:[%s231 + $0x78] sm:$0xf] %v5122
      %5155 = vst [vmem:[%s231 + $0x7c] sm:$0xf] %v5123
      %v5156 = vadd.f32 %v5060, %v5061
      %v5157 = vadd.f32 %v5156, %v5062
      %v5158 = vadd.f32 %v5157, %v5063
      %v5159 = vadd.f32 %v5158, %v5064
      %v5160 = vadd.f32 %v5159, %v5065
      %v5161 = vadd.f32 %v5160, %v5066
      %v5162 = vadd.f32 %v5161, %v5067
      %v5163 = vadd.f32 %v5162, %v5068
      %v5164 = vadd.f32 %v5163, %v5069
      %v5165 = vadd.f32 %v5164, %v5070
      %v5166 = vadd.f32 %v5165, %v5071
      %v5167 = vadd.f32 %v5166, %v5072
      %v5168 = vadd.f32 %v5167, %v5073
      %v5169 = vadd.f32 %v5168, %v5074
      %v5170 = vadd.f32 %v5169, %v5075
      %v5171 = vadd.f32 %v5170, %v5076
      %v5172 = vadd.f32 %v5171, %v5077
      %v5173 = vadd.f32 %v5172, %v5078
      %v5174 = vadd.f32 %v5173, %v5079
      %v5175 = vadd.f32 %v5174, %v5080
      %v5176 = vadd.f32 %v5175, %v5081
      %v5177 = vadd.f32 %v5176, %v5082
      %v5178 = vadd.f32 %v5177, %v5083
      %v5179 = vadd.f32 %v5178, %v5084
      %v5180 = vadd.f32 %v5179, %v5085
      %v5181 = vadd.f32 %v5180, %v5086
      %v5182 = vadd.f32 %v5181, %v5087
      %v5183 = vadd.f32 %v5182, %v5088
      %v5184 = vadd.f32 %v5183, %v5089
      %v5185 = vadd.f32 %v5184, %v5090
      %v5186 = vadd.f32 %v5185, %v5091
      %v5187 = vrot.slane %v5186, 4
      %v5188 = vadd.f32 %v5186, %v5187
      %v5189 = vrot.slane %v5188, 2
      %v5190 = vadd.f32 %v5188, %v5189
      %v5191 = vrot.slane %v5190, 1
      %v5192 = vadd.f32 %v5190, %v5191
      %5193 = vst [vmem:[%s235] sm:$0x1] %v5192
      %v5194 = vmul.f32 %v5060, %v5060
      %v5195 = vmul.f32 %v5061, %v5061
      %v5196 = vmul.f32 %v5062, %v5062
      %v5197 = vmul.f32 %v5063, %v5063
      %v5198 = vmul.f32 %v5064, %v5064
      %v5199 = vmul.f32 %v5065, %v5065
      %v5200 = vmul.f32 %v5066, %v5066
      %v5201 = vmul.f32 %v5067, %v5067
      %v5202 = vmul.f32 %v5068, %v5068
      %v5203 = vmul.f32 %v5069, %v5069
      %v5204 = vmul.f32 %v5070, %v5070
      %v5205 = vmul.f32 %v5071, %v5071
      %v5206 = vmul.f32 %v5072, %v5072
      %v5207 = vmul.f32 %v5073, %v5073
      %v5208 = vmul.f32 %v5074, %v5074
      %v5209 = vmul.f32 %v5075, %v5075
      %v5210 = vmul.f32 %v5076, %v5076
      %v5211 = vmul.f32 %v5077, %v5077
      %v5212 = vmul.f32 %v5078, %v5078
      %v5213 = vmul.f32 %v5079, %v5079
      %v5214 = vmul.f32 %v5080, %v5080
      %v5215 = vmul.f32 %v5081, %v5081
      %v5216 = vmul.f32 %v5082, %v5082
      %v5217 = vmul.f32 %v5083, %v5083
      %v5218 = vmul.f32 %v5084, %v5084
      %v5219 = vmul.f32 %v5085, %v5085
      %v5220 = vmul.f32 %v5086, %v5086
      %v5221 = vmul.f32 %v5087, %v5087
      %v5222 = vmul.f32 %v5088, %v5088
      %v5223 = vmul.f32 %v5089, %v5089
      %v5224 = vmul.f32 %v5090, %v5090
      %v5225 = vmul.f32 %v5091, %v5091
      %v5226 = vadd.f32 %v5194, %v5195
      %v5227 = vadd.f32 %v5226, %v5196
      %v5228 = vadd.f32 %v5227, %v5197
      %v5229 = vadd.f32 %v5228, %v5198
      %v5230 = vadd.f32 %v5229, %v5199
      %v5231 = vadd.f32 %v5230, %v5200
      %v5232 = vadd.f32 %v5231, %v5201
      %v5233 = vadd.f32 %v5232, %v5202
      %v5234 = vadd.f32 %v5233, %v5203
      %v5235 = vadd.f32 %v5234, %v5204
      %v5236 = vadd.f32 %v5235, %v5205
      %v5237 = vadd.f32 %v5236, %v5206
      %v5238 = vadd.f32 %v5237, %v5207
      %v5239 = vadd.f32 %v5238, %v5208
      %v5240 = vadd.f32 %v5239, %v5209
      %v5241 = vadd.f32 %v5240, %v5210
      %v5242 = vadd.f32 %v5241, %v5211
      %v5243 = vadd.f32 %v5242, %v5212
      %v5244 = vadd.f32 %v5243, %v5213
      %v5245 = vadd.f32 %v5244, %v5214
      %v5246 = vadd.f32 %v5245, %v5215
      %v5247 = vadd.f32 %v5246, %v5216
      %v5248 = vadd.f32 %v5247, %v5217
      %v5249 = vadd.f32 %v5248, %v5218
      %v5250 = vadd.f32 %v5249, %v5219
      %v5251 = vadd.f32 %v5250, %v5220
      %v5252 = vadd.f32 %v5251, %v5221
      %v5253 = vadd.f32 %v5252, %v5222
      %v5254 = vadd.f32 %v5253, %v5223
      %v5255 = vadd.f32 %v5254, %v5224
      %v5256 = vadd.f32 %v5255, %v5225
      %v5257 = vrot.slane %v5256, 4
      %v5258 = vadd.f32 %v5256, %v5257
      %v5259 = vrot.slane %v5258, 2
      %v5260 = vadd.f32 %v5258, %v5259
      %v5261 = vrot.slane %v5260, 1
      %v5262 = vadd.f32 %v5260, %v5261
      %5263 = vst [vmem:[%s235 + $0x1] sm:$0x1] %v5262
      %p5264 = scmp.lt.s32.totalorder %s17, 1
      %s5265 = scalar_select %p5264, %s17, 1
      %s5266 = smul.addr %s5265, 32
      %s5267 = smul.addr %s5266, 4
      %s5268 = scalar_lea.vmem %s4, %s5267
      %p5269 = scmp.lt.s32.totalorder %s17, 1
      %s5270 = scalar_select %p5269, %s17, 1
      %s5271 = smul.addr %s5270, 2
      %s5272 = scalar_lea.vmem %s5, %s5271
      // Predicated region
      $region37: #{encoder_block.4} parent=35 // pred_check
        %p5273 = pneg %p124
      $region38: #{encoder_block.4} parent=35 // pred_check_branch
        %5275 = sbr.rel (%p5273) target = $region40
      $region39: #{encoder_block.4} parent=35 // pred_region
        _
      $region40: #{encoder_block.4} parent=35 // pred_fallthru
        _
      // Predicated region
      $region41: #{encoder_block.4} parent=35 // pred_check
        %p5276 = pneg %p150
      $region42: #{encoder_block.4} parent=35 // pred_check_branch
        %5278 = sbr.rel (%p5276) target = $region44
      $region43: #{encoder_block.4} parent=35 // pred_region
        _
      $region44: #{encoder_block.4} parent=35 // pred_fallthru
        _
    $region36: #{encoder_block.4} parent=5 // pred_fallthru
      _
    %p5279 = scmp.le.s32.totalorder 2, %s12
    // Predicated region
    $region45: #{encoder_block.4} parent=5 // pred_check
      %p5280 = pneg %p5279
    $region46: #{encoder_block.4} parent=5 // pred_check_branch
      %5282 = sbr.rel (%p5280) target = $region48
    $region47: #{encoder_block.4} parent=5 // pred_region
      %s5283 = ssub.s32 %s12, 2
      // Predicated region
      $region49: #{encoder_block.4} parent=47 // pred_check
        %p5284 = pneg %p130
      $region50: #{encoder_block.4} parent=47 // pred_check_branch
        %5286 = sbr.rel (%p5284) target = $region52
      $region51: #{encoder_block.4} parent=47 // pred_region
        %p5287 = scmp.lt.s32.totalorder %s18, 1
        %s5288 = scalar_select %p5287, %s18, 1
        %s5289 = smul.addr %s5288, 32
        %s5290 = smul.addr %s5289, 4
        %s5291 = scalar_lea.vmem %s4, %s5290
      $region52: #{encoder_block.4} parent=47 // pred_fallthru
        _
      // Predicated region
      $region53: #{encoder_block.4} parent=47 // pred_check
        %p5292 = pneg %p156
      $region54: #{encoder_block.4} parent=47 // pred_check_branch
        %5294 = sbr.rel (%p5292) target = $region56
      $region55: #{encoder_block.4} parent=47 // pred_region
        %p5295 = scmp.lt.s32.totalorder %s18, 1
        %s5296 = scalar_select %p5295, %s18, 1
        %s5297 = smul.addr %s5296, 2
        %s5298 = scalar_lea.vmem %s5, %s5297
      $region56: #{encoder_block.4} parent=47 // pred_fallthru
        _
    $region48: #{encoder_block.4} parent=5 // pred_fallthru
      _
  $region6: #{encoder_block.4} parent=0 // loop_footer
    %s16 = sadd.s32 1, %s12
  $region7: #{encoder_block.4} parent=0 // loop_footer_branch
    %11 = sbr.rel target = $region3
  $region8: #{encoder_block.4} parent=0 // loop_exit
    _

</llo_original>
